<compile_context>
chip_gen: v7x
topology: tpu7x:2x2x1
jax: 0.10.0
libtpu: 0.0.40
codegen_flags: <defaults>
</compile_context>

<pallas_src>
import functools
import math

import jax
import jax.numpy as jnp
from jax import lax
from jax.experimental import pallas as pl
from jax.experimental.pallas import tpu as pltpu

# topomodelx SAN defaults (SANModel only overrides in/hidden/n_layers)
N_FILTERS = 2
ORDER_HARMONIC = 5
EPS_HARMONIC = 0.1

LANE = 128
SUB = 8


def _round_up(x, m):
    return (x + m - 1) // m * m


def _full_spec(shape):
    """BlockSpec covering the whole (already padded) array, grid=(1,)."""
    nd = len(shape)
    return pl.BlockSpec(shape, lambda i, _n=nd: (0,) * _n)


# ----------------------------------------------------------------------------
# The single fused forward kernel
# ----------------------------------------------------------------------------
def _san_forward_kernel(*refs, n_layers, n_filters, n_valid, order, eps):
    # refs layout:
    #   [x, L_up, L_down,
    #    (w_up, w_dn, w_har, a_eff) * n_layers,
    #    lin_w, lin_b, out]
    x_ref, lu_ref, ld_ref = refs[0], refs[1], refs[2]
    layer_refs = refs[3:3 + 4 * n_layers]
    lin_w_ref = refs[3 + 4 * n_layers]
    lin_b_ref = refs[4 + 4 * n_layers]
    o_ref = refs[5 + 4 * n_layers]

    npad = lu_ref.shape[0]
    lane = layer_refs[3].shape[1]          # lane width of a_eff (= LANE)

    lu = lu_ref[...]                        # (NP, NP) f32
    ld = ld_ref[...]

    # ---- harmonic projection  P = (I - eps*(L_up + L_down))^(2^order), once ----
    r = lax.broadcasted_iota(jnp.int32, (npad, npad), 0)
    c = lax.broadcasted_iota(jnp.int32, (npad, npad), 1)
    eye = jnp.where((r == c) & (r < n_valid), 1.0, 0.0).astype(jnp.float32)
    proj = eye - eps * (lu + ld)
    for _ in range(order):                  # repeated squaring, f32 MXU, stays in VMEM
        proj = jnp.dot(proj, proj, preferred_element_type=jnp.float32)

    # ---- selector matrices for attention-logit broadcast (hoisted out of layer loop) ----
    # e_all = x @ a_eff packs logit columns [up_tgt, up_src, dn_tgt, dn_src] in lanes.
    #   target term:  et[i,j] = e_all[i,k]  ->  e_all @ T_k          (NN matmul)
    #   source term:  es[i,j] = e_all[j,k]  ->  S_k @_NT e_all       (q@k^T-style matmul)
    sub_idx = lax.broadcasted_iota(jnp.int32, (lane, npad), 0)       # [k, j] = k
    lane_idx = lax.broadcasted_iota(jnp.int32, (npad, lane), 1)      # [i, k] = k
    t_sel_up = (sub_idx == 0).astype(jnp.float32)
    s_sel_up = (lane_idx == 1).astype(jnp.float32)
    t_sel_dn = (sub_idx == 2).astype(jnp.float32)
    s_sel_dn = (lane_idx == 3).astype(jnp.float32)
    nt_dims = (((1,), (1,)), ((), ()))      # contract both last dims: A @ B^T

    x = x_ref[...]                          # (NP, C) f32
    for l in range(n_layers):
        w_up_ref, w_dn_ref, w_har_ref, a_eff_ref = layer_refs[4 * l:4 * l + 4]
        xb = x.astype(jnp.bfloat16)         # bf16 operands for the MXU x@W matmuls

        # attention logits for both directions, packed in lanes (NP, LANE) f32
        e_all = jnp.dot(x, a_eff_ref[...], preferred_element_type=jnp.float32)

        def conv(lap, w_ref, t_sel, s_sel):
            # messages m_p = x @ W_p  (bf16 MXU, f32 accumulate)
            msgs = [jnp.dot(xb, w_ref[p], preferred_element_type=jnp.float32)
                    for p in range(n_filters)]                      # each (NP, Hp)

            # e[i,j] = leaky_relu( h_i.a_tgt + h_j.a_src ) via selector matmuls
            et = jnp.dot(e_all, t_sel, preferred_element_type=jnp.float32)        # (NP, NP)
            es = lax.dot_general(s_sel, e_all, nt_dims,
                                 preferred_element_type=jnp.float32)              # (NP, NP)
            e = et + es
            e = jnp.where(e > 0.0, e, 0.2 * e)                      # LeakyReLU(0.2)

            # masked row-softmax on support(lap)
            mask = lap != 0.0
            maskf = mask.astype(jnp.float32)
            neg = jnp.where(mask, e, -1e30)
            m = jnp.max(neg, axis=-1, keepdims=True)
            p_ = jnp.exp(neg - m) * maskf
            denom = jnp.sum(p_, axis=-1, keepdims=True)
            inv = pl.reciprocal(jnp.maximum(denom, 1e-30), approx=True)    # EUP slot
            att = p_ * inv                                           # empty rows -> all zero
            a = att * lap                                            # attention-weighted Laplacian

            # Horner:  sum_p A^(p+1) m_p = A @ (m_0 + A @ (m_1 + ...))
            acc = msgs[n_filters - 1]
            for q in range(n_filters - 2, -1, -1):
                acc = msgs[q] + jnp.dot(a, acc, preferred_element_type=jnp.float32)
            return jnp.dot(a, acc, preferred_element_type=jnp.float32)

        z_up = conv(lu, w_up_ref, t_sel_up, s_sel_up)
        z_dn = conv(ld, w_dn_ref, t_sel_dn, s_sel_dn)

        xh = jnp.dot(xb, w_har_ref[...], preferred_element_type=jnp.float32)      # (NP, Hp)
        z_har = jnp.dot(proj, xh, preferred_element_type=jnp.float32)

        x = z_up + z_dn + z_har

    # ---- fused readout: sigmoid(x @ W_lin^T + b), lane-dense store ----
    logits = jnp.dot(x, lin_w_ref[...], preferred_element_type=jnp.float32) + lin_b_ref[...]
    o_ref[...] = jax.nn.sigmoid(logits)


# ----------------------------------------------------------------------------
# Parameter preprocessing (padding / bf16 cast / effective attention vectors)
# ----------------------------------------------------------------------------
def _prep_layer(lp, c_pad, hpad):
    """Pad one layer's weights; cast MXU weights to bf16; build a_eff (W_cat @ a)."""
    c_in, n_filters, hidden = lp["w_up"].shape
    fh = n_filters * hidden

    def pad_w3(w):                               # (c_in, F, H) -> (F, c_pad, hpad) bf16
        wt = jnp.transpose(w, (1, 0, 2))
        return jnp.zeros((n_filters, c_pad, hpad), jnp.bfloat16).at[
            :, :c_in, :hidden].set(wt.astype(jnp.bfloat16))

    w_har = jnp.zeros((c_pad, hpad), jnp.bfloat16).at[:c_in, :hidden].set(
        lp["w_har"].astype(jnp.bfloat16))

    def a_eff_cols(w, a):                        # h @ a == x @ (W_cat @ a)
        wc = w.reshape(c_in, fh)
        return wc @ a[:fh, 0], wc @ a[fh:, 0]    # (c_in,), (c_in,)

    ut, us = a_eff_cols(lp["w_up"], lp["a_up"])
    dt, ds = a_eff_cols(lp["w_down"], lp["a_down"])
    a_eff = jnp.zeros((c_pad, LANE), jnp.float32)
    a_eff = a_eff.at[:c_in, 0].set(ut).at[:c_in, 1].set(us)
    a_eff = a_eff.at[:c_in, 2].set(dt).at[:c_in, 3].set(ds)

    return pad_w3(lp["w_up"]), pad_w3(lp["w_down"]), w_har, a_eff


# ----------------------------------------------------------------------------
# Full SANModel forward (one pallas_call)
# ----------------------------------------------------------------------------
def san_model_forward(params, x1, lap_up, lap_down):
    n, c_in = x1.shape
    hidden = params["layers"][0]["w_up"].shape[2]
    out_ch = params["lin_w"].shape[0]
    n_layers = len(params["layers"])

    npad = _round_up(n, LANE)
    cpad0 = _round_up(c_in, SUB)
    hpad = _round_up(hidden, LANE)               # lane-dense intermediates
    outp = _round_up(out_ch, LANE)               # lane-dense final store

    x_p = jnp.zeros((npad, cpad0), jnp.float32).at[:n, :c_in].set(x1.astype(jnp.float32))
    lu_p = jnp.zeros((npad, npad), jnp.float32).at[:n, :n].set(lap_up.astype(jnp.float32))
    ld_p = jnp.zeros((npad, npad), jnp.float32).at[:n, :n].set(lap_down.astype(jnp.float32))

    layer_args = []
    for l, lp in enumerate(params["layers"]):
        c_l = cpad0 if l == 0 else hpad
        layer_args.extend(_prep_layer(lp, c_l, hpad))

    lin_w_p = jnp.zeros((hpad, outp), jnp.float32).at[:hidden, :out_ch].set(
        params["lin_w"].T.astype(jnp.float32))
    lin_b_p = jnp.zeros((1, outp), jnp.float32).at[0, :out_ch].set(
        params["lin_b"].astype(jnp.float32))

    inputs = [x_p, lu_p, ld_p, *layer_args, lin_w_p, lin_b_p]
    in_specs = [_full_spec(a.shape) for a in inputs]

    out = pl.pallas_call(
        functools.partial(_san_forward_kernel,
                          n_layers=n_layers, n_filters=N_FILTERS, n_valid=n,
                          order=ORDER_HARMONIC, eps=EPS_HARMONIC),
        out_shape=jax.ShapeDtypeStruct((npad, outp), jnp.float32),
        grid_spec=pltpu.PrefetchScalarGridSpec(
            num_scalar_prefetch=0,
            grid=(1,),
            in_specs=in_specs,
            out_specs=_full_spec((npad, outp)),
        ),
        compiler_params=pltpu.CompilerParams(dimension_semantics=("arbitrary",)),
    )(*inputs)

    return out[:n, :out_ch]


# ----------------------------------------------------------------------------
# Deterministic parameter init (xavier-uniform-like)
# ----------------------------------------------------------------------------
def init_params(key, in_ch, hidden, out_ch, n_layers, n_filters):
    def xavier(k, shape, gain=1.414):
        fan_in = math.prod(shape[:-1])
        fan_out = shape[-1]
        bound = gain * math.sqrt(6.0 / (fan_in + fan_out))
        return jax.random.uniform(k, shape, jnp.float32, -bound, bound)

    layers = []
    for l in range(n_layers):
        c_in = in_ch if l == 0 else hidden
        key, k1, k2, k3, k4, k5 = jax.random.split(key, 6)
        layers.append({
            "w_up": xavier(k1, (c_in, n_filters, hidden)),
            "a_up": xavier(k2, (2 * n_filters * hidden, 1)),
            "w_down": xavier(k3, (c_in, n_filters, hidden)),
            "a_down": xavier(k4, (2 * n_filters * hidden, 1)),
            "w_har": xavier(k5, (c_in, hidden)),
        })
    key, kw, kb = jax.random.split(key, 3)
    return {
        "layers": layers,
        "lin_w": xavier(kw, (out_ch, hidden)),
        "lin_b": jax.random.uniform(kb, (out_ch,), jnp.float32, -0.1, 0.1),
    }


# ----------------------------------------------------------------------------
if __name__ == "__main__":
    E = 16          # number of 1-simplices (edges)
    C_IN = 4        # dataset_config["num_features"]
    HIDDEN = 32     # model_config["hidden_channels"]
    N_CLASSES = 3   # dataset_config["num_classes"]
    N_LAYERS = 2    # model_config["n_layers"]

    key = jax.random.PRNGKey(0)
    kx, ku, kd, kp = jax.random.split(key, 4)

    x1 = jax.random.normal(kx, (E, C_IN), dtype=jnp.float32)

    def rand_laplacian(k):
        k1, k2 = jax.random.split(k)
        vals = jax.random.normal(k1, (E, E), dtype=jnp.float32)
        mask = jax.random.bernoulli(k2, 0.3, (E, E))
        m = jnp.where(mask, vals, 0.0)
        m = 0.5 * (m + m.T)                       # symmetric, sparse-ish
        return m + 2.0 * jnp.eye(E, dtype=jnp.float32)

    lap_up = rand_laplacian(ku)       # data.up_laplacian_1   (dense stand-in)
    lap_down = rand_laplacian(kd)     # data.down_laplacian_1 (dense stand-in)

    params = init_params(kp, C_IN, HIDDEN, N_CLASSES, N_LAYERS, N_FILTERS)

    out = jax.jit(san_model_forward)(params, x1, lap_up, lap_down)
    out = jax.block_until_ready(out)

    assert out.shape == (E, N_CLASSES), out.shape
    assert bool(jnp.all(jnp.isfinite(out)))
    assert bool(jnp.all((out >= 0.0) & (out <= 1.0)))   # sigmoid output
    print("KERNEL_OK")
</pallas_src>

<mosaic_0001>
module attributes {stable_mosaic.version = 11 : i64} {
  func.func @_san_forward_kernel(%arg0: i32, %arg1: memref<128x8xf32, #tpu.memory_space<vmem>>, %arg2: memref<128x128xf32, #tpu.memory_space<vmem>>, %arg3: memref<128x128xf32, #tpu.memory_space<vmem>>, %arg4: memref<2x8x128xbf16, #tpu.memory_space<vmem>>, %arg5: memref<2x8x128xbf16, #tpu.memory_space<vmem>>, %arg6: memref<8x128xbf16, #tpu.memory_space<vmem>>, %arg7: memref<8x128xf32, #tpu.memory_space<vmem>>, %arg8: memref<2x128x128xbf16, #tpu.memory_space<vmem>>, %arg9: memref<2x128x128xbf16, #tpu.memory_space<vmem>>, %arg10: memref<128x128xbf16, #tpu.memory_space<vmem>>, %arg11: memref<128x128xf32, #tpu.memory_space<vmem>>, %arg12: memref<128x128xf32, #tpu.memory_space<vmem>>, %arg13: memref<1x128xf32, #tpu.memory_space<vmem>>, %arg14: memref<128x128xf32, #tpu.memory_space<vmem>>) attributes {dimension_semantics = [#tpu.dimension_semantics<arbitrary>], iteration_bounds = array<i64: 1>, scalar_prefetch = 0 : i64, scratch_operands = 0 : i64, tpu.core_type = #tpu.core_type<tc>, window_params = [{pipeline_mode = #tpu.pipeline_mode<synchronous>, transform_indices = @transform_0, window_bounds = array<i64: 128, 8>}, {pipeline_mode = #tpu.pipeline_mode<synchronous>, transform_indices = @transform_1, window_bounds = array<i64: 128, 128>}, {pipeline_mode = #tpu.pipeline_mode<synchronous>, transform_indices = @transform_2, window_bounds = array<i64: 128, 128>}, {pipeline_mode = #tpu.pipeline_mode<synchronous>, transform_indices = @transform_3, window_bounds = array<i64: 2, 8, 128>}, {pipeline_mode = #tpu.pipeline_mode<synchronous>, transform_indices = @transform_4, window_bounds = array<i64: 2, 8, 128>}, {pipeline_mode = #tpu.pipeline_mode<synchronous>, transform_indices = @transform_5, window_bounds = array<i64: 8, 128>}, {pipeline_mode = #tpu.pipeline_mode<synchronous>, transform_indices = @transform_6, window_bounds = array<i64: 8, 128>}, {pipeline_mode = #tpu.pipeline_mode<synchronous>, transform_indices = @transform_7, window_bounds = array<i64: 2, 128, 128>}, {pipeline_mode = #tpu.pipeline_mode<synchronous>, transform_indices = @transform_8, window_bounds = array<i64: 2, 128, 128>}, {pipeline_mode = #tpu.pipeline_mode<synchronous>, transform_indices = @transform_9, window_bounds = array<i64: 128, 128>}, {pipeline_mode = #tpu.pipeline_mode<synchronous>, transform_indices = @transform_10, window_bounds = array<i64: 128, 128>}, {pipeline_mode = #tpu.pipeline_mode<synchronous>, transform_indices = @transform_11, window_bounds = array<i64: 128, 128>}, {pipeline_mode = #tpu.pipeline_mode<synchronous>, transform_indices = @transform_12, window_bounds = array<i64: 1, 128>}, {pipeline_mode = #tpu.pipeline_mode<synchronous>, transform_indices = @transform_13, window_bounds = array<i64: 128, 128>}]} {
    %c0 = arith.constant 0 : index
    %c0_0 = arith.constant 0 : index
    %0 = vector.load %arg2[%c0, %c0_0] : memref<128x128xf32, #tpu.memory_space<vmem>>, vector<128x128xf32>
    %c0_1 = arith.constant 0 : index
    %c0_2 = arith.constant 0 : index
    %1 = vector.load %arg3[%c0_1, %c0_2] : memref<128x128xf32, #tpu.memory_space<vmem>>, vector<128x128xf32>
    %2 = tpu.iota {dimensions = array<i32: 0>} : vector<128x128xi32>
    %3 = tpu.iota {dimensions = array<i32: 1>} : vector<128x128xi32>
    %4 = arith.cmpi eq, %2, %3 : vector<128x128xi32>
    %c16_i32 = arith.constant 16 : i32
    %5 = vector.broadcast %c16_i32 : i32 to vector<128x128xi32>
    %6 = arith.cmpi slt, %2, %5 : vector<128x128xi32>
    %7 = arith.andi %4, %6 : vector<128x128xi1>
    %cst = arith.constant 1.000000e+00 : f32
    %cst_3 = arith.constant 0.000000e+00 : f32
    %8 = vector.broadcast %cst : f32 to vector<128x128xf32>
    %9 = vector.broadcast %cst_3 : f32 to vector<128x128xf32>
    %10 = arith.select %7, %8, %9 : vector<128x128xi1>, vector<128x128xf32>
    %11 = arith.addf %0, %1 : vector<128x128xf32>
    %cst_4 = arith.constant 1.000000e-01 : f32
    %12 = vector.broadcast %cst_4 : f32 to vector<128x128xf32>
    %13 = arith.mulf %12, %11 : vector<128x128xf32>
    %14 = arith.subf %10, %13 : vector<128x128xf32>
    %cst_5 = arith.constant dense<0.000000e+00> : vector<128x128xf32>
    %15 = tpu.matmul %14, %14, %cst_5 {dimension_numbers = #tpu.dot_dimension_numbers<[1], [0], [0], [1], [0, 0, 1, 1], [], []>} : vector<128x128xf32>, vector<128x128xf32>, vector<128x128xf32> -> vector<128x128xf32>
    %cst_6 = arith.constant dense<0.000000e+00> : vector<128x128xf32>
    %16 = tpu.matmul %15, %15, %cst_6 {dimension_numbers = #tpu.dot_dimension_numbers<[1], [0], [0], [1], [0, 0, 1, 1], [], []>} : vector<128x128xf32>, vector<128x128xf32>, vector<128x128xf32> -> vector<128x128xf32>
    %cst_7 = arith.constant dense<0.000000e+00> : vector<128x128xf32>
    %17 = tpu.matmul %16, %16, %cst_7 {dimension_numbers = #tpu.dot_dimension_numbers<[1], [0], [0], [1], [0, 0, 1, 1], [], []>} : vector<128x128xf32>, vector<128x128xf32>, vector<128x128xf32> -> vector<128x128xf32>
    %cst_8 = arith.constant dense<0.000000e+00> : vector<128x128xf32>
    %18 = tpu.matmul %17, %17, %cst_8 {dimension_numbers = #tpu.dot_dimension_numbers<[1], [0], [0], [1], [0, 0, 1, 1], [], []>} : vector<128x128xf32>, vector<128x128xf32>, vector<128x128xf32> -> vector<128x128xf32>
    %cst_9 = arith.constant dense<0.000000e+00> : vector<128x128xf32>
    %19 = tpu.matmul %18, %18, %cst_9 {dimension_numbers = #tpu.dot_dimension_numbers<[1], [0], [0], [1], [0, 0, 1, 1], [], []>} : vector<128x128xf32>, vector<128x128xf32>, vector<128x128xf32> -> vector<128x128xf32>
    %20 = tpu.iota {dimensions = array<i32: 0>} : vector<128x128xi32>
    %21 = tpu.iota {dimensions = array<i32: 1>} : vector<128x128xi32>
    %c0_i32 = arith.constant 0 : i32
    %22 = vector.broadcast %c0_i32 : i32 to vector<128x128xi32>
    %23 = arith.cmpi eq, %20, %22 : vector<128x128xi32>
    %24 = arith.extui %23 : vector<128x128xi1> to vector<128x128xi32>
    %25 = arith.sitofp %24 : vector<128x128xi32> to vector<128x128xf32>
    %c1_i32 = arith.constant 1 : i32
    %26 = vector.broadcast %c1_i32 : i32 to vector<128x128xi32>
    %27 = arith.cmpi eq, %21, %26 : vector<128x128xi32>
    %28 = arith.extui %27 : vector<128x128xi1> to vector<128x128xi32>
    %29 = arith.sitofp %28 : vector<128x128xi32> to vector<128x128xf32>
    %c2_i32 = arith.constant 2 : i32
    %30 = vector.broadcast %c2_i32 : i32 to vector<128x128xi32>
    %31 = arith.cmpi eq, %20, %30 : vector<128x128xi32>
    %32 = arith.extui %31 : vector<128x128xi1> to vector<128x128xi32>
    %33 = arith.sitofp %32 : vector<128x128xi32> to vector<128x128xf32>
    %c3_i32 = arith.constant 3 : i32
    %34 = vector.broadcast %c3_i32 : i32 to vector<128x128xi32>
    %35 = arith.cmpi eq, %21, %34 : vector<128x128xi32>
    %36 = arith.extui %35 : vector<128x128xi1> to vector<128x128xi32>
    %37 = arith.sitofp %36 : vector<128x128xi32> to vector<128x128xf32>
    %c0_10 = arith.constant 0 : index
    %c0_11 = arith.constant 0 : index
    %38 = vector.load %arg1[%c0_10, %c0_11] : memref<128x8xf32, #tpu.memory_space<vmem>>, vector<128x8xf32>
    %39 = arith.truncf %38 : vector<128x8xf32> to vector<128x8xbf16>
    %c0_12 = arith.constant 0 : index
    %c0_13 = arith.constant 0 : index
    %40 = vector.load %arg7[%c0_12, %c0_13] : memref<8x128xf32, #tpu.memory_space<vmem>>, vector<8x128xf32>
    %cst_14 = arith.constant dense<0.000000e+00> : vector<128x128xf32>
    %41 = tpu.matmul %38, %40, %cst_14 {dimension_numbers = #tpu.dot_dimension_numbers<[1], [0], [0], [1], [0, 0, 1, 1], [], []>} : vector<128x8xf32>, vector<8x128xf32>, vector<128x128xf32> -> vector<128x128xf32>
    %c0_15 = arith.constant 0 : index
    %c0_16 = arith.constant 0 : index
    %c0_17 = arith.constant 0 : index
    %42 = vector.load %arg4[%c0_15, %c0_16, %c0_17] : memref<2x8x128xbf16, #tpu.memory_space<vmem>>, vector<1x8x128xbf16>
    %43 = vector.shape_cast %42 : vector<1x8x128xbf16> to vector<8x128xbf16>
    %cst_18 = arith.constant dense<0.000000e+00> : vector<128x128xf32>
    %44 = tpu.matmul %39, %43, %cst_18 {dimension_numbers = #tpu.dot_dimension_numbers<[1], [0], [0], [1], [0, 0, 1, 1], [], []>} : vector<128x8xbf16>, vector<8x128xbf16>, vector<128x128xf32> -> vector<128x128xf32>
    %c1 = arith.constant 1 : index
    %c0_19 = arith.constant 0 : index
    %c0_20 = arith.constant 0 : index
    %45 = vector.load %arg4[%c1, %c0_19, %c0_20] : memref<2x8x128xbf16, #tpu.memory_space<vmem>>, vector<1x8x128xbf16>
    %46 = vector.shape_cast %45 : vector<1x8x128xbf16> to vector<8x128xbf16>
    %cst_21 = arith.constant dense<0.000000e+00> : vector<128x128xf32>
    %47 = tpu.matmul %39, %46, %cst_21 {dimension_numbers = #tpu.dot_dimension_numbers<[1], [0], [0], [1], [0, 0, 1, 1], [], []>} : vector<128x8xbf16>, vector<8x128xbf16>, vector<128x128xf32> -> vector<128x128xf32>
    %cst_22 = arith.constant dense<0.000000e+00> : vector<128x128xf32>
    %48 = tpu.matmul %41, %25, %cst_22 {dimension_numbers = #tpu.dot_dimension_numbers<[1], [0], [0], [1], [0, 0, 1, 1], [], []>} : vector<128x128xf32>, vector<128x128xf32>, vector<128x128xf32> -> vector<128x128xf32>
    %cst_23 = arith.constant dense<0.000000e+00> : vector<128x128xf32>
    %49 = tpu.matmul %29, %41, %cst_23 {dimension_numbers = #tpu.dot_dimension_numbers<[1], [1], [0], [0], [0, 0, 1, 0], [], []>} : vector<128x128xf32>, vector<128x128xf32>, vector<128x128xf32> -> vector<128x128xf32>
    %50 = arith.addf %48, %49 : vector<128x128xf32>
    %cst_24 = arith.constant 0.000000e+00 : f32
    %51 = vector.broadcast %cst_24 : f32 to vector<128x128xf32>
    %52 = arith.cmpf ogt, %50, %51 : vector<128x128xf32>
    %cst_25 = arith.constant 2.000000e-01 : f32
    %53 = vector.broadcast %cst_25 : f32 to vector<128x128xf32>
    %54 = arith.mulf %53, %50 : vector<128x128xf32>
    %55 = arith.select %52, %50, %54 : vector<128x128xi1>, vector<128x128xf32>
    %cst_26 = arith.constant 0.000000e+00 : f32
    %56 = vector.broadcast %cst_26 : f32 to vector<128x128xf32>
    %57 = arith.cmpf one, %0, %56 : vector<128x128xf32>
    %58 = arith.extui %57 : vector<128x128xi1> to vector<128x128xi32>
    %59 = arith.sitofp %58 : vector<128x128xi32> to vector<128x128xf32>
    %cst_27 = arith.constant -1.000000e+30 : f32
    %60 = vector.broadcast %cst_27 : f32 to vector<128x128xf32>
    %61 = arith.select %57, %55, %60 : vector<128x128xi1>, vector<128x128xf32>
    %cst_28 = arith.constant dense<0xFF800000> : vector<128xf32>
    %62 = vector.multi_reduction <maximumf>, %61, %cst_28 [1] : vector<128x128xf32> to vector<128xf32>
    %63 = vector.shape_cast %62 : vector<128xf32> to vector<128x1xf32>
    %64 = vector.broadcast %63 : vector<128x1xf32> to vector<128x128xf32>
    %65 = arith.subf %61, %64 : vector<128x128xf32>
    %66 = math.exp %65 : vector<128x128xf32>
    %67 = arith.mulf %66, %59 : vector<128x128xf32>
    %cst_29 = arith.constant dense<0.000000e+00> : vector<128xf32>
    %68 = vector.multi_reduction <add>, %67, %cst_29 [1] : vector<128x128xf32> to vector<128xf32>
    %69 = vector.shape_cast %68 : vector<128xf32> to vector<128x1xf32>
    %cst_30 = arith.constant 1.000000e-30 : f32
    %70 = vector.broadcast %cst_30 : f32 to vector<128x1xf32>
    %71 = arith.maximumf %69, %70 : vector<128x1xf32>
    %72 = tpu.reciprocal %71 {approx = true} : vector<128x1xf32> -> vector<128x1xf32>
    %73 = vector.broadcast %72 : vector<128x1xf32> to vector<128x128xf32>
    %74 = arith.mulf %67, %73 : vector<128x128xf32>
    %75 = arith.mulf %74, %0 : vector<128x128xf32>
    %cst_31 = arith.constant dense<0.000000e+00> : vector<128x128xf32>
    %76 = tpu.matmul %75, %47, %cst_31 {dimension_numbers = #tpu.dot_dimension_numbers<[1], [0], [0], [1], [0, 0, 1, 1], [], []>} : vector<128x128xf32>, vector<128x128xf32>, vector<128x128xf32> -> vector<128x128xf32>
    %77 = arith.addf %44, %76 : vector<128x128xf32>
    %cst_32 = arith.constant dense<0.000000e+00> : vector<128x128xf32>
    %78 = tpu.matmul %75, %77, %cst_32 {dimension_numbers = #tpu.dot_dimension_numbers<[1], [0], [0], [1], [0, 0, 1, 1], [], []>} : vector<128x128xf32>, vector<128x128xf32>, vector<128x128xf32> -> vector<128x128xf32>
    %c0_33 = arith.constant 0 : index
    %c0_34 = arith.constant 0 : index
    %c0_35 = arith.constant 0 : index
    %79 = vector.load %arg5[%c0_33, %c0_34, %c0_35] : memref<2x8x128xbf16, #tpu.memory_space<vmem>>, vector<1x8x128xbf16>
    %80 = vector.shape_cast %79 : vector<1x8x128xbf16> to vector<8x128xbf16>
    %cst_36 = arith.constant dense<0.000000e+00> : vector<128x128xf32>
    %81 = tpu.matmul %39, %80, %cst_36 {dimension_numbers = #tpu.dot_dimension_numbers<[1], [0], [0], [1], [0, 0, 1, 1], [], []>} : vector<128x8xbf16>, vector<8x128xbf16>, vector<128x128xf32> -> vector<128x128xf32>
    %c1_37 = arith.constant 1 : index
    %c0_38 = arith.constant 0 : index
    %c0_39 = arith.constant 0 : index
    %82 = vector.load %arg5[%c1_37, %c0_38, %c0_39] : memref<2x8x128xbf16, #tpu.memory_space<vmem>>, vector<1x8x128xbf16>
    %83 = vector.shape_cast %82 : vector<1x8x128xbf16> to vector<8x128xbf16>
    %cst_40 = arith.constant dense<0.000000e+00> : vector<128x128xf32>
    %84 = tpu.matmul %39, %83, %cst_40 {dimension_numbers = #tpu.dot_dimension_numbers<[1], [0], [0], [1], [0, 0, 1, 1], [], []>} : vector<128x8xbf16>, vector<8x128xbf16>, vector<128x128xf32> -> vector<128x128xf32>
    %cst_41 = arith.constant dense<0.000000e+00> : vector<128x128xf32>
    %85 = tpu.matmul %41, %33, %cst_41 {dimension_numbers = #tpu.dot_dimension_numbers<[1], [0], [0], [1], [0, 0, 1, 1], [], []>} : vector<128x128xf32>, vector<128x128xf32>, vector<128x128xf32> -> vector<128x128xf32>
    %cst_42 = arith.constant dense<0.000000e+00> : vector<128x128xf32>
    %86 = tpu.matmul %37, %41, %cst_42 {dimension_numbers = #tpu.dot_dimension_numbers<[1], [1], [0], [0], [0, 0, 1, 0], [], []>} : vector<128x128xf32>, vector<128x128xf32>, vector<128x128xf32> -> vector<128x128xf32>
    %87 = arith.addf %85, %86 : vector<128x128xf32>
    %cst_43 = arith.constant 0.000000e+00 : f32
    %88 = vector.broadcast %cst_43 : f32 to vector<128x128xf32>
    %89 = arith.cmpf ogt, %87, %88 : vector<128x128xf32>
    %cst_44 = arith.constant 2.000000e-01 : f32
    %90 = vector.broadcast %cst_44 : f32 to vector<128x128xf32>
    %91 = arith.mulf %90, %87 : vector<128x128xf32>
    %92 = arith.select %89, %87, %91 : vector<128x128xi1>, vector<128x128xf32>
    %cst_45 = arith.constant 0.000000e+00 : f32
    %93 = vector.broadcast %cst_45 : f32 to vector<128x128xf32>
    %94 = arith.cmpf one, %1, %93 : vector<128x128xf32>
    %95 = arith.extui %94 : vector<128x128xi1> to vector<128x128xi32>
    %96 = arith.sitofp %95 : vector<128x128xi32> to vector<128x128xf32>
    %cst_46 = arith.constant -1.000000e+30 : f32
    %97 = vector.broadcast %cst_46 : f32 to vector<128x128xf32>
    %98 = arith.select %94, %92, %97 : vector<128x128xi1>, vector<128x128xf32>
    %cst_47 = arith.constant dense<0xFF800000> : vector<128xf32>
    %99 = vector.multi_reduction <maximumf>, %98, %cst_47 [1] : vector<128x128xf32> to vector<128xf32>
    %100 = vector.shape_cast %99 : vector<128xf32> to vector<128x1xf32>
    %101 = vector.broadcast %100 : vector<128x1xf32> to vector<128x128xf32>
    %102 = arith.subf %98, %101 : vector<128x128xf32>
    %103 = math.exp %102 : vector<128x128xf32>
    %104 = arith.mulf %103, %96 : vector<128x128xf32>
    %cst_48 = arith.constant dense<0.000000e+00> : vector<128xf32>
    %105 = vector.multi_reduction <add>, %104, %cst_48 [1] : vector<128x128xf32> to vector<128xf32>
    %106 = vector.shape_cast %105 : vector<128xf32> to vector<128x1xf32>
    %cst_49 = arith.constant 1.000000e-30 : f32
    %107 = vector.broadcast %cst_49 : f32 to vector<128x1xf32>
    %108 = arith.maximumf %106, %107 : vector<128x1xf32>
    %109 = tpu.reciprocal %108 {approx = true} : vector<128x1xf32> -> vector<128x1xf32>
    %110 = vector.broadcast %109 : vector<128x1xf32> to vector<128x128xf32>
    %111 = arith.mulf %104, %110 : vector<128x128xf32>
    %112 = arith.mulf %111, %1 : vector<128x128xf32>
    %cst_50 = arith.constant dense<0.000000e+00> : vector<128x128xf32>
    %113 = tpu.matmul %112, %84, %cst_50 {dimension_numbers = #tpu.dot_dimension_numbers<[1], [0], [0], [1], [0, 0, 1, 1], [], []>} : vector<128x128xf32>, vector<128x128xf32>, vector<128x128xf32> -> vector<128x128xf32>
    %114 = arith.addf %81, %113 : vector<128x128xf32>
    %cst_51 = arith.constant dense<0.000000e+00> : vector<128x128xf32>
    %115 = tpu.matmul %112, %114, %cst_51 {dimension_numbers = #tpu.dot_dimension_numbers<[1], [0], [0], [1], [0, 0, 1, 1], [], []>} : vector<128x128xf32>, vector<128x128xf32>, vector<128x128xf32> -> vector<128x128xf32>
    %c0_52 = arith.constant 0 : index
    %c0_53 = arith.constant 0 : index
    %116 = vector.load %arg6[%c0_52, %c0_53] : memref<8x128xbf16, #tpu.memory_space<vmem>>, vector<8x128xbf16>
    %cst_54 = arith.constant dense<0.000000e+00> : vector<128x128xf32>
    %117 = tpu.matmul %39, %116, %cst_54 {dimension_numbers = #tpu.dot_dimension_numbers<[1], [0], [0], [1], [0, 0, 1, 1], [], []>} : vector<128x8xbf16>, vector<8x128xbf16>, vector<128x128xf32> -> vector<128x128xf32>
    %cst_55 = arith.constant dense<0.000000e+00> : vector<128x128xf32>
    %118 = tpu.matmul %19, %117, %cst_55 {dimension_numbers = #tpu.dot_dimension_numbers<[1], [0], [0], [1], [0, 0, 1, 1], [], []>} : vector<128x128xf32>, vector<128x128xf32>, vector<128x128xf32> -> vector<128x128xf32>
    %119 = arith.addf %78, %115 : vector<128x128xf32>
    %120 = arith.addf %119, %118 : vector<128x128xf32>
    %121 = arith.truncf %120 : vector<128x128xf32> to vector<128x128xbf16>
    %c0_56 = arith.constant 0 : index
    %c0_57 = arith.constant 0 : index
    %122 = vector.load %arg11[%c0_56, %c0_57] : memref<128x128xf32, #tpu.memory_space<vmem>>, vector<128x128xf32>
    %cst_58 = arith.constant dense<0.000000e+00> : vector<128x128xf32>
    %123 = tpu.matmul %120, %122, %cst_58 {dimension_numbers = #tpu.dot_dimension_numbers<[1], [0], [0], [1], [0, 0, 1, 1], [], []>} : vector<128x128xf32>, vector<128x128xf32>, vector<128x128xf32> -> vector<128x128xf32>
    %c0_59 = arith.constant 0 : index
    %c0_60 = arith.constant 0 : index
    %c0_61 = arith.constant 0 : index
    %124 = vector.load %arg8[%c0_59, %c0_60, %c0_61] : memref<2x128x128xbf16, #tpu.memory_space<vmem>>, vector<1x128x128xbf16>
    %125 = vector.shape_cast %124 : vector<1x128x128xbf16> to vector<128x128xbf16>
    %cst_62 = arith.constant dense<0.000000e+00> : vector<128x128xf32>
    %126 = tpu.matmul %121, %125, %cst_62 {dimension_numbers = #tpu.dot_dimension_numbers<[1], [0], [0], [1], [0, 0, 1, 1], [], []>} : vector<128x128xbf16>, vector<128x128xbf16>, vector<128x128xf32> -> vector<128x128xf32>
    %c1_63 = arith.constant 1 : index
    %c0_64 = arith.constant 0 : index
    %c0_65 = arith.constant 0 : index
    %127 = vector.load %arg8[%c1_63, %c0_64, %c0_65] : memref<2x128x128xbf16, #tpu.memory_space<vmem>>, vector<1x128x128xbf16>
    %128 = vector.shape_cast %127 : vector<1x128x128xbf16> to vector<128x128xbf16>
    %cst_66 = arith.constant dense<0.000000e+00> : vector<128x128xf32>
    %129 = tpu.matmul %121, %128, %cst_66 {dimension_numbers = #tpu.dot_dimension_numbers<[1], [0], [0], [1], [0, 0, 1, 1], [], []>} : vector<128x128xbf16>, vector<128x128xbf16>, vector<128x128xf32> -> vector<128x128xf32>
    %cst_67 = arith.constant dense<0.000000e+00> : vector<128x128xf32>
    %130 = tpu.matmul %123, %25, %cst_67 {dimension_numbers = #tpu.dot_dimension_numbers<[1], [0], [0], [1], [0, 0, 1, 1], [], []>} : vector<128x128xf32>, vector<128x128xf32>, vector<128x128xf32> -> vector<128x128xf32>
    %cst_68 = arith.constant dense<0.000000e+00> : vector<128x128xf32>
    %131 = tpu.matmul %29, %123, %cst_68 {dimension_numbers = #tpu.dot_dimension_numbers<[1], [1], [0], [0], [0, 0, 1, 0], [], []>} : vector<128x128xf32>, vector<128x128xf32>, vector<128x128xf32> -> vector<128x128xf32>
    %132 = arith.addf %130, %131 : vector<128x128xf32>
    %cst_69 = arith.constant 0.000000e+00 : f32
    %133 = vector.broadcast %cst_69 : f32 to vector<128x128xf32>
    %134 = arith.cmpf ogt, %132, %133 : vector<128x128xf32>
    %cst_70 = arith.constant 2.000000e-01 : f32
    %135 = vector.broadcast %cst_70 : f32 to vector<128x128xf32>
    %136 = arith.mulf %135, %132 : vector<128x128xf32>
    %137 = arith.select %134, %132, %136 : vector<128x128xi1>, vector<128x128xf32>
    %cst_71 = arith.constant 0.000000e+00 : f32
    %138 = vector.broadcast %cst_71 : f32 to vector<128x128xf32>
    %139 = arith.cmpf one, %0, %138 : vector<128x128xf32>
    %140 = arith.extui %139 : vector<128x128xi1> to vector<128x128xi32>
    %141 = arith.sitofp %140 : vector<128x128xi32> to vector<128x128xf32>
    %cst_72 = arith.constant -1.000000e+30 : f32
    %142 = vector.broadcast %cst_72 : f32 to vector<128x128xf32>
    %143 = arith.select %139, %137, %142 : vector<128x128xi1>, vector<128x128xf32>
    %cst_73 = arith.constant dense<0xFF800000> : vector<128xf32>
    %144 = vector.multi_reduction <maximumf>, %143, %cst_73 [1] : vector<128x128xf32> to vector<128xf32>
    %145 = vector.shape_cast %144 : vector<128xf32> to vector<128x1xf32>
    %146 = vector.broadcast %145 : vector<128x1xf32> to vector<128x128xf32>
    %147 = arith.subf %143, %146 : vector<128x128xf32>
    %148 = math.exp %147 : vector<128x128xf32>
    %149 = arith.mulf %148, %141 : vector<128x128xf32>
    %cst_74 = arith.constant dense<0.000000e+00> : vector<128xf32>
    %150 = vector.multi_reduction <add>, %149, %cst_74 [1] : vector<128x128xf32> to vector<128xf32>
    %151 = vector.shape_cast %150 : vector<128xf32> to vector<128x1xf32>
    %cst_75 = arith.constant 1.000000e-30 : f32
    %152 = vector.broadcast %cst_75 : f32 to vector<128x1xf32>
    %153 = arith.maximumf %151, %152 : vector<128x1xf32>
    %154 = tpu.reciprocal %153 {approx = true} : vector<128x1xf32> -> vector<128x1xf32>
    %155 = vector.broadcast %154 : vector<128x1xf32> to vector<128x128xf32>
    %156 = arith.mulf %149, %155 : vector<128x128xf32>
    %157 = arith.mulf %156, %0 : vector<128x128xf32>
    %cst_76 = arith.constant dense<0.000000e+00> : vector<128x128xf32>
    %158 = tpu.matmul %157, %129, %cst_76 {dimension_numbers = #tpu.dot_dimension_numbers<[1], [0], [0], [1], [0, 0, 1, 1], [], []>} : vector<128x128xf32>, vector<128x128xf32>, vector<128x128xf32> -> vector<128x128xf32>
    %159 = arith.addf %126, %158 : vector<128x128xf32>
    %cst_77 = arith.constant dense<0.000000e+00> : vector<128x128xf32>
    %160 = tpu.matmul %157, %159, %cst_77 {dimension_numbers = #tpu.dot_dimension_numbers<[1], [0], [0], [1], [0, 0, 1, 1], [], []>} : vector<128x128xf32>, vector<128x128xf32>, vector<128x128xf32> -> vector<128x128xf32>
    %c0_78 = arith.constant 0 : index
    %c0_79 = arith.constant 0 : index
    %c0_80 = arith.constant 0 : index
    %161 = vector.load %arg9[%c0_78, %c0_79, %c0_80] : memref<2x128x128xbf16, #tpu.memory_space<vmem>>, vector<1x128x128xbf16>
    %162 = vector.shape_cast %161 : vector<1x128x128xbf16> to vector<128x128xbf16>
    %cst_81 = arith.constant dense<0.000000e+00> : vector<128x128xf32>
    %163 = tpu.matmul %121, %162, %cst_81 {dimension_numbers = #tpu.dot_dimension_numbers<[1], [0], [0], [1], [0, 0, 1, 1], [], []>} : vector<128x128xbf16>, vector<128x128xbf16>, vector<128x128xf32> -> vector<128x128xf32>
    %c1_82 = arith.constant 1 : index
    %c0_83 = arith.constant 0 : index
    %c0_84 = arith.constant 0 : index
    %164 = vector.load %arg9[%c1_82, %c0_83, %c0_84] : memref<2x128x128xbf16, #tpu.memory_space<vmem>>, vector<1x128x128xbf16>
    %165 = vector.shape_cast %164 : vector<1x128x128xbf16> to vector<128x128xbf16>
    %cst_85 = arith.constant dense<0.000000e+00> : vector<128x128xf32>
    %166 = tpu.matmul %121, %165, %cst_85 {dimension_numbers = #tpu.dot_dimension_numbers<[1], [0], [0], [1], [0, 0, 1, 1], [], []>} : vector<128x128xbf16>, vector<128x128xbf16>, vector<128x128xf32> -> vector<128x128xf32>
    %cst_86 = arith.constant dense<0.000000e+00> : vector<128x128xf32>
    %167 = tpu.matmul %123, %33, %cst_86 {dimension_numbers = #tpu.dot_dimension_numbers<[1], [0], [0], [1], [0, 0, 1, 1], [], []>} : vector<128x128xf32>, vector<128x128xf32>, vector<128x128xf32> -> vector<128x128xf32>
    %cst_87 = arith.constant dense<0.000000e+00> : vector<128x128xf32>
    %168 = tpu.matmul %37, %123, %cst_87 {dimension_numbers = #tpu.dot_dimension_numbers<[1], [1], [0], [0], [0, 0, 1, 0], [], []>} : vector<128x128xf32>, vector<128x128xf32>, vector<128x128xf32> -> vector<128x128xf32>
    %169 = arith.addf %167, %168 : vector<128x128xf32>
    %cst_88 = arith.constant 0.000000e+00 : f32
    %170 = vector.broadcast %cst_88 : f32 to vector<128x128xf32>
    %171 = arith.cmpf ogt, %169, %170 : vector<128x128xf32>
    %cst_89 = arith.constant 2.000000e-01 : f32
    %172 = vector.broadcast %cst_89 : f32 to vector<128x128xf32>
    %173 = arith.mulf %172, %169 : vector<128x128xf32>
    %174 = arith.select %171, %169, %173 : vector<128x128xi1>, vector<128x128xf32>
    %cst_90 = arith.constant 0.000000e+00 : f32
    %175 = vector.broadcast %cst_90 : f32 to vector<128x128xf32>
    %176 = arith.cmpf one, %1, %175 : vector<128x128xf32>
    %177 = arith.extui %176 : vector<128x128xi1> to vector<128x128xi32>
    %178 = arith.sitofp %177 : vector<128x128xi32> to vector<128x128xf32>
    %cst_91 = arith.constant -1.000000e+30 : f32
    %179 = vector.broadcast %cst_91 : f32 to vector<128x128xf32>
    %180 = arith.select %176, %174, %179 : vector<128x128xi1>, vector<128x128xf32>
    %cst_92 = arith.constant dense<0xFF800000> : vector<128xf32>
    %181 = vector.multi_reduction <maximumf>, %180, %cst_92 [1] : vector<128x128xf32> to vector<128xf32>
    %182 = vector.shape_cast %181 : vector<128xf32> to vector<128x1xf32>
    %183 = vector.broadcast %182 : vector<128x1xf32> to vector<128x128xf32>
    %184 = arith.subf %180, %183 : vector<128x128xf32>
    %185 = math.exp %184 : vector<128x128xf32>
    %186 = arith.mulf %185, %178 : vector<128x128xf32>
    %cst_93 = arith.constant dense<0.000000e+00> : vector<128xf32>
    %187 = vector.multi_reduction <add>, %186, %cst_93 [1] : vector<128x128xf32> to vector<128xf32>
    %188 = vector.shape_cast %187 : vector<128xf32> to vector<128x1xf32>
    %cst_94 = arith.constant 1.000000e-30 : f32
    %189 = vector.broadcast %cst_94 : f32 to vector<128x1xf32>
    %190 = arith.maximumf %188, %189 : vector<128x1xf32>
    %191 = tpu.reciprocal %190 {approx = true} : vector<128x1xf32> -> vector<128x1xf32>
    %192 = vector.broadcast %191 : vector<128x1xf32> to vector<128x128xf32>
    %193 = arith.mulf %186, %192 : vector<128x128xf32>
    %194 = arith.mulf %193, %1 : vector<128x128xf32>
    %cst_95 = arith.constant dense<0.000000e+00> : vector<128x128xf32>
    %195 = tpu.matmul %194, %166, %cst_95 {dimension_numbers = #tpu.dot_dimension_numbers<[1], [0], [0], [1], [0, 0, 1, 1], [], []>} : vector<128x128xf32>, vector<128x128xf32>, vector<128x128xf32> -> vector<128x128xf32>
    %196 = arith.addf %163, %195 : vector<128x128xf32>
    %cst_96 = arith.constant dense<0.000000e+00> : vector<128x128xf32>
    %197 = tpu.matmul %194, %196, %cst_96 {dimension_numbers = #tpu.dot_dimension_numbers<[1], [0], [0], [1], [0, 0, 1, 1], [], []>} : vector<128x128xf32>, vector<128x128xf32>, vector<128x128xf32> -> vector<128x128xf32>
    %c0_97 = arith.constant 0 : index
    %c0_98 = arith.constant 0 : index
    %198 = vector.load %arg10[%c0_97, %c0_98] : memref<128x128xbf16, #tpu.memory_space<vmem>>, vector<128x128xbf16>
    %cst_99 = arith.constant dense<0.000000e+00> : vector<128x128xf32>
    %199 = tpu.matmul %121, %198, %cst_99 {dimension_numbers = #tpu.dot_dimension_numbers<[1], [0], [0], [1], [0, 0, 1, 1], [], []>} : vector<128x128xbf16>, vector<128x128xbf16>, vector<128x128xf32> -> vector<128x128xf32>
    %cst_100 = arith.constant dense<0.000000e+00> : vector<128x128xf32>
    %200 = tpu.matmul %19, %199, %cst_100 {dimension_numbers = #tpu.dot_dimension_numbers<[1], [0], [0], [1], [0, 0, 1, 1], [], []>} : vector<128x128xf32>, vector<128x128xf32>, vector<128x128xf32> -> vector<128x128xf32>
    %201 = arith.addf %160, %197 : vector<128x128xf32>
    %202 = arith.addf %201, %200 : vector<128x128xf32>
    %c0_101 = arith.constant 0 : index
    %c0_102 = arith.constant 0 : index
    %203 = vector.load %arg12[%c0_101, %c0_102] : memref<128x128xf32, #tpu.memory_space<vmem>>, vector<128x128xf32>
    %cst_103 = arith.constant dense<0.000000e+00> : vector<128x128xf32>
    %204 = tpu.matmul %202, %203, %cst_103 {dimension_numbers = #tpu.dot_dimension_numbers<[1], [0], [0], [1], [0, 0, 1, 1], [], []>} : vector<128x128xf32>, vector<128x128xf32>, vector<128x128xf32> -> vector<128x128xf32>
    %c0_104 = arith.constant 0 : index
    %c0_105 = arith.constant 0 : index
    %205 = vector.load %arg13[%c0_104, %c0_105] : memref<1x128xf32, #tpu.memory_space<vmem>>, vector<1x128xf32>
    %206 = vector.broadcast %205 : vector<1x128xf32> to vector<128x128xf32>
    %207 = arith.addf %204, %206 : vector<128x128xf32>
    %208 = arith.negf %207 : vector<128x128xf32>
    %209 = math.exp %208 : vector<128x128xf32>
    %cst_106 = arith.constant 1.000000e+00 : f32
    %210 = vector.broadcast %cst_106 : f32 to vector<128x128xf32>
    %211 = arith.addf %210, %209 : vector<128x128xf32>
    %212 = arith.divf %210, %211 : vector<128x128xf32>
    %c0_107 = arith.constant 0 : index
    %c0_108 = arith.constant 0 : index
    %213 = vector.load %arg14[%c0_107, %c0_108] : memref<128x128xf32, #tpu.memory_space<vmem>>, vector<128x128xf32>
    tpu.vector_store %arg14[%c0_107, %c0_108], %212 {strides = array<i32>} : memref<128x128xf32, #tpu.memory_space<vmem>>, vector<128x128xf32>,
    return
  }
  func.func @transform_0(%arg0: i32) -> (i32, i32) {
    %c0_i32 = arith.constant 0 : i32
    %c0_i32_0 = arith.constant 0 : i32
    %c0_i32_1 = arith.constant 0 : i32
    return %c0_i32, %c0_i32_0 : i32, i32
  }
  func.func @transform_1(%arg0: i32) -> (i32, i32) {
    %c0_i32 = arith.constant 0 : i32
    %c0_i32_0 = arith.constant 0 : i32
    %c0_i32_1 = arith.constant 0 : i32
    return %c0_i32, %c0_i32_0 : i32, i32
  }
  func.func @transform_2(%arg0: i32) -> (i32, i32) {
    %c0_i32 = arith.constant 0 : i32
    %c0_i32_0 = arith.constant 0 : i32
    %c0_i32_1 = arith.constant 0 : i32
    return %c0_i32, %c0_i32_0 : i32, i32
  }
  func.func @transform_3(%arg0: i32) -> (i32, i32, i32) {
    %c0_i32 = arith.constant 0 : i32
    %c0_i32_0 = arith.constant 0 : i32
    %c0_i32_1 = arith.constant 0 : i32
    %c0_i32_2 = arith.constant 0 : i32
    return %c0_i32, %c0_i32_0, %c0_i32_1 : i32, i32, i32
  }
  func.func @transform_4(%arg0: i32) -> (i32, i32, i32) {
    %c0_i32 = arith.constant 0 : i32
    %c0_i32_0 = arith.constant 0 : i32
    %c0_i32_1 = arith.constant 0 : i32
    %c0_i32_2 = arith.constant 0 : i32
    return %c0_i32, %c0_i32_0, %c0_i32_1 : i32, i32, i32
  }
  func.func @transform_5(%arg0: i32) -> (i32, i32) {
    %c0_i32 = arith.constant 0 : i32
    %c0_i32_0 = arith.constant 0 : i32
    %c0_i32_1 = arith.constant 0 : i32
    return %c0_i32, %c0_i32_0 : i32, i32
  }
  func.func @transform_6(%arg0: i32) -> (i32, i32) {
    %c0_i32 = arith.constant 0 : i32
    %c0_i32_0 = arith.constant 0 : i32
    %c0_i32_1 = arith.constant 0 : i32
    return %c0_i32, %c0_i32_0 : i32, i32
  }
  func.func @transform_7(%arg0: i32) -> (i32, i32, i32) {
    %c0_i32 = arith.constant 0 : i32
    %c0_i32_0 = arith.constant 0 : i32
    %c0_i32_1 = arith.constant 0 : i32
    %c0_i32_2 = arith.constant 0 : i32
    return %c0_i32, %c0_i32_0, %c0_i32_1 : i32, i32, i32
  }
  func.func @transform_8(%arg0: i32) -> (i32, i32, i32) {
    %c0_i32 = arith.constant 0 : i32
    %c0_i32_0 = arith.constant 0 : i32
    %c0_i32_1 = arith.constant 0 : i32
    %c0_i32_2 = arith.constant 0 : i32
    return %c0_i32, %c0_i32_0, %c0_i32_1 : i32, i32, i32
  }
  func.func @transform_9(%arg0: i32) -> (i32, i32) {
    %c0_i32 = arith.constant 0 : i32
    %c0_i32_0 = arith.constant 0 : i32
    %c0_i32_1 = arith.constant 0 : i32
    return %c0_i32, %c0_i32_0 : i32, i32
  }
  func.func @transform_10(%arg0: i32) -> (i32, i32) {
    %c0_i32 = arith.constant 0 : i32
    %c0_i32_0 = arith.constant 0 : i32
    %c0_i32_1 = arith.constant 0 : i32
    return %c0_i32, %c0_i32_0 : i32, i32
  }
  func.func @transform_11(%arg0: i32) -> (i32, i32) {
    %c0_i32 = arith.constant 0 : i32
    %c0_i32_0 = arith.constant 0 : i32
    %c0_i32_1 = arith.constant 0 : i32
    return %c0_i32, %c0_i32_0 : i32, i32
  }
  func.func @transform_12(%arg0: i32) -> (i32, i32) {
    %c0_i32 = arith.constant 0 : i32
    %c0_i32_0 = arith.constant 0 : i32
    %c0_i32_1 = arith.constant 0 : i32
    return %c0_i32, %c0_i32_0 : i32, i32
  }
  func.func @transform_13(%arg0: i32) -> (i32, i32) {
    %c0_i32 = arith.constant 0 : i32
    %c0_i32_0 = arith.constant 0 : i32
    %c0_i32_1 = arith.constant 0 : i32
    return %c0_i32, %c0_i32_0 : i32, i32
  }
}

</mosaic_0001>

<llo_original>
// kernel: san_model_forward.1
$region0: #{san_model_forward.1}
  #allocation0 [shape = 'u32[]', space=smem, size = 0x4, offset = 0x4, fixed_abs, tag = 'smem constant byte address 0x4 - core index']
  #allocation1 [shape = 'u32[144,128]{1,0:T(1,128)}', space=vmem, size = 0x12000, scoped, tag = 'internal scratch']
  %s0 = inlined_call_operand.vmem [shape: f32[128,8], index: 0, kind: input, shape index: {}]
  %s1 = inlined_call_operand.vmem [shape: f32[128,128], index: 1, kind: input, shape index: {}]
  %s2 = inlined_call_operand.vmem [shape: f32[128,128], index: 2, kind: input, shape index: {}]
  %s3 = inlined_call_operand.vmem [shape: bf16[2,8,128], index: 3, kind: input, shape index: {}]
  %s4 = inlined_call_operand.vmem [shape: bf16[2,8,128], index: 4, kind: input, shape index: {}]
  %s5 = inlined_call_operand.vmem [shape: bf16[8,128], index: 5, kind: input, shape index: {}]
  %s6 = inlined_call_operand.vmem [shape: f32[8,128], index: 6, kind: input, shape index: {}]
  %s7 = inlined_call_operand.vmem [shape: bf16[2,128,128], index: 7, kind: input, shape index: {}]
  %s8 = inlined_call_operand.vmem [shape: bf16[2,128,128], index: 8, kind: input, shape index: {}]
  %s9 = inlined_call_operand.vmem [shape: bf16[128,128], index: 9, kind: input, shape index: {}]
  %s10 = inlined_call_operand.vmem [shape: f32[128,128], index: 10, kind: input, shape index: {}]
  %s11 = inlined_call_operand.vmem [shape: f32[128,128], index: 11, kind: input, shape index: {}]
  %s12 = inlined_call_operand.vmem [shape: f32[1,128], index: 12, kind: input, shape index: {}]
  %s13 = inlined_call_operand.vmem [shape: f32[128,128], index: 13, kind: output, shape index: {}]
  %s14 = sld [smem:[#allocation0]]
  $region62: #{san_model_forward.1} parent=0
    _
  %s16 = ssub.s32 1, %s14
  %s17 = scalar_select 0, %s16, %s14
  // Predicated region
  $region2: #{san_model_forward.1} parent=0 // pred_check
    _
  $region3: #{san_model_forward.1} parent=0 // pred_check_branch
    %19 = sbr.rel (0) target = $region5
  $region4: #{san_model_forward.1} parent=0 // pred_region
    _
  $region5: #{san_model_forward.1} parent=0 // pred_fallthru
    _
  // Predicated region
  $region6: #{san_model_forward.1} parent=0 // pred_check
    _
  $region7: #{san_model_forward.1} parent=0 // pred_check_branch
    %21 = sbr.rel (0) target = $region9
  $region8: #{san_model_forward.1} parent=0 // pred_region
    _
  $region9: #{san_model_forward.1} parent=0 // pred_fallthru
    _
  // Predicated region
  $region10: #{san_model_forward.1} parent=0 // pred_check
    _
  $region11: #{san_model_forward.1} parent=0 // pred_check_branch
    %23 = sbr.rel (0) target = $region13
  $region12: #{san_model_forward.1} parent=0 // pred_region
    _
  $region13: #{san_model_forward.1} parent=0 // pred_fallthru
    _
  // Predicated region
  $region14: #{san_model_forward.1} parent=0 // pred_check
    _
  $region15: #{san_model_forward.1} parent=0 // pred_check_branch
    %25 = sbr.rel (0) target = $region17
  $region16: #{san_model_forward.1} parent=0 // pred_region
    _
  $region17: #{san_model_forward.1} parent=0 // pred_fallthru
    _
  // Predicated region
  $region18: #{san_model_forward.1} parent=0 // pred_check
    _
  $region19: #{san_model_forward.1} parent=0 // pred_check_branch
    %27 = sbr.rel (0) target = $region21
  $region20: #{san_model_forward.1} parent=0 // pred_region
    _
  $region21: #{san_model_forward.1} parent=0 // pred_fallthru
    _
  // Predicated region
  $region22: #{san_model_forward.1} parent=0 // pred_check
    _
  $region23: #{san_model_forward.1} parent=0 // pred_check_branch
    %29 = sbr.rel (0) target = $region25
  $region24: #{san_model_forward.1} parent=0 // pred_region
    _
  $region25: #{san_model_forward.1} parent=0 // pred_fallthru
    _
  // Predicated region
  $region26: #{san_model_forward.1} parent=0 // pred_check
    _
  $region27: #{san_model_forward.1} parent=0 // pred_check_branch
    %31 = sbr.rel (0) target = $region29
  $region28: #{san_model_forward.1} parent=0 // pred_region
    _
  $region29: #{san_model_forward.1} parent=0 // pred_fallthru
    _
  // Predicated region
  $region30: #{san_model_forward.1} parent=0 // pred_check
    _
  $region31: #{san_model_forward.1} parent=0 // pred_check_branch
    %33 = sbr.rel (0) target = $region33
  $region32: #{san_model_forward.1} parent=0 // pred_region
    _
  $region33: #{san_model_forward.1} parent=0 // pred_fallthru
    _
  // Predicated region
  $region34: #{san_model_forward.1} parent=0 // pred_check
    _
  $region35: #{san_model_forward.1} parent=0 // pred_check_branch
    %35 = sbr.rel (0) target = $region37
  $region36: #{san_model_forward.1} parent=0 // pred_region
    _
  $region37: #{san_model_forward.1} parent=0 // pred_fallthru
    _
  // Predicated region
  $region38: #{san_model_forward.1} parent=0 // pred_check
    _
  $region39: #{san_model_forward.1} parent=0 // pred_check_branch
    %37 = sbr.rel (0) target = $region41
  $region40: #{san_model_forward.1} parent=0 // pred_region
    _
  $region41: #{san_model_forward.1} parent=0 // pred_fallthru
    _
  // Predicated region
  $region42: #{san_model_forward.1} parent=0 // pred_check
    _
  $region43: #{san_model_forward.1} parent=0 // pred_check_branch
    %39 = sbr.rel (0) target = $region45
  $region44: #{san_model_forward.1} parent=0 // pred_region
    _
  $region45: #{san_model_forward.1} parent=0 // pred_fallthru
    _
  // Predicated region
  $region46: #{san_model_forward.1} parent=0 // pred_check
    _
  $region47: #{san_model_forward.1} parent=0 // pred_check_branch
    %41 = sbr.rel (0) target = $region49
  $region48: #{san_model_forward.1} parent=0 // pred_region
    _
  $region49: #{san_model_forward.1} parent=0 // pred_fallthru
    _
  // Predicated region
  $region50: #{san_model_forward.1} parent=0 // pred_check
    _
  $region51: #{san_model_forward.1} parent=0 // pred_check_branch
    %43 = sbr.rel (0) target = $region53
  $region52: #{san_model_forward.1} parent=0 // pred_region
    _
  $region53: #{san_model_forward.1} parent=0 // pred_fallthru
    _
  %v45 = vld [vmem:[%s1] sm:$0xff]
  %v46 = vld [vmem:[%s1 + $0x8] sm:$0xff]
  %v47 = vld [vmem:[%s1 + $0x10] sm:$0xff]
  %v48 = vld [vmem:[%s1 + $0x18] sm:$0xff]
  %v49 = vld [vmem:[%s1 + $0x20] sm:$0xff]
  %v50 = vld [vmem:[%s1 + $0x28] sm:$0xff]
  %v51 = vld [vmem:[%s1 + $0x30] sm:$0xff]
  %v52 = vld [vmem:[%s1 + $0x38] sm:$0xff]
  %v53 = vld [vmem:[%s1 + $0x40] sm:$0xff]
  %v54 = vld [vmem:[%s1 + $0x48] sm:$0xff]
  %v55 = vld [vmem:[%s1 + $0x50] sm:$0xff]
  %v56 = vld [vmem:[%s1 + $0x58] sm:$0xff]
  %v57 = vld [vmem:[%s1 + $0x60] sm:$0xff]
  %v58 = vld [vmem:[%s1 + $0x68] sm:$0xff]
  %v59 = vld [vmem:[%s1 + $0x70] sm:$0xff]
  %v60 = vld [vmem:[%s1 + $0x78] sm:$0xff]
  %v61 = vld [vmem:[%s2] sm:$0xff]
  %v62 = vld [vmem:[%s2 + $0x8] sm:$0xff]
  %v63 = vld [vmem:[%s2 + $0x10] sm:$0xff]
  %v64 = vld [vmem:[%s2 + $0x18] sm:$0xff]
  %v65 = vld [vmem:[%s2 + $0x20] sm:$0xff]
  %v66 = vld [vmem:[%s2 + $0x28] sm:$0xff]
  %v67 = vld [vmem:[%s2 + $0x30] sm:$0xff]
  %v68 = vld [vmem:[%s2 + $0x38] sm:$0xff]
  %v69 = vld [vmem:[%s2 + $0x40] sm:$0xff]
  %v70 = vld [vmem:[%s2 + $0x48] sm:$0xff]
  %v71 = vld [vmem:[%s2 + $0x50] sm:$0xff]
  %v72 = vld [vmem:[%s2 + $0x58] sm:$0xff]
  %v73 = vld [vmem:[%s2 + $0x60] sm:$0xff]
  %v74 = vld [vmem:[%s2 + $0x68] sm:$0xff]
  %v75 = vld [vmem:[%s2 + $0x70] sm:$0xff]
  %v76 = vld [vmem:[%s2 + $0x78] sm:$0xff]
  %v77 = vlaneseq
  %v78 = vshrl.u32 %v77, 7
  %v79 = vadd.s32 %v78, 8
  %v80 = vadd.s32 %v78, 16
  %v81 = vadd.s32 %v78, 24
  %v82 = vadd.s32 %v78, 32
  %v83 = vadd.s32 %v78, 40
  %v84 = vadd.s32 %v78, 48
  %v85 = vadd.s32 %v78, 56
  %v86 = vadd.s32 %v78, 64
  %v87 = vadd.s32 %v78, 72
  %v88 = vadd.s32 %v78, 80
  %v89 = vadd.s32 %v78, 88
  %v90 = vadd.s32 %v78, 96
  %v91 = vadd.s32 %v78, 104
  %v92 = vadd.s32 %v78, 112
  %v93 = vadd.s32 %v78, 120
  %v94 = vlaneseq
  %v95 = vand.u32 %v94, 127
  %vm96 = vcmp.eq.s32.totalorder %v78, %v95
  %vm97 = vcmp.eq.s32.totalorder %v79, %v95
  %vm98 = vcmp.eq.s32.totalorder %v80, %v95
  %vm99 = vcmp.eq.s32.totalorder %v81, %v95
  %vm100 = vcmp.eq.s32.totalorder %v82, %v95
  %vm101 = vcmp.eq.s32.totalorder %v83, %v95
  %vm102 = vcmp.eq.s32.totalorder %v84, %v95
  %vm103 = vcmp.eq.s32.totalorder %v85, %v95
  %vm104 = vcmp.eq.s32.totalorder %v86, %v95
  %vm105 = vcmp.eq.s32.totalorder %v87, %v95
  %vm106 = vcmp.eq.s32.totalorder %v88, %v95
  %vm107 = vcmp.eq.s32.totalorder %v89, %v95
  %vm108 = vcmp.eq.s32.totalorder %v90, %v95
  %vm109 = vcmp.eq.s32.totalorder %v91, %v95
  %vm110 = vcmp.eq.s32.totalorder %v92, %v95
  %vm111 = vcmp.eq.s32.totalorder %v93, %v95
  %vm112 = vcmp.lt.s32.totalorder %v78, 16
  %vm113 = vcmp.lt.s32.totalorder %v79, 16
  %vm114 = vcmp.lt.s32.totalorder %v80, 16
  %vm115 = vcmp.lt.s32.totalorder %v81, 16
  %vm116 = vcmp.lt.s32.totalorder %v82, 16
  %vm117 = vcmp.lt.s32.totalorder %v83, 16
  %vm118 = vcmp.lt.s32.totalorder %v84, 16
  %vm119 = vcmp.lt.s32.totalorder %v85, 16
  %vm120 = vcmp.lt.s32.totalorder %v86, 16
  %vm121 = vcmp.lt.s32.totalorder %v87, 16
  %vm122 = vcmp.lt.s32.totalorder %v88, 16
  %vm123 = vcmp.lt.s32.totalorder %v89, 16
  %vm124 = vcmp.lt.s32.totalorder %v90, 16
  %vm125 = vcmp.lt.s32.totalorder %v91, 16
  %vm126 = vcmp.lt.s32.totalorder %v92, 16
  %vm127 = vcmp.lt.s32.totalorder %v93, 16
  %vm128 = vmand %vm96, %vm112
  %vm129 = vmand %vm97, %vm113
  %vm130 = vmand %vm98, %vm114
  %vm131 = vmand %vm99, %vm115
  %vm132 = vmand %vm100, %vm116
  %vm133 = vmand %vm101, %vm117
  %vm134 = vmand %vm102, %vm118
  %vm135 = vmand %vm103, %vm119
  %vm136 = vmand %vm104, %vm120
  %vm137 = vmand %vm105, %vm121
  %vm138 = vmand %vm106, %vm122
  %vm139 = vmand %vm107, %vm123
  %vm140 = vmand %vm108, %vm124
  %vm141 = vmand %vm109, %vm125
  %vm142 = vmand %vm110, %vm126
  %vm143 = vmand %vm111, %vm127
  %v144 = vsel %vm128, 1.0, 0.0
  %v145 = vsel %vm129, 1.0, 0.0
  %v146 = vsel %vm130, 1.0, 0.0
  %v147 = vsel %vm131, 1.0, 0.0
  %v148 = vsel %vm132, 1.0, 0.0
  %v149 = vsel %vm133, 1.0, 0.0
  %v150 = vsel %vm134, 1.0, 0.0
  %v151 = vsel %vm135, 1.0, 0.0
  %v152 = vsel %vm136, 1.0, 0.0
  %v153 = vsel %vm137, 1.0, 0.0
  %v154 = vsel %vm138, 1.0, 0.0
  %v155 = vsel %vm139, 1.0, 0.0
  %v156 = vsel %vm140, 1.0, 0.0
  %v157 = vsel %vm141, 1.0, 0.0
  %v158 = vsel %vm142, 1.0, 0.0
  %v159 = vsel %vm143, 1.0, 0.0
  %v160 = vadd.f32 %v45, %v61
  %v161 = vadd.f32 %v46, %v62
  %v162 = vadd.f32 %v47, %v63
  %v163 = vadd.f32 %v48, %v64
  %v164 = vadd.f32 %v49, %v65
  %v165 = vadd.f32 %v50, %v66
  %v166 = vadd.f32 %v51, %v67
  %v167 = vadd.f32 %v52, %v68
  %v168 = vadd.f32 %v53, %v69
  %v169 = vadd.f32 %v54, %v70
  %v170 = vadd.f32 %v55, %v71
  %v171 = vadd.f32 %v56, %v72
  %v172 = vadd.f32 %v57, %v73
  %v173 = vadd.f32 %v58, %v74
  %v174 = vadd.f32 %v59, %v75
  %v175 = vadd.f32 %v60, %v76
  %v176 = vmul.f32 %v160, 0.1
  %v177 = vmul.f32 %v161, 0.1
  %v178 = vmul.f32 %v162, 0.1
  %v179 = vmul.f32 %v163, 0.1
  %v180 = vmul.f32 %v164, 0.1
  %v181 = vmul.f32 %v165, 0.1
  %v182 = vmul.f32 %v166, 0.1
  %v183 = vmul.f32 %v167, 0.1
  %v184 = vmul.f32 %v168, 0.1
  %v185 = vmul.f32 %v169, 0.1
  %v186 = vmul.f32 %v170, 0.1
  %v187 = vmul.f32 %v171, 0.1
  %v188 = vmul.f32 %v172, 0.1
  %v189 = vmul.f32 %v173, 0.1
  %v190 = vmul.f32 %v174, 0.1
  %v191 = vmul.f32 %v175, 0.1
  %v192 = vsub.f32 %v144, %v176
  %v193 = vsub.f32 %v145, %v177
  %v194 = vsub.f32 %v146, %v178
  %v195 = vsub.f32 %v147, %v179
  %v196 = vsub.f32 %v148, %v180
  %v197 = vsub.f32 %v149, %v181
  %v198 = vsub.f32 %v150, %v182
  %v199 = vsub.f32 %v151, %v183
  %v200 = vsub.f32 %v152, %v184
  %v201 = vsub.f32 %v153, %v185
  %v202 = vsub.f32 %v154, %v186
  %v203 = vsub.f32 %v155, %v187
  %v204 = vsub.f32 %v156, %v188
  %v205 = vsub.f32 %v157, %v189
  %v206 = vsub.f32 %v158, %v190
  %v207 = vsub.f32 %v159, %v191
  %208 = vmatprep.subr.mxu0 0.0
  %209 = vmatpush1.msra.mxu0 %v192
  %210 = vmatprep.subr.mxu0 0.0
  %211 = vmatpush1.msra.mxu0 %v193
  %212 = vmatprep.subr.mxu0 0.0
  %213 = vmatpush1.msra.mxu0 %v194
  %214 = vmatprep.subr.mxu0 0.0
  %215 = vmatpush1.msra.mxu0 %v195
  %216 = vmatprep.subr.mxu0 0.0
  %217 = vmatpush1.msra.mxu0 %v196
  %218 = vmatprep.subr.mxu0 0.0
  %219 = vmatpush1.msra.mxu0 %v197
  %220 = vmatprep.subr.mxu0 0.0
  %221 = vmatpush1.msra.mxu0 %v198
  %222 = vmatprep.subr.mxu0 0.0
  %223 = vmatpush1.msra.mxu0 %v199
  %224 = vmatprep.subr.mxu0 0.0
  %225 = vmatpush1.msra.mxu0 %v200
  %226 = vmatprep.subr.mxu0 0.0
  %227 = vmatpush1.msra.mxu0 %v201
  %228 = vmatprep.subr.mxu0 0.0
  %229 = vmatpush1.msra.mxu0 %v202
  %230 = vmatprep.subr.mxu0 0.0
  %231 = vmatpush1.msra.mxu0 %v203
  %232 = vmatprep.subr.mxu0 0.0
  %233 = vmatpush1.msra.mxu0 %v204
  %234 = vmatprep.subr.mxu0 0.0
  %235 = vmatpush1.msra.mxu0 %v205
  %236 = vmatprep.subr.mxu0 0.0
  %237 = vmatpush1.msra.mxu0 %v206
  %238 = vmatprep.subr.mxu0 0.0
  %239 = vmatpush1.msra.mxu0 %v207
  %240 = vmatprep.subr.mxu0 0.0
  %241 = vmatpush1.msra.mxu0 0.0
  %242 = vmatprep.subr.mxu0 0.0
  %243 = vmatpush1.msra.mxu0 0.0
  %244 = vmatprep.subr.mxu0 0.0
  %245 = vmatpush1.msra.mxu0 0.0
  %246 = vmatprep.subr.mxu0 0.0
  %247 = vmatpush1.msra.mxu0 0.0
  %248 = vmatprep.subr.mxu0 0.0
  %249 = vmatpush1.msra.mxu0 0.0
  %250 = vmatprep.subr.mxu0 0.0
  %251 = vmatpush1.msra.mxu0 0.0
  %252 = vmatprep.subr.mxu0 0.0
  %253 = vmatpush1.msra.mxu0 0.0
  %254 = vmatprep.subr.mxu0 0.0
  %255 = vmatpush1.msra.mxu0 0.0
  %256 = vmatprep.subr.mxu0 0.0
  %257 = vmatpush1.msra.mxu0 0.0
  %258 = vmatprep.subr.mxu0 0.0
  %259 = vmatpush1.msra.mxu0 0.0
  %260 = vmatprep.subr.mxu0 0.0
  %261 = vmatpush1.msra.mxu0 0.0
  %262 = vmatprep.subr.mxu0 0.0
  %263 = vmatpush1.msra.mxu0 0.0
  %264 = vmatprep.subr.mxu0 0.0
  %265 = vmatpush1.msra.mxu0 0.0
  %266 = vmatprep.subr.mxu0 0.0
  %267 = vmatpush1.msra.mxu0 0.0
  %268 = vmatprep.subr.mxu0 0.0
  %269 = vmatpush1.msra.mxu0 0.0
  %270 = vmatprep.subr.mxu0 0.0
  %271 = vmatpush1.msra.mxu0 0.0
  %272 = vmatprep.mubr.f32.mxu0 0.0
  %273 = vmatmul.mubr.f32.gmra.mrb[0].mxu0 %v192
  %v274 = vpop.f32.mrb[0].mxu0
  %v275 = vadd.f32 0.0, %v274
  %v276 = vpop.f32.mrb[0].mxu0
  %277 = vmatprep.mubr.f32.mxu0 0.0
  %278 = vmatmul.mubr.f32.gmra.mrb[0].mxu0 %v193
  %v279 = vpop.f32.mrb[0].mxu0
  %v280 = vadd.f32 0.0, %v279
  %v281 = vpop.f32.mrb[0].mxu0
  %282 = vmatprep.mubr.f32.mxu0 0.0
  %283 = vmatmul.mubr.f32.gmra.mrb[0].mxu0 %v194
  %v284 = vpop.f32.mrb[0].mxu0
  %v285 = vadd.f32 0.0, %v284
  %v286 = vpop.f32.mrb[0].mxu0
  %287 = vmatprep.mubr.f32.mxu0 0.0
  %288 = vmatmul.mubr.f32.gmra.mrb[0].mxu0 %v195
  %v289 = vpop.f32.mrb[0].mxu0
  %v290 = vadd.f32 0.0, %v289
  %v291 = vpop.f32.mrb[0].mxu0
  %292 = vmatprep.mubr.f32.mxu0 0.0
  %293 = vmatmul.mubr.f32.gmra.mrb[0].mxu0 %v196
  %v294 = vpop.f32.mrb[0].mxu0
  %v295 = vadd.f32 0.0, %v294
  %v296 = vpop.f32.mrb[0].mxu0
  %297 = vmatprep.mubr.f32.mxu0 0.0
  %298 = vmatmul.mubr.f32.gmra.mrb[0].mxu0 %v197
  %v299 = vpop.f32.mrb[0].mxu0
  %v300 = vadd.f32 0.0, %v299
  %v301 = vpop.f32.mrb[0].mxu0
  %302 = vmatprep.mubr.f32.mxu0 0.0
  %303 = vmatmul.mubr.f32.gmra.mrb[0].mxu0 %v198
  %v304 = vpop.f32.mrb[0].mxu0
  %v305 = vadd.f32 0.0, %v304
  %v306 = vpop.f32.mrb[0].mxu0
  %307 = vmatprep.mubr.f32.mxu0 0.0
  %308 = vmatmul.mubr.f32.gmra.mrb[0].mxu0 %v199
  %v309 = vpop.f32.mrb[0].mxu0
  %v310 = vadd.f32 0.0, %v309
  %v311 = vpop.f32.mrb[0].mxu0
  %312 = vmatprep.mubr.f32.mxu0 0.0
  %313 = vmatmul.mubr.f32.gmra.mrb[0].mxu0 %v200
  %v314 = vpop.f32.mrb[0].mxu0
  %v315 = vadd.f32 0.0, %v314
  %v316 = vpop.f32.mrb[0].mxu0
  %317 = vmatprep.mubr.f32.mxu0 0.0
  %318 = vmatmul.mubr.f32.gmra.mrb[0].mxu0 %v201
  %v319 = vpop.f32.mrb[0].mxu0
  %v320 = vadd.f32 0.0, %v319
  %v321 = vpop.f32.mrb[0].mxu0
  %322 = vmatprep.mubr.f32.mxu0 0.0
  %323 = vmatmul.mubr.f32.gmra.mrb[0].mxu0 %v202
  %v324 = vpop.f32.mrb[0].mxu0
  %v325 = vadd.f32 0.0, %v324
  %v326 = vpop.f32.mrb[0].mxu0
  %327 = vmatprep.mubr.f32.mxu0 0.0
  %328 = vmatmul.mubr.f32.gmra.mrb[0].mxu0 %v203
  %v329 = vpop.f32.mrb[0].mxu0
  %v330 = vadd.f32 0.0, %v329
  %v331 = vpop.f32.mrb[0].mxu0
  %332 = vmatprep.mubr.f32.mxu0 0.0
  %333 = vmatmul.mubr.f32.gmra.mrb[0].mxu0 %v204
  %v334 = vpop.f32.mrb[0].mxu0
  %v335 = vadd.f32 0.0, %v334
  %v336 = vpop.f32.mrb[0].mxu0
  %337 = vmatprep.mubr.f32.mxu0 0.0
  %338 = vmatmul.mubr.f32.gmra.mrb[0].mxu0 %v205
  %v339 = vpop.f32.mrb[0].mxu0
  %v340 = vadd.f32 0.0, %v339
  %v341 = vpop.f32.mrb[0].mxu0
  %342 = vmatprep.mubr.f32.mxu0 0.0
  %343 = vmatmul.mubr.f32.gmra.mrb[0].mxu0 %v206
  %v344 = vpop.f32.mrb[0].mxu0
  %v345 = vadd.f32 0.0, %v344
  %v346 = vpop.f32.mrb[0].mxu0
  %347 = vmatprep.mubr.f32.mxu0 0.0
  %348 = vmatmul.mubr.f32.gmra.mrb[0].mxu0 %v207
  %v349 = vpop.f32.mrb[0].mxu0
  %v350 = vadd.f32 0.0, %v349
  %v351 = vpop.f32.mrb[0].mxu0
  %352 = vdwg.mxu0
  %353 = vmatprep.subr.mxu0 0.0
  %354 = vmatpush1.msra.mxu0 %v275
  %355 = vmatprep.subr.mxu0 0.0
  %356 = vmatpush1.msra.mxu0 %v280
  %357 = vmatprep.subr.mxu0 0.0
  %358 = vmatpush1.msra.mxu0 %v285
  %359 = vmatprep.subr.mxu0 0.0
  %360 = vmatpush1.msra.mxu0 %v290
  %361 = vmatprep.subr.mxu0 0.0
  %362 = vmatpush1.msra.mxu0 %v295
  %363 = vmatprep.subr.mxu0 0.0
  %364 = vmatpush1.msra.mxu0 %v300
  %365 = vmatprep.subr.mxu0 0.0
  %366 = vmatpush1.msra.mxu0 %v305
  %367 = vmatprep.subr.mxu0 0.0
  %368 = vmatpush1.msra.mxu0 %v310
  %369 = vmatprep.subr.mxu0 0.0
  %370 = vmatpush1.msra.mxu0 %v315
  %371 = vmatprep.subr.mxu0 0.0
  %372 = vmatpush1.msra.mxu0 %v320
  %373 = vmatprep.subr.mxu0 0.0
  %374 = vmatpush1.msra.mxu0 %v325
  %375 = vmatprep.subr.mxu0 0.0
  %376 = vmatpush1.msra.mxu0 %v330
  %377 = vmatprep.subr.mxu0 0.0
  %378 = vmatpush1.msra.mxu0 %v335
  %379 = vmatprep.subr.mxu0 0.0
  %380 = vmatpush1.msra.mxu0 %v340
  %381 = vmatprep.subr.mxu0 0.0
  %382 = vmatpush1.msra.mxu0 %v345
  %383 = vmatprep.subr.mxu0 0.0
  %384 = vmatpush1.msra.mxu0 %v350
  %385 = vmatprep.subr.mxu0 0.0
  %386 = vmatpush1.msra.mxu0 0.0
  %387 = vmatprep.subr.mxu0 0.0
  %388 = vmatpush1.msra.mxu0 0.0
  %389 = vmatprep.subr.mxu0 0.0
  %390 = vmatpush1.msra.mxu0 0.0
  %391 = vmatprep.subr.mxu0 0.0
  %392 = vmatpush1.msra.mxu0 0.0
  %393 = vmatprep.subr.mxu0 0.0
  %394 = vmatpush1.msra.mxu0 0.0
  %395 = vmatprep.subr.mxu0 0.0
  %396 = vmatpush1.msra.mxu0 0.0
  %397 = vmatprep.subr.mxu0 0.0
  %398 = vmatpush1.msra.mxu0 0.0
  %399 = vmatprep.subr.mxu0 0.0
  %400 = vmatpush1.msra.mxu0 0.0
  %401 = vmatprep.subr.mxu0 0.0
  %402 = vmatpush1.msra.mxu0 0.0
  %403 = vmatprep.subr.mxu0 0.0
  %404 = vmatpush1.msra.mxu0 0.0
  %405 = vmatprep.subr.mxu0 0.0
  %406 = vmatpush1.msra.mxu0 0.0
  %407 = vmatprep.subr.mxu0 0.0
  %408 = vmatpush1.msra.mxu0 0.0
  %409 = vmatprep.subr.mxu0 0.0
  %410 = vmatpush1.msra.mxu0 0.0
  %411 = vmatprep.subr.mxu0 0.0
  %412 = vmatpush1.msra.mxu0 0.0
  %413 = vmatprep.subr.mxu0 0.0
  %414 = vmatpush1.msra.mxu0 0.0
  %415 = vmatprep.subr.mxu0 0.0
  %416 = vmatpush1.msra.mxu0 0.0
  %417 = vmatprep.mubr.f32.mxu0 0.0
  %418 = vmatmul.mubr.f32.gmra.mrb[0].mxu0 %v275
  %v419 = vpop.f32.mrb[0].mxu0
  %v420 = vadd.f32 0.0, %v419
  %v421 = vpop.f32.mrb[0].mxu0
  %422 = vmatprep.mubr.f32.mxu0 0.0
  %423 = vmatmul.mubr.f32.gmra.mrb[0].mxu0 %v280
  %v424 = vpop.f32.mrb[0].mxu0
  %v425 = vadd.f32 0.0, %v424
  %v426 = vpop.f32.mrb[0].mxu0
  %427 = vmatprep.mubr.f32.mxu0 0.0
  %428 = vmatmul.mubr.f32.gmra.mrb[0].mxu0 %v285
  %v429 = vpop.f32.mrb[0].mxu0
  %v430 = vadd.f32 0.0, %v429
  %v431 = vpop.f32.mrb[0].mxu0
  %432 = vmatprep.mubr.f32.mxu0 0.0
  %433 = vmatmul.mubr.f32.gmra.mrb[0].mxu0 %v290
  %v434 = vpop.f32.mrb[0].mxu0
  %v435 = vadd.f32 0.0, %v434
  %v436 = vpop.f32.mrb[0].mxu0
  %437 = vmatprep.mubr.f32.mxu0 0.0
  %438 = vmatmul.mubr.f32.gmra.mrb[0].mxu0 %v295
  %v439 = vpop.f32.mrb[0].mxu0
  %v440 = vadd.f32 0.0, %v439
  %v441 = vpop.f32.mrb[0].mxu0
  %442 = vmatprep.mubr.f32.mxu0 0.0
  %443 = vmatmul.mubr.f32.gmra.mrb[0].mxu0 %v300
  %v444 = vpop.f32.mrb[0].mxu0
  %v445 = vadd.f32 0.0, %v444
  %v446 = vpop.f32.mrb[0].mxu0
  %447 = vmatprep.mubr.f32.mxu0 0.0
  %448 = vmatmul.mubr.f32.gmra.mrb[0].mxu0 %v305
  %v449 = vpop.f32.mrb[0].mxu0
  %v450 = vadd.f32 0.0, %v449
  %v451 = vpop.f32.mrb[0].mxu0
  %452 = vmatprep.mubr.f32.mxu0 0.0
  %453 = vmatmul.mubr.f32.gmra.mrb[0].mxu0 %v310
  %v454 = vpop.f32.mrb[0].mxu0
  %v455 = vadd.f32 0.0, %v454
  %v456 = vpop.f32.mrb[0].mxu0
  %457 = vmatprep.mubr.f32.mxu0 0.0
  %458 = vmatmul.mubr.f32.gmra.mrb[0].mxu0 %v315
  %v459 = vpop.f32.mrb[0].mxu0
  %v460 = vadd.f32 0.0, %v459
  %v461 = vpop.f32.mrb[0].mxu0
  %462 = vmatprep.mubr.f32.mxu0 0.0
  %463 = vmatmul.mubr.f32.gmra.mrb[0].mxu0 %v320
  %v464 = vpop.f32.mrb[0].mxu0
  %v465 = vadd.f32 0.0, %v464
  %v466 = vpop.f32.mrb[0].mxu0
  %467 = vmatprep.mubr.f32.mxu0 0.0
  %468 = vmatmul.mubr.f32.gmra.mrb[0].mxu0 %v325
  %v469 = vpop.f32.mrb[0].mxu0
  %v470 = vadd.f32 0.0, %v469
  %v471 = vpop.f32.mrb[0].mxu0
  %472 = vmatprep.mubr.f32.mxu0 0.0
  %473 = vmatmul.mubr.f32.gmra.mrb[0].mxu0 %v330
  %v474 = vpop.f32.mrb[0].mxu0
  %v475 = vadd.f32 0.0, %v474
  %v476 = vpop.f32.mrb[0].mxu0
  %477 = vmatprep.mubr.f32.mxu0 0.0
  %478 = vmatmul.mubr.f32.gmra.mrb[0].mxu0 %v335
  %v479 = vpop.f32.mrb[0].mxu0
  %v480 = vadd.f32 0.0, %v479
  %v481 = vpop.f32.mrb[0].mxu0
  %482 = vmatprep.mubr.f32.mxu0 0.0
  %483 = vmatmul.mubr.f32.gmra.mrb[0].mxu0 %v340
  %v484 = vpop.f32.mrb[0].mxu0
  %v485 = vadd.f32 0.0, %v484
  %v486 = vpop.f32.mrb[0].mxu0
  %487 = vmatprep.mubr.f32.mxu0 0.0
  %488 = vmatmul.mubr.f32.gmra.mrb[0].mxu0 %v345
  %v489 = vpop.f32.mrb[0].mxu0
  %v490 = vadd.f32 0.0, %v489
  %v491 = vpop.f32.mrb[0].mxu0
  %492 = vmatprep.mubr.f32.mxu0 0.0
  %493 = vmatmul.mubr.f32.gmra.mrb[0].mxu0 %v350
  %v494 = vpop.f32.mrb[0].mxu0
  %v495 = vadd.f32 0.0, %v494
  %v496 = vpop.f32.mrb[0].mxu0
  %497 = vdwg.mxu0
  %498 = vmatprep.subr.mxu0 0.0
  %499 = vmatpush1.msra.mxu0 %v420
  %500 = vmatprep.subr.mxu0 0.0
  %501 = vmatpush1.msra.mxu0 %v425
  %502 = vmatprep.subr.mxu0 0.0
  %503 = vmatpush1.msra.mxu0 %v430
  %504 = vmatprep.subr.mxu0 0.0
  %505 = vmatpush1.msra.mxu0 %v435
  %506 = vmatprep.subr.mxu0 0.0
  %507 = vmatpush1.msra.mxu0 %v440
  %508 = vmatprep.subr.mxu0 0.0
  %509 = vmatpush1.msra.mxu0 %v445
  %510 = vmatprep.subr.mxu0 0.0
  %511 = vmatpush1.msra.mxu0 %v450
  %512 = vmatprep.subr.mxu0 0.0
  %513 = vmatpush1.msra.mxu0 %v455
  %514 = vmatprep.subr.mxu0 0.0
  %515 = vmatpush1.msra.mxu0 %v460
  %516 = vmatprep.subr.mxu0 0.0
  %517 = vmatpush1.msra.mxu0 %v465
  %518 = vmatprep.subr.mxu0 0.0
  %519 = vmatpush1.msra.mxu0 %v470
  %520 = vmatprep.subr.mxu0 0.0
  %521 = vmatpush1.msra.mxu0 %v475
  %522 = vmatprep.subr.mxu0 0.0
  %523 = vmatpush1.msra.mxu0 %v480
  %524 = vmatprep.subr.mxu0 0.0
  %525 = vmatpush1.msra.mxu0 %v485
  %526 = vmatprep.subr.mxu0 0.0
  %527 = vmatpush1.msra.mxu0 %v490
  %528 = vmatprep.subr.mxu0 0.0
  %529 = vmatpush1.msra.mxu0 %v495
  %530 = vmatprep.subr.mxu0 0.0
  %531 = vmatpush1.msra.mxu0 0.0
  %532 = vmatprep.subr.mxu0 0.0
  %533 = vmatpush1.msra.mxu0 0.0
  %534 = vmatprep.subr.mxu0 0.0
  %535 = vmatpush1.msra.mxu0 0.0
  %536 = vmatprep.subr.mxu0 0.0
  %537 = vmatpush1.msra.mxu0 0.0
  %538 = vmatprep.subr.mxu0 0.0
  %539 = vmatpush1.msra.mxu0 0.0
  %540 = vmatprep.subr.mxu0 0.0
  %541 = vmatpush1.msra.mxu0 0.0
  %542 = vmatprep.subr.mxu0 0.0
  %543 = vmatpush1.msra.mxu0 0.0
  %544 = vmatprep.subr.mxu0 0.0
  %545 = vmatpush1.msra.mxu0 0.0
  %546 = vmatprep.subr.mxu0 0.0
  %547 = vmatpush1.msra.mxu0 0.0
  %548 = vmatprep.subr.mxu0 0.0
  %549 = vmatpush1.msra.mxu0 0.0
  %550 = vmatprep.subr.mxu0 0.0
  %551 = vmatpush1.msra.mxu0 0.0
  %552 = vmatprep.subr.mxu0 0.0
  %553 = vmatpush1.msra.mxu0 0.0
  %554 = vmatprep.subr.mxu0 0.0
  %555 = vmatpush1.msra.mxu0 0.0
  %556 = vmatprep.subr.mxu0 0.0
  %557 = vmatpush1.msra.mxu0 0.0
  %558 = vmatprep.subr.mxu0 0.0
  %559 = vmatpush1.msra.mxu0 0.0
  %560 = vmatprep.subr.mxu0 0.0
  %561 = vmatpush1.msra.mxu0 0.0
  %562 = vmatprep.mubr.f32.mxu0 0.0
  %563 = vmatmul.mubr.f32.gmra.mrb[0].mxu0 %v420
  %v564 = vpop.f32.mrb[0].mxu0
  %v565 = vadd.f32 0.0, %v564
  %v566 = vpop.f32.mrb[0].mxu0
  %567 = vmatprep.mubr.f32.mxu0 0.0
  %568 = vmatmul.mubr.f32.gmra.mrb[0].mxu0 %v425
  %v569 = vpop.f32.mrb[0].mxu0
  %v570 = vadd.f32 0.0, %v569
  %v571 = vpop.f32.mrb[0].mxu0
  %572 = vmatprep.mubr.f32.mxu0 0.0
  %573 = vmatmul.mubr.f32.gmra.mrb[0].mxu0 %v430
  %v574 = vpop.f32.mrb[0].mxu0
  %v575 = vadd.f32 0.0, %v574
  %v576 = vpop.f32.mrb[0].mxu0
  %577 = vmatprep.mubr.f32.mxu0 0.0
  %578 = vmatmul.mubr.f32.gmra.mrb[0].mxu0 %v435
  %v579 = vpop.f32.mrb[0].mxu0
  %v580 = vadd.f32 0.0, %v579
  %v581 = vpop.f32.mrb[0].mxu0
  %582 = vmatprep.mubr.f32.mxu0 0.0
  %583 = vmatmul.mubr.f32.gmra.mrb[0].mxu0 %v440
  %v584 = vpop.f32.mrb[0].mxu0
  %v585 = vadd.f32 0.0, %v584
  %v586 = vpop.f32.mrb[0].mxu0
  %587 = vmatprep.mubr.f32.mxu0 0.0
  %588 = vmatmul.mubr.f32.gmra.mrb[0].mxu0 %v445
  %v589 = vpop.f32.mrb[0].mxu0
  %v590 = vadd.f32 0.0, %v589
  %v591 = vpop.f32.mrb[0].mxu0
  %592 = vmatprep.mubr.f32.mxu0 0.0
  %593 = vmatmul.mubr.f32.gmra.mrb[0].mxu0 %v450
  %v594 = vpop.f32.mrb[0].mxu0
  %v595 = vadd.f32 0.0, %v594
  %v596 = vpop.f32.mrb[0].mxu0
  %597 = vmatprep.mubr.f32.mxu0 0.0
  %598 = vmatmul.mubr.f32.gmra.mrb[0].mxu0 %v455
  %v599 = vpop.f32.mrb[0].mxu0
  %v600 = vadd.f32 0.0, %v599
  %v601 = vpop.f32.mrb[0].mxu0
  %602 = vmatprep.mubr.f32.mxu0 0.0
  %603 = vmatmul.mubr.f32.gmra.mrb[0].mxu0 %v460
  %v604 = vpop.f32.mrb[0].mxu0
  %v605 = vadd.f32 0.0, %v604
  %v606 = vpop.f32.mrb[0].mxu0
  %607 = vmatprep.mubr.f32.mxu0 0.0
  %608 = vmatmul.mubr.f32.gmra.mrb[0].mxu0 %v465
  %v609 = vpop.f32.mrb[0].mxu0
  %v610 = vadd.f32 0.0, %v609
  %v611 = vpop.f32.mrb[0].mxu0
  %612 = vmatprep.mubr.f32.mxu0 0.0
  %613 = vmatmul.mubr.f32.gmra.mrb[0].mxu0 %v470
  %v614 = vpop.f32.mrb[0].mxu0
  %v615 = vadd.f32 0.0, %v614
  %v616 = vpop.f32.mrb[0].mxu0
  %617 = vmatprep.mubr.f32.mxu0 0.0
  %618 = vmatmul.mubr.f32.gmra.mrb[0].mxu0 %v475
  %v619 = vpop.f32.mrb[0].mxu0
  %v620 = vadd.f32 0.0, %v619
  %v621 = vpop.f32.mrb[0].mxu0
  %622 = vmatprep.mubr.f32.mxu0 0.0
  %623 = vmatmul.mubr.f32.gmra.mrb[0].mxu0 %v480
  %v624 = vpop.f32.mrb[0].mxu0
  %v625 = vadd.f32 0.0, %v624
  %v626 = vpop.f32.mrb[0].mxu0
  %627 = vmatprep.mubr.f32.mxu0 0.0
  %628 = vmatmul.mubr.f32.gmra.mrb[0].mxu0 %v485
  %v629 = vpop.f32.mrb[0].mxu0
  %v630 = vadd.f32 0.0, %v629
  %v631 = vpop.f32.mrb[0].mxu0
  %632 = vmatprep.mubr.f32.mxu0 0.0
  %633 = vmatmul.mubr.f32.gmra.mrb[0].mxu0 %v490
  %v634 = vpop.f32.mrb[0].mxu0
  %v635 = vadd.f32 0.0, %v634
  %v636 = vpop.f32.mrb[0].mxu0
  %637 = vmatprep.mubr.f32.mxu0 0.0
  %638 = vmatmul.mubr.f32.gmra.mrb[0].mxu0 %v495
  %v639 = vpop.f32.mrb[0].mxu0
  %v640 = vadd.f32 0.0, %v639
  %v641 = vpop.f32.mrb[0].mxu0
  %642 = vdwg.mxu0
  %643 = vmatprep.subr.mxu0 0.0
  %644 = vmatpush1.msra.mxu0 %v565
  %645 = vmatprep.subr.mxu0 0.0
  %646 = vmatpush1.msra.mxu0 %v570
  %647 = vmatprep.subr.mxu0 0.0
  %648 = vmatpush1.msra.mxu0 %v575
  %649 = vmatprep.subr.mxu0 0.0
  %650 = vmatpush1.msra.mxu0 %v580
  %651 = vmatprep.subr.mxu0 0.0
  %652 = vmatpush1.msra.mxu0 %v585
  %653 = vmatprep.subr.mxu0 0.0
  %654 = vmatpush1.msra.mxu0 %v590
  %655 = vmatprep.subr.mxu0 0.0
  %656 = vmatpush1.msra.mxu0 %v595
  %657 = vmatprep.subr.mxu0 0.0
  %658 = vmatpush1.msra.mxu0 %v600
  %659 = vmatprep.subr.mxu0 0.0
  %660 = vmatpush1.msra.mxu0 %v605
  %661 = vmatprep.subr.mxu0 0.0
  %662 = vmatpush1.msra.mxu0 %v610
  %663 = vmatprep.subr.mxu0 0.0
  %664 = vmatpush1.msra.mxu0 %v615
  %665 = vmatprep.subr.mxu0 0.0
  %666 = vmatpush1.msra.mxu0 %v620
  %667 = vmatprep.subr.mxu0 0.0
  %668 = vmatpush1.msra.mxu0 %v625
  %669 = vmatprep.subr.mxu0 0.0
  %670 = vmatpush1.msra.mxu0 %v630
  %671 = vmatprep.subr.mxu0 0.0
  %672 = vmatpush1.msra.mxu0 %v635
  %673 = vmatprep.subr.mxu0 0.0
  %674 = vmatpush1.msra.mxu0 %v640
  %675 = vmatprep.subr.mxu0 0.0
  %676 = vmatpush1.msra.mxu0 0.0
  %677 = vmatprep.subr.mxu0 0.0
  %678 = vmatpush1.msra.mxu0 0.0
  %679 = vmatprep.subr.mxu0 0.0
  %680 = vmatpush1.msra.mxu0 0.0
  %681 = vmatprep.subr.mxu0 0.0
  %682 = vmatpush1.msra.mxu0 0.0
  %683 = vmatprep.subr.mxu0 0.0
  %684 = vmatpush1.msra.mxu0 0.0
  %685 = vmatprep.subr.mxu0 0.0
  %686 = vmatpush1.msra.mxu0 0.0
  %687 = vmatprep.subr.mxu0 0.0
  %688 = vmatpush1.msra.mxu0 0.0
  %689 = vmatprep.subr.mxu0 0.0
  %690 = vmatpush1.msra.mxu0 0.0
  %691 = vmatprep.subr.mxu0 0.0
  %692 = vmatpush1.msra.mxu0 0.0
  %693 = vmatprep.subr.mxu0 0.0
  %694 = vmatpush1.msra.mxu0 0.0
  %695 = vmatprep.subr.mxu0 0.0
  %696 = vmatpush1.msra.mxu0 0.0
  %697 = vmatprep.subr.mxu0 0.0
  %698 = vmatpush1.msra.mxu0 0.0
  %699 = vmatprep.subr.mxu0 0.0
  %700 = vmatpush1.msra.mxu0 0.0
  %701 = vmatprep.subr.mxu0 0.0
  %702 = vmatpush1.msra.mxu0 0.0
  %703 = vmatprep.subr.mxu0 0.0
  %704 = vmatpush1.msra.mxu0 0.0
  %705 = vmatprep.subr.mxu0 0.0
  %706 = vmatpush1.msra.mxu0 0.0
  %707 = vmatprep.mubr.f32.mxu0 0.0
  %708 = vmatmul.mubr.f32.gmra.mrb[0].mxu0 %v565
  %v709 = vpop.f32.mrb[0].mxu0
  %v710 = vadd.f32 0.0, %v709
  %v711 = vpop.f32.mrb[0].mxu0
  %712 = vmatprep.mubr.f32.mxu0 0.0
  %713 = vmatmul.mubr.f32.gmra.mrb[0].mxu0 %v570
  %v714 = vpop.f32.mrb[0].mxu0
  %v715 = vadd.f32 0.0, %v714
  %v716 = vpop.f32.mrb[0].mxu0
  %717 = vmatprep.mubr.f32.mxu0 0.0
  %718 = vmatmul.mubr.f32.gmra.mrb[0].mxu0 %v575
  %v719 = vpop.f32.mrb[0].mxu0
  %v720 = vadd.f32 0.0, %v719
  %v721 = vpop.f32.mrb[0].mxu0
  %722 = vmatprep.mubr.f32.mxu0 0.0
  %723 = vmatmul.mubr.f32.gmra.mrb[0].mxu0 %v580
  %v724 = vpop.f32.mrb[0].mxu0
  %v725 = vadd.f32 0.0, %v724
  %v726 = vpop.f32.mrb[0].mxu0
  %727 = vmatprep.mubr.f32.mxu0 0.0
  %728 = vmatmul.mubr.f32.gmra.mrb[0].mxu0 %v585
  %v729 = vpop.f32.mrb[0].mxu0
  %v730 = vadd.f32 0.0, %v729
  %v731 = vpop.f32.mrb[0].mxu0
  %732 = vmatprep.mubr.f32.mxu0 0.0
  %733 = vmatmul.mubr.f32.gmra.mrb[0].mxu0 %v590
  %v734 = vpop.f32.mrb[0].mxu0
  %v735 = vadd.f32 0.0, %v734
  %v736 = vpop.f32.mrb[0].mxu0
  %737 = vmatprep.mubr.f32.mxu0 0.0
  %738 = vmatmul.mubr.f32.gmra.mrb[0].mxu0 %v595
  %v739 = vpop.f32.mrb[0].mxu0
  %v740 = vadd.f32 0.0, %v739
  %v741 = vpop.f32.mrb[0].mxu0
  %742 = vmatprep.mubr.f32.mxu0 0.0
  %743 = vmatmul.mubr.f32.gmra.mrb[0].mxu0 %v600
  %v744 = vpop.f32.mrb[0].mxu0
  %v745 = vadd.f32 0.0, %v744
  %v746 = vpop.f32.mrb[0].mxu0
  %747 = vmatprep.mubr.f32.mxu0 0.0
  %748 = vmatmul.mubr.f32.gmra.mrb[0].mxu0 %v605
  %v749 = vpop.f32.mrb[0].mxu0
  %v750 = vadd.f32 0.0, %v749
  %v751 = vpop.f32.mrb[0].mxu0
  %752 = vmatprep.mubr.f32.mxu0 0.0
  %753 = vmatmul.mubr.f32.gmra.mrb[0].mxu0 %v610
  %v754 = vpop.f32.mrb[0].mxu0
  %v755 = vadd.f32 0.0, %v754
  %v756 = vpop.f32.mrb[0].mxu0
  %757 = vmatprep.mubr.f32.mxu0 0.0
  %758 = vmatmul.mubr.f32.gmra.mrb[0].mxu0 %v615
  %v759 = vpop.f32.mrb[0].mxu0
  %v760 = vadd.f32 0.0, %v759
  %v761 = vpop.f32.mrb[0].mxu0
  %762 = vmatprep.mubr.f32.mxu0 0.0
  %763 = vmatmul.mubr.f32.gmra.mrb[0].mxu0 %v620
  %v764 = vpop.f32.mrb[0].mxu0
  %v765 = vadd.f32 0.0, %v764
  %v766 = vpop.f32.mrb[0].mxu0
  %767 = vmatprep.mubr.f32.mxu0 0.0
  %768 = vmatmul.mubr.f32.gmra.mrb[0].mxu0 %v625
  %v769 = vpop.f32.mrb[0].mxu0
  %v770 = vadd.f32 0.0, %v769
  %v771 = vpop.f32.mrb[0].mxu0
  %772 = vmatprep.mubr.f32.mxu0 0.0
  %773 = vmatmul.mubr.f32.gmra.mrb[0].mxu0 %v630
  %v774 = vpop.f32.mrb[0].mxu0
  %v775 = vadd.f32 0.0, %v774
  %v776 = vpop.f32.mrb[0].mxu0
  %777 = vmatprep.mubr.f32.mxu0 0.0
  %778 = vmatmul.mubr.f32.gmra.mrb[0].mxu0 %v635
  %v779 = vpop.f32.mrb[0].mxu0
  %v780 = vadd.f32 0.0, %v779
  %v781 = vpop.f32.mrb[0].mxu0
  %782 = vmatprep.mubr.f32.mxu0 0.0
  %783 = vmatmul.mubr.f32.gmra.mrb[0].mxu0 %v640
  %v784 = vpop.f32.mrb[0].mxu0
  %v785 = vadd.f32 0.0, %v784
  %v786 = vpop.f32.mrb[0].mxu0
  %787 = vdwg.mxu0
  %788 = vmatprep.subr.mxu0 0.0
  %789 = vmatpush1.msra.mxu0 %v710
  %790 = vmatprep.subr.mxu0 0.0
  %791 = vmatpush1.msra.mxu0 %v715
  %792 = vmatprep.subr.mxu0 0.0
  %793 = vmatpush1.msra.mxu0 %v720
  %794 = vmatprep.subr.mxu0 0.0
  %795 = vmatpush1.msra.mxu0 %v725
  %796 = vmatprep.subr.mxu0 0.0
  %797 = vmatpush1.msra.mxu0 %v730
  %798 = vmatprep.subr.mxu0 0.0
  %799 = vmatpush1.msra.mxu0 %v735
  %800 = vmatprep.subr.mxu0 0.0
  %801 = vmatpush1.msra.mxu0 %v740
  %802 = vmatprep.subr.mxu0 0.0
  %803 = vmatpush1.msra.mxu0 %v745
  %804 = vmatprep.subr.mxu0 0.0
  %805 = vmatpush1.msra.mxu0 %v750
  %806 = vmatprep.subr.mxu0 0.0
  %807 = vmatpush1.msra.mxu0 %v755
  %808 = vmatprep.subr.mxu0 0.0
  %809 = vmatpush1.msra.mxu0 %v760
  %810 = vmatprep.subr.mxu0 0.0
  %811 = vmatpush1.msra.mxu0 %v765
  %812 = vmatprep.subr.mxu0 0.0
  %813 = vmatpush1.msra.mxu0 %v770
  %814 = vmatprep.subr.mxu0 0.0
  %815 = vmatpush1.msra.mxu0 %v775
  %816 = vmatprep.subr.mxu0 0.0
  %817 = vmatpush1.msra.mxu0 %v780
  %818 = vmatprep.subr.mxu0 0.0
  %819 = vmatpush1.msra.mxu0 %v785
  %820 = vmatprep.subr.mxu0 0.0
  %821 = vmatpush1.msra.mxu0 0.0
  %822 = vmatprep.subr.mxu0 0.0
  %823 = vmatpush1.msra.mxu0 0.0
  %824 = vmatprep.subr.mxu0 0.0
  %825 = vmatpush1.msra.mxu0 0.0
  %826 = vmatprep.subr.mxu0 0.0
  %827 = vmatpush1.msra.mxu0 0.0
  %828 = vmatprep.subr.mxu0 0.0
  %829 = vmatpush1.msra.mxu0 0.0
  %830 = vmatprep.subr.mxu0 0.0
  %831 = vmatpush1.msra.mxu0 0.0
  %832 = vmatprep.subr.mxu0 0.0
  %833 = vmatpush1.msra.mxu0 0.0
  %834 = vmatprep.subr.mxu0 0.0
  %835 = vmatpush1.msra.mxu0 0.0
  %836 = vmatprep.subr.mxu0 0.0
  %837 = vmatpush1.msra.mxu0 0.0
  %838 = vmatprep.subr.mxu0 0.0
  %839 = vmatpush1.msra.mxu0 0.0
  %840 = vmatprep.subr.mxu0 0.0
  %841 = vmatpush1.msra.mxu0 0.0
  %842 = vmatprep.subr.mxu0 0.0
  %843 = vmatpush1.msra.mxu0 0.0
  %844 = vmatprep.subr.mxu0 0.0
  %845 = vmatpush1.msra.mxu0 0.0
  %846 = vmatprep.subr.mxu0 0.0
  %847 = vmatpush1.msra.mxu0 0.0
  %848 = vmatprep.subr.mxu0 0.0
  %849 = vmatpush1.msra.mxu0 0.0
  %850 = vmatprep.subr.mxu0 0.0
  %851 = vmatpush1.msra.mxu0 0.0
  %852 = vmatprep.mubr.f32.mxu0 0.0
  %853 = vmatmul.mubr.f32.gmra.mrb[0].mxu0 %v710
  %v854 = vpop.f32.mrb[0].mxu0
  %v855 = vadd.f32 0.0, %v854
  %v856 = vpop.f32.mrb[0].mxu0
  %857 = vmatprep.mubr.f32.mxu0 0.0
  %858 = vmatmul.mubr.f32.gmra.mrb[0].mxu0 %v715
  %v859 = vpop.f32.mrb[0].mxu0
  %v860 = vadd.f32 0.0, %v859
  %v861 = vpop.f32.mrb[0].mxu0
  %862 = vmatprep.mubr.f32.mxu0 0.0
  %863 = vmatmul.mubr.f32.gmra.mrb[0].mxu0 %v720
  %v864 = vpop.f32.mrb[0].mxu0
  %v865 = vadd.f32 0.0, %v864
  %v866 = vpop.f32.mrb[0].mxu0
  %867 = vmatprep.mubr.f32.mxu0 0.0
  %868 = vmatmul.mubr.f32.gmra.mrb[0].mxu0 %v725
  %v869 = vpop.f32.mrb[0].mxu0
  %v870 = vadd.f32 0.0, %v869
  %v871 = vpop.f32.mrb[0].mxu0
  %872 = vmatprep.mubr.f32.mxu0 0.0
  %873 = vmatmul.mubr.f32.gmra.mrb[0].mxu0 %v730
  %v874 = vpop.f32.mrb[0].mxu0
  %v875 = vadd.f32 0.0, %v874
  %v876 = vpop.f32.mrb[0].mxu0
  %877 = vmatprep.mubr.f32.mxu0 0.0
  %878 = vmatmul.mubr.f32.gmra.mrb[0].mxu0 %v735
  %v879 = vpop.f32.mrb[0].mxu0
  %v880 = vadd.f32 0.0, %v879
  %v881 = vpop.f32.mrb[0].mxu0
  %882 = vmatprep.mubr.f32.mxu0 0.0
  %883 = vmatmul.mubr.f32.gmra.mrb[0].mxu0 %v740
  %v884 = vpop.f32.mrb[0].mxu0
  %v885 = vadd.f32 0.0, %v884
  %v886 = vpop.f32.mrb[0].mxu0
  %887 = vmatprep.mubr.f32.mxu0 0.0
  %888 = vmatmul.mubr.f32.gmra.mrb[0].mxu0 %v745
  %v889 = vpop.f32.mrb[0].mxu0
  %v890 = vadd.f32 0.0, %v889
  %v891 = vpop.f32.mrb[0].mxu0
  %892 = vmatprep.mubr.f32.mxu0 0.0
  %893 = vmatmul.mubr.f32.gmra.mrb[0].mxu0 %v750
  %v894 = vpop.f32.mrb[0].mxu0
  %v895 = vadd.f32 0.0, %v894
  %v896 = vpop.f32.mrb[0].mxu0
  %897 = vmatprep.mubr.f32.mxu0 0.0
  %898 = vmatmul.mubr.f32.gmra.mrb[0].mxu0 %v755
  %v899 = vpop.f32.mrb[0].mxu0
  %v900 = vadd.f32 0.0, %v899
  %v901 = vpop.f32.mrb[0].mxu0
  %902 = vmatprep.mubr.f32.mxu0 0.0
  %903 = vmatmul.mubr.f32.gmra.mrb[0].mxu0 %v760
  %v904 = vpop.f32.mrb[0].mxu0
  %v905 = vadd.f32 0.0, %v904
  %v906 = vpop.f32.mrb[0].mxu0
  %907 = vmatprep.mubr.f32.mxu0 0.0
  %908 = vmatmul.mubr.f32.gmra.mrb[0].mxu0 %v765
  %v909 = vpop.f32.mrb[0].mxu0
  %v910 = vadd.f32 0.0, %v909
  %v911 = vpop.f32.mrb[0].mxu0
  %912 = vmatprep.mubr.f32.mxu0 0.0
  %913 = vmatmul.mubr.f32.gmra.mrb[0].mxu0 %v770
  %v914 = vpop.f32.mrb[0].mxu0
  %v915 = vadd.f32 0.0, %v914
  %v916 = vpop.f32.mrb[0].mxu0
  %917 = vmatprep.mubr.f32.mxu0 0.0
  %918 = vmatmul.mubr.f32.gmra.mrb[0].mxu0 %v775
  %v919 = vpop.f32.mrb[0].mxu0
  %v920 = vadd.f32 0.0, %v919
  %v921 = vpop.f32.mrb[0].mxu0
  %922 = vmatprep.mubr.f32.mxu0 0.0
  %923 = vmatmul.mubr.f32.gmra.mrb[0].mxu0 %v780
  %v924 = vpop.f32.mrb[0].mxu0
  %v925 = vadd.f32 0.0, %v924
  %v926 = vpop.f32.mrb[0].mxu0
  %927 = vmatprep.mubr.f32.mxu0 0.0
  %928 = vmatmul.mubr.f32.gmra.mrb[0].mxu0 %v785
  %v929 = vpop.f32.mrb[0].mxu0
  %v930 = vadd.f32 0.0, %v929
  %v931 = vpop.f32.mrb[0].mxu0
  %932 = vdwg.mxu0
  %vm933 = vcmp.eq.s32.totalorder %v78, 0
  %vm934 = vcmp.eq.s32.totalorder %v79, 0
  %vm935 = vcmp.eq.s32.totalorder %v80, 0
  %vm936 = vcmp.eq.s32.totalorder %v81, 0
  %vm937 = vcmp.eq.s32.totalorder %v82, 0
  %vm938 = vcmp.eq.s32.totalorder %v83, 0
  %vm939 = vcmp.eq.s32.totalorder %v84, 0
  %vm940 = vcmp.eq.s32.totalorder %v85, 0
  %vm941 = vcmp.eq.s32.totalorder %v86, 0
  %vm942 = vcmp.eq.s32.totalorder %v87, 0
  %vm943 = vcmp.eq.s32.totalorder %v88, 0
  %vm944 = vcmp.eq.s32.totalorder %v89, 0
  %vm945 = vcmp.eq.s32.totalorder %v90, 0
  %vm946 = vcmp.eq.s32.totalorder %v91, 0
  %vm947 = vcmp.eq.s32.totalorder %v92, 0
  %vm948 = vcmp.eq.s32.totalorder %v93, 0
  %v949 = vsel %vm933, 1, 0
  %v950 = vsel %vm934, 1, 0
  %v951 = vsel %vm935, 1, 0
  %v952 = vsel %vm936, 1, 0
  %v953 = vsel %vm937, 1, 0
  %v954 = vsel %vm938, 1, 0
  %v955 = vsel %vm939, 1, 0
  %v956 = vsel %vm940, 1, 0
  %v957 = vsel %vm941, 1, 0
  %v958 = vsel %vm942, 1, 0
  %v959 = vsel %vm943, 1, 0
  %v960 = vsel %vm944, 1, 0
  %v961 = vsel %vm945, 1, 0
  %v962 = vsel %vm946, 1, 0
  %v963 = vsel %vm947, 1, 0
  %v964 = vsel %vm948, 1, 0
  %v965 = vcvt.s32.f32 %v949
  %v966 = vcvt.s32.f32 %v950
  %v967 = vcvt.s32.f32 %v951
  %v968 = vcvt.s32.f32 %v952
  %v969 = vcvt.s32.f32 %v953
  %v970 = vcvt.s32.f32 %v954
  %v971 = vcvt.s32.f32 %v955
  %v972 = vcvt.s32.f32 %v956
  %v973 = vcvt.s32.f32 %v957
  %v974 = vcvt.s32.f32 %v958
  %v975 = vcvt.s32.f32 %v959
  %v976 = vcvt.s32.f32 %v960
  %v977 = vcvt.s32.f32 %v961
  %v978 = vcvt.s32.f32 %v962
  %v979 = vcvt.s32.f32 %v963
  %v980 = vcvt.s32.f32 %v964
  %vm981 = vcmp.eq.s32.totalorder %v95, 1
  %v982 = vsel %vm981, 1, 0
  %v983 = vcvt.s32.f32 %v982
  %vm984 = vcmp.eq.s32.totalorder %v78, 2
  %vm985 = vcmp.eq.s32.totalorder %v79, 2
  %vm986 = vcmp.eq.s32.totalorder %v80, 2
  %vm987 = vcmp.eq.s32.totalorder %v81, 2
  %vm988 = vcmp.eq.s32.totalorder %v82, 2
  %vm989 = vcmp.eq.s32.totalorder %v83, 2
  %vm990 = vcmp.eq.s32.totalorder %v84, 2
  %vm991 = vcmp.eq.s32.totalorder %v85, 2
  %vm992 = vcmp.eq.s32.totalorder %v86, 2
  %vm993 = vcmp.eq.s32.totalorder %v87, 2
  %vm994 = vcmp.eq.s32.totalorder %v88, 2
  %vm995 = vcmp.eq.s32.totalorder %v89, 2
  %vm996 = vcmp.eq.s32.totalorder %v90, 2
  %vm997 = vcmp.eq.s32.totalorder %v91, 2
  %vm998 = vcmp.eq.s32.totalorder %v92, 2
  %vm999 = vcmp.eq.s32.totalorder %v93, 2
  %v1000 = vsel %vm984, 1, 0
  %v1001 = vsel %vm985, 1, 0
  %v1002 = vsel %vm986, 1, 0
  %v1003 = vsel %vm987, 1, 0
  %v1004 = vsel %vm988, 1, 0
  %v1005 = vsel %vm989, 1, 0
  %v1006 = vsel %vm990, 1, 0
  %v1007 = vsel %vm991, 1, 0
  %v1008 = vsel %vm992, 1, 0
  %v1009 = vsel %vm993, 1, 0
  %v1010 = vsel %vm994, 1, 0
  %v1011 = vsel %vm995, 1, 0
  %v1012 = vsel %vm996, 1, 0
  %v1013 = vsel %vm997, 1, 0
  %v1014 = vsel %vm998, 1, 0
  %v1015 = vsel %vm999, 1, 0
  %v1016 = vcvt.s32.f32 %v1000
  %v1017 = vcvt.s32.f32 %v1001
  %v1018 = vcvt.s32.f32 %v1002
  %v1019 = vcvt.s32.f32 %v1003
  %v1020 = vcvt.s32.f32 %v1004
  %v1021 = vcvt.s32.f32 %v1005
  %v1022 = vcvt.s32.f32 %v1006
  %v1023 = vcvt.s32.f32 %v1007
  %v1024 = vcvt.s32.f32 %v1008
  %v1025 = vcvt.s32.f32 %v1009
  %v1026 = vcvt.s32.f32 %v1010
  %v1027 = vcvt.s32.f32 %v1011
  %v1028 = vcvt.s32.f32 %v1012
  %v1029 = vcvt.s32.f32 %v1013
  %v1030 = vcvt.s32.f32 %v1014
  %v1031 = vcvt.s32.f32 %v1015
  %vm1032 = vcmp.eq.s32.totalorder %v95, 3
  %v1033 = vsel %vm1032, 1, 0
  %v1034 = vcvt.s32.f32 %v1033
  %v1035 = vld [vmem:[%s0] sm:$0xff]
  %v1036 = vld [vmem:[%s0 + $0x8] sm:$0xff]
  %v1037 = vld [vmem:[%s0 + $0x10] sm:$0xff]
  %v1038 = vld [vmem:[%s0 + $0x18] sm:$0xff]
  %v1039 = vld [vmem:[%s0 + $0x20] sm:$0xff]
  %v1040 = vld [vmem:[%s0 + $0x28] sm:$0xff]
  %v1041 = vld [vmem:[%s0 + $0x30] sm:$0xff]
  %v1042 = vld [vmem:[%s0 + $0x38] sm:$0xff]
  %v1043 = vld [vmem:[%s0 + $0x40] sm:$0xff]
  %v1044 = vld [vmem:[%s0 + $0x48] sm:$0xff]
  %v1045 = vld [vmem:[%s0 + $0x50] sm:$0xff]
  %v1046 = vld [vmem:[%s0 + $0x58] sm:$0xff]
  %v1047 = vld [vmem:[%s0 + $0x60] sm:$0xff]
  %v1048 = vld [vmem:[%s0 + $0x68] sm:$0xff]
  %v1049 = vld [vmem:[%s0 + $0x70] sm:$0xff]
  %v1050 = vld [vmem:[%s0 + $0x78] sm:$0xff]
  %v1051 = vpack.c.bf16 %v1036, %v1035
  %v1052 = vpack.c.bf16 %v1038, %v1037
  %v1053 = vpack.c.bf16 %v1040, %v1039
  %v1054 = vpack.c.bf16 %v1042, %v1041
  %v1055 = vpack.c.bf16 %v1044, %v1043
  %v1056 = vpack.c.bf16 %v1046, %v1045
  %v1057 = vpack.c.bf16 %v1048, %v1047
  %v1058 = vpack.c.bf16 %v1050, %v1049
  %v1059 = vld [vmem:[%s6] sm:$0xff]
  %vm1060 = vcmask 64512
  %v1062 = vsel %vm1060, %v1035, 0
  %v1065 = vsel %vm1060, %v1036, 0
  %v1068 = vsel %vm1060, %v1037, 0
  %v1071 = vsel %vm1060, %v1038, 0
  %v1074 = vsel %vm1060, %v1039, 0
  %v1077 = vsel %vm1060, %v1040, 0
  %v1080 = vsel %vm1060, %v1041, 0
  %v1083 = vsel %vm1060, %v1042, 0
  %v1086 = vsel %vm1060, %v1043, 0
  %v1089 = vsel %vm1060, %v1044, 0
  %v1092 = vsel %vm1060, %v1045, 0
  %v1095 = vsel %vm1060, %v1046, 0
  %v1098 = vsel %vm1060, %v1047, 0
  %v1101 = vsel %vm1060, %v1048, 0
  %v1104 = vsel %vm1060, %v1049, 0
  %v1107 = vsel %vm1060, %v1050, 0
  %1109 = vmatprep.subr.mxu0 0.0
  %1110 = vmatpush1.msra.mxu0 %v1059
  %1111 = vmatprep.subr.mxu0 0.0
  %1112 = vmatpush1.msra.mxu0 0.0
  %1113 = vmatprep.subr.mxu0 0.0
  %1114 = vmatpush1.msra.mxu0 0.0
  %1115 = vmatprep.subr.mxu0 0.0
  %1116 = vmatpush1.msra.mxu0 0.0
  %1117 = vmatprep.subr.mxu0 0.0
  %1118 = vmatpush1.msra.mxu0 0.0
  %1119 = vmatprep.subr.mxu0 0.0
  %1120 = vmatpush1.msra.mxu0 0.0
  %1121 = vmatprep.subr.mxu0 0.0
  %1122 = vmatpush1.msra.mxu0 0.0
  %1123 = vmatprep.subr.mxu0 0.0
  %1124 = vmatpush1.msra.mxu0 0.0
  %1125 = vmatprep.subr.mxu0 0.0
  %1126 = vmatpush1.msra.mxu0 0.0
  %1127 = vmatprep.subr.mxu0 0.0
  %1128 = vmatpush1.msra.mxu0 0.0
  %1129 = vmatprep.subr.mxu0 0.0
  %1130 = vmatpush1.msra.mxu0 0.0
  %1131 = vmatprep.subr.mxu0 0.0
  %1132 = vmatpush1.msra.mxu0 0.0
  %1133 = vmatprep.subr.mxu0 0.0
  %1134 = vmatpush1.msra.mxu0 0.0
  %1135 = vmatprep.subr.mxu0 0.0
  %1136 = vmatpush1.msra.mxu0 0.0
  %1137 = vmatprep.subr.mxu0 0.0
  %1138 = vmatpush1.msra.mxu0 0.0
  %1139 = vmatprep.subr.mxu0 0.0
  %1140 = vmatpush1.msra.mxu0 0.0
  %1141 = vmatprep.subr.mxu0 0.0
  %1142 = vmatpush1.msra.mxu0 0.0
  %1143 = vmatprep.subr.mxu0 0.0
  %1144 = vmatpush1.msra.mxu0 0.0
  %1145 = vmatprep.subr.mxu0 0.0
  %1146 = vmatpush1.msra.mxu0 0.0
  %1147 = vmatprep.subr.mxu0 0.0
  %1148 = vmatpush1.msra.mxu0 0.0
  %1149 = vmatprep.subr.mxu0 0.0
  %1150 = vmatpush1.msra.mxu0 0.0
  %1151 = vmatprep.subr.mxu0 0.0
  %1152 = vmatpush1.msra.mxu0 0.0
  %1153 = vmatprep.subr.mxu0 0.0
  %1154 = vmatpush1.msra.mxu0 0.0
  %1155 = vmatprep.subr.mxu0 0.0
  %1156 = vmatpush1.msra.mxu0 0.0
  %1157 = vmatprep.subr.mxu0 0.0
  %1158 = vmatpush1.msra.mxu0 0.0
  %1159 = vmatprep.subr.mxu0 0.0
  %1160 = vmatpush1.msra.mxu0 0.0
  %1161 = vmatprep.subr.mxu0 0.0
  %1162 = vmatpush1.msra.mxu0 0.0
  %1163 = vmatprep.subr.mxu0 0.0
  %1164 = vmatpush1.msra.mxu0 0.0
  %1165 = vmatprep.subr.mxu0 0.0
  %1166 = vmatpush1.msra.mxu0 0.0
  %1167 = vmatprep.subr.mxu0 0.0
  %1168 = vmatpush1.msra.mxu0 0.0
  %1169 = vmatprep.subr.mxu0 0.0
  %1170 = vmatpush1.msra.mxu0 0.0
  %1171 = vmatprep.subr.mxu0 0.0
  %1172 = vmatpush1.msra.mxu0 0.0
  %1173 = vmatprep.mubr.f32.mxu0 0.0
  %1174 = vmatmul.mubr.f32.gmra.mrb[0].mxu0 %v1062
  %v1175 = vpop.f32.mrb[0].mxu0
  %v1176 = vadd.f32 0.0, %v1175
  %v1177 = vpop.f32.mrb[0].mxu0
  %1178 = vmatprep.mubr.f32.mxu0 0.0
  %1179 = vmatmul.mubr.f32.gmra.mrb[0].mxu0 %v1065
  %v1180 = vpop.f32.mrb[0].mxu0
  %v1181 = vadd.f32 0.0, %v1180
  %v1182 = vpop.f32.mrb[0].mxu0
  %1183 = vmatprep.mubr.f32.mxu0 0.0
  %1184 = vmatmul.mubr.f32.gmra.mrb[0].mxu0 %v1068
  %v1185 = vpop.f32.mrb[0].mxu0
  %v1186 = vadd.f32 0.0, %v1185
  %v1187 = vpop.f32.mrb[0].mxu0
  %1188 = vmatprep.mubr.f32.mxu0 0.0
  %1189 = vmatmul.mubr.f32.gmra.mrb[0].mxu0 %v1071
  %v1190 = vpop.f32.mrb[0].mxu0
  %v1191 = vadd.f32 0.0, %v1190
  %v1192 = vpop.f32.mrb[0].mxu0
  %1193 = vmatprep.mubr.f32.mxu0 0.0
  %1194 = vmatmul.mubr.f32.gmra.mrb[0].mxu0 %v1074
  %v1195 = vpop.f32.mrb[0].mxu0
  %v1196 = vadd.f32 0.0, %v1195
  %v1197 = vpop.f32.mrb[0].mxu0
  %1198 = vmatprep.mubr.f32.mxu0 0.0
  %1199 = vmatmul.mubr.f32.gmra.mrb[0].mxu0 %v1077
  %v1200 = vpop.f32.mrb[0].mxu0
  %v1201 = vadd.f32 0.0, %v1200
  %v1202 = vpop.f32.mrb[0].mxu0
  %1203 = vmatprep.mubr.f32.mxu0 0.0
  %1204 = vmatmul.mubr.f32.gmra.mrb[0].mxu0 %v1080
  %v1205 = vpop.f32.mrb[0].mxu0
  %v1206 = vadd.f32 0.0, %v1205
  %v1207 = vpop.f32.mrb[0].mxu0
  %1208 = vmatprep.mubr.f32.mxu0 0.0
  %1209 = vmatmul.mubr.f32.gmra.mrb[0].mxu0 %v1083
  %v1210 = vpop.f32.mrb[0].mxu0
  %v1211 = vadd.f32 0.0, %v1210
  %v1212 = vpop.f32.mrb[0].mxu0
  %1213 = vmatprep.mubr.f32.mxu0 0.0
  %1214 = vmatmul.mubr.f32.gmra.mrb[0].mxu0 %v1086
  %v1215 = vpop.f32.mrb[0].mxu0
  %v1216 = vadd.f32 0.0, %v1215
  %v1217 = vpop.f32.mrb[0].mxu0
  %1218 = vmatprep.mubr.f32.mxu0 0.0
  %1219 = vmatmul.mubr.f32.gmra.mrb[0].mxu0 %v1089
  %v1220 = vpop.f32.mrb[0].mxu0
  %v1221 = vadd.f32 0.0, %v1220
  %v1222 = vpop.f32.mrb[0].mxu0
  %1223 = vmatprep.mubr.f32.mxu0 0.0
  %1224 = vmatmul.mubr.f32.gmra.mrb[0].mxu0 %v1092
  %v1225 = vpop.f32.mrb[0].mxu0
  %v1226 = vadd.f32 0.0, %v1225
  %v1227 = vpop.f32.mrb[0].mxu0
  %1228 = vmatprep.mubr.f32.mxu0 0.0
  %1229 = vmatmul.mubr.f32.gmra.mrb[0].mxu0 %v1095
  %v1230 = vpop.f32.mrb[0].mxu0
  %v1231 = vadd.f32 0.0, %v1230
  %v1232 = vpop.f32.mrb[0].mxu0
  %1233 = vmatprep.mubr.f32.mxu0 0.0
  %1234 = vmatmul.mubr.f32.gmra.mrb[0].mxu0 %v1098
  %v1235 = vpop.f32.mrb[0].mxu0
  %v1236 = vadd.f32 0.0, %v1235
  %v1237 = vpop.f32.mrb[0].mxu0
  %1238 = vmatprep.mubr.f32.mxu0 0.0
  %1239 = vmatmul.mubr.f32.gmra.mrb[0].mxu0 %v1101
  %v1240 = vpop.f32.mrb[0].mxu0
  %v1241 = vadd.f32 0.0, %v1240
  %v1242 = vpop.f32.mrb[0].mxu0
  %1243 = vmatprep.mubr.f32.mxu0 0.0
  %1244 = vmatmul.mubr.f32.gmra.mrb[0].mxu0 %v1104
  %v1245 = vpop.f32.mrb[0].mxu0
  %v1246 = vadd.f32 0.0, %v1245
  %v1247 = vpop.f32.mrb[0].mxu0
  %1248 = vmatprep.mubr.f32.mxu0 0.0
  %1249 = vmatmul.mubr.f32.gmra.mrb[0].mxu0 %v1107
  %v1250 = vpop.f32.mrb[0].mxu0
  %v1251 = vadd.f32 0.0, %v1250
  %v1252 = vpop.f32.mrb[0].mxu0
  %1253 = vdwg.mxu0
  %v1254 = vld [vmem:[%s3] sm:$0xf]
  %s1255 = scalar_lea.vmem %s3, 4
  %v1256 = vld [vmem:[%s1255] sm:$0xf]
  %v1258 = vsel %vm1060, %v1051, 0
  %v1261 = vsel %vm1060, %v1052, 0
  %v1264 = vsel %vm1060, %v1053, 0
  %v1267 = vsel %vm1060, %v1054, 0
  %v1270 = vsel %vm1060, %v1055, 0
  %v1273 = vsel %vm1060, %v1056, 0
  %v1276 = vsel %vm1060, %v1057, 0
  %v1279 = vsel %vm1060, %v1058, 0
  %vm1281 = vcmask 1043456
  %v1283 = vsel %vm1281, %v1256, 0
  %1285 = vmatprep.subr.bf16.mxu0 0
  %1286 = vmatpush1.bf16.msra.mxu0 %v1283
  %1287 = vmatprep.subr.bf16.mxu0 0
  %1288 = vmatpush1.bf16.msra.mxu0 0
  %1289 = vmatprep.subr.bf16.mxu0 0
  %1290 = vmatpush1.bf16.msra.mxu0 0
  %1291 = vmatprep.subr.bf16.mxu0 0
  %1292 = vmatpush1.bf16.msra.mxu0 0
  %1293 = vmatprep.subr.bf16.mxu0 0
  %1294 = vmatpush1.bf16.msra.mxu0 0
  %1295 = vmatprep.subr.bf16.mxu0 0
  %1296 = vmatpush1.bf16.msra.mxu0 0
  %1297 = vmatprep.subr.bf16.mxu0 0
  %1298 = vmatpush1.bf16.msra.mxu0 0
  %1299 = vmatprep.subr.bf16.mxu0 0
  %1300 = vmatpush1.bf16.msra.mxu0 0
  %1301 = vmatprep.subr.bf16.mxu0 0
  %1302 = vmatpush1.bf16.msra.mxu0 0
  %1303 = vmatprep.subr.bf16.mxu0 0
  %1304 = vmatpush1.bf16.msra.mxu0 0
  %1305 = vmatprep.subr.bf16.mxu0 0
  %1306 = vmatpush1.bf16.msra.mxu0 0
  %1307 = vmatprep.subr.bf16.mxu0 0
  %1308 = vmatpush1.bf16.msra.mxu0 0
  %1309 = vmatprep.subr.bf16.mxu0 0
  %1310 = vmatpush1.bf16.msra.mxu0 0
  %1311 = vmatprep.subr.bf16.mxu0 0
  %1312 = vmatpush1.bf16.msra.mxu0 0
  %1313 = vmatprep.subr.bf16.mxu0 0
  %1314 = vmatpush1.bf16.msra.mxu0 0
  %1315 = vmatprep.subr.bf16.mxu0 0
  %1316 = vmatpush1.bf16.msra.mxu0 0
  %1317 = vmatprep.mubr.bf16.mxu0 0
  %1318 = vmatmul.mubr.bf16.gmra.mrb[0].mxu0 %v1258
  %v1319 = vpop.f32.mrb[0].mxu0
  %v1320 = vadd.f32 0.0, %v1319
  %v1321 = vpop.f32.mrb[0].mxu0
  %v1322 = vpop.f32.mrb[0].mxu0
  %v1323 = vadd.f32 0.0, %v1322
  %v1324 = vpop.f32.mrb[0].mxu0
  %1325 = vmatprep.mubr.bf16.mxu0 0
  %1326 = vmatmul.mubr.bf16.gmra.mrb[0].mxu0 %v1261
  %v1327 = vpop.f32.mrb[0].mxu0
  %v1328 = vadd.f32 0.0, %v1327
  %v1329 = vpop.f32.mrb[0].mxu0
  %v1330 = vpop.f32.mrb[0].mxu0
  %v1331 = vadd.f32 0.0, %v1330
  %v1332 = vpop.f32.mrb[0].mxu0
  %1333 = vmatprep.mubr.bf16.mxu0 0
  %1334 = vmatmul.mubr.bf16.gmra.mrb[0].mxu0 %v1264
  %v1335 = vpop.f32.mrb[0].mxu0
  %v1336 = vadd.f32 0.0, %v1335
  %v1337 = vpop.f32.mrb[0].mxu0
  %v1338 = vpop.f32.mrb[0].mxu0
  %v1339 = vadd.f32 0.0, %v1338
  %v1340 = vpop.f32.mrb[0].mxu0
  %1341 = vmatprep.mubr.bf16.mxu0 0
  %1342 = vmatmul.mubr.bf16.gmra.mrb[0].mxu0 %v1267
  %v1343 = vpop.f32.mrb[0].mxu0
  %v1344 = vadd.f32 0.0, %v1343
  %v1345 = vpop.f32.mrb[0].mxu0
  %v1346 = vpop.f32.mrb[0].mxu0
  %v1347 = vadd.f32 0.0, %v1346
  %v1348 = vpop.f32.mrb[0].mxu0
  %1349 = vmatprep.mubr.bf16.mxu0 0
  %1350 = vmatmul.mubr.bf16.gmra.mrb[0].mxu0 %v1270
  %v1351 = vpop.f32.mrb[0].mxu0
  %v1352 = vadd.f32 0.0, %v1351
  %v1353 = vpop.f32.mrb[0].mxu0
  %v1354 = vpop.f32.mrb[0].mxu0
  %v1355 = vadd.f32 0.0, %v1354
  %v1356 = vpop.f32.mrb[0].mxu0
  %1357 = vmatprep.mubr.bf16.mxu0 0
  %1358 = vmatmul.mubr.bf16.gmra.mrb[0].mxu0 %v1273
  %v1359 = vpop.f32.mrb[0].mxu0
  %v1360 = vadd.f32 0.0, %v1359
  %v1361 = vpop.f32.mrb[0].mxu0
  %v1362 = vpop.f32.mrb[0].mxu0
  %v1363 = vadd.f32 0.0, %v1362
  %v1364 = vpop.f32.mrb[0].mxu0
  %1365 = vmatprep.mubr.bf16.mxu0 0
  %1366 = vmatmul.mubr.bf16.gmra.mrb[0].mxu0 %v1276
  %v1367 = vpop.f32.mrb[0].mxu0
  %v1368 = vadd.f32 0.0, %v1367
  %v1369 = vpop.f32.mrb[0].mxu0
  %v1370 = vpop.f32.mrb[0].mxu0
  %v1371 = vadd.f32 0.0, %v1370
  %v1372 = vpop.f32.mrb[0].mxu0
  %1373 = vmatprep.mubr.bf16.mxu0 0
  %1374 = vmatmul.mubr.bf16.gmra.mrb[0].mxu0 %v1279
  %v1375 = vpop.f32.mrb[0].mxu0
  %v1376 = vadd.f32 0.0, %v1375
  %v1377 = vpop.f32.mrb[0].mxu0
  %v1378 = vpop.f32.mrb[0].mxu0
  %v1379 = vadd.f32 0.0, %v1378
  %v1380 = vpop.f32.mrb[0].mxu0
  %1381 = vdwg.mxu0
  %1382 = vmatprep.subr.mxu0 0.0
  %1383 = vmatpush1.xpose.msra.mxu0 %v1176
  %1384 = vmatprep.subr.mxu0 0.0
  %1385 = vmatpush1.xpose.msra.mxu0 %v1181
  %1386 = vmatprep.subr.mxu0 0.0
  %1387 = vmatpush1.xpose.msra.mxu0 %v1186
  %1388 = vmatprep.subr.mxu0 0.0
  %1389 = vmatpush1.xpose.msra.mxu0 %v1191
  %1390 = vmatprep.subr.mxu0 0.0
  %1391 = vmatpush1.xpose.msra.mxu0 %v1196
  %1392 = vmatprep.subr.mxu0 0.0
  %1393 = vmatpush1.xpose.msra.mxu0 %v1201
  %1394 = vmatprep.subr.mxu0 0.0
  %1395 = vmatpush1.xpose.msra.mxu0 %v1206
  %1396 = vmatprep.subr.mxu0 0.0
  %1397 = vmatpush1.xpose.msra.mxu0 %v1211
  %1398 = vmatprep.subr.mxu0 0.0
  %1399 = vmatpush1.xpose.msra.mxu0 %v1216
  %1400 = vmatprep.subr.mxu0 0.0
  %1401 = vmatpush1.xpose.msra.mxu0 %v1221
  %1402 = vmatprep.subr.mxu0 0.0
  %1403 = vmatpush1.xpose.msra.mxu0 %v1226
  %1404 = vmatprep.subr.mxu0 0.0
  %1405 = vmatpush1.xpose.msra.mxu0 %v1231
  %1406 = vmatprep.subr.mxu0 0.0
  %1407 = vmatpush1.xpose.msra.mxu0 %v1236
  %1408 = vmatprep.subr.mxu0 0.0
  %1409 = vmatpush1.xpose.msra.mxu0 %v1241
  %1410 = vmatprep.subr.mxu0 0.0
  %1411 = vmatpush1.xpose.msra.mxu0 %v1246
  %1412 = vmatprep.subr.mxu0 0.0
  %1413 = vmatpush1.xpose.msra.mxu0 %v1251
  %1414 = vmatprep.subr.mxu0 0.0
  %1415 = vmatpush1.xpose.msra.mxu0 0.0
  %1416 = vmatprep.subr.mxu0 0.0
  %1417 = vmatpush1.xpose.msra.mxu0 0.0
  %1418 = vmatprep.subr.mxu0 0.0
  %1419 = vmatpush1.xpose.msra.mxu0 0.0
  %1420 = vmatprep.subr.mxu0 0.0
  %1421 = vmatpush1.xpose.msra.mxu0 0.0
  %1422 = vmatprep.subr.mxu0 0.0
  %1423 = vmatpush1.xpose.msra.mxu0 0.0
  %1424 = vmatprep.subr.mxu0 0.0
  %1425 = vmatpush1.xpose.msra.mxu0 0.0
  %1426 = vmatprep.subr.mxu0 0.0
  %1427 = vmatpush1.xpose.msra.mxu0 0.0
  %1428 = vmatprep.subr.mxu0 0.0
  %1429 = vmatpush1.xpose.msra.mxu0 0.0
  %1430 = vmatprep.subr.mxu0 0.0
  %1431 = vmatpush1.xpose.msra.mxu0 0.0
  %1432 = vmatprep.subr.mxu0 0.0
  %1433 = vmatpush1.xpose.msra.mxu0 0.0
  %1434 = vmatprep.subr.mxu0 0.0
  %1435 = vmatpush1.xpose.msra.mxu0 0.0
  %1436 = vmatprep.subr.mxu0 0.0
  %1437 = vmatpush1.xpose.msra.mxu0 0.0
  %1438 = vmatprep.subr.mxu0 0.0
  %1439 = vmatpush1.xpose.msra.mxu0 0.0
  %1440 = vmatprep.subr.mxu0 0.0
  %1441 = vmatpush1.xpose.msra.mxu0 0.0
  %1442 = vmatprep.subr.mxu0 0.0
  %1443 = vmatpush1.xpose.msra.mxu0 0.0
  %1444 = vmatprep.subr.mxu0 0.0
  %1445 = vmatpush1.xpose.msra.mxu0 0.0
  %1446 = vmatprep.mubr.f32.mxu0 0.0
  %1447 = vmatmul.mubr.f32.gmra.mrb[0].mxu0 %v983
  %v1448 = vpop.f32.mrb[0].mxu0
  %v1449 = vadd.f32 0.0, %v1448
  %v1450 = vpop.f32.mrb[0].mxu0
  %1451 = vmatprep.mubr.f32.mxu0 0.0
  %1452 = vmatmul.mubr.f32.gmra.mrb[0].mxu0 %v983
  %v1453 = vpop.f32.mrb[0].mxu0
  %v1454 = vadd.f32 0.0, %v1453
  %v1455 = vpop.f32.mrb[0].mxu0
  %1456 = vmatprep.mubr.f32.mxu0 0.0
  %1457 = vmatmul.mubr.f32.gmra.mrb[0].mxu0 %v983
  %v1458 = vpop.f32.mrb[0].mxu0
  %v1459 = vadd.f32 0.0, %v1458
  %v1460 = vpop.f32.mrb[0].mxu0
  %1461 = vmatprep.mubr.f32.mxu0 0.0
  %1462 = vmatmul.mubr.f32.gmra.mrb[0].mxu0 %v983
  %v1463 = vpop.f32.mrb[0].mxu0
  %v1464 = vadd.f32 0.0, %v1463
  %v1465 = vpop.f32.mrb[0].mxu0
  %1466 = vmatprep.mubr.f32.mxu0 0.0
  %1467 = vmatmul.mubr.f32.gmra.mrb[0].mxu0 %v983
  %v1468 = vpop.f32.mrb[0].mxu0
  %v1469 = vadd.f32 0.0, %v1468
  %v1470 = vpop.f32.mrb[0].mxu0
  %1471 = vmatprep.mubr.f32.mxu0 0.0
  %1472 = vmatmul.mubr.f32.gmra.mrb[0].mxu0 %v983
  %v1473 = vpop.f32.mrb[0].mxu0
  %v1474 = vadd.f32 0.0, %v1473
  %v1475 = vpop.f32.mrb[0].mxu0
  %1476 = vmatprep.mubr.f32.mxu0 0.0
  %1477 = vmatmul.mubr.f32.gmra.mrb[0].mxu0 %v983
  %v1478 = vpop.f32.mrb[0].mxu0
  %v1479 = vadd.f32 0.0, %v1478
  %v1480 = vpop.f32.mrb[0].mxu0
  %1481 = vmatprep.mubr.f32.mxu0 0.0
  %1482 = vmatmul.mubr.f32.gmra.mrb[0].mxu0 %v983
  %v1483 = vpop.f32.mrb[0].mxu0
  %v1484 = vadd.f32 0.0, %v1483
  %v1485 = vpop.f32.mrb[0].mxu0
  %1486 = vmatprep.mubr.f32.mxu0 0.0
  %1487 = vmatmul.mubr.f32.gmra.mrb[0].mxu0 %v983
  %v1488 = vpop.f32.mrb[0].mxu0
  %v1489 = vadd.f32 0.0, %v1488
  %v1490 = vpop.f32.mrb[0].mxu0
  %1491 = vmatprep.mubr.f32.mxu0 0.0
  %1492 = vmatmul.mubr.f32.gmra.mrb[0].mxu0 %v983
  %v1493 = vpop.f32.mrb[0].mxu0
  %v1494 = vadd.f32 0.0, %v1493
  %v1495 = vpop.f32.mrb[0].mxu0
  %1496 = vmatprep.mubr.f32.mxu0 0.0
  %1497 = vmatmul.mubr.f32.gmra.mrb[0].mxu0 %v983
  %v1498 = vpop.f32.mrb[0].mxu0
  %v1499 = vadd.f32 0.0, %v1498
  %v1500 = vpop.f32.mrb[0].mxu0
  %1501 = vmatprep.mubr.f32.mxu0 0.0
  %1502 = vmatmul.mubr.f32.gmra.mrb[0].mxu0 %v983
  %v1503 = vpop.f32.mrb[0].mxu0
  %v1504 = vadd.f32 0.0, %v1503
  %v1505 = vpop.f32.mrb[0].mxu0
  %1506 = vmatprep.mubr.f32.mxu0 0.0
  %1507 = vmatmul.mubr.f32.gmra.mrb[0].mxu0 %v983
  %v1508 = vpop.f32.mrb[0].mxu0
  %v1509 = vadd.f32 0.0, %v1508
  %v1510 = vpop.f32.mrb[0].mxu0
  %1511 = vmatprep.mubr.f32.mxu0 0.0
  %1512 = vmatmul.mubr.f32.gmra.mrb[0].mxu0 %v983
  %v1513 = vpop.f32.mrb[0].mxu0
  %v1514 = vadd.f32 0.0, %v1513
  %v1515 = vpop.f32.mrb[0].mxu0
  %1516 = vmatprep.mubr.f32.mxu0 0.0
  %1517 = vmatmul.mubr.f32.gmra.mrb[0].mxu0 %v983
  %v1518 = vpop.f32.mrb[0].mxu0
  %v1519 = vadd.f32 0.0, %v1518
  %v1520 = vpop.f32.mrb[0].mxu0
  %1521 = vmatprep.mubr.f32.mxu0 0.0
  %1522 = vmatmul.mubr.f32.gmra.mrb[0].mxu0 %v983
  %v1523 = vpop.f32.mrb[0].mxu0
  %v1524 = vadd.f32 0.0, %v1523
  %v1525 = vpop.f32.mrb[0].mxu0
  %1526 = vdwg.mxu0
  %1527 = vmatprep.subr.mxu0 0.0
  %1528 = vmatpush1.msra.mxu0 %v965
  %1529 = vmatprep.subr.mxu0 0.0
  %1530 = vmatpush1.msra.mxu0 %v966
  %1531 = vmatprep.subr.mxu0 0.0
  %1532 = vmatpush1.msra.mxu0 %v967
  %1533 = vmatprep.subr.mxu0 0.0
  %1534 = vmatpush1.msra.mxu0 %v968
  %1535 = vmatprep.subr.mxu0 0.0
  %1536 = vmatpush1.msra.mxu0 %v969
  %1537 = vmatprep.subr.mxu0 0.0
  %1538 = vmatpush1.msra.mxu0 %v970
  %1539 = vmatprep.subr.mxu0 0.0
  %1540 = vmatpush1.msra.mxu0 %v971
  %1541 = vmatprep.subr.mxu0 0.0
  %1542 = vmatpush1.msra.mxu0 %v972
  %1543 = vmatprep.subr.mxu0 0.0
  %1544 = vmatpush1.msra.mxu0 %v973
  %1545 = vmatprep.subr.mxu0 0.0
  %1546 = vmatpush1.msra.mxu0 %v974
  %1547 = vmatprep.subr.mxu0 0.0
  %1548 = vmatpush1.msra.mxu0 %v975
  %1549 = vmatprep.subr.mxu0 0.0
  %1550 = vmatpush1.msra.mxu0 %v976
  %1551 = vmatprep.subr.mxu0 0.0
  %1552 = vmatpush1.msra.mxu0 %v977
  %1553 = vmatprep.subr.mxu0 0.0
  %1554 = vmatpush1.msra.mxu0 %v978
  %1555 = vmatprep.subr.mxu0 0.0
  %1556 = vmatpush1.msra.mxu0 %v979
  %1557 = vmatprep.subr.mxu0 0.0
  %1558 = vmatpush1.msra.mxu0 %v980
  %1559 = vmatprep.subr.mxu0 0.0
  %1560 = vmatpush1.msra.mxu0 0.0
  %1561 = vmatprep.subr.mxu0 0.0
  %1562 = vmatpush1.msra.mxu0 0.0
  %1563 = vmatprep.subr.mxu0 0.0
  %1564 = vmatpush1.msra.mxu0 0.0
  %1565 = vmatprep.subr.mxu0 0.0
  %1566 = vmatpush1.msra.mxu0 0.0
  %1567 = vmatprep.subr.mxu0 0.0
  %1568 = vmatpush1.msra.mxu0 0.0
  %1569 = vmatprep.subr.mxu0 0.0
  %1570 = vmatpush1.msra.mxu0 0.0
  %1571 = vmatprep.subr.mxu0 0.0
  %1572 = vmatpush1.msra.mxu0 0.0
  %1573 = vmatprep.subr.mxu0 0.0
  %1574 = vmatpush1.msra.mxu0 0.0
  %1575 = vmatprep.subr.mxu0 0.0
  %1576 = vmatpush1.msra.mxu0 0.0
  %1577 = vmatprep.subr.mxu0 0.0
  %1578 = vmatpush1.msra.mxu0 0.0
  %1579 = vmatprep.subr.mxu0 0.0
  %1580 = vmatpush1.msra.mxu0 0.0
  %1581 = vmatprep.subr.mxu0 0.0
  %1582 = vmatpush1.msra.mxu0 0.0
  %1583 = vmatprep.subr.mxu0 0.0
  %1584 = vmatpush1.msra.mxu0 0.0
  %1585 = vmatprep.subr.mxu0 0.0
  %1586 = vmatpush1.msra.mxu0 0.0
  %1587 = vmatprep.subr.mxu0 0.0
  %1588 = vmatpush1.msra.mxu0 0.0
  %1589 = vmatprep.subr.mxu0 0.0
  %1590 = vmatpush1.msra.mxu0 0.0
  %1591 = vmatprep.mubr.f32.mxu0 0.0
  %1592 = vmatmul.mubr.f32.gmra.mrb[0].mxu0 %v1176
  %v1593 = vpop.f32.mrb[0].mxu0
  %v1594 = vadd.f32 %v1449, %v1593
  %v1595 = vpop.f32.mrb[0].mxu0
  %1596 = vmatprep.mubr.f32.mxu0 0.0
  %1597 = vmatmul.mubr.f32.gmra.mrb[0].mxu0 %v1181
  %v1598 = vpop.f32.mrb[0].mxu0
  %v1599 = vadd.f32 %v1454, %v1598
  %v1600 = vpop.f32.mrb[0].mxu0
  %1601 = vmatprep.mubr.f32.mxu0 0.0
  %1602 = vmatmul.mubr.f32.gmra.mrb[0].mxu0 %v1186
  %v1603 = vpop.f32.mrb[0].mxu0
  %v1604 = vadd.f32 %v1459, %v1603
  %v1605 = vpop.f32.mrb[0].mxu0
  %1606 = vmatprep.mubr.f32.mxu0 0.0
  %1607 = vmatmul.mubr.f32.gmra.mrb[0].mxu0 %v1191
  %v1608 = vpop.f32.mrb[0].mxu0
  %v1609 = vadd.f32 %v1464, %v1608
  %v1610 = vpop.f32.mrb[0].mxu0
  %1611 = vmatprep.mubr.f32.mxu0 0.0
  %1612 = vmatmul.mubr.f32.gmra.mrb[0].mxu0 %v1196
  %v1613 = vpop.f32.mrb[0].mxu0
  %v1614 = vadd.f32 %v1469, %v1613
  %v1615 = vpop.f32.mrb[0].mxu0
  %1616 = vmatprep.mubr.f32.mxu0 0.0
  %1617 = vmatmul.mubr.f32.gmra.mrb[0].mxu0 %v1201
  %v1618 = vpop.f32.mrb[0].mxu0
  %v1619 = vadd.f32 %v1474, %v1618
  %v1620 = vpop.f32.mrb[0].mxu0
  %1621 = vmatprep.mubr.f32.mxu0 0.0
  %1622 = vmatmul.mubr.f32.gmra.mrb[0].mxu0 %v1206
  %v1623 = vpop.f32.mrb[0].mxu0
  %v1624 = vadd.f32 %v1479, %v1623
  %v1625 = vpop.f32.mrb[0].mxu0
  %1626 = vmatprep.mubr.f32.mxu0 0.0
  %1627 = vmatmul.mubr.f32.gmra.mrb[0].mxu0 %v1211
  %v1628 = vpop.f32.mrb[0].mxu0
  %v1629 = vadd.f32 %v1484, %v1628
  %v1630 = vpop.f32.mrb[0].mxu0
  %1631 = vmatprep.mubr.f32.mxu0 0.0
  %1632 = vmatmul.mubr.f32.gmra.mrb[0].mxu0 %v1216
  %v1633 = vpop.f32.mrb[0].mxu0
  %v1634 = vadd.f32 %v1489, %v1633
  %v1635 = vpop.f32.mrb[0].mxu0
  %1636 = vmatprep.mubr.f32.mxu0 0.0
  %1637 = vmatmul.mubr.f32.gmra.mrb[0].mxu0 %v1221
  %v1638 = vpop.f32.mrb[0].mxu0
  %v1639 = vadd.f32 %v1494, %v1638
  %v1640 = vpop.f32.mrb[0].mxu0
  %1641 = vmatprep.mubr.f32.mxu0 0.0
  %1642 = vmatmul.mubr.f32.gmra.mrb[0].mxu0 %v1226
  %v1643 = vpop.f32.mrb[0].mxu0
  %v1644 = vadd.f32 %v1499, %v1643
  %v1645 = vpop.f32.mrb[0].mxu0
  %1646 = vmatprep.mubr.f32.mxu0 0.0
  %1647 = vmatmul.mubr.f32.gmra.mrb[0].mxu0 %v1231
  %v1648 = vpop.f32.mrb[0].mxu0
  %v1649 = vadd.f32 %v1504, %v1648
  %v1650 = vpop.f32.mrb[0].mxu0
  %1651 = vmatprep.mubr.f32.mxu0 0.0
  %1652 = vmatmul.mubr.f32.gmra.mrb[0].mxu0 %v1236
  %v1653 = vpop.f32.mrb[0].mxu0
  %v1654 = vadd.f32 %v1509, %v1653
  %v1655 = vpop.f32.mrb[0].mxu0
  %1656 = vmatprep.mubr.f32.mxu0 0.0
  %1657 = vmatmul.mubr.f32.gmra.mrb[0].mxu0 %v1241
  %v1658 = vpop.f32.mrb[0].mxu0
  %v1659 = vadd.f32 %v1514, %v1658
  %v1660 = vpop.f32.mrb[0].mxu0
  %1661 = vmatprep.mubr.f32.mxu0 0.0
  %1662 = vmatmul.mubr.f32.gmra.mrb[0].mxu0 %v1246
  %v1663 = vpop.f32.mrb[0].mxu0
  %v1664 = vadd.f32 %v1519, %v1663
  %v1665 = vpop.f32.mrb[0].mxu0
  %1666 = vmatprep.mubr.f32.mxu0 0.0
  %1667 = vmatmul.mubr.f32.gmra.mrb[0].mxu0 %v1251
  %v1668 = vpop.f32.mrb[0].mxu0
  %v1669 = vadd.f32 %v1524, %v1668
  %v1670 = vpop.f32.mrb[0].mxu0
  %1671 = vdwg.mxu0
  %vm1672 = vcmp.gt.f32.partialorder %v1594, 0.0
  %vm1673 = vcmp.gt.f32.partialorder %v1599, 0.0
  %vm1674 = vcmp.gt.f32.partialorder %v1604, 0.0
  %vm1675 = vcmp.gt.f32.partialorder %v1609, 0.0
  %vm1676 = vcmp.gt.f32.partialorder %v1614, 0.0
  %vm1677 = vcmp.gt.f32.partialorder %v1619, 0.0
  %vm1678 = vcmp.gt.f32.partialorder %v1624, 0.0
  %vm1679 = vcmp.gt.f32.partialorder %v1629, 0.0
  %vm1680 = vcmp.gt.f32.partialorder %v1634, 0.0
  %vm1681 = vcmp.gt.f32.partialorder %v1639, 0.0
  %vm1682 = vcmp.gt.f32.partialorder %v1644, 0.0
  %vm1683 = vcmp.gt.f32.partialorder %v1649, 0.0
  %vm1684 = vcmp.gt.f32.partialorder %v1654, 0.0
  %vm1685 = vcmp.gt.f32.partialorder %v1659, 0.0
  %vm1686 = vcmp.gt.f32.partialorder %v1664, 0.0
  %vm1687 = vcmp.gt.f32.partialorder %v1669, 0.0
  %v1688 = vmul.f32 %v1594, 0.2
  %v1689 = vmul.f32 %v1599, 0.2
  %v1690 = vmul.f32 %v1604, 0.2
  %v1691 = vmul.f32 %v1609, 0.2
  %v1692 = vmul.f32 %v1614, 0.2
  %v1693 = vmul.f32 %v1619, 0.2
  %v1694 = vmul.f32 %v1624, 0.2
  %v1695 = vmul.f32 %v1629, 0.2
  %v1696 = vmul.f32 %v1634, 0.2
  %v1697 = vmul.f32 %v1639, 0.2
  %v1698 = vmul.f32 %v1644, 0.2
  %v1699 = vmul.f32 %v1649, 0.2
  %v1700 = vmul.f32 %v1654, 0.2
  %v1701 = vmul.f32 %v1659, 0.2
  %v1702 = vmul.f32 %v1664, 0.2
  %v1703 = vmul.f32 %v1669, 0.2
  %v1704 = vsel %vm1672, %v1594, %v1688
  %v1705 = vsel %vm1673, %v1599, %v1689
  %v1706 = vsel %vm1674, %v1604, %v1690
  %v1707 = vsel %vm1675, %v1609, %v1691
  %v1708 = vsel %vm1676, %v1614, %v1692
  %v1709 = vsel %vm1677, %v1619, %v1693
  %v1710 = vsel %vm1678, %v1624, %v1694
  %v1711 = vsel %vm1679, %v1629, %v1695
  %v1712 = vsel %vm1680, %v1634, %v1696
  %v1713 = vsel %vm1681, %v1639, %v1697
  %v1714 = vsel %vm1682, %v1644, %v1698
  %v1715 = vsel %vm1683, %v1649, %v1699
  %v1716 = vsel %vm1684, %v1654, %v1700
  %v1717 = vsel %vm1685, %v1659, %v1701
  %v1718 = vsel %vm1686, %v1664, %v1702
  %v1719 = vsel %vm1687, %v1669, %v1703
  %vm1720 = vcmp.ne.f32.partialorder %v45, 0.0
  %vm1721 = vcmp.ne.f32.partialorder %v46, 0.0
  %vm1722 = vcmp.ne.f32.partialorder %v47, 0.0
  %vm1723 = vcmp.ne.f32.partialorder %v48, 0.0
  %vm1724 = vcmp.ne.f32.partialorder %v49, 0.0
  %vm1725 = vcmp.ne.f32.partialorder %v50, 0.0
  %vm1726 = vcmp.ne.f32.partialorder %v51, 0.0
  %vm1727 = vcmp.ne.f32.partialorder %v52, 0.0
  %vm1728 = vcmp.ne.f32.partialorder %v53, 0.0
  %vm1729 = vcmp.ne.f32.partialorder %v54, 0.0
  %vm1730 = vcmp.ne.f32.partialorder %v55, 0.0
  %vm1731 = vcmp.ne.f32.partialorder %v56, 0.0
  %vm1732 = vcmp.ne.f32.partialorder %v57, 0.0
  %vm1733 = vcmp.ne.f32.partialorder %v58, 0.0
  %vm1734 = vcmp.ne.f32.partialorder %v59, 0.0
  %vm1735 = vcmp.ne.f32.partialorder %v60, 0.0
  %v1736 = vsel %vm1720, 1, 0
  %v1737 = vsel %vm1721, 1, 0
  %v1738 = vsel %vm1722, 1, 0
  %v1739 = vsel %vm1723, 1, 0
  %v1740 = vsel %vm1724, 1, 0
  %v1741 = vsel %vm1725, 1, 0
  %v1742 = vsel %vm1726, 1, 0
  %v1743 = vsel %vm1727, 1, 0
  %v1744 = vsel %vm1728, 1, 0
  %v1745 = vsel %vm1729, 1, 0
  %v1746 = vsel %vm1730, 1, 0
  %v1747 = vsel %vm1731, 1, 0
  %v1748 = vsel %vm1732, 1, 0
  %v1749 = vsel %vm1733, 1, 0
  %v1750 = vsel %vm1734, 1, 0
  %v1751 = vsel %vm1735, 1, 0
  %v1752 = vcvt.s32.f32 %v1736
  %v1753 = vcvt.s32.f32 %v1737
  %v1754 = vcvt.s32.f32 %v1738
  %v1755 = vcvt.s32.f32 %v1739
  %v1756 = vcvt.s32.f32 %v1740
  %v1757 = vcvt.s32.f32 %v1741
  %v1758 = vcvt.s32.f32 %v1742
  %v1759 = vcvt.s32.f32 %v1743
  %v1760 = vcvt.s32.f32 %v1744
  %v1761 = vcvt.s32.f32 %v1745
  %v1762 = vcvt.s32.f32 %v1746
  %v1763 = vcvt.s32.f32 %v1747
  %v1764 = vcvt.s32.f32 %v1748
  %v1765 = vcvt.s32.f32 %v1749
  %v1766 = vcvt.s32.f32 %v1750
  %v1767 = vcvt.s32.f32 %v1751
  %v1768 = vsel %vm1720, %v1704, -1e+30
  %v1769 = vsel %vm1721, %v1705, -1e+30
  %v1770 = vsel %vm1722, %v1706, -1e+30
  %v1771 = vsel %vm1723, %v1707, -1e+30
  %v1772 = vsel %vm1724, %v1708, -1e+30
  %v1773 = vsel %vm1725, %v1709, -1e+30
  %v1774 = vsel %vm1726, %v1710, -1e+30
  %v1775 = vsel %vm1727, %v1711, -1e+30
  %v1776 = vsel %vm1728, %v1712, -1e+30
  %v1777 = vsel %vm1729, %v1713, -1e+30
  %v1778 = vsel %vm1730, %v1714, -1e+30
  %v1779 = vsel %vm1731, %v1715, -1e+30
  %v1780 = vsel %vm1732, %v1716, -1e+30
  %v1781 = vsel %vm1733, %v1717, -1e+30
  %v1782 = vsel %vm1734, %v1718, -1e+30
  %v1783 = vsel %vm1735, %v1719, -1e+30
  %1784 = vmax.xlane.f32.xlu0 %v1768
  %v1785 = vpop.xlane.xlu0 %1784
  %1786 = vmax.xlane.f32.xlu0 %v1769
  %v1787 = vpop.xlane.xlu0 %1786
  %1788 = vmax.xlane.f32.xlu0 %v1770
  %v1789 = vpop.xlane.xlu0 %1788
  %1790 = vmax.xlane.f32.xlu0 %v1771
  %v1791 = vpop.xlane.xlu0 %1790
  %1792 = vmax.xlane.f32.xlu0 %v1772
  %v1793 = vpop.xlane.xlu0 %1792
  %1794 = vmax.xlane.f32.xlu0 %v1773
  %v1795 = vpop.xlane.xlu0 %1794
  %1796 = vmax.xlane.f32.xlu0 %v1774
  %v1797 = vpop.xlane.xlu0 %1796
  %1798 = vmax.xlane.f32.xlu0 %v1775
  %v1799 = vpop.xlane.xlu0 %1798
  %1800 = vmax.xlane.f32.xlu0 %v1776
  %v1801 = vpop.xlane.xlu0 %1800
  %1802 = vmax.xlane.f32.xlu0 %v1777
  %v1803 = vpop.xlane.xlu0 %1802
  %1804 = vmax.xlane.f32.xlu0 %v1778
  %v1805 = vpop.xlane.xlu0 %1804
  %1806 = vmax.xlane.f32.xlu0 %v1779
  %v1807 = vpop.xlane.xlu0 %1806
  %1808 = vmax.xlane.f32.xlu0 %v1780
  %v1809 = vpop.xlane.xlu0 %1808
  %1810 = vmax.xlane.f32.xlu0 %v1781
  %v1811 = vpop.xlane.xlu0 %1810
  %1812 = vmax.xlane.f32.xlu0 %v1782
  %v1813 = vpop.xlane.xlu0 %1812
  %1814 = vmax.xlane.f32.xlu0 %v1783
  %v1815 = vpop.xlane.xlu0 %1814
  %v1816 = vsub.f32 %v1768, %v1785
  %v1817 = vsub.f32 %v1769, %v1787
  %v1818 = vsub.f32 %v1770, %v1789
  %v1819 = vsub.f32 %v1771, %v1791
  %v1820 = vsub.f32 %v1772, %v1793
  %v1821 = vsub.f32 %v1773, %v1795
  %v1822 = vsub.f32 %v1774, %v1797
  %v1823 = vsub.f32 %v1775, %v1799
  %v1824 = vsub.f32 %v1776, %v1801
  %v1825 = vsub.f32 %v1777, %v1803
  %v1826 = vsub.f32 %v1778, %v1805
  %v1827 = vsub.f32 %v1779, %v1807
  %v1828 = vsub.f32 %v1780, %v1809
  %v1829 = vsub.f32 %v1781, %v1811
  %v1830 = vsub.f32 %v1782, %v1813
  %v1831 = vsub.f32 %v1783, %v1815
  %v1832 = vmul.f32 %v1816, 1.442695
  %v1833 = vpow.pop %v1832
  %v1834 = vmul.f32 %v1817, 1.442695
  %v1835 = vpow.pop %v1834
  %v1836 = vmul.f32 %v1818, 1.442695
  %v1837 = vpow.pop %v1836
  %v1838 = vmul.f32 %v1819, 1.442695
  %v1839 = vpow.pop %v1838
  %v1840 = vmul.f32 %v1820, 1.442695
  %v1841 = vpow.pop %v1840
  %v1842 = vmul.f32 %v1821, 1.442695
  %v1843 = vpow.pop %v1842
  %v1844 = vmul.f32 %v1822, 1.442695
  %v1845 = vpow.pop %v1844
  %v1846 = vmul.f32 %v1823, 1.442695
  %v1847 = vpow.pop %v1846
  %v1848 = vmul.f32 %v1824, 1.442695
  %v1849 = vpow.pop %v1848
  %v1850 = vmul.f32 %v1825, 1.442695
  %v1851 = vpow.pop %v1850
  %v1852 = vmul.f32 %v1826, 1.442695
  %v1853 = vpow.pop %v1852
  %v1854 = vmul.f32 %v1827, 1.442695
  %v1855 = vpow.pop %v1854
  %v1856 = vmul.f32 %v1828, 1.442695
  %v1857 = vpow.pop %v1856
  %v1858 = vmul.f32 %v1829, 1.442695
  %v1859 = vpow.pop %v1858
  %v1860 = vmul.f32 %v1830, 1.442695
  %v1861 = vpow.pop %v1860
  %v1862 = vmul.f32 %v1831, 1.442695
  %v1863 = vpow.pop %v1862
  %v1864 = vmul.f32 %v1833, %v1752
  %v1865 = vmul.f32 %v1835, %v1753
  %v1866 = vmul.f32 %v1837, %v1754
  %v1867 = vmul.f32 %v1839, %v1755
  %v1868 = vmul.f32 %v1841, %v1756
  %v1869 = vmul.f32 %v1843, %v1757
  %v1870 = vmul.f32 %v1845, %v1758
  %v1871 = vmul.f32 %v1847, %v1759
  %v1872 = vmul.f32 %v1849, %v1760
  %v1873 = vmul.f32 %v1851, %v1761
  %v1874 = vmul.f32 %v1853, %v1762
  %v1875 = vmul.f32 %v1855, %v1763
  %v1876 = vmul.f32 %v1857, %v1764
  %v1877 = vmul.f32 %v1859, %v1765
  %v1878 = vmul.f32 %v1861, %v1766
  %v1879 = vmul.f32 %v1863, %v1767
  %1880 = vadd.xlane.f32.xlu0 %v1864
  %v1881 = vpop.xlane.xlu0 %1880
  %1882 = vadd.xlane.f32.xlu0 %v1865
  %v1883 = vpop.xlane.xlu0 %1882
  %1884 = vadd.xlane.f32.xlu0 %v1866
  %v1885 = vpop.xlane.xlu0 %1884
  %1886 = vadd.xlane.f32.xlu0 %v1867
  %v1887 = vpop.xlane.xlu0 %1886
  %1888 = vadd.xlane.f32.xlu0 %v1868
  %v1889 = vpop.xlane.xlu0 %1888
  %1890 = vadd.xlane.f32.xlu0 %v1869
  %v1891 = vpop.xlane.xlu0 %1890
  %1892 = vadd.xlane.f32.xlu0 %v1870
  %v1893 = vpop.xlane.xlu0 %1892
  %1894 = vadd.xlane.f32.xlu0 %v1871
  %v1895 = vpop.xlane.xlu0 %1894
  %1896 = vadd.xlane.f32.xlu0 %v1872
  %v1897 = vpop.xlane.xlu0 %1896
  %1898 = vadd.xlane.f32.xlu0 %v1873
  %v1899 = vpop.xlane.xlu0 %1898
  %1900 = vadd.xlane.f32.xlu0 %v1874
  %v1901 = vpop.xlane.xlu0 %1900
  %1902 = vadd.xlane.f32.xlu0 %v1875
  %v1903 = vpop.xlane.xlu0 %1902
  %1904 = vadd.xlane.f32.xlu0 %v1876
  %v1905 = vpop.xlane.xlu0 %1904
  %1906 = vadd.xlane.f32.xlu0 %v1877
  %v1907 = vpop.xlane.xlu0 %1906
  %1908 = vadd.xlane.f32.xlu0 %v1878
  %v1909 = vpop.xlane.xlu0 %1908
  %1910 = vadd.xlane.f32.xlu0 %v1879
  %v1911 = vpop.xlane.xlu0 %1910
  %v1912 = vmax.f32 %v1881, 1e-30
  %v1913 = vmax.f32 %v1883, 1e-30
  %v1914 = vmax.f32 %v1885, 1e-30
  %v1915 = vmax.f32 %v1887, 1e-30
  %v1916 = vmax.f32 %v1889, 1e-30
  %v1917 = vmax.f32 %v1891, 1e-30
  %v1918 = vmax.f32 %v1893, 1e-30
  %v1919 = vmax.f32 %v1895, 1e-30
  %v1920 = vmax.f32 %v1897, 1e-30
  %v1921 = vmax.f32 %v1899, 1e-30
  %v1922 = vmax.f32 %v1901, 1e-30
  %v1923 = vmax.f32 %v1903, 1e-30
  %v1924 = vmax.f32 %v1905, 1e-30
  %v1925 = vmax.f32 %v1907, 1e-30
  %v1926 = vmax.f32 %v1909, 1e-30
  %v1927 = vmax.f32 %v1911, 1e-30
  %v1928 = vrcp.pop %v1912
  %v1929 = vrcp.pop %v1913
  %v1930 = vrcp.pop %v1914
  %v1931 = vrcp.pop %v1915
  %v1932 = vrcp.pop %v1916
  %v1933 = vrcp.pop %v1917
  %v1934 = vrcp.pop %v1918
  %v1935 = vrcp.pop %v1919
  %v1936 = vrcp.pop %v1920
  %v1937 = vrcp.pop %v1921
  %v1938 = vrcp.pop %v1922
  %v1939 = vrcp.pop %v1923
  %v1940 = vrcp.pop %v1924
  %v1941 = vrcp.pop %v1925
  %v1942 = vrcp.pop %v1926
  %v1943 = vrcp.pop %v1927
  %v1944 = vmul.f32 %v1864, %v1928
  %v1945 = vmul.f32 %v1865, %v1929
  %v1946 = vmul.f32 %v1866, %v1930
  %v1947 = vmul.f32 %v1867, %v1931
  %v1948 = vmul.f32 %v1868, %v1932
  %v1949 = vmul.f32 %v1869, %v1933
  %v1950 = vmul.f32 %v1870, %v1934
  %v1951 = vmul.f32 %v1871, %v1935
  %v1952 = vmul.f32 %v1872, %v1936
  %v1953 = vmul.f32 %v1873, %v1937
  %v1954 = vmul.f32 %v1874, %v1938
  %v1955 = vmul.f32 %v1875, %v1939
  %v1956 = vmul.f32 %v1876, %v1940
  %v1957 = vmul.f32 %v1877, %v1941
  %v1958 = vmul.f32 %v1878, %v1942
  %v1959 = vmul.f32 %v1879, %v1943
  %v1960 = vmul.f32 %v1944, %v45
  %v1961 = vmul.f32 %v1945, %v46
  %v1962 = vmul.f32 %v1946, %v47
  %v1963 = vmul.f32 %v1947, %v48
  %v1964 = vmul.f32 %v1948, %v49
  %v1965 = vmul.f32 %v1949, %v50
  %v1966 = vmul.f32 %v1950, %v51
  %v1967 = vmul.f32 %v1951, %v52
  %v1968 = vmul.f32 %v1952, %v53
  %v1969 = vmul.f32 %v1953, %v54
  %v1970 = vmul.f32 %v1954, %v55
  %v1971 = vmul.f32 %v1955, %v56
  %v1972 = vmul.f32 %v1956, %v57
  %v1973 = vmul.f32 %v1957, %v58
  %v1974 = vmul.f32 %v1958, %v59
  %v1975 = vmul.f32 %v1959, %v60
  %1976 = vmatprep.subr.mxu0 0.0
  %1977 = vmatpush1.msra.mxu0 %v1320
  %1978 = vmatprep.subr.mxu0 0.0
  %1979 = vmatpush1.msra.mxu0 %v1323
  %1980 = vmatprep.subr.mxu0 0.0
  %1981 = vmatpush1.msra.mxu0 %v1328
  %1982 = vmatprep.subr.mxu0 0.0
  %1983 = vmatpush1.msra.mxu0 %v1331
  %1984 = vmatprep.subr.mxu0 0.0
  %1985 = vmatpush1.msra.mxu0 %v1336
  %1986 = vmatprep.subr.mxu0 0.0
  %1987 = vmatpush1.msra.mxu0 %v1339
  %1988 = vmatprep.subr.mxu0 0.0
  %1989 = vmatpush1.msra.mxu0 %v1344
  %1990 = vmatprep.subr.mxu0 0.0
  %1991 = vmatpush1.msra.mxu0 %v1347
  %1992 = vmatprep.subr.mxu0 0.0
  %1993 = vmatpush1.msra.mxu0 %v1352
  %1994 = vmatprep.subr.mxu0 0.0
  %1995 = vmatpush1.msra.mxu0 %v1355
  %1996 = vmatprep.subr.mxu0 0.0
  %1997 = vmatpush1.msra.mxu0 %v1360
  %1998 = vmatprep.subr.mxu0 0.0
  %1999 = vmatpush1.msra.mxu0 %v1363
  %2000 = vmatprep.subr.mxu0 0.0
  %2001 = vmatpush1.msra.mxu0 %v1368
  %2002 = vmatprep.subr.mxu0 0.0
  %2003 = vmatpush1.msra.mxu0 %v1371
  %2004 = vmatprep.subr.mxu0 0.0
  %2005 = vmatpush1.msra.mxu0 %v1376
  %2006 = vmatprep.subr.mxu0 0.0
  %2007 = vmatpush1.msra.mxu0 %v1379
  %2008 = vmatprep.subr.mxu0 0.0
  %2009 = vmatpush1.msra.mxu0 0.0
  %2010 = vmatprep.subr.mxu0 0.0
  %2011 = vmatpush1.msra.mxu0 0.0
  %2012 = vmatprep.subr.mxu0 0.0
  %2013 = vmatpush1.msra.mxu0 0.0
  %2014 = vmatprep.subr.mxu0 0.0
  %2015 = vmatpush1.msra.mxu0 0.0
  %2016 = vmatprep.subr.mxu0 0.0
  %2017 = vmatpush1.msra.mxu0 0.0
  %2018 = vmatprep.subr.mxu0 0.0
  %2019 = vmatpush1.msra.mxu0 0.0
  %2020 = vmatprep.subr.mxu0 0.0
  %2021 = vmatpush1.msra.mxu0 0.0
  %2022 = vmatprep.subr.mxu0 0.0
  %2023 = vmatpush1.msra.mxu0 0.0
  %2024 = vmatprep.subr.mxu0 0.0
  %2025 = vmatpush1.msra.mxu0 0.0
  %2026 = vmatprep.subr.mxu0 0.0
  %2027 = vmatpush1.msra.mxu0 0.0
  %2028 = vmatprep.subr.mxu0 0.0
  %2029 = vmatpush1.msra.mxu0 0.0
  %2030 = vmatprep.subr.mxu0 0.0
  %2031 = vmatpush1.msra.mxu0 0.0
  %2032 = vmatprep.subr.mxu0 0.0
  %2033 = vmatpush1.msra.mxu0 0.0
  %2034 = vmatprep.subr.mxu0 0.0
  %2035 = vmatpush1.msra.mxu0 0.0
  %2036 = vmatprep.subr.mxu0 0.0
  %2037 = vmatpush1.msra.mxu0 0.0
  %2038 = vmatprep.subr.mxu0 0.0
  %2039 = vmatpush1.msra.mxu0 0.0
  %2040 = vmatprep.mubr.f32.mxu0 0.0
  %2041 = vmatmul.mubr.f32.gmra.mrb[0].mxu0 %v1960
  %v2042 = vpop.f32.mrb[0].mxu0
  %v2043 = vadd.f32 0.0, %v2042
  %v2044 = vpop.f32.mrb[0].mxu0
  %2045 = vmatprep.mubr.f32.mxu0 0.0
  %2046 = vmatmul.mubr.f32.gmra.mrb[0].mxu0 %v1961
  %v2047 = vpop.f32.mrb[0].mxu0
  %v2048 = vadd.f32 0.0, %v2047
  %v2049 = vpop.f32.mrb[0].mxu0
  %2050 = vmatprep.mubr.f32.mxu0 0.0
  %2051 = vmatmul.mubr.f32.gmra.mrb[0].mxu0 %v1962
  %v2052 = vpop.f32.mrb[0].mxu0
  %v2053 = vadd.f32 0.0, %v2052
  %v2054 = vpop.f32.mrb[0].mxu0
  %2055 = vmatprep.mubr.f32.mxu0 0.0
  %2056 = vmatmul.mubr.f32.gmra.mrb[0].mxu0 %v1963
  %v2057 = vpop.f32.mrb[0].mxu0
  %v2058 = vadd.f32 0.0, %v2057
  %v2059 = vpop.f32.mrb[0].mxu0
  %2060 = vmatprep.mubr.f32.mxu0 0.0
  %2061 = vmatmul.mubr.f32.gmra.mrb[0].mxu0 %v1964
  %v2062 = vpop.f32.mrb[0].mxu0
  %v2063 = vadd.f32 0.0, %v2062
  %v2064 = vpop.f32.mrb[0].mxu0
  %2065 = vmatprep.mubr.f32.mxu0 0.0
  %2066 = vmatmul.mubr.f32.gmra.mrb[0].mxu0 %v1965
  %v2067 = vpop.f32.mrb[0].mxu0
  %v2068 = vadd.f32 0.0, %v2067
  %v2069 = vpop.f32.mrb[0].mxu0
  %2070 = vmatprep.mubr.f32.mxu0 0.0
  %2071 = vmatmul.mubr.f32.gmra.mrb[0].mxu0 %v1966
  %v2072 = vpop.f32.mrb[0].mxu0
  %v2073 = vadd.f32 0.0, %v2072
  %v2074 = vpop.f32.mrb[0].mxu0
  %2075 = vmatprep.mubr.f32.mxu0 0.0
  %2076 = vmatmul.mubr.f32.gmra.mrb[0].mxu0 %v1967
  %v2077 = vpop.f32.mrb[0].mxu0
  %v2078 = vadd.f32 0.0, %v2077
  %v2079 = vpop.f32.mrb[0].mxu0
  %2080 = vmatprep.mubr.f32.mxu0 0.0
  %2081 = vmatmul.mubr.f32.gmra.mrb[0].mxu0 %v1968
  %v2082 = vpop.f32.mrb[0].mxu0
  %v2083 = vadd.f32 0.0, %v2082
  %v2084 = vpop.f32.mrb[0].mxu0
  %2085 = vmatprep.mubr.f32.mxu0 0.0
  %2086 = vmatmul.mubr.f32.gmra.mrb[0].mxu0 %v1969
  %v2087 = vpop.f32.mrb[0].mxu0
  %v2088 = vadd.f32 0.0, %v2087
  %v2089 = vpop.f32.mrb[0].mxu0
  %2090 = vmatprep.mubr.f32.mxu0 0.0
  %2091 = vmatmul.mubr.f32.gmra.mrb[0].mxu0 %v1970
  %v2092 = vpop.f32.mrb[0].mxu0
  %v2093 = vadd.f32 0.0, %v2092
  %v2094 = vpop.f32.mrb[0].mxu0
  %2095 = vmatprep.mubr.f32.mxu0 0.0
  %2096 = vmatmul.mubr.f32.gmra.mrb[0].mxu0 %v1971
  %v2097 = vpop.f32.mrb[0].mxu0
  %v2098 = vadd.f32 0.0, %v2097
  %v2099 = vpop.f32.mrb[0].mxu0
  %2100 = vmatprep.mubr.f32.mxu0 0.0
  %2101 = vmatmul.mubr.f32.gmra.mrb[0].mxu0 %v1972
  %v2102 = vpop.f32.mrb[0].mxu0
  %v2103 = vadd.f32 0.0, %v2102
  %v2104 = vpop.f32.mrb[0].mxu0
  %2105 = vmatprep.mubr.f32.mxu0 0.0
  %2106 = vmatmul.mubr.f32.gmra.mrb[0].mxu0 %v1973
  %v2107 = vpop.f32.mrb[0].mxu0
  %v2108 = vadd.f32 0.0, %v2107
  %v2109 = vpop.f32.mrb[0].mxu0
  %2110 = vmatprep.mubr.f32.mxu0 0.0
  %2111 = vmatmul.mubr.f32.gmra.mrb[0].mxu0 %v1974
  %v2112 = vpop.f32.mrb[0].mxu0
  %v2113 = vadd.f32 0.0, %v2112
  %v2114 = vpop.f32.mrb[0].mxu0
  %2115 = vmatprep.mubr.f32.mxu0 0.0
  %2116 = vmatmul.mubr.f32.gmra.mrb[0].mxu0 %v1975
  %v2117 = vpop.f32.mrb[0].mxu0
  %v2118 = vadd.f32 0.0, %v2117
  %v2119 = vpop.f32.mrb[0].mxu0
  %2120 = vdwg.mxu0
  %v2122 = vsel %vm1281, %v1254, 0
  %2124 = vmatprep.subr.bf16.mxu0 0
  %2125 = vmatpush1.bf16.msra.mxu0 %v2122
  %2126 = vmatprep.subr.bf16.mxu0 0
  %2127 = vmatpush1.bf16.msra.mxu0 0
  %2128 = vmatprep.subr.bf16.mxu0 0
  %2129 = vmatpush1.bf16.msra.mxu0 0
  %2130 = vmatprep.subr.bf16.mxu0 0
  %2131 = vmatpush1.bf16.msra.mxu0 0
  %2132 = vmatprep.subr.bf16.mxu0 0
  %2133 = vmatpush1.bf16.msra.mxu0 0
  %2134 = vmatprep.subr.bf16.mxu0 0
  %2135 = vmatpush1.bf16.msra.mxu0 0
  %2136 = vmatprep.subr.bf16.mxu0 0
  %2137 = vmatpush1.bf16.msra.mxu0 0
  %2138 = vmatprep.subr.bf16.mxu0 0
  %2139 = vmatpush1.bf16.msra.mxu0 0
  %2140 = vmatprep.subr.bf16.mxu0 0
  %2141 = vmatpush1.bf16.msra.mxu0 0
  %2142 = vmatprep.subr.bf16.mxu0 0
  %2143 = vmatpush1.bf16.msra.mxu0 0
  %2144 = vmatprep.subr.bf16.mxu0 0
  %2145 = vmatpush1.bf16.msra.mxu0 0
  %2146 = vmatprep.subr.bf16.mxu0 0
  %2147 = vmatpush1.bf16.msra.mxu0 0
  %2148 = vmatprep.subr.bf16.mxu0 0
  %2149 = vmatpush1.bf16.msra.mxu0 0
  %2150 = vmatprep.subr.bf16.mxu0 0
  %2151 = vmatpush1.bf16.msra.mxu0 0
  %2152 = vmatprep.subr.bf16.mxu0 0
  %2153 = vmatpush1.bf16.msra.mxu0 0
  %2154 = vmatprep.subr.bf16.mxu0 0
  %2155 = vmatpush1.bf16.msra.mxu0 0
  %2156 = vmatprep.mubr.bf16.mxu0 0
  %2157 = vmatmul.mubr.bf16.gmra.mrb[0].mxu0 %v1258
  %v2158 = vpop.f32.mrb[0].mxu0
  %v2159 = vadd.f32 %v2043, %v2158
  %v2160 = vpop.f32.mrb[0].mxu0
  %v2161 = vpop.f32.mrb[0].mxu0
  %v2162 = vadd.f32 %v2048, %v2161
  %v2163 = vpop.f32.mrb[0].mxu0
  %2164 = vmatprep.mubr.bf16.mxu0 0
  %2165 = vmatmul.mubr.bf16.gmra.mrb[0].mxu0 %v1261
  %v2166 = vpop.f32.mrb[0].mxu0
  %v2167 = vadd.f32 %v2053, %v2166
  %v2168 = vpop.f32.mrb[0].mxu0
  %v2169 = vpop.f32.mrb[0].mxu0
  %v2170 = vadd.f32 %v2058, %v2169
  %v2171 = vpop.f32.mrb[0].mxu0
  %2172 = vmatprep.mubr.bf16.mxu0 0
  %2173 = vmatmul.mubr.bf16.gmra.mrb[0].mxu0 %v1264
  %v2174 = vpop.f32.mrb[0].mxu0
  %v2175 = vadd.f32 %v2063, %v2174
  %v2176 = vpop.f32.mrb[0].mxu0
  %v2177 = vpop.f32.mrb[0].mxu0
  %v2178 = vadd.f32 %v2068, %v2177
  %v2179 = vpop.f32.mrb[0].mxu0
  %2180 = vmatprep.mubr.bf16.mxu0 0
  %2181 = vmatmul.mubr.bf16.gmra.mrb[0].mxu0 %v1267
  %v2182 = vpop.f32.mrb[0].mxu0
  %v2183 = vadd.f32 %v2073, %v2182
  %v2184 = vpop.f32.mrb[0].mxu0
  %v2185 = vpop.f32.mrb[0].mxu0
  %v2186 = vadd.f32 %v2078, %v2185
  %v2187 = vpop.f32.mrb[0].mxu0
  %2188 = vmatprep.mubr.bf16.mxu0 0
  %2189 = vmatmul.mubr.bf16.gmra.mrb[0].mxu0 %v1270
  %v2190 = vpop.f32.mrb[0].mxu0
  %v2191 = vadd.f32 %v2083, %v2190
  %v2192 = vpop.f32.mrb[0].mxu0
  %v2193 = vpop.f32.mrb[0].mxu0
  %v2194 = vadd.f32 %v2088, %v2193
  %v2195 = vpop.f32.mrb[0].mxu0
  %2196 = vmatprep.mubr.bf16.mxu0 0
  %2197 = vmatmul.mubr.bf16.gmra.mrb[0].mxu0 %v1273
  %v2198 = vpop.f32.mrb[0].mxu0
  %v2199 = vadd.f32 %v2093, %v2198
  %v2200 = vpop.f32.mrb[0].mxu0
  %v2201 = vpop.f32.mrb[0].mxu0
  %v2202 = vadd.f32 %v2098, %v2201
  %v2203 = vpop.f32.mrb[0].mxu0
  %2204 = vmatprep.mubr.bf16.mxu0 0
  %2205 = vmatmul.mubr.bf16.gmra.mrb[0].mxu0 %v1276
  %v2206 = vpop.f32.mrb[0].mxu0
  %v2207 = vadd.f32 %v2103, %v2206
  %v2208 = vpop.f32.mrb[0].mxu0
  %v2209 = vpop.f32.mrb[0].mxu0
  %v2210 = vadd.f32 %v2108, %v2209
  %v2211 = vpop.f32.mrb[0].mxu0
  %2212 = vmatprep.mubr.bf16.mxu0 0
  %2213 = vmatmul.mubr.bf16.gmra.mrb[0].mxu0 %v1279
  %v2214 = vpop.f32.mrb[0].mxu0
  %v2215 = vadd.f32 %v2113, %v2214
  %v2216 = vpop.f32.mrb[0].mxu0
  %v2217 = vpop.f32.mrb[0].mxu0
  %v2218 = vadd.f32 %v2118, %v2217
  %v2219 = vpop.f32.mrb[0].mxu0
  %2220 = vdwg.mxu0
  %v2221 = vld [vmem:[%s4] sm:$0xf]
  %s2222 = scalar_lea.vmem %s4, 4
  %v2223 = vld [vmem:[%s2222] sm:$0xf]
  %v2225 = vsel %vm1281, %v2223, 0
  %2227 = vmatprep.subr.bf16.mxu0 0
  %2228 = vmatpush1.bf16.msra.mxu0 %v2225
  %2229 = vmatprep.subr.bf16.mxu0 0
  %2230 = vmatpush1.bf16.msra.mxu0 0
  %2231 = vmatprep.subr.bf16.mxu0 0
  %2232 = vmatpush1.bf16.msra.mxu0 0
  %2233 = vmatprep.subr.bf16.mxu0 0
  %2234 = vmatpush1.bf16.msra.mxu0 0
  %2235 = vmatprep.subr.bf16.mxu0 0
  %2236 = vmatpush1.bf16.msra.mxu0 0
  %2237 = vmatprep.subr.bf16.mxu0 0
  %2238 = vmatpush1.bf16.msra.mxu0 0
  %2239 = vmatprep.subr.bf16.mxu0 0
  %2240 = vmatpush1.bf16.msra.mxu0 0
  %2241 = vmatprep.subr.bf16.mxu0 0
  %2242 = vmatpush1.bf16.msra.mxu0 0
  %2243 = vmatprep.subr.bf16.mxu0 0
  %2244 = vmatpush1.bf16.msra.mxu0 0
  %2245 = vmatprep.subr.bf16.mxu0 0
  %2246 = vmatpush1.bf16.msra.mxu0 0
  %2247 = vmatprep.subr.bf16.mxu0 0
  %2248 = vmatpush1.bf16.msra.mxu0 0
  %2249 = vmatprep.subr.bf16.mxu0 0
  %2250 = vmatpush1.bf16.msra.mxu0 0
  %2251 = vmatprep.subr.bf16.mxu0 0
  %2252 = vmatpush1.bf16.msra.mxu0 0
  %2253 = vmatprep.subr.bf16.mxu0 0
  %2254 = vmatpush1.bf16.msra.mxu0 0
  %2255 = vmatprep.subr.bf16.mxu0 0
  %2256 = vmatpush1.bf16.msra.mxu0 0
  %2257 = vmatprep.subr.bf16.mxu0 0
  %2258 = vmatpush1.bf16.msra.mxu0 0
  %2259 = vmatprep.mubr.bf16.mxu0 0
  %2260 = vmatmul.mubr.bf16.gmra.mrb[0].mxu0 %v1258
  %v2261 = vpop.f32.mrb[0].mxu0
  %v2262 = vadd.f32 0.0, %v2261
  %v2263 = vpop.f32.mrb[0].mxu0
  %v2264 = vpop.f32.mrb[0].mxu0
  %v2265 = vadd.f32 0.0, %v2264
  %v2266 = vpop.f32.mrb[0].mxu0
  %2267 = vmatprep.mubr.bf16.mxu0 0
  %2268 = vmatmul.mubr.bf16.gmra.mrb[0].mxu0 %v1261
  %v2269 = vpop.f32.mrb[0].mxu0
  %v2270 = vadd.f32 0.0, %v2269
  %v2271 = vpop.f32.mrb[0].mxu0
  %v2272 = vpop.f32.mrb[0].mxu0
  %v2273 = vadd.f32 0.0, %v2272
  %v2274 = vpop.f32.mrb[0].mxu0
  %2275 = vmatprep.mubr.bf16.mxu0 0
  %2276 = vmatmul.mubr.bf16.gmra.mrb[0].mxu0 %v1264
  %v2277 = vpop.f32.mrb[0].mxu0
  %v2278 = vadd.f32 0.0, %v2277
  %v2279 = vpop.f32.mrb[0].mxu0
  %v2280 = vpop.f32.mrb[0].mxu0
  %v2281 = vadd.f32 0.0, %v2280
  %v2282 = vpop.f32.mrb[0].mxu0
  %2283 = vmatprep.mubr.bf16.mxu0 0
  %2284 = vmatmul.mubr.bf16.gmra.mrb[0].mxu0 %v1267
  %v2285 = vpop.f32.mrb[0].mxu0
  %v2286 = vadd.f32 0.0, %v2285
  %v2287 = vpop.f32.mrb[0].mxu0
  %v2288 = vpop.f32.mrb[0].mxu0
  %v2289 = vadd.f32 0.0, %v2288
  %v2290 = vpop.f32.mrb[0].mxu0
  %2291 = vmatprep.mubr.bf16.mxu0 0
  %2292 = vmatmul.mubr.bf16.gmra.mrb[0].mxu0 %v1270
  %v2293 = vpop.f32.mrb[0].mxu0
  %v2294 = vadd.f32 0.0, %v2293
  %v2295 = vpop.f32.mrb[0].mxu0
  %v2296 = vpop.f32.mrb[0].mxu0
  %v2297 = vadd.f32 0.0, %v2296
  %v2298 = vpop.f32.mrb[0].mxu0
  %2299 = vmatprep.mubr.bf16.mxu0 0
  %2300 = vmatmul.mubr.bf16.gmra.mrb[0].mxu0 %v1273
  %v2301 = vpop.f32.mrb[0].mxu0
  %v2302 = vadd.f32 0.0, %v2301
  %v2303 = vpop.f32.mrb[0].mxu0
  %v2304 = vpop.f32.mrb[0].mxu0
  %v2305 = vadd.f32 0.0, %v2304
  %v2306 = vpop.f32.mrb[0].mxu0
  %2307 = vmatprep.mubr.bf16.mxu0 0
  %2308 = vmatmul.mubr.bf16.gmra.mrb[0].mxu0 %v1276
  %v2309 = vpop.f32.mrb[0].mxu0
  %v2310 = vadd.f32 0.0, %v2309
  %v2311 = vpop.f32.mrb[0].mxu0
  %v2312 = vpop.f32.mrb[0].mxu0
  %v2313 = vadd.f32 0.0, %v2312
  %v2314 = vpop.f32.mrb[0].mxu0
  %2315 = vmatprep.mubr.bf16.mxu0 0
  %2316 = vmatmul.mubr.bf16.gmra.mrb[0].mxu0 %v1279
  %v2317 = vpop.f32.mrb[0].mxu0
  %v2318 = vadd.f32 0.0, %v2317
  %v2319 = vpop.f32.mrb[0].mxu0
  %v2320 = vpop.f32.mrb[0].mxu0
  %v2321 = vadd.f32 0.0, %v2320
  %v2322 = vpop.f32.mrb[0].mxu0
  %2323 = vdwg.mxu0
  %2324 = vmatprep.subr.mxu0 0.0
  %2325 = vmatpush1.xpose.msra.mxu0 %v1176
  %2326 = vmatprep.subr.mxu0 0.0
  %2327 = vmatpush1.xpose.msra.mxu0 %v1181
  %2328 = vmatprep.subr.mxu0 0.0
  %2329 = vmatpush1.xpose.msra.mxu0 %v1186
  %2330 = vmatprep.subr.mxu0 0.0
  %2331 = vmatpush1.xpose.msra.mxu0 %v1191
  %2332 = vmatprep.subr.mxu0 0.0
  %2333 = vmatpush1.xpose.msra.mxu0 %v1196
  %2334 = vmatprep.subr.mxu0 0.0
  %2335 = vmatpush1.xpose.msra.mxu0 %v1201
  %2336 = vmatprep.subr.mxu0 0.0
  %2337 = vmatpush1.xpose.msra.mxu0 %v1206
  %2338 = vmatprep.subr.mxu0 0.0
  %2339 = vmatpush1.xpose.msra.mxu0 %v1211
  %2340 = vmatprep.subr.mxu0 0.0
  %2341 = vmatpush1.xpose.msra.mxu0 %v1216
  %2342 = vmatprep.subr.mxu0 0.0
  %2343 = vmatpush1.xpose.msra.mxu0 %v1221
  %2344 = vmatprep.subr.mxu0 0.0
  %2345 = vmatpush1.xpose.msra.mxu0 %v1226
  %2346 = vmatprep.subr.mxu0 0.0
  %2347 = vmatpush1.xpose.msra.mxu0 %v1231
  %2348 = vmatprep.subr.mxu0 0.0
  %2349 = vmatpush1.xpose.msra.mxu0 %v1236
  %2350 = vmatprep.subr.mxu0 0.0
  %2351 = vmatpush1.xpose.msra.mxu0 %v1241
  %2352 = vmatprep.subr.mxu0 0.0
  %2353 = vmatpush1.xpose.msra.mxu0 %v1246
  %2354 = vmatprep.subr.mxu0 0.0
  %2355 = vmatpush1.xpose.msra.mxu0 %v1251
  %2356 = vmatprep.subr.mxu0 0.0
  %2357 = vmatpush1.xpose.msra.mxu0 0.0
  %2358 = vmatprep.subr.mxu0 0.0
  %2359 = vmatpush1.xpose.msra.mxu0 0.0
  %2360 = vmatprep.subr.mxu0 0.0
  %2361 = vmatpush1.xpose.msra.mxu0 0.0
  %2362 = vmatprep.subr.mxu0 0.0
  %2363 = vmatpush1.xpose.msra.mxu0 0.0
  %2364 = vmatprep.subr.mxu0 0.0
  %2365 = vmatpush1.xpose.msra.mxu0 0.0
  %2366 = vmatprep.subr.mxu0 0.0
  %2367 = vmatpush1.xpose.msra.mxu0 0.0
  %2368 = vmatprep.subr.mxu0 0.0
  %2369 = vmatpush1.xpose.msra.mxu0 0.0
  %2370 = vmatprep.subr.mxu0 0.0
  %2371 = vmatpush1.xpose.msra.mxu0 0.0
  %2372 = vmatprep.subr.mxu0 0.0
  %2373 = vmatpush1.xpose.msra.mxu0 0.0
  %2374 = vmatprep.subr.mxu0 0.0
  %2375 = vmatpush1.xpose.msra.mxu0 0.0
  %2376 = vmatprep.subr.mxu0 0.0
  %2377 = vmatpush1.xpose.msra.mxu0 0.0
  %2378 = vmatprep.subr.mxu0 0.0
  %2379 = vmatpush1.xpose.msra.mxu0 0.0
  %2380 = vmatprep.subr.mxu0 0.0
  %2381 = vmatpush1.xpose.msra.mxu0 0.0
  %2382 = vmatprep.subr.mxu0 0.0
  %2383 = vmatpush1.xpose.msra.mxu0 0.0
  %2384 = vmatprep.subr.mxu0 0.0
  %2385 = vmatpush1.xpose.msra.mxu0 0.0
  %2386 = vmatprep.subr.mxu0 0.0
  %2387 = vmatpush1.xpose.msra.mxu0 0.0
  %2388 = vmatprep.mubr.f32.mxu0 0.0
  %2389 = vmatmul.mubr.f32.gmra.mrb[0].mxu0 %v1034
  %v2390 = vpop.f32.mrb[0].mxu0
  %v2391 = vadd.f32 0.0, %v2390
  %v2392 = vpop.f32.mrb[0].mxu0
  %2393 = vmatprep.mubr.f32.mxu0 0.0
  %2394 = vmatmul.mubr.f32.gmra.mrb[0].mxu0 %v1034
  %v2395 = vpop.f32.mrb[0].mxu0
  %v2396 = vadd.f32 0.0, %v2395
  %v2397 = vpop.f32.mrb[0].mxu0
  %2398 = vmatprep.mubr.f32.mxu0 0.0
  %2399 = vmatmul.mubr.f32.gmra.mrb[0].mxu0 %v1034
  %v2400 = vpop.f32.mrb[0].mxu0
  %v2401 = vadd.f32 0.0, %v2400
  %v2402 = vpop.f32.mrb[0].mxu0
  %2403 = vmatprep.mubr.f32.mxu0 0.0
  %2404 = vmatmul.mubr.f32.gmra.mrb[0].mxu0 %v1034
  %v2405 = vpop.f32.mrb[0].mxu0
  %v2406 = vadd.f32 0.0, %v2405
  %v2407 = vpop.f32.mrb[0].mxu0
  %2408 = vmatprep.mubr.f32.mxu0 0.0
  %2409 = vmatmul.mubr.f32.gmra.mrb[0].mxu0 %v1034
  %v2410 = vpop.f32.mrb[0].mxu0
  %v2411 = vadd.f32 0.0, %v2410
  %v2412 = vpop.f32.mrb[0].mxu0
  %2413 = vmatprep.mubr.f32.mxu0 0.0
  %2414 = vmatmul.mubr.f32.gmra.mrb[0].mxu0 %v1034
  %v2415 = vpop.f32.mrb[0].mxu0
  %v2416 = vadd.f32 0.0, %v2415
  %v2417 = vpop.f32.mrb[0].mxu0
  %2418 = vmatprep.mubr.f32.mxu0 0.0
  %2419 = vmatmul.mubr.f32.gmra.mrb[0].mxu0 %v1034
  %v2420 = vpop.f32.mrb[0].mxu0
  %v2421 = vadd.f32 0.0, %v2420
  %v2422 = vpop.f32.mrb[0].mxu0
  %2423 = vmatprep.mubr.f32.mxu0 0.0
  %2424 = vmatmul.mubr.f32.gmra.mrb[0].mxu0 %v1034
  %v2425 = vpop.f32.mrb[0].mxu0
  %v2426 = vadd.f32 0.0, %v2425
  %v2427 = vpop.f32.mrb[0].mxu0
  %2428 = vmatprep.mubr.f32.mxu0 0.0
  %2429 = vmatmul.mubr.f32.gmra.mrb[0].mxu0 %v1034
  %v2430 = vpop.f32.mrb[0].mxu0
  %v2431 = vadd.f32 0.0, %v2430
  %v2432 = vpop.f32.mrb[0].mxu0
  %2433 = vmatprep.mubr.f32.mxu0 0.0
  %2434 = vmatmul.mubr.f32.gmra.mrb[0].mxu0 %v1034
  %v2435 = vpop.f32.mrb[0].mxu0
  %v2436 = vadd.f32 0.0, %v2435
  %v2437 = vpop.f32.mrb[0].mxu0
  %2438 = vmatprep.mubr.f32.mxu0 0.0
  %2439 = vmatmul.mubr.f32.gmra.mrb[0].mxu0 %v1034
  %v2440 = vpop.f32.mrb[0].mxu0
  %v2441 = vadd.f32 0.0, %v2440
  %v2442 = vpop.f32.mrb[0].mxu0
  %2443 = vmatprep.mubr.f32.mxu0 0.0
  %2444 = vmatmul.mubr.f32.gmra.mrb[0].mxu0 %v1034
  %v2445 = vpop.f32.mrb[0].mxu0
  %v2446 = vadd.f32 0.0, %v2445
  %v2447 = vpop.f32.mrb[0].mxu0
  %2448 = vmatprep.mubr.f32.mxu0 0.0
  %2449 = vmatmul.mubr.f32.gmra.mrb[0].mxu0 %v1034
  %v2450 = vpop.f32.mrb[0].mxu0
  %v2451 = vadd.f32 0.0, %v2450
  %v2452 = vpop.f32.mrb[0].mxu0
  %2453 = vmatprep.mubr.f32.mxu0 0.0
  %2454 = vmatmul.mubr.f32.gmra.mrb[0].mxu0 %v1034
  %v2455 = vpop.f32.mrb[0].mxu0
  %v2456 = vadd.f32 0.0, %v2455
  %v2457 = vpop.f32.mrb[0].mxu0
  %2458 = vmatprep.mubr.f32.mxu0 0.0
  %2459 = vmatmul.mubr.f32.gmra.mrb[0].mxu0 %v1034
  %v2460 = vpop.f32.mrb[0].mxu0
  %v2461 = vadd.f32 0.0, %v2460
  %v2462 = vpop.f32.mrb[0].mxu0
  %2463 = vmatprep.mubr.f32.mxu0 0.0
  %2464 = vmatmul.mubr.f32.gmra.mrb[0].mxu0 %v1034
  %v2465 = vpop.f32.mrb[0].mxu0
  %v2466 = vadd.f32 0.0, %v2465
  %v2467 = vpop.f32.mrb[0].mxu0
  %2468 = vdwg.mxu0
  %2469 = vmatprep.subr.mxu0 0.0
  %2470 = vmatpush1.msra.mxu0 %v1016
  %2471 = vmatprep.subr.mxu0 0.0
  %2472 = vmatpush1.msra.mxu0 %v1017
  %2473 = vmatprep.subr.mxu0 0.0
  %2474 = vmatpush1.msra.mxu0 %v1018
  %2475 = vmatprep.subr.mxu0 0.0
  %2476 = vmatpush1.msra.mxu0 %v1019
  %2477 = vmatprep.subr.mxu0 0.0
  %2478 = vmatpush1.msra.mxu0 %v1020
  %2479 = vmatprep.subr.mxu0 0.0
  %2480 = vmatpush1.msra.mxu0 %v1021
  %2481 = vmatprep.subr.mxu0 0.0
  %2482 = vmatpush1.msra.mxu0 %v1022
  %2483 = vmatprep.subr.mxu0 0.0
  %2484 = vmatpush1.msra.mxu0 %v1023
  %2485 = vmatprep.subr.mxu0 0.0
  %2486 = vmatpush1.msra.mxu0 %v1024
  %2487 = vmatprep.subr.mxu0 0.0
  %2488 = vmatpush1.msra.mxu0 %v1025
  %2489 = vmatprep.subr.mxu0 0.0
  %2490 = vmatpush1.msra.mxu0 %v1026
  %2491 = vmatprep.subr.mxu0 0.0
  %2492 = vmatpush1.msra.mxu0 %v1027
  %2493 = vmatprep.subr.mxu0 0.0
  %2494 = vmatpush1.msra.mxu0 %v1028
  %2495 = vmatprep.subr.mxu0 0.0
  %2496 = vmatpush1.msra.mxu0 %v1029
  %2497 = vmatprep.subr.mxu0 0.0
  %2498 = vmatpush1.msra.mxu0 %v1030
  %2499 = vmatprep.subr.mxu0 0.0
  %2500 = vmatpush1.msra.mxu0 %v1031
  %2501 = vmatprep.subr.mxu0 0.0
  %2502 = vmatpush1.msra.mxu0 0.0
  %2503 = vmatprep.subr.mxu0 0.0
  %2504 = vmatpush1.msra.mxu0 0.0
  %2505 = vmatprep.subr.mxu0 0.0
  %2506 = vmatpush1.msra.mxu0 0.0
  %2507 = vmatprep.subr.mxu0 0.0
  %2508 = vmatpush1.msra.mxu0 0.0
  %2509 = vmatprep.subr.mxu0 0.0
  %2510 = vmatpush1.msra.mxu0 0.0
  %2511 = vmatprep.subr.mxu0 0.0
  %2512 = vmatpush1.msra.mxu0 0.0
  %2513 = vmatprep.subr.mxu0 0.0
  %2514 = vmatpush1.msra.mxu0 0.0
  %2515 = vmatprep.subr.mxu0 0.0
  %2516 = vmatpush1.msra.mxu0 0.0
  %2517 = vmatprep.subr.mxu0 0.0
  %2518 = vmatpush1.msra.mxu0 0.0
  %2519 = vmatprep.subr.mxu0 0.0
  %2520 = vmatpush1.msra.mxu0 0.0
  %2521 = vmatprep.subr.mxu0 0.0
  %2522 = vmatpush1.msra.mxu0 0.0
  %2523 = vmatprep.subr.mxu0 0.0
  %2524 = vmatpush1.msra.mxu0 0.0
  %2525 = vmatprep.subr.mxu0 0.0
  %2526 = vmatpush1.msra.mxu0 0.0
  %2527 = vmatprep.subr.mxu0 0.0
  %2528 = vmatpush1.msra.mxu0 0.0
  %2529 = vmatprep.subr.mxu0 0.0
  %2530 = vmatpush1.msra.mxu0 0.0
  %2531 = vmatprep.subr.mxu0 0.0
  %2532 = vmatpush1.msra.mxu0 0.0
  %2533 = vmatprep.mubr.f32.mxu0 0.0
  %2534 = vmatmul.mubr.f32.gmra.mrb[0].mxu0 %v1176
  %v2535 = vpop.f32.mrb[0].mxu0
  %v2536 = vadd.f32 %v2391, %v2535
  %v2537 = vpop.f32.mrb[0].mxu0
  %2538 = vmatprep.mubr.f32.mxu0 0.0
  %2539 = vmatmul.mubr.f32.gmra.mrb[0].mxu0 %v1181
  %v2540 = vpop.f32.mrb[0].mxu0
  %v2541 = vadd.f32 %v2396, %v2540
  %v2542 = vpop.f32.mrb[0].mxu0
  %2543 = vmatprep.mubr.f32.mxu0 0.0
  %2544 = vmatmul.mubr.f32.gmra.mrb[0].mxu0 %v1186
  %v2545 = vpop.f32.mrb[0].mxu0
  %v2546 = vadd.f32 %v2401, %v2545
  %v2547 = vpop.f32.mrb[0].mxu0
  %2548 = vmatprep.mubr.f32.mxu0 0.0
  %2549 = vmatmul.mubr.f32.gmra.mrb[0].mxu0 %v1191
  %v2550 = vpop.f32.mrb[0].mxu0
  %v2551 = vadd.f32 %v2406, %v2550
  %v2552 = vpop.f32.mrb[0].mxu0
  %2553 = vmatprep.mubr.f32.mxu0 0.0
  %2554 = vmatmul.mubr.f32.gmra.mrb[0].mxu0 %v1196
  %v2555 = vpop.f32.mrb[0].mxu0
  %v2556 = vadd.f32 %v2411, %v2555
  %v2557 = vpop.f32.mrb[0].mxu0
  %2558 = vmatprep.mubr.f32.mxu0 0.0
  %2559 = vmatmul.mubr.f32.gmra.mrb[0].mxu0 %v1201
  %v2560 = vpop.f32.mrb[0].mxu0
  %v2561 = vadd.f32 %v2416, %v2560
  %v2562 = vpop.f32.mrb[0].mxu0
  %2563 = vmatprep.mubr.f32.mxu0 0.0
  %2564 = vmatmul.mubr.f32.gmra.mrb[0].mxu0 %v1206
  %v2565 = vpop.f32.mrb[0].mxu0
  %v2566 = vadd.f32 %v2421, %v2565
  %v2567 = vpop.f32.mrb[0].mxu0
  %2568 = vmatprep.mubr.f32.mxu0 0.0
  %2569 = vmatmul.mubr.f32.gmra.mrb[0].mxu0 %v1211
  %v2570 = vpop.f32.mrb[0].mxu0
  %v2571 = vadd.f32 %v2426, %v2570
  %v2572 = vpop.f32.mrb[0].mxu0
  %2573 = vmatprep.mubr.f32.mxu0 0.0
  %2574 = vmatmul.mubr.f32.gmra.mrb[0].mxu0 %v1216
  %v2575 = vpop.f32.mrb[0].mxu0
  %v2576 = vadd.f32 %v2431, %v2575
  %v2577 = vpop.f32.mrb[0].mxu0
  %2578 = vmatprep.mubr.f32.mxu0 0.0
  %2579 = vmatmul.mubr.f32.gmra.mrb[0].mxu0 %v1221
  %v2580 = vpop.f32.mrb[0].mxu0
  %v2581 = vadd.f32 %v2436, %v2580
  %v2582 = vpop.f32.mrb[0].mxu0
  %2583 = vmatprep.mubr.f32.mxu0 0.0
  %2584 = vmatmul.mubr.f32.gmra.mrb[0].mxu0 %v1226
  %v2585 = vpop.f32.mrb[0].mxu0
  %v2586 = vadd.f32 %v2441, %v2585
  %v2587 = vpop.f32.mrb[0].mxu0
  %2588 = vmatprep.mubr.f32.mxu0 0.0
  %2589 = vmatmul.mubr.f32.gmra.mrb[0].mxu0 %v1231
  %v2590 = vpop.f32.mrb[0].mxu0
  %v2591 = vadd.f32 %v2446, %v2590
  %v2592 = vpop.f32.mrb[0].mxu0
  %2593 = vmatprep.mubr.f32.mxu0 0.0
  %2594 = vmatmul.mubr.f32.gmra.mrb[0].mxu0 %v1236
  %v2595 = vpop.f32.mrb[0].mxu0
  %v2596 = vadd.f32 %v2451, %v2595
  %v2597 = vpop.f32.mrb[0].mxu0
  %2598 = vmatprep.mubr.f32.mxu0 0.0
  %2599 = vmatmul.mubr.f32.gmra.mrb[0].mxu0 %v1241
  %v2600 = vpop.f32.mrb[0].mxu0
  %v2601 = vadd.f32 %v2456, %v2600
  %v2602 = vpop.f32.mrb[0].mxu0
  %2603 = vmatprep.mubr.f32.mxu0 0.0
  %2604 = vmatmul.mubr.f32.gmra.mrb[0].mxu0 %v1246
  %v2605 = vpop.f32.mrb[0].mxu0
  %v2606 = vadd.f32 %v2461, %v2605
  %v2607 = vpop.f32.mrb[0].mxu0
  %2608 = vmatprep.mubr.f32.mxu0 0.0
  %2609 = vmatmul.mubr.f32.gmra.mrb[0].mxu0 %v1251
  %v2610 = vpop.f32.mrb[0].mxu0
  %v2611 = vadd.f32 %v2466, %v2610
  %v2612 = vpop.f32.mrb[0].mxu0
  %2613 = vdwg.mxu0
  %vm2614 = vcmp.gt.f32.partialorder %v2536, 0.0
  %vm2615 = vcmp.gt.f32.partialorder %v2541, 0.0
  %vm2616 = vcmp.gt.f32.partialorder %v2546, 0.0
  %vm2617 = vcmp.gt.f32.partialorder %v2551, 0.0
  %vm2618 = vcmp.gt.f32.partialorder %v2556, 0.0
  %vm2619 = vcmp.gt.f32.partialorder %v2561, 0.0
  %vm2620 = vcmp.gt.f32.partialorder %v2566, 0.0
  %vm2621 = vcmp.gt.f32.partialorder %v2571, 0.0
  %vm2622 = vcmp.gt.f32.partialorder %v2576, 0.0
  %vm2623 = vcmp.gt.f32.partialorder %v2581, 0.0
  %vm2624 = vcmp.gt.f32.partialorder %v2586, 0.0
  %vm2625 = vcmp.gt.f32.partialorder %v2591, 0.0
  %vm2626 = vcmp.gt.f32.partialorder %v2596, 0.0
  %vm2627 = vcmp.gt.f32.partialorder %v2601, 0.0
  %vm2628 = vcmp.gt.f32.partialorder %v2606, 0.0
  %vm2629 = vcmp.gt.f32.partialorder %v2611, 0.0
  %v2630 = vmul.f32 %v2536, 0.2
  %v2631 = vmul.f32 %v2541, 0.2
  %v2632 = vmul.f32 %v2546, 0.2
  %v2633 = vmul.f32 %v2551, 0.2
  %v2634 = vmul.f32 %v2556, 0.2
  %v2635 = vmul.f32 %v2561, 0.2
  %v2636 = vmul.f32 %v2566, 0.2
  %v2637 = vmul.f32 %v2571, 0.2
  %v2638 = vmul.f32 %v2576, 0.2
  %v2639 = vmul.f32 %v2581, 0.2
  %v2640 = vmul.f32 %v2586, 0.2
  %v2641 = vmul.f32 %v2591, 0.2
  %v2642 = vmul.f32 %v2596, 0.2
  %v2643 = vmul.f32 %v2601, 0.2
  %v2644 = vmul.f32 %v2606, 0.2
  %v2645 = vmul.f32 %v2611, 0.2
  %v2646 = vsel %vm2614, %v2536, %v2630
  %v2647 = vsel %vm2615, %v2541, %v2631
  %v2648 = vsel %vm2616, %v2546, %v2632
  %v2649 = vsel %vm2617, %v2551, %v2633
  %v2650 = vsel %vm2618, %v2556, %v2634
  %v2651 = vsel %vm2619, %v2561, %v2635
  %v2652 = vsel %vm2620, %v2566, %v2636
  %v2653 = vsel %vm2621, %v2571, %v2637
  %v2654 = vsel %vm2622, %v2576, %v2638
  %v2655 = vsel %vm2623, %v2581, %v2639
  %v2656 = vsel %vm2624, %v2586, %v2640
  %v2657 = vsel %vm2625, %v2591, %v2641
  %v2658 = vsel %vm2626, %v2596, %v2642
  %v2659 = vsel %vm2627, %v2601, %v2643
  %v2660 = vsel %vm2628, %v2606, %v2644
  %v2661 = vsel %vm2629, %v2611, %v2645
  %vm2662 = vcmp.ne.f32.partialorder %v61, 0.0
  %vm2663 = vcmp.ne.f32.partialorder %v62, 0.0
  %vm2664 = vcmp.ne.f32.partialorder %v63, 0.0
  %vm2665 = vcmp.ne.f32.partialorder %v64, 0.0
  %vm2666 = vcmp.ne.f32.partialorder %v65, 0.0
  %vm2667 = vcmp.ne.f32.partialorder %v66, 0.0
  %vm2668 = vcmp.ne.f32.partialorder %v67, 0.0
  %vm2669 = vcmp.ne.f32.partialorder %v68, 0.0
  %vm2670 = vcmp.ne.f32.partialorder %v69, 0.0
  %vm2671 = vcmp.ne.f32.partialorder %v70, 0.0
  %vm2672 = vcmp.ne.f32.partialorder %v71, 0.0
  %vm2673 = vcmp.ne.f32.partialorder %v72, 0.0
  %vm2674 = vcmp.ne.f32.partialorder %v73, 0.0
  %vm2675 = vcmp.ne.f32.partialorder %v74, 0.0
  %vm2676 = vcmp.ne.f32.partialorder %v75, 0.0
  %vm2677 = vcmp.ne.f32.partialorder %v76, 0.0
  %v2678 = vsel %vm2662, 1, 0
  %v2679 = vsel %vm2663, 1, 0
  %v2680 = vsel %vm2664, 1, 0
  %v2681 = vsel %vm2665, 1, 0
  %v2682 = vsel %vm2666, 1, 0
  %v2683 = vsel %vm2667, 1, 0
  %v2684 = vsel %vm2668, 1, 0
  %v2685 = vsel %vm2669, 1, 0
  %v2686 = vsel %vm2670, 1, 0
  %v2687 = vsel %vm2671, 1, 0
  %v2688 = vsel %vm2672, 1, 0
  %v2689 = vsel %vm2673, 1, 0
  %v2690 = vsel %vm2674, 1, 0
  %v2691 = vsel %vm2675, 1, 0
  %v2692 = vsel %vm2676, 1, 0
  %v2693 = vsel %vm2677, 1, 0
  %v2694 = vcvt.s32.f32 %v2678
  %v2695 = vcvt.s32.f32 %v2679
  %v2696 = vcvt.s32.f32 %v2680
  %v2697 = vcvt.s32.f32 %v2681
  %v2698 = vcvt.s32.f32 %v2682
  %v2699 = vcvt.s32.f32 %v2683
  %v2700 = vcvt.s32.f32 %v2684
  %v2701 = vcvt.s32.f32 %v2685
  %v2702 = vcvt.s32.f32 %v2686
  %v2703 = vcvt.s32.f32 %v2687
  %v2704 = vcvt.s32.f32 %v2688
  %v2705 = vcvt.s32.f32 %v2689
  %v2706 = vcvt.s32.f32 %v2690
  %v2707 = vcvt.s32.f32 %v2691
  %v2708 = vcvt.s32.f32 %v2692
  %v2709 = vcvt.s32.f32 %v2693
  %v2710 = vsel %vm2662, %v2646, -1e+30
  %v2711 = vsel %vm2663, %v2647, -1e+30
  %v2712 = vsel %vm2664, %v2648, -1e+30
  %v2713 = vsel %vm2665, %v2649, -1e+30
  %v2714 = vsel %vm2666, %v2650, -1e+30
  %v2715 = vsel %vm2667, %v2651, -1e+30
  %v2716 = vsel %vm2668, %v2652, -1e+30
  %v2717 = vsel %vm2669, %v2653, -1e+30
  %v2718 = vsel %vm2670, %v2654, -1e+30
  %v2719 = vsel %vm2671, %v2655, -1e+30
  %v2720 = vsel %vm2672, %v2656, -1e+30
  %v2721 = vsel %vm2673, %v2657, -1e+30
  %v2722 = vsel %vm2674, %v2658, -1e+30
  %v2723 = vsel %vm2675, %v2659, -1e+30
  %v2724 = vsel %vm2676, %v2660, -1e+30
  %v2725 = vsel %vm2677, %v2661, -1e+30
  %2726 = vmax.xlane.f32.xlu0 %v2710
  %v2727 = vpop.xlane.xlu0 %2726
  %2728 = vmax.xlane.f32.xlu0 %v2711
  %v2729 = vpop.xlane.xlu0 %2728
  %2730 = vmax.xlane.f32.xlu0 %v2712
  %v2731 = vpop.xlane.xlu0 %2730
  %2732 = vmax.xlane.f32.xlu0 %v2713
  %v2733 = vpop.xlane.xlu0 %2732
  %2734 = vmax.xlane.f32.xlu0 %v2714
  %v2735 = vpop.xlane.xlu0 %2734
  %2736 = vmax.xlane.f32.xlu0 %v2715
  %v2737 = vpop.xlane.xlu0 %2736
  %2738 = vmax.xlane.f32.xlu0 %v2716
  %v2739 = vpop.xlane.xlu0 %2738
  %2740 = vmax.xlane.f32.xlu0 %v2717
  %v2741 = vpop.xlane.xlu0 %2740
  %2742 = vmax.xlane.f32.xlu0 %v2718
  %v2743 = vpop.xlane.xlu0 %2742
  %2744 = vmax.xlane.f32.xlu0 %v2719
  %v2745 = vpop.xlane.xlu0 %2744
  %2746 = vmax.xlane.f32.xlu0 %v2720
  %v2747 = vpop.xlane.xlu0 %2746
  %2748 = vmax.xlane.f32.xlu0 %v2721
  %v2749 = vpop.xlane.xlu0 %2748
  %2750 = vmax.xlane.f32.xlu0 %v2722
  %v2751 = vpop.xlane.xlu0 %2750
  %2752 = vmax.xlane.f32.xlu0 %v2723
  %v2753 = vpop.xlane.xlu0 %2752
  %2754 = vmax.xlane.f32.xlu0 %v2724
  %v2755 = vpop.xlane.xlu0 %2754
  %2756 = vmax.xlane.f32.xlu0 %v2725
  %v2757 = vpop.xlane.xlu0 %2756
  %v2758 = vsub.f32 %v2710, %v2727
  %v2759 = vsub.f32 %v2711, %v2729
  %v2760 = vsub.f32 %v2712, %v2731
  %v2761 = vsub.f32 %v2713, %v2733
  %v2762 = vsub.f32 %v2714, %v2735
  %v2763 = vsub.f32 %v2715, %v2737
  %v2764 = vsub.f32 %v2716, %v2739
  %v2765 = vsub.f32 %v2717, %v2741
  %v2766 = vsub.f32 %v2718, %v2743
  %v2767 = vsub.f32 %v2719, %v2745
  %v2768 = vsub.f32 %v2720, %v2747
  %v2769 = vsub.f32 %v2721, %v2749
  %v2770 = vsub.f32 %v2722, %v2751
  %v2771 = vsub.f32 %v2723, %v2753
  %v2772 = vsub.f32 %v2724, %v2755
  %v2773 = vsub.f32 %v2725, %v2757
  %v2774 = vmul.f32 %v2758, 1.442695
  %v2775 = vpow.pop %v2774
  %v2776 = vmul.f32 %v2759, 1.442695
  %v2777 = vpow.pop %v2776
  %v2778 = vmul.f32 %v2760, 1.442695
  %v2779 = vpow.pop %v2778
  %v2780 = vmul.f32 %v2761, 1.442695
  %v2781 = vpow.pop %v2780
  %v2782 = vmul.f32 %v2762, 1.442695
  %v2783 = vpow.pop %v2782
  %v2784 = vmul.f32 %v2763, 1.442695
  %v2785 = vpow.pop %v2784
  %v2786 = vmul.f32 %v2764, 1.442695
  %v2787 = vpow.pop %v2786
  %v2788 = vmul.f32 %v2765, 1.442695
  %v2789 = vpow.pop %v2788
  %v2790 = vmul.f32 %v2766, 1.442695
  %v2791 = vpow.pop %v2790
  %v2792 = vmul.f32 %v2767, 1.442695
  %v2793 = vpow.pop %v2792
  %v2794 = vmul.f32 %v2768, 1.442695
  %v2795 = vpow.pop %v2794
  %v2796 = vmul.f32 %v2769, 1.442695
  %v2797 = vpow.pop %v2796
  %v2798 = vmul.f32 %v2770, 1.442695
  %v2799 = vpow.pop %v2798
  %v2800 = vmul.f32 %v2771, 1.442695
  %v2801 = vpow.pop %v2800
  %v2802 = vmul.f32 %v2772, 1.442695
  %v2803 = vpow.pop %v2802
  %v2804 = vmul.f32 %v2773, 1.442695
  %v2805 = vpow.pop %v2804
  %v2806 = vmul.f32 %v2775, %v2694
  %v2807 = vmul.f32 %v2777, %v2695
  %v2808 = vmul.f32 %v2779, %v2696
  %v2809 = vmul.f32 %v2781, %v2697
  %v2810 = vmul.f32 %v2783, %v2698
  %v2811 = vmul.f32 %v2785, %v2699
  %v2812 = vmul.f32 %v2787, %v2700
  %v2813 = vmul.f32 %v2789, %v2701
  %v2814 = vmul.f32 %v2791, %v2702
  %v2815 = vmul.f32 %v2793, %v2703
  %v2816 = vmul.f32 %v2795, %v2704
  %v2817 = vmul.f32 %v2797, %v2705
  %v2818 = vmul.f32 %v2799, %v2706
  %v2819 = vmul.f32 %v2801, %v2707
  %v2820 = vmul.f32 %v2803, %v2708
  %v2821 = vmul.f32 %v2805, %v2709
  %2822 = vadd.xlane.f32.xlu0 %v2806
  %v2823 = vpop.xlane.xlu0 %2822
  %2824 = vadd.xlane.f32.xlu0 %v2807
  %v2825 = vpop.xlane.xlu0 %2824
  %2826 = vadd.xlane.f32.xlu0 %v2808
  %v2827 = vpop.xlane.xlu0 %2826
  %2828 = vadd.xlane.f32.xlu0 %v2809
  %v2829 = vpop.xlane.xlu0 %2828
  %2830 = vadd.xlane.f32.xlu0 %v2810
  %v2831 = vpop.xlane.xlu0 %2830
  %2832 = vadd.xlane.f32.xlu0 %v2811
  %v2833 = vpop.xlane.xlu0 %2832
  %2834 = vadd.xlane.f32.xlu0 %v2812
  %v2835 = vpop.xlane.xlu0 %2834
  %2836 = vadd.xlane.f32.xlu0 %v2813
  %v2837 = vpop.xlane.xlu0 %2836
  %2838 = vadd.xlane.f32.xlu0 %v2814
  %v2839 = vpop.xlane.xlu0 %2838
  %2840 = vadd.xlane.f32.xlu0 %v2815
  %v2841 = vpop.xlane.xlu0 %2840
  %2842 = vadd.xlane.f32.xlu0 %v2816
  %v2843 = vpop.xlane.xlu0 %2842
  %2844 = vadd.xlane.f32.xlu0 %v2817
  %v2845 = vpop.xlane.xlu0 %2844
  %2846 = vadd.xlane.f32.xlu0 %v2818
  %v2847 = vpop.xlane.xlu0 %2846
  %2848 = vadd.xlane.f32.xlu0 %v2819
  %v2849 = vpop.xlane.xlu0 %2848
  %2850 = vadd.xlane.f32.xlu0 %v2820
  %v2851 = vpop.xlane.xlu0 %2850
  %2852 = vadd.xlane.f32.xlu0 %v2821
  %v2853 = vpop.xlane.xlu0 %2852
  %v2854 = vmax.f32 %v2823, 1e-30
  %v2855 = vmax.f32 %v2825, 1e-30
  %v2856 = vmax.f32 %v2827, 1e-30
  %v2857 = vmax.f32 %v2829, 1e-30
  %v2858 = vmax.f32 %v2831, 1e-30
  %v2859 = vmax.f32 %v2833, 1e-30
  %v2860 = vmax.f32 %v2835, 1e-30
  %v2861 = vmax.f32 %v2837, 1e-30
  %v2862 = vmax.f32 %v2839, 1e-30
  %v2863 = vmax.f32 %v2841, 1e-30
  %v2864 = vmax.f32 %v2843, 1e-30
  %v2865 = vmax.f32 %v2845, 1e-30
  %v2866 = vmax.f32 %v2847, 1e-30
  %v2867 = vmax.f32 %v2849, 1e-30
  %v2868 = vmax.f32 %v2851, 1e-30
  %v2869 = vmax.f32 %v2853, 1e-30
  %v2870 = vrcp.pop %v2854
  %v2871 = vrcp.pop %v2855
  %v2872 = vrcp.pop %v2856
  %v2873 = vrcp.pop %v2857
  %v2874 = vrcp.pop %v2858
  %v2875 = vrcp.pop %v2859
  %v2876 = vrcp.pop %v2860
  %v2877 = vrcp.pop %v2861
  %v2878 = vrcp.pop %v2862
  %v2879 = vrcp.pop %v2863
  %v2880 = vrcp.pop %v2864
  %v2881 = vrcp.pop %v2865
  %v2882 = vrcp.pop %v2866
  %v2883 = vrcp.pop %v2867
  %v2884 = vrcp.pop %v2868
  %v2885 = vrcp.pop %v2869
  %v2886 = vmul.f32 %v2806, %v2870
  %v2887 = vmul.f32 %v2807, %v2871
  %v2888 = vmul.f32 %v2808, %v2872
  %v2889 = vmul.f32 %v2809, %v2873
  %v2890 = vmul.f32 %v2810, %v2874
  %v2891 = vmul.f32 %v2811, %v2875
  %v2892 = vmul.f32 %v2812, %v2876
  %v2893 = vmul.f32 %v2813, %v2877
  %v2894 = vmul.f32 %v2814, %v2878
  %v2895 = vmul.f32 %v2815, %v2879
  %v2896 = vmul.f32 %v2816, %v2880
  %v2897 = vmul.f32 %v2817, %v2881
  %v2898 = vmul.f32 %v2818, %v2882
  %v2899 = vmul.f32 %v2819, %v2883
  %v2900 = vmul.f32 %v2820, %v2884
  %v2901 = vmul.f32 %v2821, %v2885
  %v2902 = vmul.f32 %v2886, %v61
  %v2903 = vmul.f32 %v2887, %v62
  %v2904 = vmul.f32 %v2888, %v63
  %v2905 = vmul.f32 %v2889, %v64
  %v2906 = vmul.f32 %v2890, %v65
  %v2907 = vmul.f32 %v2891, %v66
  %v2908 = vmul.f32 %v2892, %v67
  %v2909 = vmul.f32 %v2893, %v68
  %v2910 = vmul.f32 %v2894, %v69
  %v2911 = vmul.f32 %v2895, %v70
  %v2912 = vmul.f32 %v2896, %v71
  %v2913 = vmul.f32 %v2897, %v72
  %v2914 = vmul.f32 %v2898, %v73
  %v2915 = vmul.f32 %v2899, %v74
  %v2916 = vmul.f32 %v2900, %v75
  %v2917 = vmul.f32 %v2901, %v76
  %2918 = vmatprep.subr.mxu0 0.0
  %2919 = vmatpush1.msra.mxu0 %v2262
  %2920 = vmatprep.subr.mxu0 0.0
  %2921 = vmatpush1.msra.mxu0 %v2265
  %2922 = vmatprep.subr.mxu0 0.0
  %2923 = vmatpush1.msra.mxu0 %v2270
  %2924 = vmatprep.subr.mxu0 0.0
  %2925 = vmatpush1.msra.mxu0 %v2273
  %2926 = vmatprep.subr.mxu0 0.0
  %2927 = vmatpush1.msra.mxu0 %v2278
  %2928 = vmatprep.subr.mxu0 0.0
  %2929 = vmatpush1.msra.mxu0 %v2281
  %2930 = vmatprep.subr.mxu0 0.0
  %2931 = vmatpush1.msra.mxu0 %v2286
  %2932 = vmatprep.subr.mxu0 0.0
  %2933 = vmatpush1.msra.mxu0 %v2289
  %2934 = vmatprep.subr.mxu0 0.0
  %2935 = vmatpush1.msra.mxu0 %v2294
  %2936 = vmatprep.subr.mxu0 0.0
  %2937 = vmatpush1.msra.mxu0 %v2297
  %2938 = vmatprep.subr.mxu0 0.0
  %2939 = vmatpush1.msra.mxu0 %v2302
  %2940 = vmatprep.subr.mxu0 0.0
  %2941 = vmatpush1.msra.mxu0 %v2305
  %2942 = vmatprep.subr.mxu0 0.0
  %2943 = vmatpush1.msra.mxu0 %v2310
  %2944 = vmatprep.subr.mxu0 0.0
  %2945 = vmatpush1.msra.mxu0 %v2313
  %2946 = vmatprep.subr.mxu0 0.0
  %2947 = vmatpush1.msra.mxu0 %v2318
  %2948 = vmatprep.subr.mxu0 0.0
  %2949 = vmatpush1.msra.mxu0 %v2321
  %2950 = vmatprep.subr.mxu0 0.0
  %2951 = vmatpush1.msra.mxu0 0.0
  %2952 = vmatprep.subr.mxu0 0.0
  %2953 = vmatpush1.msra.mxu0 0.0
  %2954 = vmatprep.subr.mxu0 0.0
  %2955 = vmatpush1.msra.mxu0 0.0
  %2956 = vmatprep.subr.mxu0 0.0
  %2957 = vmatpush1.msra.mxu0 0.0
  %2958 = vmatprep.subr.mxu0 0.0
  %2959 = vmatpush1.msra.mxu0 0.0
  %2960 = vmatprep.subr.mxu0 0.0
  %2961 = vmatpush1.msra.mxu0 0.0
  %2962 = vmatprep.subr.mxu0 0.0
  %2963 = vmatpush1.msra.mxu0 0.0
  %2964 = vmatprep.subr.mxu0 0.0
  %2965 = vmatpush1.msra.mxu0 0.0
  %2966 = vmatprep.subr.mxu0 0.0
  %2967 = vmatpush1.msra.mxu0 0.0
  %2968 = vmatprep.subr.mxu0 0.0
  %2969 = vmatpush1.msra.mxu0 0.0
  %2970 = vmatprep.subr.mxu0 0.0
  %2971 = vmatpush1.msra.mxu0 0.0
  %2972 = vmatprep.subr.mxu0 0.0
  %2973 = vmatpush1.msra.mxu0 0.0
  %2974 = vmatprep.subr.mxu0 0.0
  %2975 = vmatpush1.msra.mxu0 0.0
  %2976 = vmatprep.subr.mxu0 0.0
  %2977 = vmatpush1.msra.mxu0 0.0
  %2978 = vmatprep.subr.mxu0 0.0
  %2979 = vmatpush1.msra.mxu0 0.0
  %2980 = vmatprep.subr.mxu0 0.0
  %2981 = vmatpush1.msra.mxu0 0.0
  %2982 = vmatprep.mubr.f32.mxu0 0.0
  %2983 = vmatmul.mubr.f32.gmra.mrb[0].mxu0 %v2902
  %v2984 = vpop.f32.mrb[0].mxu0
  %v2985 = vadd.f32 0.0, %v2984
  %v2986 = vpop.f32.mrb[0].mxu0
  %2987 = vmatprep.mubr.f32.mxu0 0.0
  %2988 = vmatmul.mubr.f32.gmra.mrb[0].mxu0 %v2903
  %v2989 = vpop.f32.mrb[0].mxu0
  %v2990 = vadd.f32 0.0, %v2989
  %v2991 = vpop.f32.mrb[0].mxu0
  %2992 = vmatprep.mubr.f32.mxu0 0.0
  %2993 = vmatmul.mubr.f32.gmra.mrb[0].mxu0 %v2904
  %v2994 = vpop.f32.mrb[0].mxu0
  %v2995 = vadd.f32 0.0, %v2994
  %v2996 = vpop.f32.mrb[0].mxu0
  %2997 = vmatprep.mubr.f32.mxu0 0.0
  %2998 = vmatmul.mubr.f32.gmra.mrb[0].mxu0 %v2905
  %v2999 = vpop.f32.mrb[0].mxu0
  %v3000 = vadd.f32 0.0, %v2999
  %v3001 = vpop.f32.mrb[0].mxu0
  %3002 = vmatprep.mubr.f32.mxu0 0.0
  %3003 = vmatmul.mubr.f32.gmra.mrb[0].mxu0 %v2906
  %v3004 = vpop.f32.mrb[0].mxu0
  %v3005 = vadd.f32 0.0, %v3004
  %v3006 = vpop.f32.mrb[0].mxu0
  %3007 = vmatprep.mubr.f32.mxu0 0.0
  %3008 = vmatmul.mubr.f32.gmra.mrb[0].mxu0 %v2907
  %v3009 = vpop.f32.mrb[0].mxu0
  %v3010 = vadd.f32 0.0, %v3009
  %v3011 = vpop.f32.mrb[0].mxu0
  %3012 = vmatprep.mubr.f32.mxu0 0.0
  %3013 = vmatmul.mubr.f32.gmra.mrb[0].mxu0 %v2908
  %v3014 = vpop.f32.mrb[0].mxu0
  %v3015 = vadd.f32 0.0, %v3014
  %v3016 = vpop.f32.mrb[0].mxu0
  %3017 = vmatprep.mubr.f32.mxu0 0.0
  %3018 = vmatmul.mubr.f32.gmra.mrb[0].mxu0 %v2909
  %v3019 = vpop.f32.mrb[0].mxu0
  %v3020 = vadd.f32 0.0, %v3019
  %v3021 = vpop.f32.mrb[0].mxu0
  %3022 = vmatprep.mubr.f32.mxu0 0.0
  %3023 = vmatmul.mubr.f32.gmra.mrb[0].mxu0 %v2910
  %v3024 = vpop.f32.mrb[0].mxu0
  %v3025 = vadd.f32 0.0, %v3024
  %v3026 = vpop.f32.mrb[0].mxu0
  %3027 = vmatprep.mubr.f32.mxu0 0.0
  %3028 = vmatmul.mubr.f32.gmra.mrb[0].mxu0 %v2911
  %v3029 = vpop.f32.mrb[0].mxu0
  %v3030 = vadd.f32 0.0, %v3029
  %v3031 = vpop.f32.mrb[0].mxu0
  %3032 = vmatprep.mubr.f32.mxu0 0.0
  %3033 = vmatmul.mubr.f32.gmra.mrb[0].mxu0 %v2912
  %v3034 = vpop.f32.mrb[0].mxu0
  %v3035 = vadd.f32 0.0, %v3034
  %v3036 = vpop.f32.mrb[0].mxu0
  %3037 = vmatprep.mubr.f32.mxu0 0.0
  %3038 = vmatmul.mubr.f32.gmra.mrb[0].mxu0 %v2913
  %v3039 = vpop.f32.mrb[0].mxu0
  %v3040 = vadd.f32 0.0, %v3039
  %v3041 = vpop.f32.mrb[0].mxu0
  %3042 = vmatprep.mubr.f32.mxu0 0.0
  %3043 = vmatmul.mubr.f32.gmra.mrb[0].mxu0 %v2914
  %v3044 = vpop.f32.mrb[0].mxu0
  %v3045 = vadd.f32 0.0, %v3044
  %v3046 = vpop.f32.mrb[0].mxu0
  %3047 = vmatprep.mubr.f32.mxu0 0.0
  %3048 = vmatmul.mubr.f32.gmra.mrb[0].mxu0 %v2915
  %v3049 = vpop.f32.mrb[0].mxu0
  %v3050 = vadd.f32 0.0, %v3049
  %v3051 = vpop.f32.mrb[0].mxu0
  %3052 = vmatprep.mubr.f32.mxu0 0.0
  %3053 = vmatmul.mubr.f32.gmra.mrb[0].mxu0 %v2916
  %v3054 = vpop.f32.mrb[0].mxu0
  %v3055 = vadd.f32 0.0, %v3054
  %v3056 = vpop.f32.mrb[0].mxu0
  %3057 = vmatprep.mubr.f32.mxu0 0.0
  %3058 = vmatmul.mubr.f32.gmra.mrb[0].mxu0 %v2917
  %v3059 = vpop.f32.mrb[0].mxu0
  %v3060 = vadd.f32 0.0, %v3059
  %v3061 = vpop.f32.mrb[0].mxu0
  %3062 = vdwg.mxu0
  %v3064 = vsel %vm1281, %v2221, 0
  %3066 = vmatprep.subr.bf16.mxu0 0
  %3067 = vmatpush1.bf16.msra.mxu0 %v3064
  %3068 = vmatprep.subr.bf16.mxu0 0
  %3069 = vmatpush1.bf16.msra.mxu0 0
  %3070 = vmatprep.subr.bf16.mxu0 0
  %3071 = vmatpush1.bf16.msra.mxu0 0
  %3072 = vmatprep.subr.bf16.mxu0 0
  %3073 = vmatpush1.bf16.msra.mxu0 0
  %3074 = vmatprep.subr.bf16.mxu0 0
  %3075 = vmatpush1.bf16.msra.mxu0 0
  %3076 = vmatprep.subr.bf16.mxu0 0
  %3077 = vmatpush1.bf16.msra.mxu0 0
  %3078 = vmatprep.subr.bf16.mxu0 0
  %3079 = vmatpush1.bf16.msra.mxu0 0
  %3080 = vmatprep.subr.bf16.mxu0 0
  %3081 = vmatpush1.bf16.msra.mxu0 0
  %3082 = vmatprep.subr.bf16.mxu0 0
  %3083 = vmatpush1.bf16.msra.mxu0 0
  %3084 = vmatprep.subr.bf16.mxu0 0
  %3085 = vmatpush1.bf16.msra.mxu0 0
  %3086 = vmatprep.subr.bf16.mxu0 0
  %3087 = vmatpush1.bf16.msra.mxu0 0
  %3088 = vmatprep.subr.bf16.mxu0 0
  %3089 = vmatpush1.bf16.msra.mxu0 0
  %3090 = vmatprep.subr.bf16.mxu0 0
  %3091 = vmatpush1.bf16.msra.mxu0 0
  %3092 = vmatprep.subr.bf16.mxu0 0
  %3093 = vmatpush1.bf16.msra.mxu0 0
  %3094 = vmatprep.subr.bf16.mxu0 0
  %3095 = vmatpush1.bf16.msra.mxu0 0
  %3096 = vmatprep.subr.bf16.mxu0 0
  %3097 = vmatpush1.bf16.msra.mxu0 0
  %3098 = vmatprep.mubr.bf16.mxu0 0
  %3099 = vmatmul.mubr.bf16.gmra.mrb[0].mxu0 %v1258
  %v3100 = vpop.f32.mrb[0].mxu0
  %v3101 = vadd.f32 %v2985, %v3100
  %v3102 = vpop.f32.mrb[0].mxu0
  %v3103 = vpop.f32.mrb[0].mxu0
  %v3104 = vadd.f32 %v2990, %v3103
  %v3105 = vpop.f32.mrb[0].mxu0
  %3106 = vmatprep.mubr.bf16.mxu0 0
  %3107 = vmatmul.mubr.bf16.gmra.mrb[0].mxu0 %v1261
  %v3108 = vpop.f32.mrb[0].mxu0
  %v3109 = vadd.f32 %v2995, %v3108
  %v3110 = vpop.f32.mrb[0].mxu0
  %v3111 = vpop.f32.mrb[0].mxu0
  %v3112 = vadd.f32 %v3000, %v3111
  %v3113 = vpop.f32.mrb[0].mxu0
  %3114 = vmatprep.mubr.bf16.mxu0 0
  %3115 = vmatmul.mubr.bf16.gmra.mrb[0].mxu0 %v1264
  %v3116 = vpop.f32.mrb[0].mxu0
  %v3117 = vadd.f32 %v3005, %v3116
  %v3118 = vpop.f32.mrb[0].mxu0
  %v3119 = vpop.f32.mrb[0].mxu0
  %v3120 = vadd.f32 %v3010, %v3119
  %v3121 = vpop.f32.mrb[0].mxu0
  %3122 = vmatprep.mubr.bf16.mxu0 0
  %3123 = vmatmul.mubr.bf16.gmra.mrb[0].mxu0 %v1267
  %v3124 = vpop.f32.mrb[0].mxu0
  %v3125 = vadd.f32 %v3015, %v3124
  %v3126 = vpop.f32.mrb[0].mxu0
  %v3127 = vpop.f32.mrb[0].mxu0
  %v3128 = vadd.f32 %v3020, %v3127
  %v3129 = vpop.f32.mrb[0].mxu0
  %3130 = vmatprep.mubr.bf16.mxu0 0
  %3131 = vmatmul.mubr.bf16.gmra.mrb[0].mxu0 %v1270
  %v3132 = vpop.f32.mrb[0].mxu0
  %v3133 = vadd.f32 %v3025, %v3132
  %v3134 = vpop.f32.mrb[0].mxu0
  %v3135 = vpop.f32.mrb[0].mxu0
  %v3136 = vadd.f32 %v3030, %v3135
  %v3137 = vpop.f32.mrb[0].mxu0
  %3138 = vmatprep.mubr.bf16.mxu0 0
  %3139 = vmatmul.mubr.bf16.gmra.mrb[0].mxu0 %v1273
  %v3140 = vpop.f32.mrb[0].mxu0
  %v3141 = vadd.f32 %v3035, %v3140
  %v3142 = vpop.f32.mrb[0].mxu0
  %v3143 = vpop.f32.mrb[0].mxu0
  %v3144 = vadd.f32 %v3040, %v3143
  %v3145 = vpop.f32.mrb[0].mxu0
  %3146 = vmatprep.mubr.bf16.mxu0 0
  %3147 = vmatmul.mubr.bf16.gmra.mrb[0].mxu0 %v1276
  %v3148 = vpop.f32.mrb[0].mxu0
  %v3149 = vadd.f32 %v3045, %v3148
  %v3150 = vpop.f32.mrb[0].mxu0
  %v3151 = vpop.f32.mrb[0].mxu0
  %v3152 = vadd.f32 %v3050, %v3151
  %v3153 = vpop.f32.mrb[0].mxu0
  %3154 = vmatprep.mubr.bf16.mxu0 0
  %3155 = vmatmul.mubr.bf16.gmra.mrb[0].mxu0 %v1279
  %v3156 = vpop.f32.mrb[0].mxu0
  %v3157 = vadd.f32 %v3055, %v3156
  %v3158 = vpop.f32.mrb[0].mxu0
  %v3159 = vpop.f32.mrb[0].mxu0
  %v3160 = vadd.f32 %v3060, %v3159
  %v3161 = vpop.f32.mrb[0].mxu0
  %3162 = vdwg.mxu0
  %3163 = vmatprep.subr.mxu0 0.0
  %3164 = vmatpush1.msra.mxu0 %v3101
  %3165 = vmatprep.subr.mxu0 0.0
  %3166 = vmatpush1.msra.mxu0 %v3104
  %3167 = vmatprep.subr.mxu0 0.0
  %3168 = vmatpush1.msra.mxu0 %v3109
  %3169 = vmatprep.subr.mxu0 0.0
  %3170 = vmatpush1.msra.mxu0 %v3112
  %3171 = vmatprep.subr.mxu0 0.0
  %3172 = vmatpush1.msra.mxu0 %v3117
  %3173 = vmatprep.subr.mxu0 0.0
  %3174 = vmatpush1.msra.mxu0 %v3120
  %3175 = vmatprep.subr.mxu0 0.0
  %3176 = vmatpush1.msra.mxu0 %v3125
  %3177 = vmatprep.subr.mxu0 0.0
  %3178 = vmatpush1.msra.mxu0 %v3128
  %3179 = vmatprep.subr.mxu0 0.0
  %3180 = vmatpush1.msra.mxu0 %v3133
  %3181 = vmatprep.subr.mxu0 0.0
  %3182 = vmatpush1.msra.mxu0 %v3136
  %3183 = vmatprep.subr.mxu0 0.0
  %3184 = vmatpush1.msra.mxu0 %v3141
  %3185 = vmatprep.subr.mxu0 0.0
  %3186 = vmatpush1.msra.mxu0 %v3144
  %3187 = vmatprep.subr.mxu0 0.0
  %3188 = vmatpush1.msra.mxu0 %v3149
  %3189 = vmatprep.subr.mxu0 0.0
  %3190 = vmatpush1.msra.mxu0 %v3152
  %3191 = vmatprep.subr.mxu0 0.0
  %3192 = vmatpush1.msra.mxu0 %v3157
  %3193 = vmatprep.subr.mxu0 0.0
  %3194 = vmatpush1.msra.mxu0 %v3160
  %3195 = vmatprep.subr.mxu0 0.0
  %3196 = vmatpush1.msra.mxu0 0.0
  %3197 = vmatprep.subr.mxu0 0.0
  %3198 = vmatpush1.msra.mxu0 0.0
  %3199 = vmatprep.subr.mxu0 0.0
  %3200 = vmatpush1.msra.mxu0 0.0
  %3201 = vmatprep.subr.mxu0 0.0
  %3202 = vmatpush1.msra.mxu0 0.0
  %3203 = vmatprep.subr.mxu0 0.0
  %3204 = vmatpush1.msra.mxu0 0.0
  %3205 = vmatprep.subr.mxu0 0.0
  %3206 = vmatpush1.msra.mxu0 0.0
  %3207 = vmatprep.subr.mxu0 0.0
  %3208 = vmatpush1.msra.mxu0 0.0
  %3209 = vmatprep.subr.mxu0 0.0
  %3210 = vmatpush1.msra.mxu0 0.0
  %3211 = vmatprep.subr.mxu0 0.0
  %3212 = vmatpush1.msra.mxu0 0.0
  %3213 = vmatprep.subr.mxu0 0.0
  %3214 = vmatpush1.msra.mxu0 0.0
  %3215 = vmatprep.subr.mxu0 0.0
  %3216 = vmatpush1.msra.mxu0 0.0
  %3217 = vmatprep.subr.mxu0 0.0
  %3218 = vmatpush1.msra.mxu0 0.0
  %3219 = vmatprep.subr.mxu0 0.0
  %3220 = vmatpush1.msra.mxu0 0.0
  %3221 = vmatprep.subr.mxu0 0.0
  %3222 = vmatpush1.msra.mxu0 0.0
  %3223 = vmatprep.subr.mxu0 0.0
  %3224 = vmatpush1.msra.mxu0 0.0
  %3225 = vmatprep.subr.mxu0 0.0
  %3226 = vmatpush1.msra.mxu0 0.0
  %3227 = vmatprep.mubr.f32.mxu0 0.0
  %3228 = vmatmul.mubr.f32.gmra.mrb[0].mxu0 %v2902
  %v3229 = vpop.f32.mrb[0].mxu0
  %v3230 = vadd.f32 0.0, %v3229
  %v3231 = vpop.f32.mrb[0].mxu0
  %3232 = vmatprep.mubr.f32.mxu0 0.0
  %3233 = vmatmul.mubr.f32.gmra.mrb[0].mxu0 %v2903
  %v3234 = vpop.f32.mrb[0].mxu0
  %v3235 = vadd.f32 0.0, %v3234
  %v3236 = vpop.f32.mrb[0].mxu0
  %3237 = vmatprep.mubr.f32.mxu0 0.0
  %3238 = vmatmul.mubr.f32.gmra.mrb[0].mxu0 %v2904
  %v3239 = vpop.f32.mrb[0].mxu0
  %v3240 = vadd.f32 0.0, %v3239
  %v3241 = vpop.f32.mrb[0].mxu0
  %3242 = vmatprep.mubr.f32.mxu0 0.0
  %3243 = vmatmul.mubr.f32.gmra.mrb[0].mxu0 %v2905
  %v3244 = vpop.f32.mrb[0].mxu0
  %v3245 = vadd.f32 0.0, %v3244
  %v3246 = vpop.f32.mrb[0].mxu0
  %3247 = vmatprep.mubr.f32.mxu0 0.0
  %3248 = vmatmul.mubr.f32.gmra.mrb[0].mxu0 %v2906
  %v3249 = vpop.f32.mrb[0].mxu0
  %v3250 = vadd.f32 0.0, %v3249
  %v3251 = vpop.f32.mrb[0].mxu0
  %3252 = vmatprep.mubr.f32.mxu0 0.0
  %3253 = vmatmul.mubr.f32.gmra.mrb[0].mxu0 %v2907
  %v3254 = vpop.f32.mrb[0].mxu0
  %v3255 = vadd.f32 0.0, %v3254
  %v3256 = vpop.f32.mrb[0].mxu0
  %3257 = vmatprep.mubr.f32.mxu0 0.0
  %3258 = vmatmul.mubr.f32.gmra.mrb[0].mxu0 %v2908
  %v3259 = vpop.f32.mrb[0].mxu0
  %v3260 = vadd.f32 0.0, %v3259
  %v3261 = vpop.f32.mrb[0].mxu0
  %3262 = vmatprep.mubr.f32.mxu0 0.0
  %3263 = vmatmul.mubr.f32.gmra.mrb[0].mxu0 %v2909
  %v3264 = vpop.f32.mrb[0].mxu0
  %v3265 = vadd.f32 0.0, %v3264
  %v3266 = vpop.f32.mrb[0].mxu0
  %3267 = vmatprep.mubr.f32.mxu0 0.0
  %3268 = vmatmul.mubr.f32.gmra.mrb[0].mxu0 %v2910
  %v3269 = vpop.f32.mrb[0].mxu0
  %v3270 = vadd.f32 0.0, %v3269
  %v3271 = vpop.f32.mrb[0].mxu0
  %3272 = vmatprep.mubr.f32.mxu0 0.0
  %3273 = vmatmul.mubr.f32.gmra.mrb[0].mxu0 %v2911
  %v3274 = vpop.f32.mrb[0].mxu0
  %v3275 = vadd.f32 0.0, %v3274
  %v3276 = vpop.f32.mrb[0].mxu0
  %3277 = vmatprep.mubr.f32.mxu0 0.0
  %3278 = vmatmul.mubr.f32.gmra.mrb[0].mxu0 %v2912
  %v3279 = vpop.f32.mrb[0].mxu0
  %v3280 = vadd.f32 0.0, %v3279
  %v3281 = vpop.f32.mrb[0].mxu0
  %3282 = vmatprep.mubr.f32.mxu0 0.0
  %3283 = vmatmul.mubr.f32.gmra.mrb[0].mxu0 %v2913
  %v3284 = vpop.f32.mrb[0].mxu0
  %v3285 = vadd.f32 0.0, %v3284
  %v3286 = vpop.f32.mrb[0].mxu0
  %3287 = vmatprep.mubr.f32.mxu0 0.0
  %3288 = vmatmul.mubr.f32.gmra.mrb[0].mxu0 %v2914
  %v3289 = vpop.f32.mrb[0].mxu0
  %v3290 = vadd.f32 0.0, %v3289
  %v3291 = vpop.f32.mrb[0].mxu0
  %3292 = vmatprep.mubr.f32.mxu0 0.0
  %3293 = vmatmul.mubr.f32.gmra.mrb[0].mxu0 %v2915
  %v3294 = vpop.f32.mrb[0].mxu0
  %v3295 = vadd.f32 0.0, %v3294
  %v3296 = vpop.f32.mrb[0].mxu0
  %3297 = vmatprep.mubr.f32.mxu0 0.0
  %3298 = vmatmul.mubr.f32.gmra.mrb[0].mxu0 %v2916
  %v3299 = vpop.f32.mrb[0].mxu0
  %v3300 = vadd.f32 0.0, %v3299
  %v3301 = vpop.f32.mrb[0].mxu0
  %3302 = vmatprep.mubr.f32.mxu0 0.0
  %3303 = vmatmul.mubr.f32.gmra.mrb[0].mxu0 %v2917
  %v3304 = vpop.f32.mrb[0].mxu0
  %v3305 = vadd.f32 0.0, %v3304
  %v3306 = vpop.f32.mrb[0].mxu0
  %3307 = vdwg.mxu0
  %v3308 = vld [vmem:[%s5] sm:$0xf]
  %v3310 = vsel %vm1281, %v3308, 0
  %3312 = vmatprep.subr.bf16.mxu0 0
  %3313 = vmatpush1.bf16.msra.mxu0 %v3310
  %3314 = vmatprep.subr.bf16.mxu0 0
  %3315 = vmatpush1.bf16.msra.mxu0 0
  %3316 = vmatprep.subr.bf16.mxu0 0
  %3317 = vmatpush1.bf16.msra.mxu0 0
  %3318 = vmatprep.subr.bf16.mxu0 0
  %3319 = vmatpush1.bf16.msra.mxu0 0
  %3320 = vmatprep.subr.bf16.mxu0 0
  %3321 = vmatpush1.bf16.msra.mxu0 0
  %3322 = vmatprep.subr.bf16.mxu0 0
  %3323 = vmatpush1.bf16.msra.mxu0 0
  %3324 = vmatprep.subr.bf16.mxu0 0
  %3325 = vmatpush1.bf16.msra.mxu0 0
  %3326 = vmatprep.subr.bf16.mxu0 0
  %3327 = vmatpush1.bf16.msra.mxu0 0
  %3328 = vmatprep.subr.bf16.mxu0 0
  %3329 = vmatpush1.bf16.msra.mxu0 0
  %3330 = vmatprep.subr.bf16.mxu0 0
  %3331 = vmatpush1.bf16.msra.mxu0 0
  %3332 = vmatprep.subr.bf16.mxu0 0
  %3333 = vmatpush1.bf16.msra.mxu0 0
  %3334 = vmatprep.subr.bf16.mxu0 0
  %3335 = vmatpush1.bf16.msra.mxu0 0
  %3336 = vmatprep.subr.bf16.mxu0 0
  %3337 = vmatpush1.bf16.msra.mxu0 0
  %3338 = vmatprep.subr.bf16.mxu0 0
  %3339 = vmatpush1.bf16.msra.mxu0 0
  %3340 = vmatprep.subr.bf16.mxu0 0
  %3341 = vmatpush1.bf16.msra.mxu0 0
  %3342 = vmatprep.subr.bf16.mxu0 0
  %3343 = vmatpush1.bf16.msra.mxu0 0
  %3344 = vmatprep.mubr.bf16.mxu0 0
  %3345 = vmatmul.mubr.bf16.gmra.mrb[0].mxu0 %v1258
  %v3346 = vpop.f32.mrb[0].mxu0
  %v3347 = vadd.f32 0.0, %v3346
  %v3348 = vpop.f32.mrb[0].mxu0
  %v3349 = vpop.f32.mrb[0].mxu0
  %v3350 = vadd.f32 0.0, %v3349
  %v3351 = vpop.f32.mrb[0].mxu0
  %3352 = vmatprep.mubr.bf16.mxu0 0
  %3353 = vmatmul.mubr.bf16.gmra.mrb[0].mxu0 %v1261
  %v3354 = vpop.f32.mrb[0].mxu0
  %v3355 = vadd.f32 0.0, %v3354
  %v3356 = vpop.f32.mrb[0].mxu0
  %v3357 = vpop.f32.mrb[0].mxu0
  %v3358 = vadd.f32 0.0, %v3357
  %v3359 = vpop.f32.mrb[0].mxu0
  %3360 = vmatprep.mubr.bf16.mxu0 0
  %3361 = vmatmul.mubr.bf16.gmra.mrb[0].mxu0 %v1264
  %v3362 = vpop.f32.mrb[0].mxu0
  %v3363 = vadd.f32 0.0, %v3362
  %v3364 = vpop.f32.mrb[0].mxu0
  %v3365 = vpop.f32.mrb[0].mxu0
  %v3366 = vadd.f32 0.0, %v3365
  %v3367 = vpop.f32.mrb[0].mxu0
  %3368 = vmatprep.mubr.bf16.mxu0 0
  %3369 = vmatmul.mubr.bf16.gmra.mrb[0].mxu0 %v1267
  %v3370 = vpop.f32.mrb[0].mxu0
  %v3371 = vadd.f32 0.0, %v3370
  %v3372 = vpop.f32.mrb[0].mxu0
  %v3373 = vpop.f32.mrb[0].mxu0
  %v3374 = vadd.f32 0.0, %v3373
  %v3375 = vpop.f32.mrb[0].mxu0
  %3376 = vmatprep.mubr.bf16.mxu0 0
  %3377 = vmatmul.mubr.bf16.gmra.mrb[0].mxu0 %v1270
  %v3378 = vpop.f32.mrb[0].mxu0
  %v3379 = vadd.f32 0.0, %v3378
  %v3380 = vpop.f32.mrb[0].mxu0
  %v3381 = vpop.f32.mrb[0].mxu0
  %v3382 = vadd.f32 0.0, %v3381
  %v3383 = vpop.f32.mrb[0].mxu0
  %3384 = vmatprep.mubr.bf16.mxu0 0
  %3385 = vmatmul.mubr.bf16.gmra.mrb[0].mxu0 %v1273
  %v3386 = vpop.f32.mrb[0].mxu0
  %v3387 = vadd.f32 0.0, %v3386
  %v3388 = vpop.f32.mrb[0].mxu0
  %v3389 = vpop.f32.mrb[0].mxu0
  %v3390 = vadd.f32 0.0, %v3389
  %v3391 = vpop.f32.mrb[0].mxu0
  %3392 = vmatprep.mubr.bf16.mxu0 0
  %3393 = vmatmul.mubr.bf16.gmra.mrb[0].mxu0 %v1276
  %v3394 = vpop.f32.mrb[0].mxu0
  %v3395 = vadd.f32 0.0, %v3394
  %v3396 = vpop.f32.mrb[0].mxu0
  %v3397 = vpop.f32.mrb[0].mxu0
  %v3398 = vadd.f32 0.0, %v3397
  %v3399 = vpop.f32.mrb[0].mxu0
  %3400 = vmatprep.mubr.bf16.mxu0 0
  %3401 = vmatmul.mubr.bf16.gmra.mrb[0].mxu0 %v1279
  %v3402 = vpop.f32.mrb[0].mxu0
  %v3403 = vadd.f32 0.0, %v3402
  %v3404 = vpop.f32.mrb[0].mxu0
  %v3405 = vpop.f32.mrb[0].mxu0
  %v3406 = vadd.f32 0.0, %v3405
  %v3407 = vpop.f32.mrb[0].mxu0
  %3408 = vdwg.mxu0
  %3409 = vmatprep.subr.mxu0 0.0
  %3410 = vmatpush1.msra.mxu0 %v3347
  %3411 = vmatprep.subr.mxu0 0.0
  %3412 = vmatpush1.msra.mxu0 %v3350
  %3413 = vmatprep.subr.mxu0 0.0
  %3414 = vmatpush1.msra.mxu0 %v3355
  %3415 = vmatprep.subr.mxu0 0.0
  %3416 = vmatpush1.msra.mxu0 %v3358
  %3417 = vmatprep.subr.mxu0 0.0
  %3418 = vmatpush1.msra.mxu0 %v3363
  %3419 = vmatprep.subr.mxu0 0.0
  %3420 = vmatpush1.msra.mxu0 %v3366
  %3421 = vmatprep.subr.mxu0 0.0
  %3422 = vmatpush1.msra.mxu0 %v3371
  %3423 = vmatprep.subr.mxu0 0.0
  %3424 = vmatpush1.msra.mxu0 %v3374
  %3425 = vmatprep.subr.mxu0 0.0
  %3426 = vmatpush1.msra.mxu0 %v3379
  %3427 = vmatprep.subr.mxu0 0.0
  %3428 = vmatpush1.msra.mxu0 %v3382
  %3429 = vmatprep.subr.mxu0 0.0
  %3430 = vmatpush1.msra.mxu0 %v3387
  %3431 = vmatprep.subr.mxu0 0.0
  %3432 = vmatpush1.msra.mxu0 %v3390
  %3433 = vmatprep.subr.mxu0 0.0
  %3434 = vmatpush1.msra.mxu0 %v3395
  %3435 = vmatprep.subr.mxu0 0.0
  %3436 = vmatpush1.msra.mxu0 %v3398
  %3437 = vmatprep.subr.mxu0 0.0
  %3438 = vmatpush1.msra.mxu0 %v3403
  %3439 = vmatprep.subr.mxu0 0.0
  %3440 = vmatpush1.msra.mxu0 %v3406
  %3441 = vmatprep.subr.mxu0 0.0
  %3442 = vmatpush1.msra.mxu0 0.0
  %3443 = vmatprep.subr.mxu0 0.0
  %3444 = vmatpush1.msra.mxu0 0.0
  %3445 = vmatprep.subr.mxu0 0.0
  %3446 = vmatpush1.msra.mxu0 0.0
  %3447 = vmatprep.subr.mxu0 0.0
  %3448 = vmatpush1.msra.mxu0 0.0
  %3449 = vmatprep.subr.mxu0 0.0
  %3450 = vmatpush1.msra.mxu0 0.0
  %3451 = vmatprep.subr.mxu0 0.0
  %3452 = vmatpush1.msra.mxu0 0.0
  %3453 = vmatprep.subr.mxu0 0.0
  %3454 = vmatpush1.msra.mxu0 0.0
  %3455 = vmatprep.subr.mxu0 0.0
  %3456 = vmatpush1.msra.mxu0 0.0
  %3457 = vmatprep.subr.mxu0 0.0
  %3458 = vmatpush1.msra.mxu0 0.0
  %3459 = vmatprep.subr.mxu0 0.0
  %3460 = vmatpush1.msra.mxu0 0.0
  %3461 = vmatprep.subr.mxu0 0.0
  %3462 = vmatpush1.msra.mxu0 0.0
  %3463 = vmatprep.subr.mxu0 0.0
  %3464 = vmatpush1.msra.mxu0 0.0
  %3465 = vmatprep.subr.mxu0 0.0
  %3466 = vmatpush1.msra.mxu0 0.0
  %3467 = vmatprep.subr.mxu0 0.0
  %3468 = vmatpush1.msra.mxu0 0.0
  %3469 = vmatprep.subr.mxu0 0.0
  %3470 = vmatpush1.msra.mxu0 0.0
  %3471 = vmatprep.subr.mxu0 0.0
  %3472 = vmatpush1.msra.mxu0 0.0
  %3473 = vmatprep.mubr.f32.mxu0 0.0
  %3474 = vmatmul.mubr.f32.gmra.mrb[0].mxu0 %v855
  %v3475 = vpop.f32.mrb[0].mxu0
  %v3476 = vadd.f32 0.0, %v3475
  %v3477 = vpop.f32.mrb[0].mxu0
  %3478 = vmatprep.mubr.f32.mxu0 0.0
  %3479 = vmatmul.mubr.f32.gmra.mrb[0].mxu0 %v860
  %v3480 = vpop.f32.mrb[0].mxu0
  %v3481 = vadd.f32 0.0, %v3480
  %v3482 = vpop.f32.mrb[0].mxu0
  %3483 = vmatprep.mubr.f32.mxu0 0.0
  %3484 = vmatmul.mubr.f32.gmra.mrb[0].mxu0 %v865
  %v3485 = vpop.f32.mrb[0].mxu0
  %v3486 = vadd.f32 0.0, %v3485
  %v3487 = vpop.f32.mrb[0].mxu0
  %3488 = vmatprep.mubr.f32.mxu0 0.0
  %3489 = vmatmul.mubr.f32.gmra.mrb[0].mxu0 %v870
  %v3490 = vpop.f32.mrb[0].mxu0
  %v3491 = vadd.f32 0.0, %v3490
  %v3492 = vpop.f32.mrb[0].mxu0
  %3493 = vmatprep.mubr.f32.mxu0 0.0
  %3494 = vmatmul.mubr.f32.gmra.mrb[0].mxu0 %v875
  %v3495 = vpop.f32.mrb[0].mxu0
  %v3496 = vadd.f32 0.0, %v3495
  %v3497 = vpop.f32.mrb[0].mxu0
  %3498 = vmatprep.mubr.f32.mxu0 0.0
  %3499 = vmatmul.mubr.f32.gmra.mrb[0].mxu0 %v880
  %v3500 = vpop.f32.mrb[0].mxu0
  %v3501 = vadd.f32 0.0, %v3500
  %v3502 = vpop.f32.mrb[0].mxu0
  %3503 = vmatprep.mubr.f32.mxu0 0.0
  %3504 = vmatmul.mubr.f32.gmra.mrb[0].mxu0 %v885
  %v3505 = vpop.f32.mrb[0].mxu0
  %v3506 = vadd.f32 0.0, %v3505
  %v3507 = vpop.f32.mrb[0].mxu0
  %3508 = vmatprep.mubr.f32.mxu0 0.0
  %3509 = vmatmul.mubr.f32.gmra.mrb[0].mxu0 %v890
  %v3510 = vpop.f32.mrb[0].mxu0
  %v3511 = vadd.f32 0.0, %v3510
  %v3512 = vpop.f32.mrb[0].mxu0
  %3513 = vmatprep.mubr.f32.mxu0 0.0
  %3514 = vmatmul.mubr.f32.gmra.mrb[0].mxu0 %v895
  %v3515 = vpop.f32.mrb[0].mxu0
  %v3516 = vadd.f32 0.0, %v3515
  %v3517 = vpop.f32.mrb[0].mxu0
  %3518 = vmatprep.mubr.f32.mxu0 0.0
  %3519 = vmatmul.mubr.f32.gmra.mrb[0].mxu0 %v900
  %v3520 = vpop.f32.mrb[0].mxu0
  %v3521 = vadd.f32 0.0, %v3520
  %v3522 = vpop.f32.mrb[0].mxu0
  %3523 = vmatprep.mubr.f32.mxu0 0.0
  %3524 = vmatmul.mubr.f32.gmra.mrb[0].mxu0 %v905
  %v3525 = vpop.f32.mrb[0].mxu0
  %v3526 = vadd.f32 0.0, %v3525
  %v3527 = vpop.f32.mrb[0].mxu0
  %3528 = vmatprep.mubr.f32.mxu0 0.0
  %3529 = vmatmul.mubr.f32.gmra.mrb[0].mxu0 %v910
  %v3530 = vpop.f32.mrb[0].mxu0
  %v3531 = vadd.f32 0.0, %v3530
  %v3532 = vpop.f32.mrb[0].mxu0
  %3533 = vmatprep.mubr.f32.mxu0 0.0
  %3534 = vmatmul.mubr.f32.gmra.mrb[0].mxu0 %v915
  %v3535 = vpop.f32.mrb[0].mxu0
  %v3536 = vadd.f32 0.0, %v3535
  %v3537 = vpop.f32.mrb[0].mxu0
  %3538 = vmatprep.mubr.f32.mxu0 0.0
  %3539 = vmatmul.mubr.f32.gmra.mrb[0].mxu0 %v920
  %v3540 = vpop.f32.mrb[0].mxu0
  %v3541 = vadd.f32 0.0, %v3540
  %v3542 = vpop.f32.mrb[0].mxu0
  %3543 = vmatprep.mubr.f32.mxu0 0.0
  %3544 = vmatmul.mubr.f32.gmra.mrb[0].mxu0 %v925
  %v3545 = vpop.f32.mrb[0].mxu0
  %v3546 = vadd.f32 0.0, %v3545
  %v3547 = vpop.f32.mrb[0].mxu0
  %3548 = vmatprep.mubr.f32.mxu0 0.0
  %3549 = vmatmul.mubr.f32.gmra.mrb[0].mxu0 %v930
  %v3550 = vpop.f32.mrb[0].mxu0
  %v3551 = vadd.f32 0.0, %v3550
  %v3552 = vpop.f32.mrb[0].mxu0
  %3553 = vdwg.mxu0
  %3554 = vmatprep.subr.mxu0 0.0
  %3555 = vmatpush1.msra.mxu0 %v2159
  %3556 = vmatprep.subr.mxu0 0.0
  %3557 = vmatpush1.msra.mxu0 %v2162
  %3558 = vmatprep.subr.mxu0 0.0
  %3559 = vmatpush1.msra.mxu0 %v2167
  %3560 = vmatprep.subr.mxu0 0.0
  %3561 = vmatpush1.msra.mxu0 %v2170
  %3562 = vmatprep.subr.mxu0 0.0
  %3563 = vmatpush1.msra.mxu0 %v2175
  %3564 = vmatprep.subr.mxu0 0.0
  %3565 = vmatpush1.msra.mxu0 %v2178
  %3566 = vmatprep.subr.mxu0 0.0
  %3567 = vmatpush1.msra.mxu0 %v2183
  %3568 = vmatprep.subr.mxu0 0.0
  %3569 = vmatpush1.msra.mxu0 %v2186
  %3570 = vmatprep.subr.mxu0 0.0
  %3571 = vmatpush1.msra.mxu0 %v2191
  %3572 = vmatprep.subr.mxu0 0.0
  %3573 = vmatpush1.msra.mxu0 %v2194
  %3574 = vmatprep.subr.mxu0 0.0
  %3575 = vmatpush1.msra.mxu0 %v2199
  %3576 = vmatprep.subr.mxu0 0.0
  %3577 = vmatpush1.msra.mxu0 %v2202
  %3578 = vmatprep.subr.mxu0 0.0
  %3579 = vmatpush1.msra.mxu0 %v2207
  %3580 = vmatprep.subr.mxu0 0.0
  %3581 = vmatpush1.msra.mxu0 %v2210
  %3582 = vmatprep.subr.mxu0 0.0
  %3583 = vmatpush1.msra.mxu0 %v2215
  %3584 = vmatprep.subr.mxu0 0.0
  %3585 = vmatpush1.msra.mxu0 %v2218
  %3586 = vmatprep.subr.mxu0 0.0
  %3587 = vmatpush1.msra.mxu0 0.0
  %3588 = vmatprep.subr.mxu0 0.0
  %3589 = vmatpush1.msra.mxu0 0.0
  %3590 = vmatprep.subr.mxu0 0.0
  %3591 = vmatpush1.msra.mxu0 0.0
  %3592 = vmatprep.subr.mxu0 0.0
  %3593 = vmatpush1.msra.mxu0 0.0
  %3594 = vmatprep.subr.mxu0 0.0
  %3595 = vmatpush1.msra.mxu0 0.0
  %3596 = vmatprep.subr.mxu0 0.0
  %3597 = vmatpush1.msra.mxu0 0.0
  %3598 = vmatprep.subr.mxu0 0.0
  %3599 = vmatpush1.msra.mxu0 0.0
  %3600 = vmatprep.subr.mxu0 0.0
  %3601 = vmatpush1.msra.mxu0 0.0
  %3602 = vmatprep.subr.mxu0 0.0
  %3603 = vmatpush1.msra.mxu0 0.0
  %3604 = vmatprep.subr.mxu0 0.0
  %3605 = vmatpush1.msra.mxu0 0.0
  %3606 = vmatprep.subr.mxu0 0.0
  %3607 = vmatpush1.msra.mxu0 0.0
  %3608 = vmatprep.subr.mxu0 0.0
  %3609 = vmatpush1.msra.mxu0 0.0
  %3610 = vmatprep.subr.mxu0 0.0
  %3611 = vmatpush1.msra.mxu0 0.0
  %3612 = vmatprep.subr.mxu0 0.0
  %3613 = vmatpush1.msra.mxu0 0.0
  %3614 = vmatprep.subr.mxu0 0.0
  %3615 = vmatpush1.msra.mxu0 0.0
  %3616 = vmatprep.subr.mxu0 0.0
  %3617 = vmatpush1.msra.mxu0 0.0
  %3618 = vmatprep.mubr.f32.mxu0 0.0
  %3619 = vmatmul.mubr.f32.gmra.mrb[0].mxu0 %v1960
  %v3620 = vpop.f32.mrb[0].mxu0
  %v3621 = vadd.f32 %v3230, %v3620
  %v3622 = vpop.f32.mrb[0].mxu0
  %3623 = vmatprep.mubr.f32.mxu0 0.0
  %3624 = vmatmul.mubr.f32.gmra.mrb[0].mxu0 %v1961
  %v3625 = vpop.f32.mrb[0].mxu0
  %v3626 = vadd.f32 %v3235, %v3625
  %v3627 = vpop.f32.mrb[0].mxu0
  %3628 = vmatprep.mubr.f32.mxu0 0.0
  %3629 = vmatmul.mubr.f32.gmra.mrb[0].mxu0 %v1962
  %v3630 = vpop.f32.mrb[0].mxu0
  %v3631 = vadd.f32 %v3240, %v3630
  %v3632 = vpop.f32.mrb[0].mxu0
  %3633 = vmatprep.mubr.f32.mxu0 0.0
  %3634 = vmatmul.mubr.f32.gmra.mrb[0].mxu0 %v1963
  %v3635 = vpop.f32.mrb[0].mxu0
  %v3636 = vadd.f32 %v3245, %v3635
  %v3637 = vpop.f32.mrb[0].mxu0
  %3638 = vmatprep.mubr.f32.mxu0 0.0
  %3639 = vmatmul.mubr.f32.gmra.mrb[0].mxu0 %v1964
  %v3640 = vpop.f32.mrb[0].mxu0
  %v3641 = vadd.f32 %v3250, %v3640
  %v3642 = vpop.f32.mrb[0].mxu0
  %3643 = vmatprep.mubr.f32.mxu0 0.0
  %3644 = vmatmul.mubr.f32.gmra.mrb[0].mxu0 %v1965
  %v3645 = vpop.f32.mrb[0].mxu0
  %v3646 = vadd.f32 %v3255, %v3645
  %v3647 = vpop.f32.mrb[0].mxu0
  %3648 = vmatprep.mubr.f32.mxu0 0.0
  %3649 = vmatmul.mubr.f32.gmra.mrb[0].mxu0 %v1966
  %v3650 = vpop.f32.mrb[0].mxu0
  %v3651 = vadd.f32 %v3260, %v3650
  %v3652 = vpop.f32.mrb[0].mxu0
  %3653 = vmatprep.mubr.f32.mxu0 0.0
  %3654 = vmatmul.mubr.f32.gmra.mrb[0].mxu0 %v1967
  %v3655 = vpop.f32.mrb[0].mxu0
  %v3656 = vadd.f32 %v3265, %v3655
  %v3657 = vpop.f32.mrb[0].mxu0
  %3658 = vmatprep.mubr.f32.mxu0 0.0
  %3659 = vmatmul.mubr.f32.gmra.mrb[0].mxu0 %v1968
  %v3660 = vpop.f32.mrb[0].mxu0
  %v3661 = vadd.f32 %v3270, %v3660
  %v3662 = vpop.f32.mrb[0].mxu0
  %3663 = vmatprep.mubr.f32.mxu0 0.0
  %3664 = vmatmul.mubr.f32.gmra.mrb[0].mxu0 %v1969
  %v3665 = vpop.f32.mrb[0].mxu0
  %v3666 = vadd.f32 %v3275, %v3665
  %v3667 = vpop.f32.mrb[0].mxu0
  %3668 = vmatprep.mubr.f32.mxu0 0.0
  %3669 = vmatmul.mubr.f32.gmra.mrb[0].mxu0 %v1970
  %v3670 = vpop.f32.mrb[0].mxu0
  %v3671 = vadd.f32 %v3280, %v3670
  %v3672 = vpop.f32.mrb[0].mxu0
  %3673 = vmatprep.mubr.f32.mxu0 0.0
  %3674 = vmatmul.mubr.f32.gmra.mrb[0].mxu0 %v1971
  %v3675 = vpop.f32.mrb[0].mxu0
  %v3676 = vadd.f32 %v3285, %v3675
  %v3677 = vpop.f32.mrb[0].mxu0
  %3678 = vmatprep.mubr.f32.mxu0 0.0
  %3679 = vmatmul.mubr.f32.gmra.mrb[0].mxu0 %v1972
  %v3680 = vpop.f32.mrb[0].mxu0
  %v3681 = vadd.f32 %v3290, %v3680
  %v3682 = vpop.f32.mrb[0].mxu0
  %3683 = vmatprep.mubr.f32.mxu0 0.0
  %3684 = vmatmul.mubr.f32.gmra.mrb[0].mxu0 %v1973
  %v3685 = vpop.f32.mrb[0].mxu0
  %v3686 = vadd.f32 %v3295, %v3685
  %v3687 = vpop.f32.mrb[0].mxu0
  %3688 = vmatprep.mubr.f32.mxu0 0.0
  %3689 = vmatmul.mubr.f32.gmra.mrb[0].mxu0 %v1974
  %v3690 = vpop.f32.mrb[0].mxu0
  %v3691 = vadd.f32 %v3300, %v3690
  %v3692 = vpop.f32.mrb[0].mxu0
  %3693 = vmatprep.mubr.f32.mxu0 0.0
  %3694 = vmatmul.mubr.f32.gmra.mrb[0].mxu0 %v1975
  %v3695 = vpop.f32.mrb[0].mxu0
  %v3696 = vadd.f32 %v3305, %v3695
  %v3697 = vpop.f32.mrb[0].mxu0
  %3698 = vdwg.mxu0
  %v3699 = vadd.f32 %v3621, %v3476
  %v3700 = vadd.f32 %v3626, %v3481
  %v3701 = vadd.f32 %v3631, %v3486
  %v3702 = vadd.f32 %v3636, %v3491
  %v3703 = vadd.f32 %v3641, %v3496
  %v3704 = vadd.f32 %v3646, %v3501
  %v3705 = vadd.f32 %v3651, %v3506
  %v3706 = vadd.f32 %v3656, %v3511
  %v3707 = vadd.f32 %v3661, %v3516
  %v3708 = vadd.f32 %v3666, %v3521
  %v3709 = vadd.f32 %v3671, %v3526
  %v3710 = vadd.f32 %v3676, %v3531
  %v3711 = vadd.f32 %v3681, %v3536
  %v3712 = vadd.f32 %v3686, %v3541
  %v3713 = vadd.f32 %v3691, %v3546
  %v3714 = vadd.f32 %v3696, %v3551
  %v3715 = vpack.c.bf16 %v3700, %v3699
  %v3716 = vpack.c.bf16 %v3702, %v3701
  %v3717 = vpack.c.bf16 %v3704, %v3703
  %v3718 = vpack.c.bf16 %v3706, %v3705
  %v3719 = vpack.c.bf16 %v3708, %v3707
  %v3720 = vpack.c.bf16 %v3710, %v3709
  %v3721 = vpack.c.bf16 %v3712, %v3711
  %v3722 = vpack.c.bf16 %v3714, %v3713
  %v3723 = vld [vmem:[%s10] sm:$0xff]
  %v3724 = vld [vmem:[%s10 + $0x8] sm:$0xff]
  %v3725 = vld [vmem:[%s10 + $0x10] sm:$0xff]
  %v3726 = vld [vmem:[%s10 + $0x18] sm:$0xff]
  %v3727 = vld [vmem:[%s10 + $0x20] sm:$0xff]
  %v3728 = vld [vmem:[%s10 + $0x28] sm:$0xff]
  %v3729 = vld [vmem:[%s10 + $0x30] sm:$0xff]
  %v3730 = vld [vmem:[%s10 + $0x38] sm:$0xff]
  %v3731 = vld [vmem:[%s10 + $0x40] sm:$0xff]
  %v3732 = vld [vmem:[%s10 + $0x48] sm:$0xff]
  %v3733 = vld [vmem:[%s10 + $0x50] sm:$0xff]
  %v3734 = vld [vmem:[%s10 + $0x58] sm:$0xff]
  %v3735 = vld [vmem:[%s10 + $0x60] sm:$0xff]
  %v3736 = vld [vmem:[%s10 + $0x68] sm:$0xff]
  %v3737 = vld [vmem:[%s10 + $0x70] sm:$0xff]
  %v3738 = vld [vmem:[%s10 + $0x78] sm:$0xff]
  %3739 = vmatprep.subr.mxu0 0.0
  %3740 = vmatpush1.msra.mxu0 %v3723
  %3741 = vmatprep.subr.mxu0 0.0
  %3742 = vmatpush1.msra.mxu0 %v3724
  %3743 = vmatprep.subr.mxu0 0.0
  %3744 = vmatpush1.msra.mxu0 %v3725
  %3745 = vmatprep.subr.mxu0 0.0
  %3746 = vmatpush1.msra.mxu0 %v3726
  %3747 = vmatprep.subr.mxu0 0.0
  %3748 = vmatpush1.msra.mxu0 %v3727
  %3749 = vmatprep.subr.mxu0 0.0
  %3750 = vmatpush1.msra.mxu0 %v3728
  %3751 = vmatprep.subr.mxu0 0.0
  %3752 = vmatpush1.msra.mxu0 %v3729
  %3753 = vmatprep.subr.mxu0 0.0
  %3754 = vmatpush1.msra.mxu0 %v3730
  %3755 = vmatprep.subr.mxu0 0.0
  %3756 = vmatpush1.msra.mxu0 %v3731
  %3757 = vmatprep.subr.mxu0 0.0
  %3758 = vmatpush1.msra.mxu0 %v3732
  %3759 = vmatprep.subr.mxu0 0.0
  %3760 = vmatpush1.msra.mxu0 %v3733
  %3761 = vmatprep.subr.mxu0 0.0
  %3762 = vmatpush1.msra.mxu0 %v3734
  %3763 = vmatprep.subr.mxu0 0.0
  %3764 = vmatpush1.msra.mxu0 %v3735
  %3765 = vmatprep.subr.mxu0 0.0
  %3766 = vmatpush1.msra.mxu0 %v3736
  %3767 = vmatprep.subr.mxu0 0.0
  %3768 = vmatpush1.msra.mxu0 %v3737
  %3769 = vmatprep.subr.mxu0 0.0
  %3770 = vmatpush1.msra.mxu0 %v3738
  %3771 = vmatprep.subr.mxu0 0.0
  %3772 = vmatpush1.msra.mxu0 0.0
  %3773 = vmatprep.subr.mxu0 0.0
  %3774 = vmatpush1.msra.mxu0 0.0
  %3775 = vmatprep.subr.mxu0 0.0
  %3776 = vmatpush1.msra.mxu0 0.0
  %3777 = vmatprep.subr.mxu0 0.0
  %3778 = vmatpush1.msra.mxu0 0.0
  %3779 = vmatprep.subr.mxu0 0.0
  %3780 = vmatpush1.msra.mxu0 0.0
  %3781 = vmatprep.subr.mxu0 0.0
  %3782 = vmatpush1.msra.mxu0 0.0
  %3783 = vmatprep.subr.mxu0 0.0
  %3784 = vmatpush1.msra.mxu0 0.0
  %3785 = vmatprep.subr.mxu0 0.0
  %3786 = vmatpush1.msra.mxu0 0.0
  %3787 = vmatprep.subr.mxu0 0.0
  %3788 = vmatpush1.msra.mxu0 0.0
  %3789 = vmatprep.subr.mxu0 0.0
  %3790 = vmatpush1.msra.mxu0 0.0
  %3791 = vmatprep.subr.mxu0 0.0
  %3792 = vmatpush1.msra.mxu0 0.0
  %3793 = vmatprep.subr.mxu0 0.0
  %3794 = vmatpush1.msra.mxu0 0.0
  %3795 = vmatprep.subr.mxu0 0.0
  %3796 = vmatpush1.msra.mxu0 0.0
  %3797 = vmatprep.subr.mxu0 0.0
  %3798 = vmatpush1.msra.mxu0 0.0
  %3799 = vmatprep.subr.mxu0 0.0
  %3800 = vmatpush1.msra.mxu0 0.0
  %3801 = vmatprep.subr.mxu0 0.0
  %3802 = vmatpush1.msra.mxu0 0.0
  %3803 = vmatprep.mubr.f32.mxu0 0.0
  %3804 = vmatmul.mubr.f32.gmra.mrb[0].mxu0 %v3699
  %v3805 = vpop.f32.mrb[0].mxu0
  %v3806 = vadd.f32 0.0, %v3805
  %v3807 = vpop.f32.mrb[0].mxu0
  %3808 = vmatprep.mubr.f32.mxu0 0.0
  %3809 = vmatmul.mubr.f32.gmra.mrb[0].mxu0 %v3700
  %v3810 = vpop.f32.mrb[0].mxu0
  %v3811 = vadd.f32 0.0, %v3810
  %v3812 = vpop.f32.mrb[0].mxu0
  %3813 = vmatprep.mubr.f32.mxu0 0.0
  %3814 = vmatmul.mubr.f32.gmra.mrb[0].mxu0 %v3701
  %v3815 = vpop.f32.mrb[0].mxu0
  %v3816 = vadd.f32 0.0, %v3815
  %v3817 = vpop.f32.mrb[0].mxu0
  %3818 = vmatprep.mubr.f32.mxu0 0.0
  %3819 = vmatmul.mubr.f32.gmra.mrb[0].mxu0 %v3702
  %v3820 = vpop.f32.mrb[0].mxu0
  %v3821 = vadd.f32 0.0, %v3820
  %v3822 = vpop.f32.mrb[0].mxu0
  %3823 = vmatprep.mubr.f32.mxu0 0.0
  %3824 = vmatmul.mubr.f32.gmra.mrb[0].mxu0 %v3703
  %v3825 = vpop.f32.mrb[0].mxu0
  %v3826 = vadd.f32 0.0, %v3825
  %v3827 = vpop.f32.mrb[0].mxu0
  %3828 = vmatprep.mubr.f32.mxu0 0.0
  %3829 = vmatmul.mubr.f32.gmra.mrb[0].mxu0 %v3704
  %v3830 = vpop.f32.mrb[0].mxu0
  %v3831 = vadd.f32 0.0, %v3830
  %v3832 = vpop.f32.mrb[0].mxu0
  %3833 = vmatprep.mubr.f32.mxu0 0.0
  %3834 = vmatmul.mubr.f32.gmra.mrb[0].mxu0 %v3705
  %v3835 = vpop.f32.mrb[0].mxu0
  %v3836 = vadd.f32 0.0, %v3835
  %v3837 = vpop.f32.mrb[0].mxu0
  %3838 = vmatprep.mubr.f32.mxu0 0.0
  %3839 = vmatmul.mubr.f32.gmra.mrb[0].mxu0 %v3706
  %v3840 = vpop.f32.mrb[0].mxu0
  %v3841 = vadd.f32 0.0, %v3840
  %v3842 = vpop.f32.mrb[0].mxu0
  %3843 = vmatprep.mubr.f32.mxu0 0.0
  %3844 = vmatmul.mubr.f32.gmra.mrb[0].mxu0 %v3707
  %v3845 = vpop.f32.mrb[0].mxu0
  %v3846 = vadd.f32 0.0, %v3845
  %v3847 = vpop.f32.mrb[0].mxu0
  %3848 = vmatprep.mubr.f32.mxu0 0.0
  %3849 = vmatmul.mubr.f32.gmra.mrb[0].mxu0 %v3708
  %v3850 = vpop.f32.mrb[0].mxu0
  %v3851 = vadd.f32 0.0, %v3850
  %v3852 = vpop.f32.mrb[0].mxu0
  %3853 = vmatprep.mubr.f32.mxu0 0.0
  %3854 = vmatmul.mubr.f32.gmra.mrb[0].mxu0 %v3709
  %v3855 = vpop.f32.mrb[0].mxu0
  %v3856 = vadd.f32 0.0, %v3855
  %v3857 = vpop.f32.mrb[0].mxu0
  %3858 = vmatprep.mubr.f32.mxu0 0.0
  %3859 = vmatmul.mubr.f32.gmra.mrb[0].mxu0 %v3710
  %v3860 = vpop.f32.mrb[0].mxu0
  %v3861 = vadd.f32 0.0, %v3860
  %v3862 = vpop.f32.mrb[0].mxu0
  %3863 = vmatprep.mubr.f32.mxu0 0.0
  %3864 = vmatmul.mubr.f32.gmra.mrb[0].mxu0 %v3711
  %v3865 = vpop.f32.mrb[0].mxu0
  %v3866 = vadd.f32 0.0, %v3865
  %v3867 = vpop.f32.mrb[0].mxu0
  %3868 = vmatprep.mubr.f32.mxu0 0.0
  %3869 = vmatmul.mubr.f32.gmra.mrb[0].mxu0 %v3712
  %v3870 = vpop.f32.mrb[0].mxu0
  %v3871 = vadd.f32 0.0, %v3870
  %v3872 = vpop.f32.mrb[0].mxu0
  %3873 = vmatprep.mubr.f32.mxu0 0.0
  %3874 = vmatmul.mubr.f32.gmra.mrb[0].mxu0 %v3713
  %v3875 = vpop.f32.mrb[0].mxu0
  %v3876 = vadd.f32 0.0, %v3875
  %v3877 = vpop.f32.mrb[0].mxu0
  %3878 = vmatprep.mubr.f32.mxu0 0.0
  %3879 = vmatmul.mubr.f32.gmra.mrb[0].mxu0 %v3714
  %v3880 = vpop.f32.mrb[0].mxu0
  %v3881 = vadd.f32 0.0, %v3880
  %v3882 = vpop.f32.mrb[0].mxu0
  %3883 = vdwg.mxu0
  %v3884 = vld [vmem:[%s7] sm:$0xf]
  %v3885 = vld [vmem:[%s7 + $0x4] sm:$0xf]
  %v3886 = vld [vmem:[%s7 + $0x8] sm:$0xf]
  %v3887 = vld [vmem:[%s7 + $0xc] sm:$0xf]
  %v3888 = vld [vmem:[%s7 + $0x10] sm:$0xf]
  %v3889 = vld [vmem:[%s7 + $0x14] sm:$0xf]
  %v3890 = vld [vmem:[%s7 + $0x18] sm:$0xf]
  %v3891 = vld [vmem:[%s7 + $0x1c] sm:$0xf]
  %v3892 = vld [vmem:[%s7 + $0x20] sm:$0xf]
  %v3893 = vld [vmem:[%s7 + $0x24] sm:$0xf]
  %v3894 = vld [vmem:[%s7 + $0x28] sm:$0xf]
  %v3895 = vld [vmem:[%s7 + $0x2c] sm:$0xf]
  %v3896 = vld [vmem:[%s7 + $0x30] sm:$0xf]
  %v3897 = vld [vmem:[%s7 + $0x34] sm:$0xf]
  %v3898 = vld [vmem:[%s7 + $0x38] sm:$0xf]
  %v3899 = vld [vmem:[%s7 + $0x3c] sm:$0xf]
  %s3900 = scalar_lea.vmem %s7, 64
  %v3901 = vld [vmem:[%s3900] sm:$0xf]
  %v3902 = vld [vmem:[%s3900 + $0x4] sm:$0xf]
  %v3903 = vld [vmem:[%s3900 + $0x8] sm:$0xf]
  %v3904 = vld [vmem:[%s3900 + $0xc] sm:$0xf]
  %v3905 = vld [vmem:[%s3900 + $0x10] sm:$0xf]
  %v3906 = vld [vmem:[%s3900 + $0x14] sm:$0xf]
  %v3907 = vld [vmem:[%s3900 + $0x18] sm:$0xf]
  %v3908 = vld [vmem:[%s3900 + $0x1c] sm:$0xf]
  %v3909 = vld [vmem:[%s3900 + $0x20] sm:$0xf]
  %v3910 = vld [vmem:[%s3900 + $0x24] sm:$0xf]
  %v3911 = vld [vmem:[%s3900 + $0x28] sm:$0xf]
  %v3912 = vld [vmem:[%s3900 + $0x2c] sm:$0xf]
  %v3913 = vld [vmem:[%s3900 + $0x30] sm:$0xf]
  %v3914 = vld [vmem:[%s3900 + $0x34] sm:$0xf]
  %v3915 = vld [vmem:[%s3900 + $0x38] sm:$0xf]
  %v3916 = vld [vmem:[%s3900 + $0x3c] sm:$0xf]
  %v3933 = vunpack.c.l.b16 %v3901
  %v3934 = vunpack.c.l.b16 %v3902
  %v3935 = vunpack.c.l.b16 %v3903
  %v3936 = vunpack.c.l.b16 %v3904
  %v3937 = vunpack.c.l.b16 %v3905
  %v3938 = vunpack.c.l.b16 %v3906
  %v3939 = vunpack.c.l.b16 %v3907
  %v3940 = vunpack.c.l.b16 %v3908
  %v3941 = vunpack.c.l.b16 %v3909
  %v3942 = vunpack.c.l.b16 %v3910
  %v3943 = vunpack.c.l.b16 %v3911
  %v3944 = vunpack.c.l.b16 %v3912
  %v3945 = vunpack.c.l.b16 %v3913
  %v3946 = vunpack.c.l.b16 %v3914
  %v3947 = vunpack.c.l.b16 %v3915
  %v3948 = vunpack.c.l.b16 %v3916
  %v3949 = vpack.c.b16 %v3934, %v3933
  %v3950 = vpack.c.b16 %v3936, %v3935
  %v3951 = vpack.c.b16 %v3938, %v3937
  %v3952 = vpack.c.b16 %v3940, %v3939
  %v3953 = vpack.c.b16 %v3942, %v3941
  %v3954 = vpack.c.b16 %v3944, %v3943
  %v3955 = vpack.c.b16 %v3946, %v3945
  %v3956 = vpack.c.b16 %v3948, %v3947
  %3965 = vmatprep.subr.bf16.mxu0 0
  %3966 = vmatpush1.bf16.msra.mxu0 %v3949
  %3967 = vmatprep.subr.bf16.mxu0 0
  %3968 = vmatpush1.bf16.msra.mxu0 %v3950
  %3969 = vmatprep.subr.bf16.mxu0 0
  %3970 = vmatpush1.bf16.msra.mxu0 %v3951
  %3971 = vmatprep.subr.bf16.mxu0 0
  %3972 = vmatpush1.bf16.msra.mxu0 %v3952
  %3973 = vmatprep.subr.bf16.mxu0 0
  %3974 = vmatpush1.bf16.msra.mxu0 %v3953
  %3975 = vmatprep.subr.bf16.mxu0 0
  %3976 = vmatpush1.bf16.msra.mxu0 %v3954
  %3977 = vmatprep.subr.bf16.mxu0 0
  %3978 = vmatpush1.bf16.msra.mxu0 %v3955
  %3979 = vmatprep.subr.bf16.mxu0 0
  %3980 = vmatpush1.bf16.msra.mxu0 %v3956
  %3981 = vmatprep.subr.bf16.mxu0 0
  %3982 = vmatpush1.bf16.msra.mxu0 0
  %3983 = vmatprep.subr.bf16.mxu0 0
  %3984 = vmatpush1.bf16.msra.mxu0 0
  %3985 = vmatprep.subr.bf16.mxu0 0
  %3986 = vmatpush1.bf16.msra.mxu0 0
  %3987 = vmatprep.subr.bf16.mxu0 0
  %3988 = vmatpush1.bf16.msra.mxu0 0
  %3989 = vmatprep.subr.bf16.mxu0 0
  %3990 = vmatpush1.bf16.msra.mxu0 0
  %3991 = vmatprep.subr.bf16.mxu0 0
  %3992 = vmatpush1.bf16.msra.mxu0 0
  %3993 = vmatprep.subr.bf16.mxu0 0
  %3994 = vmatpush1.bf16.msra.mxu0 0
  %3995 = vmatprep.subr.bf16.mxu0 0
  %3996 = vmatpush1.bf16.msra.mxu0 0
  %3997 = vmatprep.mubr.bf16.mxu0 0
  %3998 = vmatmul.mubr.bf16.gmra.mrb[0].mxu0 %v3715
  %v3999 = vpop.f32.mrb[0].mxu0
  %v4000 = vadd.f32 0.0, %v3999
  %v4001 = vpop.f32.mrb[0].mxu0
  %v4002 = vpop.f32.mrb[0].mxu0
  %v4003 = vadd.f32 0.0, %v4002
  %v4004 = vpop.f32.mrb[0].mxu0
  %4005 = vmatprep.mubr.bf16.mxu0 0
  %4006 = vmatmul.mubr.bf16.gmra.mrb[0].mxu0 %v3716
  %v4007 = vpop.f32.mrb[0].mxu0
  %v4008 = vadd.f32 0.0, %v4007
  %v4009 = vpop.f32.mrb[0].mxu0
  %v4010 = vpop.f32.mrb[0].mxu0
  %v4011 = vadd.f32 0.0, %v4010
  %v4012 = vpop.f32.mrb[0].mxu0
  %4013 = vmatprep.mubr.bf16.mxu0 0
  %4014 = vmatmul.mubr.bf16.gmra.mrb[0].mxu0 %v3717
  %v4015 = vpop.f32.mrb[0].mxu0
  %v4016 = vadd.f32 0.0, %v4015
  %v4017 = vpop.f32.mrb[0].mxu0
  %v4018 = vpop.f32.mrb[0].mxu0
  %v4019 = vadd.f32 0.0, %v4018
  %v4020 = vpop.f32.mrb[0].mxu0
  %4021 = vmatprep.mubr.bf16.mxu0 0
  %4022 = vmatmul.mubr.bf16.gmra.mrb[0].mxu0 %v3718
  %v4023 = vpop.f32.mrb[0].mxu0
  %v4024 = vadd.f32 0.0, %v4023
  %v4025 = vpop.f32.mrb[0].mxu0
  %v4026 = vpop.f32.mrb[0].mxu0
  %v4027 = vadd.f32 0.0, %v4026
  %v4028 = vpop.f32.mrb[0].mxu0
  %4029 = vmatprep.mubr.bf16.mxu0 0
  %4030 = vmatmul.mubr.bf16.gmra.mrb[0].mxu0 %v3719
  %v4031 = vpop.f32.mrb[0].mxu0
  %v4032 = vadd.f32 0.0, %v4031
  %v4033 = vpop.f32.mrb[0].mxu0
  %v4034 = vpop.f32.mrb[0].mxu0
  %v4035 = vadd.f32 0.0, %v4034
  %v4036 = vpop.f32.mrb[0].mxu0
  %4037 = vmatprep.mubr.bf16.mxu0 0
  %4038 = vmatmul.mubr.bf16.gmra.mrb[0].mxu0 %v3720
  %v4039 = vpop.f32.mrb[0].mxu0
  %v4040 = vadd.f32 0.0, %v4039
  %v4041 = vpop.f32.mrb[0].mxu0
  %v4042 = vpop.f32.mrb[0].mxu0
  %v4043 = vadd.f32 0.0, %v4042
  %v4044 = vpop.f32.mrb[0].mxu0
  %4045 = vmatprep.mubr.bf16.mxu0 0
  %4046 = vmatmul.mubr.bf16.gmra.mrb[0].mxu0 %v3721
  %v4047 = vpop.f32.mrb[0].mxu0
  %v4048 = vadd.f32 0.0, %v4047
  %v4049 = vpop.f32.mrb[0].mxu0
  %v4050 = vpop.f32.mrb[0].mxu0
  %v4051 = vadd.f32 0.0, %v4050
  %v4052 = vpop.f32.mrb[0].mxu0
  %4053 = vmatprep.mubr.bf16.mxu0 0
  %4054 = vmatmul.mubr.bf16.gmra.mrb[0].mxu0 %v3722
  %v4055 = vpop.f32.mrb[0].mxu0
  %v4056 = vadd.f32 0.0, %v4055
  %v4057 = vpop.f32.mrb[0].mxu0
  %v4058 = vpop.f32.mrb[0].mxu0
  %v4059 = vadd.f32 0.0, %v4058
  %v4060 = vpop.f32.mrb[0].mxu0
  %4061 = vdwg.mxu0
  %4062 = vmatprep.subr.mxu0 0.0
  %4063 = vmatpush1.xpose.msra.mxu0 %v3806
  %4064 = vmatprep.subr.mxu0 0.0
  %4065 = vmatpush1.xpose.msra.mxu0 %v3811
  %4066 = vmatprep.subr.mxu0 0.0
  %4067 = vmatpush1.xpose.msra.mxu0 %v3816
  %4068 = vmatprep.subr.mxu0 0.0
  %4069 = vmatpush1.xpose.msra.mxu0 %v3821
  %4070 = vmatprep.subr.mxu0 0.0
  %4071 = vmatpush1.xpose.msra.mxu0 %v3826
  %4072 = vmatprep.subr.mxu0 0.0
  %4073 = vmatpush1.xpose.msra.mxu0 %v3831
  %4074 = vmatprep.subr.mxu0 0.0
  %4075 = vmatpush1.xpose.msra.mxu0 %v3836
  %4076 = vmatprep.subr.mxu0 0.0
  %4077 = vmatpush1.xpose.msra.mxu0 %v3841
  %4078 = vmatprep.subr.mxu0 0.0
  %4079 = vmatpush1.xpose.msra.mxu0 %v3846
  %4080 = vmatprep.subr.mxu0 0.0
  %4081 = vmatpush1.xpose.msra.mxu0 %v3851
  %4082 = vmatprep.subr.mxu0 0.0
  %4083 = vmatpush1.xpose.msra.mxu0 %v3856
  %4084 = vmatprep.subr.mxu0 0.0
  %4085 = vmatpush1.xpose.msra.mxu0 %v3861
  %4086 = vmatprep.subr.mxu0 0.0
  %4087 = vmatpush1.xpose.msra.mxu0 %v3866
  %4088 = vmatprep.subr.mxu0 0.0
  %4089 = vmatpush1.xpose.msra.mxu0 %v3871
  %4090 = vmatprep.subr.mxu0 0.0
  %4091 = vmatpush1.xpose.msra.mxu0 %v3876
  %4092 = vmatprep.subr.mxu0 0.0
  %4093 = vmatpush1.xpose.msra.mxu0 %v3881
  %4094 = vmatprep.subr.mxu0 0.0
  %4095 = vmatpush1.xpose.msra.mxu0 0.0
  %4096 = vmatprep.subr.mxu0 0.0
  %4097 = vmatpush1.xpose.msra.mxu0 0.0
  %4098 = vmatprep.subr.mxu0 0.0
  %4099 = vmatpush1.xpose.msra.mxu0 0.0
  %4100 = vmatprep.subr.mxu0 0.0
  %4101 = vmatpush1.xpose.msra.mxu0 0.0
  %4102 = vmatprep.subr.mxu0 0.0
  %4103 = vmatpush1.xpose.msra.mxu0 0.0
  %4104 = vmatprep.subr.mxu0 0.0
  %4105 = vmatpush1.xpose.msra.mxu0 0.0
  %4106 = vmatprep.subr.mxu0 0.0
  %4107 = vmatpush1.xpose.msra.mxu0 0.0
  %4108 = vmatprep.subr.mxu0 0.0
  %4109 = vmatpush1.xpose.msra.mxu0 0.0
  %4110 = vmatprep.subr.mxu0 0.0
  %4111 = vmatpush1.xpose.msra.mxu0 0.0
  %4112 = vmatprep.subr.mxu0 0.0
  %4113 = vmatpush1.xpose.msra.mxu0 0.0
  %4114 = vmatprep.subr.mxu0 0.0
  %4115 = vmatpush1.xpose.msra.mxu0 0.0
  %4116 = vmatprep.subr.mxu0 0.0
  %4117 = vmatpush1.xpose.msra.mxu0 0.0
  %4118 = vmatprep.subr.mxu0 0.0
  %4119 = vmatpush1.xpose.msra.mxu0 0.0
  %4120 = vmatprep.subr.mxu0 0.0
  %4121 = vmatpush1.xpose.msra.mxu0 0.0
  %4122 = vmatprep.subr.mxu0 0.0
  %4123 = vmatpush1.xpose.msra.mxu0 0.0
  %4124 = vmatprep.subr.mxu0 0.0
  %4125 = vmatpush1.xpose.msra.mxu0 0.0
  %4126 = vmatprep.mubr.f32.mxu0 0.0
  %4127 = vmatmul.mubr.f32.gmra.mrb[0].mxu0 %v983
  %v4128 = vpop.f32.mrb[0].mxu0
  %v4129 = vadd.f32 0.0, %v4128
  %v4130 = vpop.f32.mrb[0].mxu0
  %4131 = vmatprep.mubr.f32.mxu0 0.0
  %4132 = vmatmul.mubr.f32.gmra.mrb[0].mxu0 %v983
  %v4133 = vpop.f32.mrb[0].mxu0
  %v4134 = vadd.f32 0.0, %v4133
  %v4135 = vpop.f32.mrb[0].mxu0
  %4136 = vmatprep.mubr.f32.mxu0 0.0
  %4137 = vmatmul.mubr.f32.gmra.mrb[0].mxu0 %v983
  %v4138 = vpop.f32.mrb[0].mxu0
  %v4139 = vadd.f32 0.0, %v4138
  %v4140 = vpop.f32.mrb[0].mxu0
  %4141 = vmatprep.mubr.f32.mxu0 0.0
  %4142 = vmatmul.mubr.f32.gmra.mrb[0].mxu0 %v983
  %v4143 = vpop.f32.mrb[0].mxu0
  %v4144 = vadd.f32 0.0, %v4143
  %v4145 = vpop.f32.mrb[0].mxu0
  %4146 = vmatprep.mubr.f32.mxu0 0.0
  %4147 = vmatmul.mubr.f32.gmra.mrb[0].mxu0 %v983
  %v4148 = vpop.f32.mrb[0].mxu0
  %v4149 = vadd.f32 0.0, %v4148
  %v4150 = vpop.f32.mrb[0].mxu0
  %4151 = vmatprep.mubr.f32.mxu0 0.0
  %4152 = vmatmul.mubr.f32.gmra.mrb[0].mxu0 %v983
  %v4153 = vpop.f32.mrb[0].mxu0
  %v4154 = vadd.f32 0.0, %v4153
  %v4155 = vpop.f32.mrb[0].mxu0
  %4156 = vmatprep.mubr.f32.mxu0 0.0
  %4157 = vmatmul.mubr.f32.gmra.mrb[0].mxu0 %v983
  %v4158 = vpop.f32.mrb[0].mxu0
  %v4159 = vadd.f32 0.0, %v4158
  %v4160 = vpop.f32.mrb[0].mxu0
  %4161 = vmatprep.mubr.f32.mxu0 0.0
  %4162 = vmatmul.mubr.f32.gmra.mrb[0].mxu0 %v983
  %v4163 = vpop.f32.mrb[0].mxu0
  %v4164 = vadd.f32 0.0, %v4163
  %v4165 = vpop.f32.mrb[0].mxu0
  %4166 = vmatprep.mubr.f32.mxu0 0.0
  %4167 = vmatmul.mubr.f32.gmra.mrb[0].mxu0 %v983
  %v4168 = vpop.f32.mrb[0].mxu0
  %v4169 = vadd.f32 0.0, %v4168
  %v4170 = vpop.f32.mrb[0].mxu0
  %4171 = vmatprep.mubr.f32.mxu0 0.0
  %4172 = vmatmul.mubr.f32.gmra.mrb[0].mxu0 %v983
  %v4173 = vpop.f32.mrb[0].mxu0
  %v4174 = vadd.f32 0.0, %v4173
  %v4175 = vpop.f32.mrb[0].mxu0
  %4176 = vmatprep.mubr.f32.mxu0 0.0
  %4177 = vmatmul.mubr.f32.gmra.mrb[0].mxu0 %v983
  %v4178 = vpop.f32.mrb[0].mxu0
  %v4179 = vadd.f32 0.0, %v4178
  %v4180 = vpop.f32.mrb[0].mxu0
  %4181 = vmatprep.mubr.f32.mxu0 0.0
  %4182 = vmatmul.mubr.f32.gmra.mrb[0].mxu0 %v983
  %v4183 = vpop.f32.mrb[0].mxu0
  %v4184 = vadd.f32 0.0, %v4183
  %v4185 = vpop.f32.mrb[0].mxu0
  %4186 = vmatprep.mubr.f32.mxu0 0.0
  %4187 = vmatmul.mubr.f32.gmra.mrb[0].mxu0 %v983
  %v4188 = vpop.f32.mrb[0].mxu0
  %v4189 = vadd.f32 0.0, %v4188
  %v4190 = vpop.f32.mrb[0].mxu0
  %4191 = vmatprep.mubr.f32.mxu0 0.0
  %4192 = vmatmul.mubr.f32.gmra.mrb[0].mxu0 %v983
  %v4193 = vpop.f32.mrb[0].mxu0
  %v4194 = vadd.f32 0.0, %v4193
  %v4195 = vpop.f32.mrb[0].mxu0
  %4196 = vmatprep.mubr.f32.mxu0 0.0
  %4197 = vmatmul.mubr.f32.gmra.mrb[0].mxu0 %v983
  %v4198 = vpop.f32.mrb[0].mxu0
  %v4199 = vadd.f32 0.0, %v4198
  %v4200 = vpop.f32.mrb[0].mxu0
  %4201 = vmatprep.mubr.f32.mxu0 0.0
  %4202 = vmatmul.mubr.f32.gmra.mrb[0].mxu0 %v983
  %v4203 = vpop.f32.mrb[0].mxu0
  %v4204 = vadd.f32 0.0, %v4203
  %v4205 = vpop.f32.mrb[0].mxu0
  %4206 = vdwg.mxu0
  %4207 = vmatprep.subr.mxu0 0.0
  %4208 = vmatpush1.msra.mxu0 %v965
  %4209 = vmatprep.subr.mxu0 0.0
  %4210 = vmatpush1.msra.mxu0 %v966
  %4211 = vmatprep.subr.mxu0 0.0
  %4212 = vmatpush1.msra.mxu0 %v967
  %4213 = vmatprep.subr.mxu0 0.0
  %4214 = vmatpush1.msra.mxu0 %v968
  %4215 = vmatprep.subr.mxu0 0.0
  %4216 = vmatpush1.msra.mxu0 %v969
  %4217 = vmatprep.subr.mxu0 0.0
  %4218 = vmatpush1.msra.mxu0 %v970
  %4219 = vmatprep.subr.mxu0 0.0
  %4220 = vmatpush1.msra.mxu0 %v971
  %4221 = vmatprep.subr.mxu0 0.0
  %4222 = vmatpush1.msra.mxu0 %v972
  %4223 = vmatprep.subr.mxu0 0.0
  %4224 = vmatpush1.msra.mxu0 %v973
  %4225 = vmatprep.subr.mxu0 0.0
  %4226 = vmatpush1.msra.mxu0 %v974
  %4227 = vmatprep.subr.mxu0 0.0
  %4228 = vmatpush1.msra.mxu0 %v975
  %4229 = vmatprep.subr.mxu0 0.0
  %4230 = vmatpush1.msra.mxu0 %v976
  %4231 = vmatprep.subr.mxu0 0.0
  %4232 = vmatpush1.msra.mxu0 %v977
  %4233 = vmatprep.subr.mxu0 0.0
  %4234 = vmatpush1.msra.mxu0 %v978
  %4235 = vmatprep.subr.mxu0 0.0
  %4236 = vmatpush1.msra.mxu0 %v979
  %4237 = vmatprep.subr.mxu0 0.0
  %4238 = vmatpush1.msra.mxu0 %v980
  %4239 = vmatprep.subr.mxu0 0.0
  %4240 = vmatpush1.msra.mxu0 0.0
  %4241 = vmatprep.subr.mxu0 0.0
  %4242 = vmatpush1.msra.mxu0 0.0
  %4243 = vmatprep.subr.mxu0 0.0
  %4244 = vmatpush1.msra.mxu0 0.0
  %4245 = vmatprep.subr.mxu0 0.0
  %4246 = vmatpush1.msra.mxu0 0.0
  %4247 = vmatprep.subr.mxu0 0.0
  %4248 = vmatpush1.msra.mxu0 0.0
  %4249 = vmatprep.subr.mxu0 0.0
  %4250 = vmatpush1.msra.mxu0 0.0
  %4251 = vmatprep.subr.mxu0 0.0
  %4252 = vmatpush1.msra.mxu0 0.0
  %4253 = vmatprep.subr.mxu0 0.0
  %4254 = vmatpush1.msra.mxu0 0.0
  %4255 = vmatprep.subr.mxu0 0.0
  %4256 = vmatpush1.msra.mxu0 0.0
  %4257 = vmatprep.subr.mxu0 0.0
  %4258 = vmatpush1.msra.mxu0 0.0
  %4259 = vmatprep.subr.mxu0 0.0
  %4260 = vmatpush1.msra.mxu0 0.0
  %4261 = vmatprep.subr.mxu0 0.0
  %4262 = vmatpush1.msra.mxu0 0.0
  %4263 = vmatprep.subr.mxu0 0.0
  %4264 = vmatpush1.msra.mxu0 0.0
  %4265 = vmatprep.subr.mxu0 0.0
  %4266 = vmatpush1.msra.mxu0 0.0
  %4267 = vmatprep.subr.mxu0 0.0
  %4268 = vmatpush1.msra.mxu0 0.0
  %4269 = vmatprep.subr.mxu0 0.0
  %4270 = vmatpush1.msra.mxu0 0.0
  %4271 = vmatprep.mubr.f32.mxu0 0.0
  %4272 = vmatmul.mubr.f32.gmra.mrb[0].mxu0 %v3806
  %v4273 = vpop.f32.mrb[0].mxu0
  %v4274 = vadd.f32 %v4129, %v4273
  %v4275 = vpop.f32.mrb[0].mxu0
  %4276 = vmatprep.mubr.f32.mxu0 0.0
  %4277 = vmatmul.mubr.f32.gmra.mrb[0].mxu0 %v3811
  %v4278 = vpop.f32.mrb[0].mxu0
  %v4279 = vadd.f32 %v4134, %v4278
  %v4280 = vpop.f32.mrb[0].mxu0
  %4281 = vmatprep.mubr.f32.mxu0 0.0
  %4282 = vmatmul.mubr.f32.gmra.mrb[0].mxu0 %v3816
  %v4283 = vpop.f32.mrb[0].mxu0
  %v4284 = vadd.f32 %v4139, %v4283
  %v4285 = vpop.f32.mrb[0].mxu0
  %4286 = vmatprep.mubr.f32.mxu0 0.0
  %4287 = vmatmul.mubr.f32.gmra.mrb[0].mxu0 %v3821
  %v4288 = vpop.f32.mrb[0].mxu0
  %v4289 = vadd.f32 %v4144, %v4288
  %v4290 = vpop.f32.mrb[0].mxu0
  %4291 = vmatprep.mubr.f32.mxu0 0.0
  %4292 = vmatmul.mubr.f32.gmra.mrb[0].mxu0 %v3826
  %v4293 = vpop.f32.mrb[0].mxu0
  %v4294 = vadd.f32 %v4149, %v4293
  %v4295 = vpop.f32.mrb[0].mxu0
  %4296 = vmatprep.mubr.f32.mxu0 0.0
  %4297 = vmatmul.mubr.f32.gmra.mrb[0].mxu0 %v3831
  %v4298 = vpop.f32.mrb[0].mxu0
  %v4299 = vadd.f32 %v4154, %v4298
  %v4300 = vpop.f32.mrb[0].mxu0
  %4301 = vmatprep.mubr.f32.mxu0 0.0
  %4302 = vmatmul.mubr.f32.gmra.mrb[0].mxu0 %v3836
  %v4303 = vpop.f32.mrb[0].mxu0
  %v4304 = vadd.f32 %v4159, %v4303
  %v4305 = vpop.f32.mrb[0].mxu0
  %4306 = vmatprep.mubr.f32.mxu0 0.0
  %4307 = vmatmul.mubr.f32.gmra.mrb[0].mxu0 %v3841
  %v4308 = vpop.f32.mrb[0].mxu0
  %v4309 = vadd.f32 %v4164, %v4308
  %v4310 = vpop.f32.mrb[0].mxu0
  %4311 = vmatprep.mubr.f32.mxu0 0.0
  %4312 = vmatmul.mubr.f32.gmra.mrb[0].mxu0 %v3846
  %v4313 = vpop.f32.mrb[0].mxu0
  %v4314 = vadd.f32 %v4169, %v4313
  %v4315 = vpop.f32.mrb[0].mxu0
  %4316 = vmatprep.mubr.f32.mxu0 0.0
  %4317 = vmatmul.mubr.f32.gmra.mrb[0].mxu0 %v3851
  %v4318 = vpop.f32.mrb[0].mxu0
  %v4319 = vadd.f32 %v4174, %v4318
  %v4320 = vpop.f32.mrb[0].mxu0
  %4321 = vmatprep.mubr.f32.mxu0 0.0
  %4322 = vmatmul.mubr.f32.gmra.mrb[0].mxu0 %v3856
  %v4323 = vpop.f32.mrb[0].mxu0
  %v4324 = vadd.f32 %v4179, %v4323
  %v4325 = vpop.f32.mrb[0].mxu0
  %4326 = vmatprep.mubr.f32.mxu0 0.0
  %4327 = vmatmul.mubr.f32.gmra.mrb[0].mxu0 %v3861
  %v4328 = vpop.f32.mrb[0].mxu0
  %v4329 = vadd.f32 %v4184, %v4328
  %v4330 = vpop.f32.mrb[0].mxu0
  %4331 = vmatprep.mubr.f32.mxu0 0.0
  %4332 = vmatmul.mubr.f32.gmra.mrb[0].mxu0 %v3866
  %v4333 = vpop.f32.mrb[0].mxu0
  %v4334 = vadd.f32 %v4189, %v4333
  %v4335 = vpop.f32.mrb[0].mxu0
  %4336 = vmatprep.mubr.f32.mxu0 0.0
  %4337 = vmatmul.mubr.f32.gmra.mrb[0].mxu0 %v3871
  %v4338 = vpop.f32.mrb[0].mxu0
  %v4339 = vadd.f32 %v4194, %v4338
  %v4340 = vpop.f32.mrb[0].mxu0
  %4341 = vmatprep.mubr.f32.mxu0 0.0
  %4342 = vmatmul.mubr.f32.gmra.mrb[0].mxu0 %v3876
  %v4343 = vpop.f32.mrb[0].mxu0
  %v4344 = vadd.f32 %v4199, %v4343
  %v4345 = vpop.f32.mrb[0].mxu0
  %4346 = vmatprep.mubr.f32.mxu0 0.0
  %4347 = vmatmul.mubr.f32.gmra.mrb[0].mxu0 %v3881
  %v4348 = vpop.f32.mrb[0].mxu0
  %v4349 = vadd.f32 %v4204, %v4348
  %v4350 = vpop.f32.mrb[0].mxu0
  %4351 = vdwg.mxu0
  %vm4352 = vcmp.gt.f32.partialorder %v4274, 0.0
  %vm4353 = vcmp.gt.f32.partialorder %v4279, 0.0
  %vm4354 = vcmp.gt.f32.partialorder %v4284, 0.0
  %vm4355 = vcmp.gt.f32.partialorder %v4289, 0.0
  %vm4356 = vcmp.gt.f32.partialorder %v4294, 0.0
  %vm4357 = vcmp.gt.f32.partialorder %v4299, 0.0
  %vm4358 = vcmp.gt.f32.partialorder %v4304, 0.0
  %vm4359 = vcmp.gt.f32.partialorder %v4309, 0.0
  %vm4360 = vcmp.gt.f32.partialorder %v4314, 0.0
  %vm4361 = vcmp.gt.f32.partialorder %v4319, 0.0
  %vm4362 = vcmp.gt.f32.partialorder %v4324, 0.0
  %vm4363 = vcmp.gt.f32.partialorder %v4329, 0.0
  %vm4364 = vcmp.gt.f32.partialorder %v4334, 0.0
  %vm4365 = vcmp.gt.f32.partialorder %v4339, 0.0
  %vm4366 = vcmp.gt.f32.partialorder %v4344, 0.0
  %vm4367 = vcmp.gt.f32.partialorder %v4349, 0.0
  %v4368 = vmul.f32 %v4274, 0.2
  %v4369 = vmul.f32 %v4279, 0.2
  %v4370 = vmul.f32 %v4284, 0.2
  %v4371 = vmul.f32 %v4289, 0.2
  %v4372 = vmul.f32 %v4294, 0.2
  %v4373 = vmul.f32 %v4299, 0.2
  %v4374 = vmul.f32 %v4304, 0.2
  %v4375 = vmul.f32 %v4309, 0.2
  %v4376 = vmul.f32 %v4314, 0.2
  %v4377 = vmul.f32 %v4319, 0.2
  %v4378 = vmul.f32 %v4324, 0.2
  %v4379 = vmul.f32 %v4329, 0.2
  %v4380 = vmul.f32 %v4334, 0.2
  %v4381 = vmul.f32 %v4339, 0.2
  %v4382 = vmul.f32 %v4344, 0.2
  %v4383 = vmul.f32 %v4349, 0.2
  %v4384 = vsel %vm4352, %v4274, %v4368
  %v4385 = vsel %vm4353, %v4279, %v4369
  %v4386 = vsel %vm4354, %v4284, %v4370
  %v4387 = vsel %vm4355, %v4289, %v4371
  %v4388 = vsel %vm4356, %v4294, %v4372
  %v4389 = vsel %vm4357, %v4299, %v4373
  %v4390 = vsel %vm4358, %v4304, %v4374
  %v4391 = vsel %vm4359, %v4309, %v4375
  %v4392 = vsel %vm4360, %v4314, %v4376
  %v4393 = vsel %vm4361, %v4319, %v4377
  %v4394 = vsel %vm4362, %v4324, %v4378
  %v4395 = vsel %vm4363, %v4329, %v4379
  %v4396 = vsel %vm4364, %v4334, %v4380
  %v4397 = vsel %vm4365, %v4339, %v4381
  %v4398 = vsel %vm4366, %v4344, %v4382
  %v4399 = vsel %vm4367, %v4349, %v4383
  %v4400 = vsel %vm1720, %v4384, -1e+30
  %v4401 = vsel %vm1721, %v4385, -1e+30
  %v4402 = vsel %vm1722, %v4386, -1e+30
  %v4403 = vsel %vm1723, %v4387, -1e+30
  %v4404 = vsel %vm1724, %v4388, -1e+30
  %v4405 = vsel %vm1725, %v4389, -1e+30
  %v4406 = vsel %vm1726, %v4390, -1e+30
  %v4407 = vsel %vm1727, %v4391, -1e+30
  %v4408 = vsel %vm1728, %v4392, -1e+30
  %v4409 = vsel %vm1729, %v4393, -1e+30
  %v4410 = vsel %vm1730, %v4394, -1e+30
  %v4411 = vsel %vm1731, %v4395, -1e+30
  %v4412 = vsel %vm1732, %v4396, -1e+30
  %v4413 = vsel %vm1733, %v4397, -1e+30
  %v4414 = vsel %vm1734, %v4398, -1e+30
  %v4415 = vsel %vm1735, %v4399, -1e+30
  %4416 = vmax.xlane.f32.xlu0 %v4400
  %v4417 = vpop.xlane.xlu0 %4416
  %4418 = vmax.xlane.f32.xlu0 %v4401
  %v4419 = vpop.xlane.xlu0 %4418
  %4420 = vmax.xlane.f32.xlu0 %v4402
  %v4421 = vpop.xlane.xlu0 %4420
  %4422 = vmax.xlane.f32.xlu0 %v4403
  %v4423 = vpop.xlane.xlu0 %4422
  %4424 = vmax.xlane.f32.xlu0 %v4404
  %v4425 = vpop.xlane.xlu0 %4424
  %4426 = vmax.xlane.f32.xlu0 %v4405
  %v4427 = vpop.xlane.xlu0 %4426
  %4428 = vmax.xlane.f32.xlu0 %v4406
  %v4429 = vpop.xlane.xlu0 %4428
  %4430 = vmax.xlane.f32.xlu0 %v4407
  %v4431 = vpop.xlane.xlu0 %4430
  %4432 = vmax.xlane.f32.xlu0 %v4408
  %v4433 = vpop.xlane.xlu0 %4432
  %4434 = vmax.xlane.f32.xlu0 %v4409
  %v4435 = vpop.xlane.xlu0 %4434
  %4436 = vmax.xlane.f32.xlu0 %v4410
  %v4437 = vpop.xlane.xlu0 %4436
  %4438 = vmax.xlane.f32.xlu0 %v4411
  %v4439 = vpop.xlane.xlu0 %4438
  %4440 = vmax.xlane.f32.xlu0 %v4412
  %v4441 = vpop.xlane.xlu0 %4440
  %4442 = vmax.xlane.f32.xlu0 %v4413
  %v4443 = vpop.xlane.xlu0 %4442
  %4444 = vmax.xlane.f32.xlu0 %v4414
  %v4445 = vpop.xlane.xlu0 %4444
  %4446 = vmax.xlane.f32.xlu0 %v4415
  %v4447 = vpop.xlane.xlu0 %4446
  %v4448 = vsub.f32 %v4400, %v4417
  %v4449 = vsub.f32 %v4401, %v4419
  %v4450 = vsub.f32 %v4402, %v4421
  %v4451 = vsub.f32 %v4403, %v4423
  %v4452 = vsub.f32 %v4404, %v4425
  %v4453 = vsub.f32 %v4405, %v4427
  %v4454 = vsub.f32 %v4406, %v4429
  %v4455 = vsub.f32 %v4407, %v4431
  %v4456 = vsub.f32 %v4408, %v4433
  %v4457 = vsub.f32 %v4409, %v4435
  %v4458 = vsub.f32 %v4410, %v4437
  %v4459 = vsub.f32 %v4411, %v4439
  %v4460 = vsub.f32 %v4412, %v4441
  %v4461 = vsub.f32 %v4413, %v4443
  %v4462 = vsub.f32 %v4414, %v4445
  %v4463 = vsub.f32 %v4415, %v4447
  %v4464 = vmul.f32 %v4448, 1.442695
  %v4465 = vpow.pop %v4464
  %v4466 = vmul.f32 %v4449, 1.442695
  %v4467 = vpow.pop %v4466
  %v4468 = vmul.f32 %v4450, 1.442695
  %v4469 = vpow.pop %v4468
  %v4470 = vmul.f32 %v4451, 1.442695
  %v4471 = vpow.pop %v4470
  %v4472 = vmul.f32 %v4452, 1.442695
  %v4473 = vpow.pop %v4472
  %v4474 = vmul.f32 %v4453, 1.442695
  %v4475 = vpow.pop %v4474
  %v4476 = vmul.f32 %v4454, 1.442695
  %v4477 = vpow.pop %v4476
  %v4478 = vmul.f32 %v4455, 1.442695
  %v4479 = vpow.pop %v4478
  %v4480 = vmul.f32 %v4456, 1.442695
  %v4481 = vpow.pop %v4480
  %v4482 = vmul.f32 %v4457, 1.442695
  %v4483 = vpow.pop %v4482
  %v4484 = vmul.f32 %v4458, 1.442695
  %v4485 = vpow.pop %v4484
  %v4486 = vmul.f32 %v4459, 1.442695
  %v4487 = vpow.pop %v4486
  %v4488 = vmul.f32 %v4460, 1.442695
  %v4489 = vpow.pop %v4488
  %v4490 = vmul.f32 %v4461, 1.442695
  %v4491 = vpow.pop %v4490
  %v4492 = vmul.f32 %v4462, 1.442695
  %v4493 = vpow.pop %v4492
  %v4494 = vmul.f32 %v4463, 1.442695
  %v4495 = vpow.pop %v4494
  %v4496 = vmul.f32 %v4465, %v1752
  %v4497 = vmul.f32 %v4467, %v1753
  %v4498 = vmul.f32 %v4469, %v1754
  %v4499 = vmul.f32 %v4471, %v1755
  %v4500 = vmul.f32 %v4473, %v1756
  %v4501 = vmul.f32 %v4475, %v1757
  %v4502 = vmul.f32 %v4477, %v1758
  %v4503 = vmul.f32 %v4479, %v1759
  %v4504 = vmul.f32 %v4481, %v1760
  %v4505 = vmul.f32 %v4483, %v1761
  %v4506 = vmul.f32 %v4485, %v1762
  %v4507 = vmul.f32 %v4487, %v1763
  %v4508 = vmul.f32 %v4489, %v1764
  %v4509 = vmul.f32 %v4491, %v1765
  %v4510 = vmul.f32 %v4493, %v1766
  %v4511 = vmul.f32 %v4495, %v1767
  %4512 = vadd.xlane.f32.xlu0 %v4496
  %v4513 = vpop.xlane.xlu0 %4512
  %4514 = vadd.xlane.f32.xlu0 %v4497
  %v4515 = vpop.xlane.xlu0 %4514
  %4516 = vadd.xlane.f32.xlu0 %v4498
  %v4517 = vpop.xlane.xlu0 %4516
  %4518 = vadd.xlane.f32.xlu0 %v4499
  %v4519 = vpop.xlane.xlu0 %4518
  %4520 = vadd.xlane.f32.xlu0 %v4500
  %v4521 = vpop.xlane.xlu0 %4520
  %4522 = vadd.xlane.f32.xlu0 %v4501
  %v4523 = vpop.xlane.xlu0 %4522
  %4524 = vadd.xlane.f32.xlu0 %v4502
  %v4525 = vpop.xlane.xlu0 %4524
  %4526 = vadd.xlane.f32.xlu0 %v4503
  %v4527 = vpop.xlane.xlu0 %4526
  %4528 = vadd.xlane.f32.xlu0 %v4504
  %v4529 = vpop.xlane.xlu0 %4528
  %4530 = vadd.xlane.f32.xlu0 %v4505
  %v4531 = vpop.xlane.xlu0 %4530
  %4532 = vadd.xlane.f32.xlu0 %v4506
  %v4533 = vpop.xlane.xlu0 %4532
  %4534 = vadd.xlane.f32.xlu0 %v4507
  %v4535 = vpop.xlane.xlu0 %4534
  %4536 = vadd.xlane.f32.xlu0 %v4508
  %v4537 = vpop.xlane.xlu0 %4536
  %4538 = vadd.xlane.f32.xlu0 %v4509
  %v4539 = vpop.xlane.xlu0 %4538
  %4540 = vadd.xlane.f32.xlu0 %v4510
  %v4541 = vpop.xlane.xlu0 %4540
  %4542 = vadd.xlane.f32.xlu0 %v4511
  %v4543 = vpop.xlane.xlu0 %4542
  %v4544 = vmax.f32 %v4513, 1e-30
  %v4545 = vmax.f32 %v4515, 1e-30
  %v4546 = vmax.f32 %v4517, 1e-30
  %v4547 = vmax.f32 %v4519, 1e-30
  %v4548 = vmax.f32 %v4521, 1e-30
  %v4549 = vmax.f32 %v4523, 1e-30
  %v4550 = vmax.f32 %v4525, 1e-30
  %v4551 = vmax.f32 %v4527, 1e-30
  %v4552 = vmax.f32 %v4529, 1e-30
  %v4553 = vmax.f32 %v4531, 1e-30
  %v4554 = vmax.f32 %v4533, 1e-30
  %v4555 = vmax.f32 %v4535, 1e-30
  %v4556 = vmax.f32 %v4537, 1e-30
  %v4557 = vmax.f32 %v4539, 1e-30
  %v4558 = vmax.f32 %v4541, 1e-30
  %v4559 = vmax.f32 %v4543, 1e-30
  %v4560 = vrcp.pop %v4544
  %v4561 = vrcp.pop %v4545
  %v4562 = vrcp.pop %v4546
  %v4563 = vrcp.pop %v4547
  %v4564 = vrcp.pop %v4548
  %v4565 = vrcp.pop %v4549
  %v4566 = vrcp.pop %v4550
  %v4567 = vrcp.pop %v4551
  %v4568 = vrcp.pop %v4552
  %v4569 = vrcp.pop %v4553
  %v4570 = vrcp.pop %v4554
  %v4571 = vrcp.pop %v4555
  %v4572 = vrcp.pop %v4556
  %v4573 = vrcp.pop %v4557
  %v4574 = vrcp.pop %v4558
  %v4575 = vrcp.pop %v4559
  %v4576 = vmul.f32 %v4496, %v4560
  %v4577 = vmul.f32 %v4497, %v4561
  %v4578 = vmul.f32 %v4498, %v4562
  %v4579 = vmul.f32 %v4499, %v4563
  %v4580 = vmul.f32 %v4500, %v4564
  %v4581 = vmul.f32 %v4501, %v4565
  %v4582 = vmul.f32 %v4502, %v4566
  %v4583 = vmul.f32 %v4503, %v4567
  %v4584 = vmul.f32 %v4504, %v4568
  %v4585 = vmul.f32 %v4505, %v4569
  %v4586 = vmul.f32 %v4506, %v4570
  %v4587 = vmul.f32 %v4507, %v4571
  %v4588 = vmul.f32 %v4508, %v4572
  %v4589 = vmul.f32 %v4509, %v4573
  %v4590 = vmul.f32 %v4510, %v4574
  %v4591 = vmul.f32 %v4511, %v4575
  %v4592 = vmul.f32 %v4576, %v45
  %v4593 = vmul.f32 %v4577, %v46
  %v4594 = vmul.f32 %v4578, %v47
  %v4595 = vmul.f32 %v4579, %v48
  %v4596 = vmul.f32 %v4580, %v49
  %v4597 = vmul.f32 %v4581, %v50
  %v4598 = vmul.f32 %v4582, %v51
  %v4599 = vmul.f32 %v4583, %v52
  %v4600 = vmul.f32 %v4584, %v53
  %v4601 = vmul.f32 %v4585, %v54
  %v4602 = vmul.f32 %v4586, %v55
  %v4603 = vmul.f32 %v4587, %v56
  %v4604 = vmul.f32 %v4588, %v57
  %v4605 = vmul.f32 %v4589, %v58
  %v4606 = vmul.f32 %v4590, %v59
  %v4607 = vmul.f32 %v4591, %v60
  %4608 = vmatprep.subr.mxu0 0.0
  %4609 = vmatpush1.msra.mxu0 %v4000
  %4610 = vmatprep.subr.mxu0 0.0
  %4611 = vmatpush1.msra.mxu0 %v4003
  %4612 = vmatprep.subr.mxu0 0.0
  %4613 = vmatpush1.msra.mxu0 %v4008
  %4614 = vmatprep.subr.mxu0 0.0
  %4615 = vmatpush1.msra.mxu0 %v4011
  %4616 = vmatprep.subr.mxu0 0.0
  %4617 = vmatpush1.msra.mxu0 %v4016
  %4618 = vmatprep.subr.mxu0 0.0
  %4619 = vmatpush1.msra.mxu0 %v4019
  %4620 = vmatprep.subr.mxu0 0.0
  %4621 = vmatpush1.msra.mxu0 %v4024
  %4622 = vmatprep.subr.mxu0 0.0
  %4623 = vmatpush1.msra.mxu0 %v4027
  %4624 = vmatprep.subr.mxu0 0.0
  %4625 = vmatpush1.msra.mxu0 %v4032
  %4626 = vmatprep.subr.mxu0 0.0
  %4627 = vmatpush1.msra.mxu0 %v4035
  %4628 = vmatprep.subr.mxu0 0.0
  %4629 = vmatpush1.msra.mxu0 %v4040
  %4630 = vmatprep.subr.mxu0 0.0
  %4631 = vmatpush1.msra.mxu0 %v4043
  %4632 = vmatprep.subr.mxu0 0.0
  %4633 = vmatpush1.msra.mxu0 %v4048
  %4634 = vmatprep.subr.mxu0 0.0
  %4635 = vmatpush1.msra.mxu0 %v4051
  %4636 = vmatprep.subr.mxu0 0.0
  %4637 = vmatpush1.msra.mxu0 %v4056
  %4638 = vmatprep.subr.mxu0 0.0
  %4639 = vmatpush1.msra.mxu0 %v4059
  %4640 = vmatprep.subr.mxu0 0.0
  %4641 = vmatpush1.msra.mxu0 0.0
  %4642 = vmatprep.subr.mxu0 0.0
  %4643 = vmatpush1.msra.mxu0 0.0
  %4644 = vmatprep.subr.mxu0 0.0
  %4645 = vmatpush1.msra.mxu0 0.0
  %4646 = vmatprep.subr.mxu0 0.0
  %4647 = vmatpush1.msra.mxu0 0.0
  %4648 = vmatprep.subr.mxu0 0.0
  %4649 = vmatpush1.msra.mxu0 0.0
  %4650 = vmatprep.subr.mxu0 0.0
  %4651 = vmatpush1.msra.mxu0 0.0
  %4652 = vmatprep.subr.mxu0 0.0
  %4653 = vmatpush1.msra.mxu0 0.0
  %4654 = vmatprep.subr.mxu0 0.0
  %4655 = vmatpush1.msra.mxu0 0.0
  %4656 = vmatprep.subr.mxu0 0.0
  %4657 = vmatpush1.msra.mxu0 0.0
  %4658 = vmatprep.subr.mxu0 0.0
  %4659 = vmatpush1.msra.mxu0 0.0
  %4660 = vmatprep.subr.mxu0 0.0
  %4661 = vmatpush1.msra.mxu0 0.0
  %4662 = vmatprep.subr.mxu0 0.0
  %4663 = vmatpush1.msra.mxu0 0.0
  %4664 = vmatprep.subr.mxu0 0.0
  %4665 = vmatpush1.msra.mxu0 0.0
  %4666 = vmatprep.subr.mxu0 0.0
  %4667 = vmatpush1.msra.mxu0 0.0
  %4668 = vmatprep.subr.mxu0 0.0
  %4669 = vmatpush1.msra.mxu0 0.0
  %4670 = vmatprep.subr.mxu0 0.0
  %4671 = vmatpush1.msra.mxu0 0.0
  %4672 = vmatprep.mubr.f32.mxu0 0.0
  %4673 = vmatmul.mubr.f32.gmra.mrb[0].mxu0 %v4592
  %v4674 = vpop.f32.mrb[0].mxu0
  %v4675 = vadd.f32 0.0, %v4674
  %v4676 = vpop.f32.mrb[0].mxu0
  %4677 = vmatprep.mubr.f32.mxu0 0.0
  %4678 = vmatmul.mubr.f32.gmra.mrb[0].mxu0 %v4593
  %v4679 = vpop.f32.mrb[0].mxu0
  %v4680 = vadd.f32 0.0, %v4679
  %v4681 = vpop.f32.mrb[0].mxu0
  %4682 = vmatprep.mubr.f32.mxu0 0.0
  %4683 = vmatmul.mubr.f32.gmra.mrb[0].mxu0 %v4594
  %v4684 = vpop.f32.mrb[0].mxu0
  %v4685 = vadd.f32 0.0, %v4684
  %v4686 = vpop.f32.mrb[0].mxu0
  %4687 = vmatprep.mubr.f32.mxu0 0.0
  %4688 = vmatmul.mubr.f32.gmra.mrb[0].mxu0 %v4595
  %v4689 = vpop.f32.mrb[0].mxu0
  %v4690 = vadd.f32 0.0, %v4689
  %v4691 = vpop.f32.mrb[0].mxu0
  %4692 = vmatprep.mubr.f32.mxu0 0.0
  %4693 = vmatmul.mubr.f32.gmra.mrb[0].mxu0 %v4596
  %v4694 = vpop.f32.mrb[0].mxu0
  %v4695 = vadd.f32 0.0, %v4694
  %v4696 = vpop.f32.mrb[0].mxu0
  %4697 = vmatprep.mubr.f32.mxu0 0.0
  %4698 = vmatmul.mubr.f32.gmra.mrb[0].mxu0 %v4597
  %v4699 = vpop.f32.mrb[0].mxu0
  %v4700 = vadd.f32 0.0, %v4699
  %v4701 = vpop.f32.mrb[0].mxu0
  %4702 = vmatprep.mubr.f32.mxu0 0.0
  %4703 = vmatmul.mubr.f32.gmra.mrb[0].mxu0 %v4598
  %v4704 = vpop.f32.mrb[0].mxu0
  %v4705 = vadd.f32 0.0, %v4704
  %v4706 = vpop.f32.mrb[0].mxu0
  %4707 = vmatprep.mubr.f32.mxu0 0.0
  %4708 = vmatmul.mubr.f32.gmra.mrb[0].mxu0 %v4599
  %v4709 = vpop.f32.mrb[0].mxu0
  %v4710 = vadd.f32 0.0, %v4709
  %v4711 = vpop.f32.mrb[0].mxu0
  %4712 = vmatprep.mubr.f32.mxu0 0.0
  %4713 = vmatmul.mubr.f32.gmra.mrb[0].mxu0 %v4600
  %v4714 = vpop.f32.mrb[0].mxu0
  %v4715 = vadd.f32 0.0, %v4714
  %v4716 = vpop.f32.mrb[0].mxu0
  %4717 = vmatprep.mubr.f32.mxu0 0.0
  %4718 = vmatmul.mubr.f32.gmra.mrb[0].mxu0 %v4601
  %v4719 = vpop.f32.mrb[0].mxu0
  %v4720 = vadd.f32 0.0, %v4719
  %v4721 = vpop.f32.mrb[0].mxu0
  %4722 = vmatprep.mubr.f32.mxu0 0.0
  %4723 = vmatmul.mubr.f32.gmra.mrb[0].mxu0 %v4602
  %v4724 = vpop.f32.mrb[0].mxu0
  %v4725 = vadd.f32 0.0, %v4724
  %v4726 = vpop.f32.mrb[0].mxu0
  %4727 = vmatprep.mubr.f32.mxu0 0.0
  %4728 = vmatmul.mubr.f32.gmra.mrb[0].mxu0 %v4603
  %v4729 = vpop.f32.mrb[0].mxu0
  %v4730 = vadd.f32 0.0, %v4729
  %v4731 = vpop.f32.mrb[0].mxu0
  %4732 = vmatprep.mubr.f32.mxu0 0.0
  %4733 = vmatmul.mubr.f32.gmra.mrb[0].mxu0 %v4604
  %v4734 = vpop.f32.mrb[0].mxu0
  %v4735 = vadd.f32 0.0, %v4734
  %v4736 = vpop.f32.mrb[0].mxu0
  %4737 = vmatprep.mubr.f32.mxu0 0.0
  %4738 = vmatmul.mubr.f32.gmra.mrb[0].mxu0 %v4605
  %v4739 = vpop.f32.mrb[0].mxu0
  %v4740 = vadd.f32 0.0, %v4739
  %v4741 = vpop.f32.mrb[0].mxu0
  %4742 = vmatprep.mubr.f32.mxu0 0.0
  %4743 = vmatmul.mubr.f32.gmra.mrb[0].mxu0 %v4606
  %v4744 = vpop.f32.mrb[0].mxu0
  %v4745 = vadd.f32 0.0, %v4744
  %v4746 = vpop.f32.mrb[0].mxu0
  %4747 = vmatprep.mubr.f32.mxu0 0.0
  %4748 = vmatmul.mubr.f32.gmra.mrb[0].mxu0 %v4607
  %v4749 = vpop.f32.mrb[0].mxu0
  %v4750 = vadd.f32 0.0, %v4749
  %v4751 = vpop.f32.mrb[0].mxu0
  %4752 = vdwg.mxu0
  %v4769 = vunpack.c.l.b16 %v3884
  %v4770 = vunpack.c.l.b16 %v3885
  %v4771 = vunpack.c.l.b16 %v3886
  %v4772 = vunpack.c.l.b16 %v3887
  %v4773 = vunpack.c.l.b16 %v3888
  %v4774 = vunpack.c.l.b16 %v3889
  %v4775 = vunpack.c.l.b16 %v3890
  %v4776 = vunpack.c.l.b16 %v3891
  %v4777 = vunpack.c.l.b16 %v3892
  %v4778 = vunpack.c.l.b16 %v3893
  %v4779 = vunpack.c.l.b16 %v3894
  %v4780 = vunpack.c.l.b16 %v3895
  %v4781 = vunpack.c.l.b16 %v3896
  %v4782 = vunpack.c.l.b16 %v3897
  %v4783 = vunpack.c.l.b16 %v3898
  %v4784 = vunpack.c.l.b16 %v3899
  %v4785 = vpack.c.b16 %v4770, %v4769
  %v4786 = vpack.c.b16 %v4772, %v4771
  %v4787 = vpack.c.b16 %v4774, %v4773
  %v4788 = vpack.c.b16 %v4776, %v4775
  %v4789 = vpack.c.b16 %v4778, %v4777
  %v4790 = vpack.c.b16 %v4780, %v4779
  %v4791 = vpack.c.b16 %v4782, %v4781
  %v4792 = vpack.c.b16 %v4784, %v4783
  %4801 = vmatprep.subr.bf16.mxu0 0
  %4802 = vmatpush1.bf16.msra.mxu0 %v4785
  %4803 = vmatprep.subr.bf16.mxu0 0
  %4804 = vmatpush1.bf16.msra.mxu0 %v4786
  %4805 = vmatprep.subr.bf16.mxu0 0
  %4806 = vmatpush1.bf16.msra.mxu0 %v4787
  %4807 = vmatprep.subr.bf16.mxu0 0
  %4808 = vmatpush1.bf16.msra.mxu0 %v4788
  %4809 = vmatprep.subr.bf16.mxu0 0
  %4810 = vmatpush1.bf16.msra.mxu0 %v4789
  %4811 = vmatprep.subr.bf16.mxu0 0
  %4812 = vmatpush1.bf16.msra.mxu0 %v4790
  %4813 = vmatprep.subr.bf16.mxu0 0
  %4814 = vmatpush1.bf16.msra.mxu0 %v4791
  %4815 = vmatprep.subr.bf16.mxu0 0
  %4816 = vmatpush1.bf16.msra.mxu0 %v4792
  %4817 = vmatprep.subr.bf16.mxu0 0
  %4818 = vmatpush1.bf16.msra.mxu0 0
  %4819 = vmatprep.subr.bf16.mxu0 0
  %4820 = vmatpush1.bf16.msra.mxu0 0
  %4821 = vmatprep.subr.bf16.mxu0 0
  %4822 = vmatpush1.bf16.msra.mxu0 0
  %4823 = vmatprep.subr.bf16.mxu0 0
  %4824 = vmatpush1.bf16.msra.mxu0 0
  %4825 = vmatprep.subr.bf16.mxu0 0
  %4826 = vmatpush1.bf16.msra.mxu0 0
  %4827 = vmatprep.subr.bf16.mxu0 0
  %4828 = vmatpush1.bf16.msra.mxu0 0
  %4829 = vmatprep.subr.bf16.mxu0 0
  %4830 = vmatpush1.bf16.msra.mxu0 0
  %4831 = vmatprep.subr.bf16.mxu0 0
  %4832 = vmatpush1.bf16.msra.mxu0 0
  %4833 = vmatprep.mubr.bf16.mxu0 0
  %4834 = vmatmul.mubr.bf16.gmra.mrb[0].mxu0 %v3715
  %v4835 = vpop.f32.mrb[0].mxu0
  %v4836 = vadd.f32 %v4675, %v4835
  %v4837 = vpop.f32.mrb[0].mxu0
  %v4838 = vpop.f32.mrb[0].mxu0
  %v4839 = vadd.f32 %v4680, %v4838
  %v4840 = vpop.f32.mrb[0].mxu0
  %4841 = vmatprep.mubr.bf16.mxu0 0
  %4842 = vmatmul.mubr.bf16.gmra.mrb[0].mxu0 %v3716
  %v4843 = vpop.f32.mrb[0].mxu0
  %v4844 = vadd.f32 %v4685, %v4843
  %v4845 = vpop.f32.mrb[0].mxu0
  %v4846 = vpop.f32.mrb[0].mxu0
  %v4847 = vadd.f32 %v4690, %v4846
  %v4848 = vpop.f32.mrb[0].mxu0
  %4849 = vmatprep.mubr.bf16.mxu0 0
  %4850 = vmatmul.mubr.bf16.gmra.mrb[0].mxu0 %v3717
  %v4851 = vpop.f32.mrb[0].mxu0
  %v4852 = vadd.f32 %v4695, %v4851
  %v4853 = vpop.f32.mrb[0].mxu0
  %v4854 = vpop.f32.mrb[0].mxu0
  %v4855 = vadd.f32 %v4700, %v4854
  %v4856 = vpop.f32.mrb[0].mxu0
  %4857 = vmatprep.mubr.bf16.mxu0 0
  %4858 = vmatmul.mubr.bf16.gmra.mrb[0].mxu0 %v3718
  %v4859 = vpop.f32.mrb[0].mxu0
  %v4860 = vadd.f32 %v4705, %v4859
  %v4861 = vpop.f32.mrb[0].mxu0
  %v4862 = vpop.f32.mrb[0].mxu0
  %v4863 = vadd.f32 %v4710, %v4862
  %v4864 = vpop.f32.mrb[0].mxu0
  %4865 = vmatprep.mubr.bf16.mxu0 0
  %4866 = vmatmul.mubr.bf16.gmra.mrb[0].mxu0 %v3719
  %v4867 = vpop.f32.mrb[0].mxu0
  %v4868 = vadd.f32 %v4715, %v4867
  %v4869 = vpop.f32.mrb[0].mxu0
  %v4870 = vpop.f32.mrb[0].mxu0
  %v4871 = vadd.f32 %v4720, %v4870
  %v4872 = vpop.f32.mrb[0].mxu0
  %4873 = vmatprep.mubr.bf16.mxu0 0
  %4874 = vmatmul.mubr.bf16.gmra.mrb[0].mxu0 %v3720
  %v4875 = vpop.f32.mrb[0].mxu0
  %v4876 = vadd.f32 %v4725, %v4875
  %v4877 = vpop.f32.mrb[0].mxu0
  %v4878 = vpop.f32.mrb[0].mxu0
  %v4879 = vadd.f32 %v4730, %v4878
  %v4880 = vpop.f32.mrb[0].mxu0
  %4881 = vmatprep.mubr.bf16.mxu0 0
  %4882 = vmatmul.mubr.bf16.gmra.mrb[0].mxu0 %v3721
  %v4883 = vpop.f32.mrb[0].mxu0
  %v4884 = vadd.f32 %v4735, %v4883
  %v4885 = vpop.f32.mrb[0].mxu0
  %v4886 = vpop.f32.mrb[0].mxu0
  %v4887 = vadd.f32 %v4740, %v4886
  %v4888 = vpop.f32.mrb[0].mxu0
  %4889 = vmatprep.mubr.bf16.mxu0 0
  %4890 = vmatmul.mubr.bf16.gmra.mrb[0].mxu0 %v3722
  %v4891 = vpop.f32.mrb[0].mxu0
  %v4892 = vadd.f32 %v4745, %v4891
  %v4893 = vpop.f32.mrb[0].mxu0
  %v4894 = vpop.f32.mrb[0].mxu0
  %v4895 = vadd.f32 %v4750, %v4894
  %v4896 = vpop.f32.mrb[0].mxu0
  %4897 = vdwg.mxu0
  %v4898 = vld [vmem:[%s8] sm:$0xf]
  %v4899 = vld [vmem:[%s8 + $0x4] sm:$0xf]
  %v4900 = vld [vmem:[%s8 + $0x8] sm:$0xf]
  %v4901 = vld [vmem:[%s8 + $0xc] sm:$0xf]
  %v4902 = vld [vmem:[%s8 + $0x10] sm:$0xf]
  %v4903 = vld [vmem:[%s8 + $0x14] sm:$0xf]
  %v4904 = vld [vmem:[%s8 + $0x18] sm:$0xf]
  %v4905 = vld [vmem:[%s8 + $0x1c] sm:$0xf]
  %v4906 = vld [vmem:[%s8 + $0x20] sm:$0xf]
  %v4907 = vld [vmem:[%s8 + $0x24] sm:$0xf]
  %v4908 = vld [vmem:[%s8 + $0x28] sm:$0xf]
  %v4909 = vld [vmem:[%s8 + $0x2c] sm:$0xf]
  %v4910 = vld [vmem:[%s8 + $0x30] sm:$0xf]
  %v4911 = vld [vmem:[%s8 + $0x34] sm:$0xf]
  %v4912 = vld [vmem:[%s8 + $0x38] sm:$0xf]
  %v4913 = vld [vmem:[%s8 + $0x3c] sm:$0xf]
  %s4914 = scalar_lea.vmem %s8, 64
  %v4915 = vld [vmem:[%s4914] sm:$0xf]
  %v4916 = vld [vmem:[%s4914 + $0x4] sm:$0xf]
  %v4917 = vld [vmem:[%s4914 + $0x8] sm:$0xf]
  %v4918 = vld [vmem:[%s4914 + $0xc] sm:$0xf]
  %v4919 = vld [vmem:[%s4914 + $0x10] sm:$0xf]
  %v4920 = vld [vmem:[%s4914 + $0x14] sm:$0xf]
  %v4921 = vld [vmem:[%s4914 + $0x18] sm:$0xf]
  %v4922 = vld [vmem:[%s4914 + $0x1c] sm:$0xf]
  %v4923 = vld [vmem:[%s4914 + $0x20] sm:$0xf]
  %v4924 = vld [vmem:[%s4914 + $0x24] sm:$0xf]
  %v4925 = vld [vmem:[%s4914 + $0x28] sm:$0xf]
  %v4926 = vld [vmem:[%s4914 + $0x2c] sm:$0xf]
  %v4927 = vld [vmem:[%s4914 + $0x30] sm:$0xf]
  %v4928 = vld [vmem:[%s4914 + $0x34] sm:$0xf]
  %v4929 = vld [vmem:[%s4914 + $0x38] sm:$0xf]
  %v4930 = vld [vmem:[%s4914 + $0x3c] sm:$0xf]
  %v4947 = vunpack.c.l.b16 %v4915
  %v4948 = vunpack.c.l.b16 %v4916
  %v4949 = vunpack.c.l.b16 %v4917
  %v4950 = vunpack.c.l.b16 %v4918
  %v4951 = vunpack.c.l.b16 %v4919
  %v4952 = vunpack.c.l.b16 %v4920
  %v4953 = vunpack.c.l.b16 %v4921
  %v4954 = vunpack.c.l.b16 %v4922
  %v4955 = vunpack.c.l.b16 %v4923
  %v4956 = vunpack.c.l.b16 %v4924
  %v4957 = vunpack.c.l.b16 %v4925
  %v4958 = vunpack.c.l.b16 %v4926
  %v4959 = vunpack.c.l.b16 %v4927
  %v4960 = vunpack.c.l.b16 %v4928
  %v4961 = vunpack.c.l.b16 %v4929
  %v4962 = vunpack.c.l.b16 %v4930
  %v4963 = vpack.c.b16 %v4948, %v4947
  %v4964 = vpack.c.b16 %v4950, %v4949
  %v4965 = vpack.c.b16 %v4952, %v4951
  %v4966 = vpack.c.b16 %v4954, %v4953
  %v4967 = vpack.c.b16 %v4956, %v4955
  %v4968 = vpack.c.b16 %v4958, %v4957
  %v4969 = vpack.c.b16 %v4960, %v4959
  %v4970 = vpack.c.b16 %v4962, %v4961
  %4979 = vmatprep.subr.bf16.mxu0 0
  %4980 = vmatpush1.bf16.msra.mxu0 %v4963
  %4981 = vmatprep.subr.bf16.mxu0 0
  %4982 = vmatpush1.bf16.msra.mxu0 %v4964
  %4983 = vmatprep.subr.bf16.mxu0 0
  %4984 = vmatpush1.bf16.msra.mxu0 %v4965
  %4985 = vmatprep.subr.bf16.mxu0 0
  %4986 = vmatpush1.bf16.msra.mxu0 %v4966
  %4987 = vmatprep.subr.bf16.mxu0 0
  %4988 = vmatpush1.bf16.msra.mxu0 %v4967
  %4989 = vmatprep.subr.bf16.mxu0 0
  %4990 = vmatpush1.bf16.msra.mxu0 %v4968
  %4991 = vmatprep.subr.bf16.mxu0 0
  %4992 = vmatpush1.bf16.msra.mxu0 %v4969
  %4993 = vmatprep.subr.bf16.mxu0 0
  %4994 = vmatpush1.bf16.msra.mxu0 %v4970
  %4995 = vmatprep.subr.bf16.mxu0 0
  %4996 = vmatpush1.bf16.msra.mxu0 0
  %4997 = vmatprep.subr.bf16.mxu0 0
  %4998 = vmatpush1.bf16.msra.mxu0 0
  %4999 = vmatprep.subr.bf16.mxu0 0
  %5000 = vmatpush1.bf16.msra.mxu0 0
  %5001 = vmatprep.subr.bf16.mxu0 0
  %5002 = vmatpush1.bf16.msra.mxu0 0
  %5003 = vmatprep.subr.bf16.mxu0 0
  %5004 = vmatpush1.bf16.msra.mxu0 0
  %5005 = vmatprep.subr.bf16.mxu0 0
  %5006 = vmatpush1.bf16.msra.mxu0 0
  %5007 = vmatprep.subr.bf16.mxu0 0
  %5008 = vmatpush1.bf16.msra.mxu0 0
  %5009 = vmatprep.subr.bf16.mxu0 0
  %5010 = vmatpush1.bf16.msra.mxu0 0
  %5011 = vmatprep.mubr.bf16.mxu0 0
  %5012 = vmatmul.mubr.bf16.gmra.mrb[0].mxu0 %v3715
  %v5013 = vpop.f32.mrb[0].mxu0
  %v5014 = vadd.f32 0.0, %v5013
  %v5015 = vpop.f32.mrb[0].mxu0
  %v5016 = vpop.f32.mrb[0].mxu0
  %v5017 = vadd.f32 0.0, %v5016
  %v5018 = vpop.f32.mrb[0].mxu0
  %5019 = vmatprep.mubr.bf16.mxu0 0
  %5020 = vmatmul.mubr.bf16.gmra.mrb[0].mxu0 %v3716
  %v5021 = vpop.f32.mrb[0].mxu0
  %v5022 = vadd.f32 0.0, %v5021
  %v5023 = vpop.f32.mrb[0].mxu0
  %v5024 = vpop.f32.mrb[0].mxu0
  %v5025 = vadd.f32 0.0, %v5024
  %v5026 = vpop.f32.mrb[0].mxu0
  %5027 = vmatprep.mubr.bf16.mxu0 0
  %5028 = vmatmul.mubr.bf16.gmra.mrb[0].mxu0 %v3717
  %v5029 = vpop.f32.mrb[0].mxu0
  %v5030 = vadd.f32 0.0, %v5029
  %v5031 = vpop.f32.mrb[0].mxu0
  %v5032 = vpop.f32.mrb[0].mxu0
  %v5033 = vadd.f32 0.0, %v5032
  %v5034 = vpop.f32.mrb[0].mxu0
  %5035 = vmatprep.mubr.bf16.mxu0 0
  %5036 = vmatmul.mubr.bf16.gmra.mrb[0].mxu0 %v3718
  %v5037 = vpop.f32.mrb[0].mxu0
  %v5038 = vadd.f32 0.0, %v5037
  %v5039 = vpop.f32.mrb[0].mxu0
  %v5040 = vpop.f32.mrb[0].mxu0
  %v5041 = vadd.f32 0.0, %v5040
  %v5042 = vpop.f32.mrb[0].mxu0
  %5043 = vmatprep.mubr.bf16.mxu0 0
  %5044 = vmatmul.mubr.bf16.gmra.mrb[0].mxu0 %v3719
  %v5045 = vpop.f32.mrb[0].mxu0
  %v5046 = vadd.f32 0.0, %v5045
  %v5047 = vpop.f32.mrb[0].mxu0
  %v5048 = vpop.f32.mrb[0].mxu0
  %v5049 = vadd.f32 0.0, %v5048
  %v5050 = vpop.f32.mrb[0].mxu0
  %5051 = vmatprep.mubr.bf16.mxu0 0
  %5052 = vmatmul.mubr.bf16.gmra.mrb[0].mxu0 %v3720
  %v5053 = vpop.f32.mrb[0].mxu0
  %v5054 = vadd.f32 0.0, %v5053
  %v5055 = vpop.f32.mrb[0].mxu0
  %v5056 = vpop.f32.mrb[0].mxu0
  %v5057 = vadd.f32 0.0, %v5056
  %v5058 = vpop.f32.mrb[0].mxu0
  %5059 = vmatprep.mubr.bf16.mxu0 0
  %5060 = vmatmul.mubr.bf16.gmra.mrb[0].mxu0 %v3721
  %v5061 = vpop.f32.mrb[0].mxu0
  %v5062 = vadd.f32 0.0, %v5061
  %v5063 = vpop.f32.mrb[0].mxu0
  %v5064 = vpop.f32.mrb[0].mxu0
  %v5065 = vadd.f32 0.0, %v5064
  %v5066 = vpop.f32.mrb[0].mxu0
  %5067 = vmatprep.mubr.bf16.mxu0 0
  %5068 = vmatmul.mubr.bf16.gmra.mrb[0].mxu0 %v3722
  %v5069 = vpop.f32.mrb[0].mxu0
  %v5070 = vadd.f32 0.0, %v5069
  %v5071 = vpop.f32.mrb[0].mxu0
  %v5072 = vpop.f32.mrb[0].mxu0
  %v5073 = vadd.f32 0.0, %v5072
  %v5074 = vpop.f32.mrb[0].mxu0
  %5075 = vdwg.mxu0
  %5076 = vmatprep.subr.mxu0 0.0
  %5077 = vmatpush1.xpose.msra.mxu0 %v3806
  %5078 = vmatprep.subr.mxu0 0.0
  %5079 = vmatpush1.xpose.msra.mxu0 %v3811
  %5080 = vmatprep.subr.mxu0 0.0
  %5081 = vmatpush1.xpose.msra.mxu0 %v3816
  %5082 = vmatprep.subr.mxu0 0.0
  %5083 = vmatpush1.xpose.msra.mxu0 %v3821
  %5084 = vmatprep.subr.mxu0 0.0
  %5085 = vmatpush1.xpose.msra.mxu0 %v3826
  %5086 = vmatprep.subr.mxu0 0.0
  %5087 = vmatpush1.xpose.msra.mxu0 %v3831
  %5088 = vmatprep.subr.mxu0 0.0
  %5089 = vmatpush1.xpose.msra.mxu0 %v3836
  %5090 = vmatprep.subr.mxu0 0.0
  %5091 = vmatpush1.xpose.msra.mxu0 %v3841
  %5092 = vmatprep.subr.mxu0 0.0
  %5093 = vmatpush1.xpose.msra.mxu0 %v3846
  %5094 = vmatprep.subr.mxu0 0.0
  %5095 = vmatpush1.xpose.msra.mxu0 %v3851
  %5096 = vmatprep.subr.mxu0 0.0
  %5097 = vmatpush1.xpose.msra.mxu0 %v3856
  %5098 = vmatprep.subr.mxu0 0.0
  %5099 = vmatpush1.xpose.msra.mxu0 %v3861
  %5100 = vmatprep.subr.mxu0 0.0
  %5101 = vmatpush1.xpose.msra.mxu0 %v3866
  %5102 = vmatprep.subr.mxu0 0.0
  %5103 = vmatpush1.xpose.msra.mxu0 %v3871
  %5104 = vmatprep.subr.mxu0 0.0
  %5105 = vmatpush1.xpose.msra.mxu0 %v3876
  %5106 = vmatprep.subr.mxu0 0.0
  %5107 = vmatpush1.xpose.msra.mxu0 %v3881
  %5108 = vmatprep.subr.mxu0 0.0
  %5109 = vmatpush1.xpose.msra.mxu0 0.0
  %5110 = vmatprep.subr.mxu0 0.0
  %5111 = vmatpush1.xpose.msra.mxu0 0.0
  %5112 = vmatprep.subr.mxu0 0.0
  %5113 = vmatpush1.xpose.msra.mxu0 0.0
  %5114 = vmatprep.subr.mxu0 0.0
  %5115 = vmatpush1.xpose.msra.mxu0 0.0
  %5116 = vmatprep.subr.mxu0 0.0
  %5117 = vmatpush1.xpose.msra.mxu0 0.0
  %5118 = vmatprep.subr.mxu0 0.0
  %5119 = vmatpush1.xpose.msra.mxu0 0.0
  %5120 = vmatprep.subr.mxu0 0.0
  %5121 = vmatpush1.xpose.msra.mxu0 0.0
  %5122 = vmatprep.subr.mxu0 0.0
  %5123 = vmatpush1.xpose.msra.mxu0 0.0
  %5124 = vmatprep.subr.mxu0 0.0
  %5125 = vmatpush1.xpose.msra.mxu0 0.0
  %5126 = vmatprep.subr.mxu0 0.0
  %5127 = vmatpush1.xpose.msra.mxu0 0.0
  %5128 = vmatprep.subr.mxu0 0.0
  %5129 = vmatpush1.xpose.msra.mxu0 0.0
  %5130 = vmatprep.subr.mxu0 0.0
  %5131 = vmatpush1.xpose.msra.mxu0 0.0
  %5132 = vmatprep.subr.mxu0 0.0
  %5133 = vmatpush1.xpose.msra.mxu0 0.0
  %5134 = vmatprep.subr.mxu0 0.0
  %5135 = vmatpush1.xpose.msra.mxu0 0.0
  %5136 = vmatprep.subr.mxu0 0.0
  %5137 = vmatpush1.xpose.msra.mxu0 0.0
  %5138 = vmatprep.subr.mxu0 0.0
  %5139 = vmatpush1.xpose.msra.mxu0 0.0
  %5140 = vmatprep.mubr.f32.mxu0 0.0
  %5141 = vmatmul.mubr.f32.gmra.mrb[0].mxu0 %v1034
  %v5142 = vpop.f32.mrb[0].mxu0
  %v5143 = vadd.f32 0.0, %v5142
  %v5144 = vpop.f32.mrb[0].mxu0
  %5145 = vmatprep.mubr.f32.mxu0 0.0
  %5146 = vmatmul.mubr.f32.gmra.mrb[0].mxu0 %v1034
  %v5147 = vpop.f32.mrb[0].mxu0
  %v5148 = vadd.f32 0.0, %v5147
  %v5149 = vpop.f32.mrb[0].mxu0
  %5150 = vmatprep.mubr.f32.mxu0 0.0
  %5151 = vmatmul.mubr.f32.gmra.mrb[0].mxu0 %v1034
  %v5152 = vpop.f32.mrb[0].mxu0
  %v5153 = vadd.f32 0.0, %v5152
  %v5154 = vpop.f32.mrb[0].mxu0
  %5155 = vmatprep.mubr.f32.mxu0 0.0
  %5156 = vmatmul.mubr.f32.gmra.mrb[0].mxu0 %v1034
  %v5157 = vpop.f32.mrb[0].mxu0
  %v5158 = vadd.f32 0.0, %v5157
  %v5159 = vpop.f32.mrb[0].mxu0
  %5160 = vmatprep.mubr.f32.mxu0 0.0
  %5161 = vmatmul.mubr.f32.gmra.mrb[0].mxu0 %v1034
  %v5162 = vpop.f32.mrb[0].mxu0
  %v5163 = vadd.f32 0.0, %v5162
  %v5164 = vpop.f32.mrb[0].mxu0
  %5165 = vmatprep.mubr.f32.mxu0 0.0
  %5166 = vmatmul.mubr.f32.gmra.mrb[0].mxu0 %v1034
  %v5167 = vpop.f32.mrb[0].mxu0
  %v5168 = vadd.f32 0.0, %v5167
  %v5169 = vpop.f32.mrb[0].mxu0
  %5170 = vmatprep.mubr.f32.mxu0 0.0
  %5171 = vmatmul.mubr.f32.gmra.mrb[0].mxu0 %v1034
  %v5172 = vpop.f32.mrb[0].mxu0
  %v5173 = vadd.f32 0.0, %v5172
  %v5174 = vpop.f32.mrb[0].mxu0
  %5175 = vmatprep.mubr.f32.mxu0 0.0
  %5176 = vmatmul.mubr.f32.gmra.mrb[0].mxu0 %v1034
  %v5177 = vpop.f32.mrb[0].mxu0
  %v5178 = vadd.f32 0.0, %v5177
  %v5179 = vpop.f32.mrb[0].mxu0
  %5180 = vmatprep.mubr.f32.mxu0 0.0
  %5181 = vmatmul.mubr.f32.gmra.mrb[0].mxu0 %v1034
  %v5182 = vpop.f32.mrb[0].mxu0
  %v5183 = vadd.f32 0.0, %v5182
  %v5184 = vpop.f32.mrb[0].mxu0
  %5185 = vmatprep.mubr.f32.mxu0 0.0
  %5186 = vmatmul.mubr.f32.gmra.mrb[0].mxu0 %v1034
  %v5187 = vpop.f32.mrb[0].mxu0
  %v5188 = vadd.f32 0.0, %v5187
  %v5189 = vpop.f32.mrb[0].mxu0
  %5190 = vmatprep.mubr.f32.mxu0 0.0
  %5191 = vmatmul.mubr.f32.gmra.mrb[0].mxu0 %v1034
  %v5192 = vpop.f32.mrb[0].mxu0
  %v5193 = vadd.f32 0.0, %v5192
  %v5194 = vpop.f32.mrb[0].mxu0
  %5195 = vmatprep.mubr.f32.mxu0 0.0
  %5196 = vmatmul.mubr.f32.gmra.mrb[0].mxu0 %v1034
  %v5197 = vpop.f32.mrb[0].mxu0
  %v5198 = vadd.f32 0.0, %v5197
  %v5199 = vpop.f32.mrb[0].mxu0
  %5200 = vmatprep.mubr.f32.mxu0 0.0
  %5201 = vmatmul.mubr.f32.gmra.mrb[0].mxu0 %v1034
  %v5202 = vpop.f32.mrb[0].mxu0
  %v5203 = vadd.f32 0.0, %v5202
  %v5204 = vpop.f32.mrb[0].mxu0
  %5205 = vmatprep.mubr.f32.mxu0 0.0
  %5206 = vmatmul.mubr.f32.gmra.mrb[0].mxu0 %v1034
  %v5207 = vpop.f32.mrb[0].mxu0
  %v5208 = vadd.f32 0.0, %v5207
  %v5209 = vpop.f32.mrb[0].mxu0
  %5210 = vmatprep.mubr.f32.mxu0 0.0
  %5211 = vmatmul.mubr.f32.gmra.mrb[0].mxu0 %v1034
  %v5212 = vpop.f32.mrb[0].mxu0
  %v5213 = vadd.f32 0.0, %v5212
  %v5214 = vpop.f32.mrb[0].mxu0
  %5215 = vmatprep.mubr.f32.mxu0 0.0
  %5216 = vmatmul.mubr.f32.gmra.mrb[0].mxu0 %v1034
  %v5217 = vpop.f32.mrb[0].mxu0
  %v5218 = vadd.f32 0.0, %v5217
  %v5219 = vpop.f32.mrb[0].mxu0
  %5220 = vdwg.mxu0
  %5221 = vmatprep.subr.mxu0 0.0
  %5222 = vmatpush1.msra.mxu0 %v1016
  %5223 = vmatprep.subr.mxu0 0.0
  %5224 = vmatpush1.msra.mxu0 %v1017
  %5225 = vmatprep.subr.mxu0 0.0
  %5226 = vmatpush1.msra.mxu0 %v1018
  %5227 = vmatprep.subr.mxu0 0.0
  %5228 = vmatpush1.msra.mxu0 %v1019
  %5229 = vmatprep.subr.mxu0 0.0
  %5230 = vmatpush1.msra.mxu0 %v1020
  %5231 = vmatprep.subr.mxu0 0.0
  %5232 = vmatpush1.msra.mxu0 %v1021
  %5233 = vmatprep.subr.mxu0 0.0
  %5234 = vmatpush1.msra.mxu0 %v1022
  %5235 = vmatprep.subr.mxu0 0.0
  %5236 = vmatpush1.msra.mxu0 %v1023
  %5237 = vmatprep.subr.mxu0 0.0
  %5238 = vmatpush1.msra.mxu0 %v1024
  %5239 = vmatprep.subr.mxu0 0.0
  %5240 = vmatpush1.msra.mxu0 %v1025
  %5241 = vmatprep.subr.mxu0 0.0
  %5242 = vmatpush1.msra.mxu0 %v1026
  %5243 = vmatprep.subr.mxu0 0.0
  %5244 = vmatpush1.msra.mxu0 %v1027
  %5245 = vmatprep.subr.mxu0 0.0
  %5246 = vmatpush1.msra.mxu0 %v1028
  %5247 = vmatprep.subr.mxu0 0.0
  %5248 = vmatpush1.msra.mxu0 %v1029
  %5249 = vmatprep.subr.mxu0 0.0
  %5250 = vmatpush1.msra.mxu0 %v1030
  %5251 = vmatprep.subr.mxu0 0.0
  %5252 = vmatpush1.msra.mxu0 %v1031
  %5253 = vmatprep.subr.mxu0 0.0
  %5254 = vmatpush1.msra.mxu0 0.0
  %5255 = vmatprep.subr.mxu0 0.0
  %5256 = vmatpush1.msra.mxu0 0.0
  %5257 = vmatprep.subr.mxu0 0.0
  %5258 = vmatpush1.msra.mxu0 0.0
  %5259 = vmatprep.subr.mxu0 0.0
  %5260 = vmatpush1.msra.mxu0 0.0
  %5261 = vmatprep.subr.mxu0 0.0
  %5262 = vmatpush1.msra.mxu0 0.0
  %5263 = vmatprep.subr.mxu0 0.0
  %5264 = vmatpush1.msra.mxu0 0.0
  %5265 = vmatprep.subr.mxu0 0.0
  %5266 = vmatpush1.msra.mxu0 0.0
  %5267 = vmatprep.subr.mxu0 0.0
  %5268 = vmatpush1.msra.mxu0 0.0
  %5269 = vmatprep.subr.mxu0 0.0
  %5270 = vmatpush1.msra.mxu0 0.0
  %5271 = vmatprep.subr.mxu0 0.0
  %5272 = vmatpush1.msra.mxu0 0.0
  %5273 = vmatprep.subr.mxu0 0.0
  %5274 = vmatpush1.msra.mxu0 0.0
  %5275 = vmatprep.subr.mxu0 0.0
  %5276 = vmatpush1.msra.mxu0 0.0
  %5277 = vmatprep.subr.mxu0 0.0
  %5278 = vmatpush1.msra.mxu0 0.0
  %5279 = vmatprep.subr.mxu0 0.0
  %5280 = vmatpush1.msra.mxu0 0.0
  %5281 = vmatprep.subr.mxu0 0.0
  %5282 = vmatpush1.msra.mxu0 0.0
  %5283 = vmatprep.subr.mxu0 0.0
  %5284 = vmatpush1.msra.mxu0 0.0
  %5285 = vmatprep.mubr.f32.mxu0 0.0
  %5286 = vmatmul.mubr.f32.gmra.mrb[0].mxu0 %v3806
  %v5287 = vpop.f32.mrb[0].mxu0
  %v5288 = vadd.f32 %v5143, %v5287
  %v5289 = vpop.f32.mrb[0].mxu0
  %5290 = vmatprep.mubr.f32.mxu0 0.0
  %5291 = vmatmul.mubr.f32.gmra.mrb[0].mxu0 %v3811
  %v5292 = vpop.f32.mrb[0].mxu0
  %v5293 = vadd.f32 %v5148, %v5292
  %v5294 = vpop.f32.mrb[0].mxu0
  %5295 = vmatprep.mubr.f32.mxu0 0.0
  %5296 = vmatmul.mubr.f32.gmra.mrb[0].mxu0 %v3816
  %v5297 = vpop.f32.mrb[0].mxu0
  %v5298 = vadd.f32 %v5153, %v5297
  %v5299 = vpop.f32.mrb[0].mxu0
  %5300 = vmatprep.mubr.f32.mxu0 0.0
  %5301 = vmatmul.mubr.f32.gmra.mrb[0].mxu0 %v3821
  %v5302 = vpop.f32.mrb[0].mxu0
  %v5303 = vadd.f32 %v5158, %v5302
  %v5304 = vpop.f32.mrb[0].mxu0
  %5305 = vmatprep.mubr.f32.mxu0 0.0
  %5306 = vmatmul.mubr.f32.gmra.mrb[0].mxu0 %v3826
  %v5307 = vpop.f32.mrb[0].mxu0
  %v5308 = vadd.f32 %v5163, %v5307
  %v5309 = vpop.f32.mrb[0].mxu0
  %5310 = vmatprep.mubr.f32.mxu0 0.0
  %5311 = vmatmul.mubr.f32.gmra.mrb[0].mxu0 %v3831
  %v5312 = vpop.f32.mrb[0].mxu0
  %v5313 = vadd.f32 %v5168, %v5312
  %v5314 = vpop.f32.mrb[0].mxu0
  %5315 = vmatprep.mubr.f32.mxu0 0.0
  %5316 = vmatmul.mubr.f32.gmra.mrb[0].mxu0 %v3836
  %v5317 = vpop.f32.mrb[0].mxu0
  %v5318 = vadd.f32 %v5173, %v5317
  %v5319 = vpop.f32.mrb[0].mxu0
  %5320 = vmatprep.mubr.f32.mxu0 0.0
  %5321 = vmatmul.mubr.f32.gmra.mrb[0].mxu0 %v3841
  %v5322 = vpop.f32.mrb[0].mxu0
  %v5323 = vadd.f32 %v5178, %v5322
  %v5324 = vpop.f32.mrb[0].mxu0
  %5325 = vmatprep.mubr.f32.mxu0 0.0
  %5326 = vmatmul.mubr.f32.gmra.mrb[0].mxu0 %v3846
  %v5327 = vpop.f32.mrb[0].mxu0
  %v5328 = vadd.f32 %v5183, %v5327
  %v5329 = vpop.f32.mrb[0].mxu0
  %5330 = vmatprep.mubr.f32.mxu0 0.0
  %5331 = vmatmul.mubr.f32.gmra.mrb[0].mxu0 %v3851
  %v5332 = vpop.f32.mrb[0].mxu0
  %v5333 = vadd.f32 %v5188, %v5332
  %v5334 = vpop.f32.mrb[0].mxu0
  %5335 = vmatprep.mubr.f32.mxu0 0.0
  %5336 = vmatmul.mubr.f32.gmra.mrb[0].mxu0 %v3856
  %v5337 = vpop.f32.mrb[0].mxu0
  %v5338 = vadd.f32 %v5193, %v5337
  %v5339 = vpop.f32.mrb[0].mxu0
  %5340 = vmatprep.mubr.f32.mxu0 0.0
  %5341 = vmatmul.mubr.f32.gmra.mrb[0].mxu0 %v3861
  %v5342 = vpop.f32.mrb[0].mxu0
  %v5343 = vadd.f32 %v5198, %v5342
  %v5344 = vpop.f32.mrb[0].mxu0
  %5345 = vmatprep.mubr.f32.mxu0 0.0
  %5346 = vmatmul.mubr.f32.gmra.mrb[0].mxu0 %v3866
  %v5347 = vpop.f32.mrb[0].mxu0
  %v5348 = vadd.f32 %v5203, %v5347
  %v5349 = vpop.f32.mrb[0].mxu0
  %5350 = vmatprep.mubr.f32.mxu0 0.0
  %5351 = vmatmul.mubr.f32.gmra.mrb[0].mxu0 %v3871
  %v5352 = vpop.f32.mrb[0].mxu0
  %v5353 = vadd.f32 %v5208, %v5352
  %v5354 = vpop.f32.mrb[0].mxu0
  %5355 = vmatprep.mubr.f32.mxu0 0.0
  %5356 = vmatmul.mubr.f32.gmra.mrb[0].mxu0 %v3876
  %v5357 = vpop.f32.mrb[0].mxu0
  %v5358 = vadd.f32 %v5213, %v5357
  %v5359 = vpop.f32.mrb[0].mxu0
  %5360 = vmatprep.mubr.f32.mxu0 0.0
  %5361 = vmatmul.mubr.f32.gmra.mrb[0].mxu0 %v3881
  %v5362 = vpop.f32.mrb[0].mxu0
  %v5363 = vadd.f32 %v5218, %v5362
  %v5364 = vpop.f32.mrb[0].mxu0
  %5365 = vdwg.mxu0
  %vm5366 = vcmp.gt.f32.partialorder %v5288, 0.0
  %vm5367 = vcmp.gt.f32.partialorder %v5293, 0.0
  %vm5368 = vcmp.gt.f32.partialorder %v5298, 0.0
  %vm5369 = vcmp.gt.f32.partialorder %v5303, 0.0
  %vm5370 = vcmp.gt.f32.partialorder %v5308, 0.0
  %vm5371 = vcmp.gt.f32.partialorder %v5313, 0.0
  %vm5372 = vcmp.gt.f32.partialorder %v5318, 0.0
  %vm5373 = vcmp.gt.f32.partialorder %v5323, 0.0
  %vm5374 = vcmp.gt.f32.partialorder %v5328, 0.0
  %vm5375 = vcmp.gt.f32.partialorder %v5333, 0.0
  %vm5376 = vcmp.gt.f32.partialorder %v5338, 0.0
  %vm5377 = vcmp.gt.f32.partialorder %v5343, 0.0
  %vm5378 = vcmp.gt.f32.partialorder %v5348, 0.0
  %vm5379 = vcmp.gt.f32.partialorder %v5353, 0.0
  %vm5380 = vcmp.gt.f32.partialorder %v5358, 0.0
  %vm5381 = vcmp.gt.f32.partialorder %v5363, 0.0
  %v5382 = vmul.f32 %v5288, 0.2
  %v5383 = vmul.f32 %v5293, 0.2
  %v5384 = vmul.f32 %v5298, 0.2
  %v5385 = vmul.f32 %v5303, 0.2
  %v5386 = vmul.f32 %v5308, 0.2
  %v5387 = vmul.f32 %v5313, 0.2
  %v5388 = vmul.f32 %v5318, 0.2
  %v5389 = vmul.f32 %v5323, 0.2
  %v5390 = vmul.f32 %v5328, 0.2
  %v5391 = vmul.f32 %v5333, 0.2
  %v5392 = vmul.f32 %v5338, 0.2
  %v5393 = vmul.f32 %v5343, 0.2
  %v5394 = vmul.f32 %v5348, 0.2
  %v5395 = vmul.f32 %v5353, 0.2
  %v5396 = vmul.f32 %v5358, 0.2
  %v5397 = vmul.f32 %v5363, 0.2
  %v5398 = vsel %vm5366, %v5288, %v5382
  %v5399 = vsel %vm5367, %v5293, %v5383
  %v5400 = vsel %vm5368, %v5298, %v5384
  %v5401 = vsel %vm5369, %v5303, %v5385
  %v5402 = vsel %vm5370, %v5308, %v5386
  %v5403 = vsel %vm5371, %v5313, %v5387
  %v5404 = vsel %vm5372, %v5318, %v5388
  %v5405 = vsel %vm5373, %v5323, %v5389
  %v5406 = vsel %vm5374, %v5328, %v5390
  %v5407 = vsel %vm5375, %v5333, %v5391
  %v5408 = vsel %vm5376, %v5338, %v5392
  %v5409 = vsel %vm5377, %v5343, %v5393
  %v5410 = vsel %vm5378, %v5348, %v5394
  %v5411 = vsel %vm5379, %v5353, %v5395
  %v5412 = vsel %vm5380, %v5358, %v5396
  %v5413 = vsel %vm5381, %v5363, %v5397
  %v5414 = vsel %vm2662, %v5398, -1e+30
  %v5415 = vsel %vm2663, %v5399, -1e+30
  %v5416 = vsel %vm2664, %v5400, -1e+30
  %v5417 = vsel %vm2665, %v5401, -1e+30
  %v5418 = vsel %vm2666, %v5402, -1e+30
  %v5419 = vsel %vm2667, %v5403, -1e+30
  %v5420 = vsel %vm2668, %v5404, -1e+30
  %v5421 = vsel %vm2669, %v5405, -1e+30
  %v5422 = vsel %vm2670, %v5406, -1e+30
  %v5423 = vsel %vm2671, %v5407, -1e+30
  %v5424 = vsel %vm2672, %v5408, -1e+30
  %v5425 = vsel %vm2673, %v5409, -1e+30
  %v5426 = vsel %vm2674, %v5410, -1e+30
  %v5427 = vsel %vm2675, %v5411, -1e+30
  %v5428 = vsel %vm2676, %v5412, -1e+30
  %v5429 = vsel %vm2677, %v5413, -1e+30
  %5430 = vmax.xlane.f32.xlu0 %v5414
  %v5431 = vpop.xlane.xlu0 %5430
  %5432 = vmax.xlane.f32.xlu0 %v5415
  %v5433 = vpop.xlane.xlu0 %5432
  %5434 = vmax.xlane.f32.xlu0 %v5416
  %v5435 = vpop.xlane.xlu0 %5434
  %5436 = vmax.xlane.f32.xlu0 %v5417
  %v5437 = vpop.xlane.xlu0 %5436
  %5438 = vmax.xlane.f32.xlu0 %v5418
  %v5439 = vpop.xlane.xlu0 %5438
  %5440 = vmax.xlane.f32.xlu0 %v5419
  %v5441 = vpop.xlane.xlu0 %5440
  %5442 = vmax.xlane.f32.xlu0 %v5420
  %v5443 = vpop.xlane.xlu0 %5442
  %5444 = vmax.xlane.f32.xlu0 %v5421
  %v5445 = vpop.xlane.xlu0 %5444
  %5446 = vmax.xlane.f32.xlu0 %v5422
  %v5447 = vpop.xlane.xlu0 %5446
  %5448 = vmax.xlane.f32.xlu0 %v5423
  %v5449 = vpop.xlane.xlu0 %5448
  %5450 = vmax.xlane.f32.xlu0 %v5424
  %v5451 = vpop.xlane.xlu0 %5450
  %5452 = vmax.xlane.f32.xlu0 %v5425
  %v5453 = vpop.xlane.xlu0 %5452
  %5454 = vmax.xlane.f32.xlu0 %v5426
  %v5455 = vpop.xlane.xlu0 %5454
  %5456 = vmax.xlane.f32.xlu0 %v5427
  %v5457 = vpop.xlane.xlu0 %5456
  %5458 = vmax.xlane.f32.xlu0 %v5428
  %v5459 = vpop.xlane.xlu0 %5458
  %5460 = vmax.xlane.f32.xlu0 %v5429
  %v5461 = vpop.xlane.xlu0 %5460
  %v5462 = vsub.f32 %v5414, %v5431
  %v5463 = vsub.f32 %v5415, %v5433
  %v5464 = vsub.f32 %v5416, %v5435
  %v5465 = vsub.f32 %v5417, %v5437
  %v5466 = vsub.f32 %v5418, %v5439
  %v5467 = vsub.f32 %v5419, %v5441
  %v5468 = vsub.f32 %v5420, %v5443
  %v5469 = vsub.f32 %v5421, %v5445
  %v5470 = vsub.f32 %v5422, %v5447
  %v5471 = vsub.f32 %v5423, %v5449
  %v5472 = vsub.f32 %v5424, %v5451
  %v5473 = vsub.f32 %v5425, %v5453
  %v5474 = vsub.f32 %v5426, %v5455
  %v5475 = vsub.f32 %v5427, %v5457
  %v5476 = vsub.f32 %v5428, %v5459
  %v5477 = vsub.f32 %v5429, %v5461
  %v5478 = vmul.f32 %v5462, 1.442695
  %v5479 = vpow.pop %v5478
  %v5480 = vmul.f32 %v5463, 1.442695
  %v5481 = vpow.pop %v5480
  %v5482 = vmul.f32 %v5464, 1.442695
  %v5483 = vpow.pop %v5482
  %v5484 = vmul.f32 %v5465, 1.442695
  %v5485 = vpow.pop %v5484
  %v5486 = vmul.f32 %v5466, 1.442695
  %v5487 = vpow.pop %v5486
  %v5488 = vmul.f32 %v5467, 1.442695
  %v5489 = vpow.pop %v5488
  %v5490 = vmul.f32 %v5468, 1.442695
  %v5491 = vpow.pop %v5490
  %v5492 = vmul.f32 %v5469, 1.442695
  %v5493 = vpow.pop %v5492
  %v5494 = vmul.f32 %v5470, 1.442695
  %v5495 = vpow.pop %v5494
  %v5496 = vmul.f32 %v5471, 1.442695
  %v5497 = vpow.pop %v5496
  %v5498 = vmul.f32 %v5472, 1.442695
  %v5499 = vpow.pop %v5498
  %v5500 = vmul.f32 %v5473, 1.442695
  %v5501 = vpow.pop %v5500
  %v5502 = vmul.f32 %v5474, 1.442695
  %v5503 = vpow.pop %v5502
  %v5504 = vmul.f32 %v5475, 1.442695
  %v5505 = vpow.pop %v5504
  %v5506 = vmul.f32 %v5476, 1.442695
  %v5507 = vpow.pop %v5506
  %v5508 = vmul.f32 %v5477, 1.442695
  %v5509 = vpow.pop %v5508
  %v5510 = vmul.f32 %v5479, %v2694
  %v5511 = vmul.f32 %v5481, %v2695
  %v5512 = vmul.f32 %v5483, %v2696
  %v5513 = vmul.f32 %v5485, %v2697
  %v5514 = vmul.f32 %v5487, %v2698
  %v5515 = vmul.f32 %v5489, %v2699
  %v5516 = vmul.f32 %v5491, %v2700
  %v5517 = vmul.f32 %v5493, %v2701
  %v5518 = vmul.f32 %v5495, %v2702
  %v5519 = vmul.f32 %v5497, %v2703
  %v5520 = vmul.f32 %v5499, %v2704
  %v5521 = vmul.f32 %v5501, %v2705
  %v5522 = vmul.f32 %v5503, %v2706
  %v5523 = vmul.f32 %v5505, %v2707
  %v5524 = vmul.f32 %v5507, %v2708
  %v5525 = vmul.f32 %v5509, %v2709
  %5526 = vadd.xlane.f32.xlu0 %v5510
  %v5527 = vpop.xlane.xlu0 %5526
  %5528 = vadd.xlane.f32.xlu0 %v5511
  %v5529 = vpop.xlane.xlu0 %5528
  %5530 = vadd.xlane.f32.xlu0 %v5512
  %v5531 = vpop.xlane.xlu0 %5530
  %5532 = vadd.xlane.f32.xlu0 %v5513
  %v5533 = vpop.xlane.xlu0 %5532
  %5534 = vadd.xlane.f32.xlu0 %v5514
  %v5535 = vpop.xlane.xlu0 %5534
  %5536 = vadd.xlane.f32.xlu0 %v5515
  %v5537 = vpop.xlane.xlu0 %5536
  %5538 = vadd.xlane.f32.xlu0 %v5516
  %v5539 = vpop.xlane.xlu0 %5538
  %5540 = vadd.xlane.f32.xlu0 %v5517
  %v5541 = vpop.xlane.xlu0 %5540
  %5542 = vadd.xlane.f32.xlu0 %v5518
  %v5543 = vpop.xlane.xlu0 %5542
  %5544 = vadd.xlane.f32.xlu0 %v5519
  %v5545 = vpop.xlane.xlu0 %5544
  %5546 = vadd.xlane.f32.xlu0 %v5520
  %v5547 = vpop.xlane.xlu0 %5546
  %5548 = vadd.xlane.f32.xlu0 %v5521
  %v5549 = vpop.xlane.xlu0 %5548
  %5550 = vadd.xlane.f32.xlu0 %v5522
  %v5551 = vpop.xlane.xlu0 %5550
  %5552 = vadd.xlane.f32.xlu0 %v5523
  %v5553 = vpop.xlane.xlu0 %5552
  %5554 = vadd.xlane.f32.xlu0 %v5524
  %v5555 = vpop.xlane.xlu0 %5554
  %5556 = vadd.xlane.f32.xlu0 %v5525
  %v5557 = vpop.xlane.xlu0 %5556
  %v5558 = vmax.f32 %v5527, 1e-30
  %v5559 = vmax.f32 %v5529, 1e-30
  %v5560 = vmax.f32 %v5531, 1e-30
  %v5561 = vmax.f32 %v5533, 1e-30
  %v5562 = vmax.f32 %v5535, 1e-30
  %v5563 = vmax.f32 %v5537, 1e-30
  %v5564 = vmax.f32 %v5539, 1e-30
  %v5565 = vmax.f32 %v5541, 1e-30
  %v5566 = vmax.f32 %v5543, 1e-30
  %v5567 = vmax.f32 %v5545, 1e-30
  %v5568 = vmax.f32 %v5547, 1e-30
  %v5569 = vmax.f32 %v5549, 1e-30
  %v5570 = vmax.f32 %v5551, 1e-30
  %v5571 = vmax.f32 %v5553, 1e-30
  %v5572 = vmax.f32 %v5555, 1e-30
  %v5573 = vmax.f32 %v5557, 1e-30
  %v5574 = vrcp.pop %v5558
  %v5575 = vrcp.pop %v5559
  %v5576 = vrcp.pop %v5560
  %v5577 = vrcp.pop %v5561
  %v5578 = vrcp.pop %v5562
  %v5579 = vrcp.pop %v5563
  %v5580 = vrcp.pop %v5564
  %v5581 = vrcp.pop %v5565
  %v5582 = vrcp.pop %v5566
  %v5583 = vrcp.pop %v5567
  %v5584 = vrcp.pop %v5568
  %v5585 = vrcp.pop %v5569
  %v5586 = vrcp.pop %v5570
  %v5587 = vrcp.pop %v5571
  %v5588 = vrcp.pop %v5572
  %v5589 = vrcp.pop %v5573
  %v5590 = vmul.f32 %v5510, %v5574
  %v5591 = vmul.f32 %v5511, %v5575
  %v5592 = vmul.f32 %v5512, %v5576
  %v5593 = vmul.f32 %v5513, %v5577
  %v5594 = vmul.f32 %v5514, %v5578
  %v5595 = vmul.f32 %v5515, %v5579
  %v5596 = vmul.f32 %v5516, %v5580
  %v5597 = vmul.f32 %v5517, %v5581
  %v5598 = vmul.f32 %v5518, %v5582
  %v5599 = vmul.f32 %v5519, %v5583
  %v5600 = vmul.f32 %v5520, %v5584
  %v5601 = vmul.f32 %v5521, %v5585
  %v5602 = vmul.f32 %v5522, %v5586
  %v5603 = vmul.f32 %v5523, %v5587
  %v5604 = vmul.f32 %v5524, %v5588
  %v5605 = vmul.f32 %v5525, %v5589
  %v5606 = vmul.f32 %v5590, %v61
  %v5607 = vmul.f32 %v5591, %v62
  %v5608 = vmul.f32 %v5592, %v63
  %v5609 = vmul.f32 %v5593, %v64
  %v5610 = vmul.f32 %v5594, %v65
  %v5611 = vmul.f32 %v5595, %v66
  %v5612 = vmul.f32 %v5596, %v67
  %v5613 = vmul.f32 %v5597, %v68
  %v5614 = vmul.f32 %v5598, %v69
  %v5615 = vmul.f32 %v5599, %v70
  %v5616 = vmul.f32 %v5600, %v71
  %v5617 = vmul.f32 %v5601, %v72
  %v5618 = vmul.f32 %v5602, %v73
  %v5619 = vmul.f32 %v5603, %v74
  %v5620 = vmul.f32 %v5604, %v75
  %v5621 = vmul.f32 %v5605, %v76
  %5622 = vmatprep.subr.mxu0 0.0
  %5623 = vmatpush1.msra.mxu0 %v5014
  %5624 = vmatprep.subr.mxu0 0.0
  %5625 = vmatpush1.msra.mxu0 %v5017
  %5626 = vmatprep.subr.mxu0 0.0
  %5627 = vmatpush1.msra.mxu0 %v5022
  %5628 = vmatprep.subr.mxu0 0.0
  %5629 = vmatpush1.msra.mxu0 %v5025
  %5630 = vmatprep.subr.mxu0 0.0
  %5631 = vmatpush1.msra.mxu0 %v5030
  %5632 = vmatprep.subr.mxu0 0.0
  %5633 = vmatpush1.msra.mxu0 %v5033
  %5634 = vmatprep.subr.mxu0 0.0
  %5635 = vmatpush1.msra.mxu0 %v5038
  %5636 = vmatprep.subr.mxu0 0.0
  %5637 = vmatpush1.msra.mxu0 %v5041
  %5638 = vmatprep.subr.mxu0 0.0
  %5639 = vmatpush1.msra.mxu0 %v5046
  %5640 = vmatprep.subr.mxu0 0.0
  %5641 = vmatpush1.msra.mxu0 %v5049
  %5642 = vmatprep.subr.mxu0 0.0
  %5643 = vmatpush1.msra.mxu0 %v5054
  %5644 = vmatprep.subr.mxu0 0.0
  %5645 = vmatpush1.msra.mxu0 %v5057
  %5646 = vmatprep.subr.mxu0 0.0
  %5647 = vmatpush1.msra.mxu0 %v5062
  %5648 = vmatprep.subr.mxu0 0.0
  %5649 = vmatpush1.msra.mxu0 %v5065
  %5650 = vmatprep.subr.mxu0 0.0
  %5651 = vmatpush1.msra.mxu0 %v5070
  %5652 = vmatprep.subr.mxu0 0.0
  %5653 = vmatpush1.msra.mxu0 %v5073
  %5654 = vmatprep.subr.mxu0 0.0
  %5655 = vmatpush1.msra.mxu0 0.0
  %5656 = vmatprep.subr.mxu0 0.0
  %5657 = vmatpush1.msra.mxu0 0.0
  %5658 = vmatprep.subr.mxu0 0.0
  %5659 = vmatpush1.msra.mxu0 0.0
  %5660 = vmatprep.subr.mxu0 0.0
  %5661 = vmatpush1.msra.mxu0 0.0
  %5662 = vmatprep.subr.mxu0 0.0
  %5663 = vmatpush1.msra.mxu0 0.0
  %5664 = vmatprep.subr.mxu0 0.0
  %5665 = vmatpush1.msra.mxu0 0.0
  %5666 = vmatprep.subr.mxu0 0.0
  %5667 = vmatpush1.msra.mxu0 0.0
  %5668 = vmatprep.subr.mxu0 0.0
  %5669 = vmatpush1.msra.mxu0 0.0
  %5670 = vmatprep.subr.mxu0 0.0
  %5671 = vmatpush1.msra.mxu0 0.0
  %5672 = vmatprep.subr.mxu0 0.0
  %5673 = vmatpush1.msra.mxu0 0.0
  %5674 = vmatprep.subr.mxu0 0.0
  %5675 = vmatpush1.msra.mxu0 0.0
  %5676 = vmatprep.subr.mxu0 0.0
  %5677 = vmatpush1.msra.mxu0 0.0
  %5678 = vmatprep.subr.mxu0 0.0
  %5679 = vmatpush1.msra.mxu0 0.0
  %5680 = vmatprep.subr.mxu0 0.0
  %5681 = vmatpush1.msra.mxu0 0.0
  %5682 = vmatprep.subr.mxu0 0.0
  %5683 = vmatpush1.msra.mxu0 0.0
  %5684 = vmatprep.subr.mxu0 0.0
  %5685 = vmatpush1.msra.mxu0 0.0
  %5686 = vmatprep.mubr.f32.mxu0 0.0
  %5687 = vmatmul.mubr.f32.gmra.mrb[0].mxu0 %v5606
  %v5688 = vpop.f32.mrb[0].mxu0
  %v5689 = vadd.f32 0.0, %v5688
  %v5690 = vpop.f32.mrb[0].mxu0
  %5691 = vmatprep.mubr.f32.mxu0 0.0
  %5692 = vmatmul.mubr.f32.gmra.mrb[0].mxu0 %v5607
  %v5693 = vpop.f32.mrb[0].mxu0
  %v5694 = vadd.f32 0.0, %v5693
  %v5695 = vpop.f32.mrb[0].mxu0
  %5696 = vmatprep.mubr.f32.mxu0 0.0
  %5697 = vmatmul.mubr.f32.gmra.mrb[0].mxu0 %v5608
  %v5698 = vpop.f32.mrb[0].mxu0
  %v5699 = vadd.f32 0.0, %v5698
  %v5700 = vpop.f32.mrb[0].mxu0
  %5701 = vmatprep.mubr.f32.mxu0 0.0
  %5702 = vmatmul.mubr.f32.gmra.mrb[0].mxu0 %v5609
  %v5703 = vpop.f32.mrb[0].mxu0
  %v5704 = vadd.f32 0.0, %v5703
  %v5705 = vpop.f32.mrb[0].mxu0
  %5706 = vmatprep.mubr.f32.mxu0 0.0
  %5707 = vmatmul.mubr.f32.gmra.mrb[0].mxu0 %v5610
  %v5708 = vpop.f32.mrb[0].mxu0
  %v5709 = vadd.f32 0.0, %v5708
  %v5710 = vpop.f32.mrb[0].mxu0
  %5711 = vmatprep.mubr.f32.mxu0 0.0
  %5712 = vmatmul.mubr.f32.gmra.mrb[0].mxu0 %v5611
  %v5713 = vpop.f32.mrb[0].mxu0
  %v5714 = vadd.f32 0.0, %v5713
  %v5715 = vpop.f32.mrb[0].mxu0
  %5716 = vmatprep.mubr.f32.mxu0 0.0
  %5717 = vmatmul.mubr.f32.gmra.mrb[0].mxu0 %v5612
  %v5718 = vpop.f32.mrb[0].mxu0
  %v5719 = vadd.f32 0.0, %v5718
  %v5720 = vpop.f32.mrb[0].mxu0
  %5721 = vmatprep.mubr.f32.mxu0 0.0
  %5722 = vmatmul.mubr.f32.gmra.mrb[0].mxu0 %v5613
  %v5723 = vpop.f32.mrb[0].mxu0
  %v5724 = vadd.f32 0.0, %v5723
  %v5725 = vpop.f32.mrb[0].mxu0
  %5726 = vmatprep.mubr.f32.mxu0 0.0
  %5727 = vmatmul.mubr.f32.gmra.mrb[0].mxu0 %v5614
  %v5728 = vpop.f32.mrb[0].mxu0
  %v5729 = vadd.f32 0.0, %v5728
  %v5730 = vpop.f32.mrb[0].mxu0
  %5731 = vmatprep.mubr.f32.mxu0 0.0
  %5732 = vmatmul.mubr.f32.gmra.mrb[0].mxu0 %v5615
  %v5733 = vpop.f32.mrb[0].mxu0
  %v5734 = vadd.f32 0.0, %v5733
  %v5735 = vpop.f32.mrb[0].mxu0
  %5736 = vmatprep.mubr.f32.mxu0 0.0
  %5737 = vmatmul.mubr.f32.gmra.mrb[0].mxu0 %v5616
  %v5738 = vpop.f32.mrb[0].mxu0
  %v5739 = vadd.f32 0.0, %v5738
  %v5740 = vpop.f32.mrb[0].mxu0
  %5741 = vmatprep.mubr.f32.mxu0 0.0
  %5742 = vmatmul.mubr.f32.gmra.mrb[0].mxu0 %v5617
  %v5743 = vpop.f32.mrb[0].mxu0
  %v5744 = vadd.f32 0.0, %v5743
  %v5745 = vpop.f32.mrb[0].mxu0
  %5746 = vmatprep.mubr.f32.mxu0 0.0
  %5747 = vmatmul.mubr.f32.gmra.mrb[0].mxu0 %v5618
  %v5748 = vpop.f32.mrb[0].mxu0
  %v5749 = vadd.f32 0.0, %v5748
  %v5750 = vpop.f32.mrb[0].mxu0
  %5751 = vmatprep.mubr.f32.mxu0 0.0
  %5752 = vmatmul.mubr.f32.gmra.mrb[0].mxu0 %v5619
  %v5753 = vpop.f32.mrb[0].mxu0
  %v5754 = vadd.f32 0.0, %v5753
  %v5755 = vpop.f32.mrb[0].mxu0
  %5756 = vmatprep.mubr.f32.mxu0 0.0
  %5757 = vmatmul.mubr.f32.gmra.mrb[0].mxu0 %v5620
  %v5758 = vpop.f32.mrb[0].mxu0
  %v5759 = vadd.f32 0.0, %v5758
  %v5760 = vpop.f32.mrb[0].mxu0
  %5761 = vmatprep.mubr.f32.mxu0 0.0
  %5762 = vmatmul.mubr.f32.gmra.mrb[0].mxu0 %v5621
  %v5763 = vpop.f32.mrb[0].mxu0
  %v5764 = vadd.f32 0.0, %v5763
  %v5765 = vpop.f32.mrb[0].mxu0
  %5766 = vdwg.mxu0
  %v5783 = vunpack.c.l.b16 %v4898
  %v5784 = vunpack.c.l.b16 %v4899
  %v5785 = vunpack.c.l.b16 %v4900
  %v5786 = vunpack.c.l.b16 %v4901
  %v5787 = vunpack.c.l.b16 %v4902
  %v5788 = vunpack.c.l.b16 %v4903
  %v5789 = vunpack.c.l.b16 %v4904
  %v5790 = vunpack.c.l.b16 %v4905
  %v5791 = vunpack.c.l.b16 %v4906
  %v5792 = vunpack.c.l.b16 %v4907
  %v5793 = vunpack.c.l.b16 %v4908
  %v5794 = vunpack.c.l.b16 %v4909
  %v5795 = vunpack.c.l.b16 %v4910
  %v5796 = vunpack.c.l.b16 %v4911
  %v5797 = vunpack.c.l.b16 %v4912
  %v5798 = vunpack.c.l.b16 %v4913
  %v5799 = vpack.c.b16 %v5784, %v5783
  %v5800 = vpack.c.b16 %v5786, %v5785
  %v5801 = vpack.c.b16 %v5788, %v5787
  %v5802 = vpack.c.b16 %v5790, %v5789
  %v5803 = vpack.c.b16 %v5792, %v5791
  %v5804 = vpack.c.b16 %v5794, %v5793
  %v5805 = vpack.c.b16 %v5796, %v5795
  %v5806 = vpack.c.b16 %v5798, %v5797
  %5815 = vmatprep.subr.bf16.mxu0 0
  %5816 = vmatpush1.bf16.msra.mxu0 %v5799
  %5817 = vmatprep.subr.bf16.mxu0 0
  %5818 = vmatpush1.bf16.msra.mxu0 %v5800
  %5819 = vmatprep.subr.bf16.mxu0 0
  %5820 = vmatpush1.bf16.msra.mxu0 %v5801
  %5821 = vmatprep.subr.bf16.mxu0 0
  %5822 = vmatpush1.bf16.msra.mxu0 %v5802
  %5823 = vmatprep.subr.bf16.mxu0 0
  %5824 = vmatpush1.bf16.msra.mxu0 %v5803
  %5825 = vmatprep.subr.bf16.mxu0 0
  %5826 = vmatpush1.bf16.msra.mxu0 %v5804
  %5827 = vmatprep.subr.bf16.mxu0 0
  %5828 = vmatpush1.bf16.msra.mxu0 %v5805
  %5829 = vmatprep.subr.bf16.mxu0 0
  %5830 = vmatpush1.bf16.msra.mxu0 %v5806
  %5831 = vmatprep.subr.bf16.mxu0 0
  %5832 = vmatpush1.bf16.msra.mxu0 0
  %5833 = vmatprep.subr.bf16.mxu0 0
  %5834 = vmatpush1.bf16.msra.mxu0 0
  %5835 = vmatprep.subr.bf16.mxu0 0
  %5836 = vmatpush1.bf16.msra.mxu0 0
  %5837 = vmatprep.subr.bf16.mxu0 0
  %5838 = vmatpush1.bf16.msra.mxu0 0
  %5839 = vmatprep.subr.bf16.mxu0 0
  %5840 = vmatpush1.bf16.msra.mxu0 0
  %5841 = vmatprep.subr.bf16.mxu0 0
  %5842 = vmatpush1.bf16.msra.mxu0 0
  %5843 = vmatprep.subr.bf16.mxu0 0
  %5844 = vmatpush1.bf16.msra.mxu0 0
  %5845 = vmatprep.subr.bf16.mxu0 0
  %5846 = vmatpush1.bf16.msra.mxu0 0
  %5847 = vmatprep.mubr.bf16.mxu0 0
  %5848 = vmatmul.mubr.bf16.gmra.mrb[0].mxu0 %v3715
  %v5849 = vpop.f32.mrb[0].mxu0
  %v5850 = vadd.f32 %v5689, %v5849
  %v5851 = vpop.f32.mrb[0].mxu0
  %v5852 = vpop.f32.mrb[0].mxu0
  %v5853 = vadd.f32 %v5694, %v5852
  %v5854 = vpop.f32.mrb[0].mxu0
  %5855 = vmatprep.mubr.bf16.mxu0 0
  %5856 = vmatmul.mubr.bf16.gmra.mrb[0].mxu0 %v3716
  %v5857 = vpop.f32.mrb[0].mxu0
  %v5858 = vadd.f32 %v5699, %v5857
  %v5859 = vpop.f32.mrb[0].mxu0
  %v5860 = vpop.f32.mrb[0].mxu0
  %v5861 = vadd.f32 %v5704, %v5860
  %v5862 = vpop.f32.mrb[0].mxu0
  %5863 = vmatprep.mubr.bf16.mxu0 0
  %5864 = vmatmul.mubr.bf16.gmra.mrb[0].mxu0 %v3717
  %v5865 = vpop.f32.mrb[0].mxu0
  %v5866 = vadd.f32 %v5709, %v5865
  %v5867 = vpop.f32.mrb[0].mxu0
  %v5868 = vpop.f32.mrb[0].mxu0
  %v5869 = vadd.f32 %v5714, %v5868
  %v5870 = vpop.f32.mrb[0].mxu0
  %5871 = vmatprep.mubr.bf16.mxu0 0
  %5872 = vmatmul.mubr.bf16.gmra.mrb[0].mxu0 %v3718
  %v5873 = vpop.f32.mrb[0].mxu0
  %v5874 = vadd.f32 %v5719, %v5873
  %v5875 = vpop.f32.mrb[0].mxu0
  %v5876 = vpop.f32.mrb[0].mxu0
  %v5877 = vadd.f32 %v5724, %v5876
  %v5878 = vpop.f32.mrb[0].mxu0
  %5879 = vmatprep.mubr.bf16.mxu0 0
  %5880 = vmatmul.mubr.bf16.gmra.mrb[0].mxu0 %v3719
  %v5881 = vpop.f32.mrb[0].mxu0
  %v5882 = vadd.f32 %v5729, %v5881
  %v5883 = vpop.f32.mrb[0].mxu0
  %v5884 = vpop.f32.mrb[0].mxu0
  %v5885 = vadd.f32 %v5734, %v5884
  %v5886 = vpop.f32.mrb[0].mxu0
  %5887 = vmatprep.mubr.bf16.mxu0 0
  %5888 = vmatmul.mubr.bf16.gmra.mrb[0].mxu0 %v3720
  %v5889 = vpop.f32.mrb[0].mxu0
  %v5890 = vadd.f32 %v5739, %v5889
  %v5891 = vpop.f32.mrb[0].mxu0
  %v5892 = vpop.f32.mrb[0].mxu0
  %v5893 = vadd.f32 %v5744, %v5892
  %v5894 = vpop.f32.mrb[0].mxu0
  %5895 = vmatprep.mubr.bf16.mxu0 0
  %5896 = vmatmul.mubr.bf16.gmra.mrb[0].mxu0 %v3721
  %v5897 = vpop.f32.mrb[0].mxu0
  %v5898 = vadd.f32 %v5749, %v5897
  %v5899 = vpop.f32.mrb[0].mxu0
  %v5900 = vpop.f32.mrb[0].mxu0
  %v5901 = vadd.f32 %v5754, %v5900
  %v5902 = vpop.f32.mrb[0].mxu0
  %5903 = vmatprep.mubr.bf16.mxu0 0
  %5904 = vmatmul.mubr.bf16.gmra.mrb[0].mxu0 %v3722
  %v5905 = vpop.f32.mrb[0].mxu0
  %v5906 = vadd.f32 %v5759, %v5905
  %v5907 = vpop.f32.mrb[0].mxu0
  %v5908 = vpop.f32.mrb[0].mxu0
  %v5909 = vadd.f32 %v5764, %v5908
  %v5910 = vpop.f32.mrb[0].mxu0
  %5911 = vdwg.mxu0
  %5912 = vmatprep.subr.mxu0 0.0
  %5913 = vmatpush1.msra.mxu0 %v5850
  %5914 = vmatprep.subr.mxu0 0.0
  %5915 = vmatpush1.msra.mxu0 %v5853
  %5916 = vmatprep.subr.mxu0 0.0
  %5917 = vmatpush1.msra.mxu0 %v5858
  %5918 = vmatprep.subr.mxu0 0.0
  %5919 = vmatpush1.msra.mxu0 %v5861
  %5920 = vmatprep.subr.mxu0 0.0
  %5921 = vmatpush1.msra.mxu0 %v5866
  %5922 = vmatprep.subr.mxu0 0.0
  %5923 = vmatpush1.msra.mxu0 %v5869
  %5924 = vmatprep.subr.mxu0 0.0
  %5925 = vmatpush1.msra.mxu0 %v5874
  %5926 = vmatprep.subr.mxu0 0.0
  %5927 = vmatpush1.msra.mxu0 %v5877
  %5928 = vmatprep.subr.mxu0 0.0
  %5929 = vmatpush1.msra.mxu0 %v5882
  %5930 = vmatprep.subr.mxu0 0.0
  %5931 = vmatpush1.msra.mxu0 %v5885
  %5932 = vmatprep.subr.mxu0 0.0
  %5933 = vmatpush1.msra.mxu0 %v5890
  %5934 = vmatprep.subr.mxu0 0.0
  %5935 = vmatpush1.msra.mxu0 %v5893
  %5936 = vmatprep.subr.mxu0 0.0
  %5937 = vmatpush1.msra.mxu0 %v5898
  %5938 = vmatprep.subr.mxu0 0.0
  %5939 = vmatpush1.msra.mxu0 %v5901
  %5940 = vmatprep.subr.mxu0 0.0
  %5941 = vmatpush1.msra.mxu0 %v5906
  %5942 = vmatprep.subr.mxu0 0.0
  %5943 = vmatpush1.msra.mxu0 %v5909
  %5944 = vmatprep.subr.mxu0 0.0
  %5945 = vmatpush1.msra.mxu0 0.0
  %5946 = vmatprep.subr.mxu0 0.0
  %5947 = vmatpush1.msra.mxu0 0.0
  %5948 = vmatprep.subr.mxu0 0.0
  %5949 = vmatpush1.msra.mxu0 0.0
  %5950 = vmatprep.subr.mxu0 0.0
  %5951 = vmatpush1.msra.mxu0 0.0
  %5952 = vmatprep.subr.mxu0 0.0
  %5953 = vmatpush1.msra.mxu0 0.0
  %5954 = vmatprep.subr.mxu0 0.0
  %5955 = vmatpush1.msra.mxu0 0.0
  %5956 = vmatprep.subr.mxu0 0.0
  %5957 = vmatpush1.msra.mxu0 0.0
  %5958 = vmatprep.subr.mxu0 0.0
  %5959 = vmatpush1.msra.mxu0 0.0
  %5960 = vmatprep.subr.mxu0 0.0
  %5961 = vmatpush1.msra.mxu0 0.0
  %5962 = vmatprep.subr.mxu0 0.0
  %5963 = vmatpush1.msra.mxu0 0.0
  %5964 = vmatprep.subr.mxu0 0.0
  %5965 = vmatpush1.msra.mxu0 0.0
  %5966 = vmatprep.subr.mxu0 0.0
  %5967 = vmatpush1.msra.mxu0 0.0
  %5968 = vmatprep.subr.mxu0 0.0
  %5969 = vmatpush1.msra.mxu0 0.0
  %5970 = vmatprep.subr.mxu0 0.0
  %5971 = vmatpush1.msra.mxu0 0.0
  %5972 = vmatprep.subr.mxu0 0.0
  %5973 = vmatpush1.msra.mxu0 0.0
  %5974 = vmatprep.subr.mxu0 0.0
  %5975 = vmatpush1.msra.mxu0 0.0
  %5976 = vmatprep.mubr.f32.mxu0 0.0
  %5977 = vmatmul.mubr.f32.gmra.mrb[0].mxu0 %v5606
  %v5978 = vpop.f32.mrb[0].mxu0
  %v5979 = vadd.f32 0.0, %v5978
  %v5980 = vpop.f32.mrb[0].mxu0
  %5981 = vmatprep.mubr.f32.mxu0 0.0
  %5982 = vmatmul.mubr.f32.gmra.mrb[0].mxu0 %v5607
  %v5983 = vpop.f32.mrb[0].mxu0
  %v5984 = vadd.f32 0.0, %v5983
  %v5985 = vpop.f32.mrb[0].mxu0
  %5986 = vmatprep.mubr.f32.mxu0 0.0
  %5987 = vmatmul.mubr.f32.gmra.mrb[0].mxu0 %v5608
  %v5988 = vpop.f32.mrb[0].mxu0
  %v5989 = vadd.f32 0.0, %v5988
  %v5990 = vpop.f32.mrb[0].mxu0
  %5991 = vmatprep.mubr.f32.mxu0 0.0
  %5992 = vmatmul.mubr.f32.gmra.mrb[0].mxu0 %v5609
  %v5993 = vpop.f32.mrb[0].mxu0
  %v5994 = vadd.f32 0.0, %v5993
  %v5995 = vpop.f32.mrb[0].mxu0
  %5996 = vmatprep.mubr.f32.mxu0 0.0
  %5997 = vmatmul.mubr.f32.gmra.mrb[0].mxu0 %v5610
  %v5998 = vpop.f32.mrb[0].mxu0
  %v5999 = vadd.f32 0.0, %v5998
  %v6000 = vpop.f32.mrb[0].mxu0
  %6001 = vmatprep.mubr.f32.mxu0 0.0
  %6002 = vmatmul.mubr.f32.gmra.mrb[0].mxu0 %v5611
  %v6003 = vpop.f32.mrb[0].mxu0
  %v6004 = vadd.f32 0.0, %v6003
  %v6005 = vpop.f32.mrb[0].mxu0
  %6006 = vmatprep.mubr.f32.mxu0 0.0
  %6007 = vmatmul.mubr.f32.gmra.mrb[0].mxu0 %v5612
  %v6008 = vpop.f32.mrb[0].mxu0
  %v6009 = vadd.f32 0.0, %v6008
  %v6010 = vpop.f32.mrb[0].mxu0
  %6011 = vmatprep.mubr.f32.mxu0 0.0
  %6012 = vmatmul.mubr.f32.gmra.mrb[0].mxu0 %v5613
  %v6013 = vpop.f32.mrb[0].mxu0
  %v6014 = vadd.f32 0.0, %v6013
  %v6015 = vpop.f32.mrb[0].mxu0
  %6016 = vmatprep.mubr.f32.mxu0 0.0
  %6017 = vmatmul.mubr.f32.gmra.mrb[0].mxu0 %v5614
  %v6018 = vpop.f32.mrb[0].mxu0
  %v6019 = vadd.f32 0.0, %v6018
  %v6020 = vpop.f32.mrb[0].mxu0
  %6021 = vmatprep.mubr.f32.mxu0 0.0
  %6022 = vmatmul.mubr.f32.gmra.mrb[0].mxu0 %v5615
  %v6023 = vpop.f32.mrb[0].mxu0
  %v6024 = vadd.f32 0.0, %v6023
  %v6025 = vpop.f32.mrb[0].mxu0
  %6026 = vmatprep.mubr.f32.mxu0 0.0
  %6027 = vmatmul.mubr.f32.gmra.mrb[0].mxu0 %v5616
  %v6028 = vpop.f32.mrb[0].mxu0
  %v6029 = vadd.f32 0.0, %v6028
  %v6030 = vpop.f32.mrb[0].mxu0
  %6031 = vmatprep.mubr.f32.mxu0 0.0
  %6032 = vmatmul.mubr.f32.gmra.mrb[0].mxu0 %v5617
  %v6033 = vpop.f32.mrb[0].mxu0
  %v6034 = vadd.f32 0.0, %v6033
  %v6035 = vpop.f32.mrb[0].mxu0
  %6036 = vmatprep.mubr.f32.mxu0 0.0
  %6037 = vmatmul.mubr.f32.gmra.mrb[0].mxu0 %v5618
  %v6038 = vpop.f32.mrb[0].mxu0
  %v6039 = vadd.f32 0.0, %v6038
  %v6040 = vpop.f32.mrb[0].mxu0
  %6041 = vmatprep.mubr.f32.mxu0 0.0
  %6042 = vmatmul.mubr.f32.gmra.mrb[0].mxu0 %v5619
  %v6043 = vpop.f32.mrb[0].mxu0
  %v6044 = vadd.f32 0.0, %v6043
  %v6045 = vpop.f32.mrb[0].mxu0
  %6046 = vmatprep.mubr.f32.mxu0 0.0
  %6047 = vmatmul.mubr.f32.gmra.mrb[0].mxu0 %v5620
  %v6048 = vpop.f32.mrb[0].mxu0
  %v6049 = vadd.f32 0.0, %v6048
  %v6050 = vpop.f32.mrb[0].mxu0
  %6051 = vmatprep.mubr.f32.mxu0 0.0
  %6052 = vmatmul.mubr.f32.gmra.mrb[0].mxu0 %v5621
  %v6053 = vpop.f32.mrb[0].mxu0
  %v6054 = vadd.f32 0.0, %v6053
  %v6055 = vpop.f32.mrb[0].mxu0
  %6056 = vdwg.mxu0
  %v6057 = vld [vmem:[%s9] sm:$0xf]
  %v6058 = vld [vmem:[%s9 + $0x4] sm:$0xf]
  %v6059 = vld [vmem:[%s9 + $0x8] sm:$0xf]
  %v6060 = vld [vmem:[%s9 + $0xc] sm:$0xf]
  %v6061 = vld [vmem:[%s9 + $0x10] sm:$0xf]
  %v6062 = vld [vmem:[%s9 + $0x14] sm:$0xf]
  %v6063 = vld [vmem:[%s9 + $0x18] sm:$0xf]
  %v6064 = vld [vmem:[%s9 + $0x1c] sm:$0xf]
  %v6065 = vld [vmem:[%s9 + $0x20] sm:$0xf]
  %v6066 = vld [vmem:[%s9 + $0x24] sm:$0xf]
  %v6067 = vld [vmem:[%s9 + $0x28] sm:$0xf]
  %v6068 = vld [vmem:[%s9 + $0x2c] sm:$0xf]
  %v6069 = vld [vmem:[%s9 + $0x30] sm:$0xf]
  %v6070 = vld [vmem:[%s9 + $0x34] sm:$0xf]
  %v6071 = vld [vmem:[%s9 + $0x38] sm:$0xf]
  %v6072 = vld [vmem:[%s9 + $0x3c] sm:$0xf]
  %v6089 = vunpack.c.l.b16 %v6057
  %v6090 = vunpack.c.l.b16 %v6058
  %v6091 = vunpack.c.l.b16 %v6059
  %v6092 = vunpack.c.l.b16 %v6060
  %v6093 = vunpack.c.l.b16 %v6061
  %v6094 = vunpack.c.l.b16 %v6062
  %v6095 = vunpack.c.l.b16 %v6063
  %v6096 = vunpack.c.l.b16 %v6064
  %v6097 = vunpack.c.l.b16 %v6065
  %v6098 = vunpack.c.l.b16 %v6066
  %v6099 = vunpack.c.l.b16 %v6067
  %v6100 = vunpack.c.l.b16 %v6068
  %v6101 = vunpack.c.l.b16 %v6069
  %v6102 = vunpack.c.l.b16 %v6070
  %v6103 = vunpack.c.l.b16 %v6071
  %v6104 = vunpack.c.l.b16 %v6072
  %v6105 = vpack.c.b16 %v6090, %v6089
  %v6106 = vpack.c.b16 %v6092, %v6091
  %v6107 = vpack.c.b16 %v6094, %v6093
  %v6108 = vpack.c.b16 %v6096, %v6095
  %v6109 = vpack.c.b16 %v6098, %v6097
  %v6110 = vpack.c.b16 %v6100, %v6099
  %v6111 = vpack.c.b16 %v6102, %v6101
  %v6112 = vpack.c.b16 %v6104, %v6103
  %6121 = vmatprep.subr.bf16.mxu0 0
  %6122 = vmatpush1.bf16.msra.mxu0 %v6105
  %6123 = vmatprep.subr.bf16.mxu0 0
  %6124 = vmatpush1.bf16.msra.mxu0 %v6106
  %6125 = vmatprep.subr.bf16.mxu0 0
  %6126 = vmatpush1.bf16.msra.mxu0 %v6107
  %6127 = vmatprep.subr.bf16.mxu0 0
  %6128 = vmatpush1.bf16.msra.mxu0 %v6108
  %6129 = vmatprep.subr.bf16.mxu0 0
  %6130 = vmatpush1.bf16.msra.mxu0 %v6109
  %6131 = vmatprep.subr.bf16.mxu0 0
  %6132 = vmatpush1.bf16.msra.mxu0 %v6110
  %6133 = vmatprep.subr.bf16.mxu0 0
  %6134 = vmatpush1.bf16.msra.mxu0 %v6111
  %6135 = vmatprep.subr.bf16.mxu0 0
  %6136 = vmatpush1.bf16.msra.mxu0 %v6112
  %6137 = vmatprep.subr.bf16.mxu0 0
  %6138 = vmatpush1.bf16.msra.mxu0 0
  %6139 = vmatprep.subr.bf16.mxu0 0
  %6140 = vmatpush1.bf16.msra.mxu0 0
  %6141 = vmatprep.subr.bf16.mxu0 0
  %6142 = vmatpush1.bf16.msra.mxu0 0
  %6143 = vmatprep.subr.bf16.mxu0 0
  %6144 = vmatpush1.bf16.msra.mxu0 0
  %6145 = vmatprep.subr.bf16.mxu0 0
  %6146 = vmatpush1.bf16.msra.mxu0 0
  %6147 = vmatprep.subr.bf16.mxu0 0
  %6148 = vmatpush1.bf16.msra.mxu0 0
  %6149 = vmatprep.subr.bf16.mxu0 0
  %6150 = vmatpush1.bf16.msra.mxu0 0
  %6151 = vmatprep.subr.bf16.mxu0 0
  %6152 = vmatpush1.bf16.msra.mxu0 0
  %6153 = vmatprep.mubr.bf16.mxu0 0
  %6154 = vmatmul.mubr.bf16.gmra.mrb[0].mxu0 %v3715
  %v6155 = vpop.f32.mrb[0].mxu0
  %v6156 = vadd.f32 0.0, %v6155
  %v6157 = vpop.f32.mrb[0].mxu0
  %v6158 = vpop.f32.mrb[0].mxu0
  %v6159 = vadd.f32 0.0, %v6158
  %v6160 = vpop.f32.mrb[0].mxu0
  %6161 = vmatprep.mubr.bf16.mxu0 0
  %6162 = vmatmul.mubr.bf16.gmra.mrb[0].mxu0 %v3716
  %v6163 = vpop.f32.mrb[0].mxu0
  %v6164 = vadd.f32 0.0, %v6163
  %v6165 = vpop.f32.mrb[0].mxu0
  %v6166 = vpop.f32.mrb[0].mxu0
  %v6167 = vadd.f32 0.0, %v6166
  %v6168 = vpop.f32.mrb[0].mxu0
  %6169 = vmatprep.mubr.bf16.mxu0 0
  %6170 = vmatmul.mubr.bf16.gmra.mrb[0].mxu0 %v3717
  %v6171 = vpop.f32.mrb[0].mxu0
  %v6172 = vadd.f32 0.0, %v6171
  %v6173 = vpop.f32.mrb[0].mxu0
  %v6174 = vpop.f32.mrb[0].mxu0
  %v6175 = vadd.f32 0.0, %v6174
  %v6176 = vpop.f32.mrb[0].mxu0
  %6177 = vmatprep.mubr.bf16.mxu0 0
  %6178 = vmatmul.mubr.bf16.gmra.mrb[0].mxu0 %v3718
  %v6179 = vpop.f32.mrb[0].mxu0
  %v6180 = vadd.f32 0.0, %v6179
  %v6181 = vpop.f32.mrb[0].mxu0
  %v6182 = vpop.f32.mrb[0].mxu0
  %v6183 = vadd.f32 0.0, %v6182
  %v6184 = vpop.f32.mrb[0].mxu0
  %6185 = vmatprep.mubr.bf16.mxu0 0
  %6186 = vmatmul.mubr.bf16.gmra.mrb[0].mxu0 %v3719
  %v6187 = vpop.f32.mrb[0].mxu0
  %v6188 = vadd.f32 0.0, %v6187
  %v6189 = vpop.f32.mrb[0].mxu0
  %v6190 = vpop.f32.mrb[0].mxu0
  %v6191 = vadd.f32 0.0, %v6190
  %v6192 = vpop.f32.mrb[0].mxu0
  %6193 = vmatprep.mubr.bf16.mxu0 0
  %6194 = vmatmul.mubr.bf16.gmra.mrb[0].mxu0 %v3720
  %v6195 = vpop.f32.mrb[0].mxu0
  %v6196 = vadd.f32 0.0, %v6195
  %v6197 = vpop.f32.mrb[0].mxu0
  %v6198 = vpop.f32.mrb[0].mxu0
  %v6199 = vadd.f32 0.0, %v6198
  %v6200 = vpop.f32.mrb[0].mxu0
  %6201 = vmatprep.mubr.bf16.mxu0 0
  %6202 = vmatmul.mubr.bf16.gmra.mrb[0].mxu0 %v3721
  %v6203 = vpop.f32.mrb[0].mxu0
  %v6204 = vadd.f32 0.0, %v6203
  %v6205 = vpop.f32.mrb[0].mxu0
  %v6206 = vpop.f32.mrb[0].mxu0
  %v6207 = vadd.f32 0.0, %v6206
  %v6208 = vpop.f32.mrb[0].mxu0
  %6209 = vmatprep.mubr.bf16.mxu0 0
  %6210 = vmatmul.mubr.bf16.gmra.mrb[0].mxu0 %v3722
  %v6211 = vpop.f32.mrb[0].mxu0
  %v6212 = vadd.f32 0.0, %v6211
  %v6213 = vpop.f32.mrb[0].mxu0
  %v6214 = vpop.f32.mrb[0].mxu0
  %v6215 = vadd.f32 0.0, %v6214
  %v6216 = vpop.f32.mrb[0].mxu0
  %6217 = vdwg.mxu0
  %6218 = vmatprep.subr.mxu0 0.0
  %6219 = vmatpush1.msra.mxu0 %v6156
  %6220 = vmatprep.subr.mxu0 0.0
  %6221 = vmatpush1.msra.mxu0 %v6159
  %6222 = vmatprep.subr.mxu0 0.0
  %6223 = vmatpush1.msra.mxu0 %v6164
  %6224 = vmatprep.subr.mxu0 0.0
  %6225 = vmatpush1.msra.mxu0 %v6167
  %6226 = vmatprep.subr.mxu0 0.0
  %6227 = vmatpush1.msra.mxu0 %v6172
  %6228 = vmatprep.subr.mxu0 0.0
  %6229 = vmatpush1.msra.mxu0 %v6175
  %6230 = vmatprep.subr.mxu0 0.0
  %6231 = vmatpush1.msra.mxu0 %v6180
  %6232 = vmatprep.subr.mxu0 0.0
  %6233 = vmatpush1.msra.mxu0 %v6183
  %6234 = vmatprep.subr.mxu0 0.0
  %6235 = vmatpush1.msra.mxu0 %v6188
  %6236 = vmatprep.subr.mxu0 0.0
  %6237 = vmatpush1.msra.mxu0 %v6191
  %6238 = vmatprep.subr.mxu0 0.0
  %6239 = vmatpush1.msra.mxu0 %v6196
  %6240 = vmatprep.subr.mxu0 0.0
  %6241 = vmatpush1.msra.mxu0 %v6199
  %6242 = vmatprep.subr.mxu0 0.0
  %6243 = vmatpush1.msra.mxu0 %v6204
  %6244 = vmatprep.subr.mxu0 0.0
  %6245 = vmatpush1.msra.mxu0 %v6207
  %6246 = vmatprep.subr.mxu0 0.0
  %6247 = vmatpush1.msra.mxu0 %v6212
  %6248 = vmatprep.subr.mxu0 0.0
  %6249 = vmatpush1.msra.mxu0 %v6215
  %6250 = vmatprep.subr.mxu0 0.0
  %6251 = vmatpush1.msra.mxu0 0.0
  %6252 = vmatprep.subr.mxu0 0.0
  %6253 = vmatpush1.msra.mxu0 0.0
  %6254 = vmatprep.subr.mxu0 0.0
  %6255 = vmatpush1.msra.mxu0 0.0
  %6256 = vmatprep.subr.mxu0 0.0
  %6257 = vmatpush1.msra.mxu0 0.0
  %6258 = vmatprep.subr.mxu0 0.0
  %6259 = vmatpush1.msra.mxu0 0.0
  %6260 = vmatprep.subr.mxu0 0.0
  %6261 = vmatpush1.msra.mxu0 0.0
  %6262 = vmatprep.subr.mxu0 0.0
  %6263 = vmatpush1.msra.mxu0 0.0
  %6264 = vmatprep.subr.mxu0 0.0
  %6265 = vmatpush1.msra.mxu0 0.0
  %6266 = vmatprep.subr.mxu0 0.0
  %6267 = vmatpush1.msra.mxu0 0.0
  %6268 = vmatprep.subr.mxu0 0.0
  %6269 = vmatpush1.msra.mxu0 0.0
  %6270 = vmatprep.subr.mxu0 0.0
  %6271 = vmatpush1.msra.mxu0 0.0
  %6272 = vmatprep.subr.mxu0 0.0
  %6273 = vmatpush1.msra.mxu0 0.0
  %6274 = vmatprep.subr.mxu0 0.0
  %6275 = vmatpush1.msra.mxu0 0.0
  %6276 = vmatprep.subr.mxu0 0.0
  %6277 = vmatpush1.msra.mxu0 0.0
  %6278 = vmatprep.subr.mxu0 0.0
  %6279 = vmatpush1.msra.mxu0 0.0
  %6280 = vmatprep.subr.mxu0 0.0
  %6281 = vmatpush1.msra.mxu0 0.0
  %6282 = vmatprep.mubr.f32.mxu0 0.0
  %6283 = vmatmul.mubr.f32.gmra.mrb[0].mxu0 %v855
  %v6284 = vpop.f32.mrb[0].mxu0
  %v6285 = vadd.f32 0.0, %v6284
  %v6286 = vpop.f32.mrb[0].mxu0
  %6287 = vmatprep.mubr.f32.mxu0 0.0
  %6288 = vmatmul.mubr.f32.gmra.mrb[0].mxu0 %v860
  %v6289 = vpop.f32.mrb[0].mxu0
  %v6290 = vadd.f32 0.0, %v6289
  %v6291 = vpop.f32.mrb[0].mxu0
  %6292 = vmatprep.mubr.f32.mxu0 0.0
  %6293 = vmatmul.mubr.f32.gmra.mrb[0].mxu0 %v865
  %v6294 = vpop.f32.mrb[0].mxu0
  %v6295 = vadd.f32 0.0, %v6294
  %v6296 = vpop.f32.mrb[0].mxu0
  %6297 = vmatprep.mubr.f32.mxu0 0.0
  %6298 = vmatmul.mubr.f32.gmra.mrb[0].mxu0 %v870
  %v6299 = vpop.f32.mrb[0].mxu0
  %v6300 = vadd.f32 0.0, %v6299
  %v6301 = vpop.f32.mrb[0].mxu0
  %6302 = vmatprep.mubr.f32.mxu0 0.0
  %6303 = vmatmul.mubr.f32.gmra.mrb[0].mxu0 %v875
  %v6304 = vpop.f32.mrb[0].mxu0
  %v6305 = vadd.f32 0.0, %v6304
  %v6306 = vpop.f32.mrb[0].mxu0
  %6307 = vmatprep.mubr.f32.mxu0 0.0
  %6308 = vmatmul.mubr.f32.gmra.mrb[0].mxu0 %v880
  %v6309 = vpop.f32.mrb[0].mxu0
  %v6310 = vadd.f32 0.0, %v6309
  %v6311 = vpop.f32.mrb[0].mxu0
  %6312 = vmatprep.mubr.f32.mxu0 0.0
  %6313 = vmatmul.mubr.f32.gmra.mrb[0].mxu0 %v885
  %v6314 = vpop.f32.mrb[0].mxu0
  %v6315 = vadd.f32 0.0, %v6314
  %v6316 = vpop.f32.mrb[0].mxu0
  %6317 = vmatprep.mubr.f32.mxu0 0.0
  %6318 = vmatmul.mubr.f32.gmra.mrb[0].mxu0 %v890
  %v6319 = vpop.f32.mrb[0].mxu0
  %v6320 = vadd.f32 0.0, %v6319
  %v6321 = vpop.f32.mrb[0].mxu0
  %6322 = vmatprep.mubr.f32.mxu0 0.0
  %6323 = vmatmul.mubr.f32.gmra.mrb[0].mxu0 %v895
  %v6324 = vpop.f32.mrb[0].mxu0
  %v6325 = vadd.f32 0.0, %v6324
  %v6326 = vpop.f32.mrb[0].mxu0
  %6327 = vmatprep.mubr.f32.mxu0 0.0
  %6328 = vmatmul.mubr.f32.gmra.mrb[0].mxu0 %v900
  %v6329 = vpop.f32.mrb[0].mxu0
  %v6330 = vadd.f32 0.0, %v6329
  %v6331 = vpop.f32.mrb[0].mxu0
  %6332 = vmatprep.mubr.f32.mxu0 0.0
  %6333 = vmatmul.mubr.f32.gmra.mrb[0].mxu0 %v905
  %v6334 = vpop.f32.mrb[0].mxu0
  %v6335 = vadd.f32 0.0, %v6334
  %v6336 = vpop.f32.mrb[0].mxu0
  %6337 = vmatprep.mubr.f32.mxu0 0.0
  %6338 = vmatmul.mubr.f32.gmra.mrb[0].mxu0 %v910
  %v6339 = vpop.f32.mrb[0].mxu0
  %v6340 = vadd.f32 0.0, %v6339
  %v6341 = vpop.f32.mrb[0].mxu0
  %6342 = vmatprep.mubr.f32.mxu0 0.0
  %6343 = vmatmul.mubr.f32.gmra.mrb[0].mxu0 %v915
  %v6344 = vpop.f32.mrb[0].mxu0
  %v6345 = vadd.f32 0.0, %v6344
  %v6346 = vpop.f32.mrb[0].mxu0
  %6347 = vmatprep.mubr.f32.mxu0 0.0
  %6348 = vmatmul.mubr.f32.gmra.mrb[0].mxu0 %v920
  %v6349 = vpop.f32.mrb[0].mxu0
  %v6350 = vadd.f32 0.0, %v6349
  %v6351 = vpop.f32.mrb[0].mxu0
  %6352 = vmatprep.mubr.f32.mxu0 0.0
  %6353 = vmatmul.mubr.f32.gmra.mrb[0].mxu0 %v925
  %v6354 = vpop.f32.mrb[0].mxu0
  %v6355 = vadd.f32 0.0, %v6354
  %v6356 = vpop.f32.mrb[0].mxu0
  %6357 = vmatprep.mubr.f32.mxu0 0.0
  %6358 = vmatmul.mubr.f32.gmra.mrb[0].mxu0 %v930
  %v6359 = vpop.f32.mrb[0].mxu0
  %v6360 = vadd.f32 0.0, %v6359
  %v6361 = vpop.f32.mrb[0].mxu0
  %6362 = vdwg.mxu0
  %6363 = vmatprep.subr.mxu0 0.0
  %6364 = vmatpush1.msra.mxu0 %v4836
  %6365 = vmatprep.subr.mxu0 0.0
  %6366 = vmatpush1.msra.mxu0 %v4839
  %6367 = vmatprep.subr.mxu0 0.0
  %6368 = vmatpush1.msra.mxu0 %v4844
  %6369 = vmatprep.subr.mxu0 0.0
  %6370 = vmatpush1.msra.mxu0 %v4847
  %6371 = vmatprep.subr.mxu0 0.0
  %6372 = vmatpush1.msra.mxu0 %v4852
  %6373 = vmatprep.subr.mxu0 0.0
  %6374 = vmatpush1.msra.mxu0 %v4855
  %6375 = vmatprep.subr.mxu0 0.0
  %6376 = vmatpush1.msra.mxu0 %v4860
  %6377 = vmatprep.subr.mxu0 0.0
  %6378 = vmatpush1.msra.mxu0 %v4863
  %6379 = vmatprep.subr.mxu0 0.0
  %6380 = vmatpush1.msra.mxu0 %v4868
  %6381 = vmatprep.subr.mxu0 0.0
  %6382 = vmatpush1.msra.mxu0 %v4871
  %6383 = vmatprep.subr.mxu0 0.0
  %6384 = vmatpush1.msra.mxu0 %v4876
  %6385 = vmatprep.subr.mxu0 0.0
  %6386 = vmatpush1.msra.mxu0 %v4879
  %6387 = vmatprep.subr.mxu0 0.0
  %6388 = vmatpush1.msra.mxu0 %v4884
  %6389 = vmatprep.subr.mxu0 0.0
  %6390 = vmatpush1.msra.mxu0 %v4887
  %6391 = vmatprep.subr.mxu0 0.0
  %6392 = vmatpush1.msra.mxu0 %v4892
  %6393 = vmatprep.subr.mxu0 0.0
  %6394 = vmatpush1.msra.mxu0 %v4895
  %6395 = vmatprep.subr.mxu0 0.0
  %6396 = vmatpush1.msra.mxu0 0.0
  %6397 = vmatprep.subr.mxu0 0.0
  %6398 = vmatpush1.msra.mxu0 0.0
  %6399 = vmatprep.subr.mxu0 0.0
  %6400 = vmatpush1.msra.mxu0 0.0
  %6401 = vmatprep.subr.mxu0 0.0
  %6402 = vmatpush1.msra.mxu0 0.0
  %6403 = vmatprep.subr.mxu0 0.0
  %6404 = vmatpush1.msra.mxu0 0.0
  %6405 = vmatprep.subr.mxu0 0.0
  %6406 = vmatpush1.msra.mxu0 0.0
  %6407 = vmatprep.subr.mxu0 0.0
  %6408 = vmatpush1.msra.mxu0 0.0
  %6409 = vmatprep.subr.mxu0 0.0
  %6410 = vmatpush1.msra.mxu0 0.0
  %6411 = vmatprep.subr.mxu0 0.0
  %6412 = vmatpush1.msra.mxu0 0.0
  %6413 = vmatprep.subr.mxu0 0.0
  %6414 = vmatpush1.msra.mxu0 0.0
  %6415 = vmatprep.subr.mxu0 0.0
  %6416 = vmatpush1.msra.mxu0 0.0
  %6417 = vmatprep.subr.mxu0 0.0
  %6418 = vmatpush1.msra.mxu0 0.0
  %6419 = vmatprep.subr.mxu0 0.0
  %6420 = vmatpush1.msra.mxu0 0.0
  %6421 = vmatprep.subr.mxu0 0.0
  %6422 = vmatpush1.msra.mxu0 0.0
  %6423 = vmatprep.subr.mxu0 0.0
  %6424 = vmatpush1.msra.mxu0 0.0
  %6425 = vmatprep.subr.mxu0 0.0
  %6426 = vmatpush1.msra.mxu0 0.0
  %6427 = vmatprep.mubr.f32.mxu0 0.0
  %6428 = vmatmul.mubr.f32.gmra.mrb[0].mxu0 %v4592
  %v6429 = vpop.f32.mrb[0].mxu0
  %v6430 = vadd.f32 %v5979, %v6429
  %v6431 = vpop.f32.mrb[0].mxu0
  %6432 = vmatprep.mubr.f32.mxu0 0.0
  %6433 = vmatmul.mubr.f32.gmra.mrb[0].mxu0 %v4593
  %v6434 = vpop.f32.mrb[0].mxu0
  %v6435 = vadd.f32 %v5984, %v6434
  %v6436 = vpop.f32.mrb[0].mxu0
  %6437 = vmatprep.mubr.f32.mxu0 0.0
  %6438 = vmatmul.mubr.f32.gmra.mrb[0].mxu0 %v4594
  %v6439 = vpop.f32.mrb[0].mxu0
  %v6440 = vadd.f32 %v5989, %v6439
  %v6441 = vpop.f32.mrb[0].mxu0
  %6442 = vmatprep.mubr.f32.mxu0 0.0
  %6443 = vmatmul.mubr.f32.gmra.mrb[0].mxu0 %v4595
  %v6444 = vpop.f32.mrb[0].mxu0
  %v6445 = vadd.f32 %v5994, %v6444
  %v6446 = vpop.f32.mrb[0].mxu0
  %6447 = vmatprep.mubr.f32.mxu0 0.0
  %6448 = vmatmul.mubr.f32.gmra.mrb[0].mxu0 %v4596
  %v6449 = vpop.f32.mrb[0].mxu0
  %v6450 = vadd.f32 %v5999, %v6449
  %v6451 = vpop.f32.mrb[0].mxu0
  %6452 = vmatprep.mubr.f32.mxu0 0.0
  %6453 = vmatmul.mubr.f32.gmra.mrb[0].mxu0 %v4597
  %v6454 = vpop.f32.mrb[0].mxu0
  %v6455 = vadd.f32 %v6004, %v6454
  %v6456 = vpop.f32.mrb[0].mxu0
  %6457 = vmatprep.mubr.f32.mxu0 0.0
  %6458 = vmatmul.mubr.f32.gmra.mrb[0].mxu0 %v4598
  %v6459 = vpop.f32.mrb[0].mxu0
  %v6460 = vadd.f32 %v6009, %v6459
  %v6461 = vpop.f32.mrb[0].mxu0
  %6462 = vmatprep.mubr.f32.mxu0 0.0
  %6463 = vmatmul.mubr.f32.gmra.mrb[0].mxu0 %v4599
  %v6464 = vpop.f32.mrb[0].mxu0
  %v6465 = vadd.f32 %v6014, %v6464
  %v6466 = vpop.f32.mrb[0].mxu0
  %6467 = vmatprep.mubr.f32.mxu0 0.0
  %6468 = vmatmul.mubr.f32.gmra.mrb[0].mxu0 %v4600
  %v6469 = vpop.f32.mrb[0].mxu0
  %v6470 = vadd.f32 %v6019, %v6469
  %v6471 = vpop.f32.mrb[0].mxu0
  %6472 = vmatprep.mubr.f32.mxu0 0.0
  %6473 = vmatmul.mubr.f32.gmra.mrb[0].mxu0 %v4601
  %v6474 = vpop.f32.mrb[0].mxu0
  %v6475 = vadd.f32 %v6024, %v6474
  %v6476 = vpop.f32.mrb[0].mxu0
  %6477 = vmatprep.mubr.f32.mxu0 0.0
  %6478 = vmatmul.mubr.f32.gmra.mrb[0].mxu0 %v4602
  %v6479 = vpop.f32.mrb[0].mxu0
  %v6480 = vadd.f32 %v6029, %v6479
  %v6481 = vpop.f32.mrb[0].mxu0
  %6482 = vmatprep.mubr.f32.mxu0 0.0
  %6483 = vmatmul.mubr.f32.gmra.mrb[0].mxu0 %v4603
  %v6484 = vpop.f32.mrb[0].mxu0
  %v6485 = vadd.f32 %v6034, %v6484
  %v6486 = vpop.f32.mrb[0].mxu0
  %6487 = vmatprep.mubr.f32.mxu0 0.0
  %6488 = vmatmul.mubr.f32.gmra.mrb[0].mxu0 %v4604
  %v6489 = vpop.f32.mrb[0].mxu0
  %v6490 = vadd.f32 %v6039, %v6489
  %v6491 = vpop.f32.mrb[0].mxu0
  %6492 = vmatprep.mubr.f32.mxu0 0.0
  %6493 = vmatmul.mubr.f32.gmra.mrb[0].mxu0 %v4605
  %v6494 = vpop.f32.mrb[0].mxu0
  %v6495 = vadd.f32 %v6044, %v6494
  %v6496 = vpop.f32.mrb[0].mxu0
  %6497 = vmatprep.mubr.f32.mxu0 0.0
  %6498 = vmatmul.mubr.f32.gmra.mrb[0].mxu0 %v4606
  %v6499 = vpop.f32.mrb[0].mxu0
  %v6500 = vadd.f32 %v6049, %v6499
  %v6501 = vpop.f32.mrb[0].mxu0
  %6502 = vmatprep.mubr.f32.mxu0 0.0
  %6503 = vmatmul.mubr.f32.gmra.mrb[0].mxu0 %v4607
  %v6504 = vpop.f32.mrb[0].mxu0
  %v6505 = vadd.f32 %v6054, %v6504
  %v6506 = vpop.f32.mrb[0].mxu0
  %6507 = vdwg.mxu0
  %v6508 = vadd.f32 %v6430, %v6285
  %v6509 = vadd.f32 %v6435, %v6290
  %v6510 = vadd.f32 %v6440, %v6295
  %v6511 = vadd.f32 %v6445, %v6300
  %v6512 = vadd.f32 %v6450, %v6305
  %v6513 = vadd.f32 %v6455, %v6310
  %v6514 = vadd.f32 %v6460, %v6315
  %v6515 = vadd.f32 %v6465, %v6320
  %v6516 = vadd.f32 %v6470, %v6325
  %v6517 = vadd.f32 %v6475, %v6330
  %v6518 = vadd.f32 %v6480, %v6335
  %v6519 = vadd.f32 %v6485, %v6340
  %v6520 = vadd.f32 %v6490, %v6345
  %v6521 = vadd.f32 %v6495, %v6350
  %v6522 = vadd.f32 %v6500, %v6355
  %v6523 = vadd.f32 %v6505, %v6360
  %v6524 = vld [vmem:[%s11] sm:$0xff]
  %v6525 = vld [vmem:[%s11 + $0x8] sm:$0xff]
  %v6526 = vld [vmem:[%s11 + $0x10] sm:$0xff]
  %v6527 = vld [vmem:[%s11 + $0x18] sm:$0xff]
  %v6528 = vld [vmem:[%s11 + $0x20] sm:$0xff]
  %v6529 = vld [vmem:[%s11 + $0x28] sm:$0xff]
  %v6530 = vld [vmem:[%s11 + $0x30] sm:$0xff]
  %v6531 = vld [vmem:[%s11 + $0x38] sm:$0xff]
  %v6532 = vld [vmem:[%s11 + $0x40] sm:$0xff]
  %v6533 = vld [vmem:[%s11 + $0x48] sm:$0xff]
  %v6534 = vld [vmem:[%s11 + $0x50] sm:$0xff]
  %v6535 = vld [vmem:[%s11 + $0x58] sm:$0xff]
  %v6536 = vld [vmem:[%s11 + $0x60] sm:$0xff]
  %v6537 = vld [vmem:[%s11 + $0x68] sm:$0xff]
  %v6538 = vld [vmem:[%s11 + $0x70] sm:$0xff]
  %v6539 = vld [vmem:[%s11 + $0x78] sm:$0xff]
  %v6540 = vld [vmem:[%s12] sm:$0x1]
  %v6542 = vlaneseq
  %v6543 = vshrl.u32 %v6542, 7
  %v6544 = vsub.s32 0, %v6543
  %v6545 = vrot.slane %v6540, %v6544
  %6547 = vmatprep.subr.mxu0 0.0
  %6548 = vmatpush1.msra.mxu0 %v6524
  %6549 = vmatprep.subr.mxu0 0.0
  %6550 = vmatpush1.msra.mxu0 %v6525
  %6551 = vmatprep.subr.mxu0 0.0
  %6552 = vmatpush1.msra.mxu0 %v6526
  %6553 = vmatprep.subr.mxu0 0.0
  %6554 = vmatpush1.msra.mxu0 %v6527
  %6555 = vmatprep.subr.mxu0 0.0
  %6556 = vmatpush1.msra.mxu0 %v6528
  %6557 = vmatprep.subr.mxu0 0.0
  %6558 = vmatpush1.msra.mxu0 %v6529
  %6559 = vmatprep.subr.mxu0 0.0
  %6560 = vmatpush1.msra.mxu0 %v6530
  %6561 = vmatprep.subr.mxu0 0.0
  %6562 = vmatpush1.msra.mxu0 %v6531
  %6563 = vmatprep.subr.mxu0 0.0
  %6564 = vmatpush1.msra.mxu0 %v6532
  %6565 = vmatprep.subr.mxu0 0.0
  %6566 = vmatpush1.msra.mxu0 %v6533
  %6567 = vmatprep.subr.mxu0 0.0
  %6568 = vmatpush1.msra.mxu0 %v6534
  %6569 = vmatprep.subr.mxu0 0.0
  %6570 = vmatpush1.msra.mxu0 %v6535
  %6571 = vmatprep.subr.mxu0 0.0
  %6572 = vmatpush1.msra.mxu0 %v6536
  %6573 = vmatprep.subr.mxu0 0.0
  %6574 = vmatpush1.msra.mxu0 %v6537
  %6575 = vmatprep.subr.mxu0 0.0
  %6576 = vmatpush1.msra.mxu0 %v6538
  %6577 = vmatprep.subr.mxu0 0.0
  %6578 = vmatpush1.msra.mxu0 %v6539
  %6579 = vmatprep.subr.mxu0 0.0
  %6580 = vmatpush1.msra.mxu0 0.0
  %6581 = vmatprep.subr.mxu0 0.0
  %6582 = vmatpush1.msra.mxu0 0.0
  %6583 = vmatprep.subr.mxu0 0.0
  %6584 = vmatpush1.msra.mxu0 0.0
  %6585 = vmatprep.subr.mxu0 0.0
  %6586 = vmatpush1.msra.mxu0 0.0
  %6587 = vmatprep.subr.mxu0 0.0
  %6588 = vmatpush1.msra.mxu0 0.0
  %6589 = vmatprep.subr.mxu0 0.0
  %6590 = vmatpush1.msra.mxu0 0.0
  %6591 = vmatprep.subr.mxu0 0.0
  %6592 = vmatpush1.msra.mxu0 0.0
  %6593 = vmatprep.subr.mxu0 0.0
  %6594 = vmatpush1.msra.mxu0 0.0
  %6595 = vmatprep.subr.mxu0 0.0
  %6596 = vmatpush1.msra.mxu0 0.0
  %6597 = vmatprep.subr.mxu0 0.0
  %6598 = vmatpush1.msra.mxu0 0.0
  %6599 = vmatprep.subr.mxu0 0.0
  %6600 = vmatpush1.msra.mxu0 0.0
  %6601 = vmatprep.subr.mxu0 0.0
  %6602 = vmatpush1.msra.mxu0 0.0
  %6603 = vmatprep.subr.mxu0 0.0
  %6604 = vmatpush1.msra.mxu0 0.0
  %6605 = vmatprep.subr.mxu0 0.0
  %6606 = vmatpush1.msra.mxu0 0.0
  %6607 = vmatprep.subr.mxu0 0.0
  %6608 = vmatpush1.msra.mxu0 0.0
  %6609 = vmatprep.subr.mxu0 0.0
  %6610 = vmatpush1.msra.mxu0 0.0
  %6611 = vmatprep.mubr.f32.mxu0 0.0
  %6612 = vmatmul.mubr.f32.gmra.mrb[0].mxu0 %v6508
  %v6613 = vpop.f32.mrb[0].mxu0
  %v6614 = vadd.f32 %v6545, %v6613
  %v6615 = vpop.f32.mrb[0].mxu0
  %6616 = vmatprep.mubr.f32.mxu0 0.0
  %6617 = vmatmul.mubr.f32.gmra.mrb[0].mxu0 %v6509
  %v6618 = vpop.f32.mrb[0].mxu0
  %v6619 = vadd.f32 %v6545, %v6618
  %v6620 = vpop.f32.mrb[0].mxu0
  %6621 = vmatprep.mubr.f32.mxu0 0.0
  %6622 = vmatmul.mubr.f32.gmra.mrb[0].mxu0 %v6510
  %v6623 = vpop.f32.mrb[0].mxu0
  %v6624 = vadd.f32 %v6545, %v6623
  %v6625 = vpop.f32.mrb[0].mxu0
  %6626 = vmatprep.mubr.f32.mxu0 0.0
  %6627 = vmatmul.mubr.f32.gmra.mrb[0].mxu0 %v6511
  %v6628 = vpop.f32.mrb[0].mxu0
  %v6629 = vadd.f32 %v6545, %v6628
  %v6630 = vpop.f32.mrb[0].mxu0
  %6631 = vmatprep.mubr.f32.mxu0 0.0
  %6632 = vmatmul.mubr.f32.gmra.mrb[0].mxu0 %v6512
  %v6633 = vpop.f32.mrb[0].mxu0
  %v6634 = vadd.f32 %v6545, %v6633
  %v6635 = vpop.f32.mrb[0].mxu0
  %6636 = vmatprep.mubr.f32.mxu0 0.0
  %6637 = vmatmul.mubr.f32.gmra.mrb[0].mxu0 %v6513
  %v6638 = vpop.f32.mrb[0].mxu0
  %v6639 = vadd.f32 %v6545, %v6638
  %v6640 = vpop.f32.mrb[0].mxu0
  %6641 = vmatprep.mubr.f32.mxu0 0.0
  %6642 = vmatmul.mubr.f32.gmra.mrb[0].mxu0 %v6514
  %v6643 = vpop.f32.mrb[0].mxu0
  %v6644 = vadd.f32 %v6545, %v6643
  %v6645 = vpop.f32.mrb[0].mxu0
  %6646 = vmatprep.mubr.f32.mxu0 0.0
  %6647 = vmatmul.mubr.f32.gmra.mrb[0].mxu0 %v6515
  %v6648 = vpop.f32.mrb[0].mxu0
  %v6649 = vadd.f32 %v6545, %v6648
  %v6650 = vpop.f32.mrb[0].mxu0
  %6651 = vmatprep.mubr.f32.mxu0 0.0
  %6652 = vmatmul.mubr.f32.gmra.mrb[0].mxu0 %v6516
  %v6653 = vpop.f32.mrb[0].mxu0
  %v6654 = vadd.f32 %v6545, %v6653
  %v6655 = vpop.f32.mrb[0].mxu0
  %6656 = vmatprep.mubr.f32.mxu0 0.0
  %6657 = vmatmul.mubr.f32.gmra.mrb[0].mxu0 %v6517
  %v6658 = vpop.f32.mrb[0].mxu0
  %v6659 = vadd.f32 %v6545, %v6658
  %v6660 = vpop.f32.mrb[0].mxu0
  %6661 = vmatprep.mubr.f32.mxu0 0.0
  %6662 = vmatmul.mubr.f32.gmra.mrb[0].mxu0 %v6518
  %v6663 = vpop.f32.mrb[0].mxu0
  %v6664 = vadd.f32 %v6545, %v6663
  %v6665 = vpop.f32.mrb[0].mxu0
  %6666 = vmatprep.mubr.f32.mxu0 0.0
  %6667 = vmatmul.mubr.f32.gmra.mrb[0].mxu0 %v6519
  %v6668 = vpop.f32.mrb[0].mxu0
  %v6669 = vadd.f32 %v6545, %v6668
  %v6670 = vpop.f32.mrb[0].mxu0
  %6671 = vmatprep.mubr.f32.mxu0 0.0
  %6672 = vmatmul.mubr.f32.gmra.mrb[0].mxu0 %v6520
  %v6673 = vpop.f32.mrb[0].mxu0
  %v6674 = vadd.f32 %v6545, %v6673
  %v6675 = vpop.f32.mrb[0].mxu0
  %6676 = vmatprep.mubr.f32.mxu0 0.0
  %6677 = vmatmul.mubr.f32.gmra.mrb[0].mxu0 %v6521
  %v6678 = vpop.f32.mrb[0].mxu0
  %v6679 = vadd.f32 %v6545, %v6678
  %v6680 = vpop.f32.mrb[0].mxu0
  %6681 = vmatprep.mubr.f32.mxu0 0.0
  %6682 = vmatmul.mubr.f32.gmra.mrb[0].mxu0 %v6522
  %v6683 = vpop.f32.mrb[0].mxu0
  %v6684 = vadd.f32 %v6545, %v6683
  %v6685 = vpop.f32.mrb[0].mxu0
  %6686 = vmatprep.mubr.f32.mxu0 0.0
  %6687 = vmatmul.mubr.f32.gmra.mrb[0].mxu0 %v6523
  %v6688 = vpop.f32.mrb[0].mxu0
  %v6689 = vadd.f32 %v6545, %v6688
  %v6690 = vpop.f32.mrb[0].mxu0
  %6691 = vdwg.mxu0
  %v6692 = vxor.u32 %v6614, 2147483648
  %v6693 = vxor.u32 %v6619, 2147483648
  %v6694 = vxor.u32 %v6624, 2147483648
  %v6695 = vxor.u32 %v6629, 2147483648
  %v6696 = vxor.u32 %v6634, 2147483648
  %v6697 = vxor.u32 %v6639, 2147483648
  %v6698 = vxor.u32 %v6644, 2147483648
  %v6699 = vxor.u32 %v6649, 2147483648
  %v6700 = vxor.u32 %v6654, 2147483648
  %v6701 = vxor.u32 %v6659, 2147483648
  %v6702 = vxor.u32 %v6664, 2147483648
  %v6703 = vxor.u32 %v6669, 2147483648
  %v6704 = vxor.u32 %v6674, 2147483648
  %v6705 = vxor.u32 %v6679, 2147483648
  %v6706 = vxor.u32 %v6684, 2147483648
  %v6707 = vxor.u32 %v6689, 2147483648
  %v6708 = vmul.f32 %v6692, 1.442695
  %v6709 = vpow.pop %v6708
  %v6710 = vmul.f32 %v6693, 1.442695
  %v6711 = vpow.pop %v6710
  %v6712 = vmul.f32 %v6694, 1.442695
  %v6713 = vpow.pop %v6712
  %v6714 = vmul.f32 %v6695, 1.442695
  %v6715 = vpow.pop %v6714
  %v6716 = vmul.f32 %v6696, 1.442695
  %v6717 = vpow.pop %v6716
  %v6718 = vmul.f32 %v6697, 1.442695
  %v6719 = vpow.pop %v6718
  %v6720 = vmul.f32 %v6698, 1.442695
  %v6721 = vpow.pop %v6720
  %v6722 = vmul.f32 %v6699, 1.442695
  %v6723 = vpow.pop %v6722
  %v6724 = vmul.f32 %v6700, 1.442695
  %v6725 = vpow.pop %v6724
  %v6726 = vmul.f32 %v6701, 1.442695
  %v6727 = vpow.pop %v6726
  %v6728 = vmul.f32 %v6702, 1.442695
  %v6729 = vpow.pop %v6728
  %v6730 = vmul.f32 %v6703, 1.442695
  %v6731 = vpow.pop %v6730
  %v6732 = vmul.f32 %v6704, 1.442695
  %v6733 = vpow.pop %v6732
  %v6734 = vmul.f32 %v6705, 1.442695
  %v6735 = vpow.pop %v6734
  %v6736 = vmul.f32 %v6706, 1.442695
  %v6737 = vpow.pop %v6736
  %v6738 = vmul.f32 %v6707, 1.442695
  %v6739 = vpow.pop %v6738
  %v6740 = vadd.f32 %v6709, 1.0
  %v6741 = vadd.f32 %v6711, 1.0
  %v6742 = vadd.f32 %v6713, 1.0
  %v6743 = vadd.f32 %v6715, 1.0
  %v6744 = vadd.f32 %v6717, 1.0
  %v6745 = vadd.f32 %v6719, 1.0
  %v6746 = vadd.f32 %v6721, 1.0
  %v6747 = vadd.f32 %v6723, 1.0
  %v6748 = vadd.f32 %v6725, 1.0
  %v6749 = vadd.f32 %v6727, 1.0
  %v6750 = vadd.f32 %v6729, 1.0
  %v6751 = vadd.f32 %v6731, 1.0
  %v6752 = vadd.f32 %v6733, 1.0
  %v6753 = vadd.f32 %v6735, 1.0
  %v6754 = vadd.f32 %v6737, 1.0
  %v6755 = vadd.f32 %v6739, 1.0
  %v6756 = vrcp.pop %v6740
  %v6757 = vmul.f32 1.0, %v6756
  %v6758 = vrcp.pop %v6741
  %v6759 = vmul.f32 1.0, %v6758
  %v6760 = vrcp.pop %v6742
  %v6761 = vmul.f32 1.0, %v6760
  %v6762 = vrcp.pop %v6743
  %v6763 = vmul.f32 1.0, %v6762
  %v6764 = vrcp.pop %v6744
  %v6765 = vmul.f32 1.0, %v6764
  %v6766 = vrcp.pop %v6745
  %v6767 = vmul.f32 1.0, %v6766
  %v6768 = vrcp.pop %v6746
  %v6769 = vmul.f32 1.0, %v6768
  %v6770 = vrcp.pop %v6747
  %v6771 = vmul.f32 1.0, %v6770
  %v6772 = vrcp.pop %v6748
  %v6773 = vmul.f32 1.0, %v6772
  %v6774 = vrcp.pop %v6749
  %v6775 = vmul.f32 1.0, %v6774
  %v6776 = vrcp.pop %v6750
  %v6777 = vmul.f32 1.0, %v6776
  %v6778 = vrcp.pop %v6751
  %v6779 = vmul.f32 1.0, %v6778
  %v6780 = vrcp.pop %v6752
  %v6781 = vmul.f32 1.0, %v6780
  %v6782 = vrcp.pop %v6753
  %v6783 = vmul.f32 1.0, %v6782
  %v6784 = vrcp.pop %v6754
  %v6785 = vmul.f32 1.0, %v6784
  %v6786 = vrcp.pop %v6755
  %v6787 = vmul.f32 1.0, %v6786
  %6788 = vst [vmem:[%s13] sm:$0xff] %v6757
  %6789 = vst [vmem:[%s13 + $0x8] sm:$0xff] %v6759
  %6790 = vst [vmem:[%s13 + $0x10] sm:$0xff] %v6761
  %6791 = vst [vmem:[%s13 + $0x18] sm:$0xff] %v6763
  %6792 = vst [vmem:[%s13 + $0x20] sm:$0xff] %v6765
  %6793 = vst [vmem:[%s13 + $0x28] sm:$0xff] %v6767
  %6794 = vst [vmem:[%s13 + $0x30] sm:$0xff] %v6769
  %6795 = vst [vmem:[%s13 + $0x38] sm:$0xff] %v6771
  %6796 = vst [vmem:[%s13 + $0x40] sm:$0xff] %v6773
  %6797 = vst [vmem:[%s13 + $0x48] sm:$0xff] %v6775
  %6798 = vst [vmem:[%s13 + $0x50] sm:$0xff] %v6777
  %6799 = vst [vmem:[%s13 + $0x58] sm:$0xff] %v6779
  %6800 = vst [vmem:[%s13 + $0x60] sm:$0xff] %v6781
  %6801 = vst [vmem:[%s13 + $0x68] sm:$0xff] %v6783
  %6802 = vst [vmem:[%s13 + $0x70] sm:$0xff] %v6785
  %6803 = vst [vmem:[%s13 + $0x78] sm:$0xff] %v6787
  // Predicated region
  $region54: #{san_model_forward.1} parent=0 // pred_check
    _
  $region55: #{san_model_forward.1} parent=0 // pred_check_branch
    %6805 = sbr.rel (0) target = $region57
  $region56: #{san_model_forward.1} parent=0 // pred_region
    _
  $region57: #{san_model_forward.1} parent=0 // pred_fallthru
    _
  // Predicated region
  $region58: #{san_model_forward.1} parent=0 // pred_check
    _
  $region59: #{san_model_forward.1} parent=0 // pred_check_branch
    %6807 = sbr.rel (0) target = $region61
  $region60: #{san_model_forward.1} parent=0 // pred_region
    _
  $region61: #{san_model_forward.1} parent=0 // pred_fallthru
    _

</llo_original>
